<compile_context>
chip_gen: v7x
topology: tpu7x:2x2x1
jax: 0.10.0
libtpu: 0.0.40
codegen_flags: <defaults>
</compile_context>

<pallas_src>
import functools

import jax
import jax.numpy as jnp
from jax.experimental import pallas as pl
from jax.experimental.pallas import tpu as pltpu

_MIB = 1024 * 1024


# ---------------------------------------------------------------------------
# Pallas kernel: fused (1x1 conv -> folded BN -> ReLU) x3  +  max over a tile
# of the K neighbours, accumulated into the resident output block.
# Grid = (group tiles ["parallel"], K tiles ["arbitrary", innermost]).
# ---------------------------------------------------------------------------
def _sa_mlp_kernel(*refs, has_pts):
    if has_pts:
        (x_xyz_ref, x_pts_ref, w1x_ref, w1p_ref, b1_ref,
         w2_ref, b2_ref, w3_ref, b3_ref, o_ref) = refs
    else:
        (x_xyz_ref, w1x_ref, b1_ref,
         w2_ref, b2_ref, w3_ref, b3_ref, o_ref) = refs

    k = pl.program_id(1)
    tg, tk = x_xyz_ref.shape[0], x_xyz_ref.shape[1]
    rows = tg * tk

    # Layer 1 / xyz (Cin=3): three VPU broadcast mul-adds instead of an MXU dot
    # (a 3-deep f32 contraction wastes the MXU and forces multi-pass lowering).
    x = x_xyz_ref[...].reshape(rows, 3)
    h = (x[:, 0:1] * w1x_ref[0:1, :]
         + x[:, 1:2] * w1x_ref[1:2, :]
         + x[:, 2:3] * w1x_ref[2:3, :])

    # Layer 1 / point features (lane-aligned 128 ch): bf16 MXU, f32 accumulate.
    if has_pts:
        xp = x_pts_ref[...].reshape(rows, x_pts_ref.shape[2])
        h = h + jnp.dot(xp, w1p_ref[...], preferred_element_type=jnp.float32)
    h = jnp.maximum(h + b1_ref[...], 0.0)

    # Layers 2-3: bf16 MXU matmuls with f32 accumulation; bias/ReLU kept in f32
    # so the same code path runs on v5e (no bf16 VPU).
    h = jnp.maximum(
        jnp.dot(h.astype(jnp.bfloat16), w2_ref[...],
                preferred_element_type=jnp.float32) + b2_ref[...], 0.0)
    h = jnp.maximum(
        jnp.dot(h.astype(jnp.bfloat16), w3_ref[...],
                preferred_element_type=jnp.float32) + b3_ref[...], 0.0)

    # Max over this K tile, folded into the resident output accumulator.
    blk_max = jnp.max(h.reshape(tg, tk, h.shape[-1]), axis=1)      # (tg, C3p)

    @pl.when(k == 0)
    def _():
        o_ref[...] = jnp.full_like(o_ref, -jnp.inf)

    o_ref[...] = jnp.maximum(o_ref[...], blk_max)


# ---------------------------------------------------------------------------
# Tile-size selection (per-generation VMEM budget, megacore friendly)
# ---------------------------------------------------------------------------
def _round_up(x, m):
    return (x + m - 1) // m * m


def _vmem_budget_and_limit():
    """Per-generation VMEM budget / scoped limit (bytes)."""
    try:
        cap = pltpu.get_tpu_info().vmem_capacity_bytes
    except Exception:                              # non-TPU trace / older jax
        cap = None
    if cap is not None and cap >= 100 * _MIB:      # v5e / v6e: 128 MiB VMEM
        return 48 * _MIB, 96 * _MIB
    return 20 * _MIB, 48 * _MIB                    # v7x (64 MiB/TC) + fallback


def _estimate_vmem_bytes(tg, tk, has_pts, c1, c2, c3p):
    """Rough per-step VMEM footprint: double-buffered I/O + f32 intermediates."""
    rows = tg * tk
    b = 2 * rows * 128 * 4                 # xyz tile (3 ch lane-padded), x2 bufs
    if has_pts:
        b += 2 * rows * 128 * 2            # point-feature tile (bf16), x2 bufs
    b += 2 * tg * c3p * 4                  # resident output accumulator block
    b += rows * (c1 + c2 + c3p) * 4        # f32 layer intermediates (incl. pre-max)
    b += rows * max(c1, c2, 128) * 2       # bf16 casts feeding the MXU
    b += 1 * _MIB                          # constants + slack
    return b


def _choose_tiles(num_groups, K, has_pts, c1, c2, c3p, budget):
    """Largest group tile under the VMEM budget; prefer an even (>=2) step count
    on the parallel axis so v7x's two TensorCores get balanced work."""
    tk = next((t for t in (16, 8) if K % t == 0), K)
    ng8 = _round_up(max(num_groups, 1), 8)
    cands = [t for t in (512, 256, 128, 64, 32, 16, 8) if t <= ng8] or [8]
    best = None
    for t in cands:
        if _estimate_vmem_bytes(t, tk, has_pts, c1, c2, c3p) > budget:
            continue
        steps = -(-ng8 // t)
        if steps >= 2 and steps % 2 == 0:
            return t, tk
        if best is None:
            best = t                       # fits, but odd / single-step grid
    return (best if best is not None else 8), tk


def sa_mlp_groupmax(x_xyz, x_pts, ws, bs):
    """x_xyz: [ng, K, 3]; x_pts: [ng, K, Cp] or None -> [ng, Cout] via Pallas."""
    ng, K, _ = x_xyz.shape
    w1, w2, w3 = ws
    b1, b2, b3 = bs
    c1, c2, c3 = w1.shape[-1], w2.shape[-1], w3.shape[-1]
    c3p = _round_up(c3, 128)               # lane-dense (unmasked) output stores
    has_pts = x_pts is not None

    # Pad the final-layer weights/bias so the output is a multiple of 128 lanes.
    if c3p != c3:
        w3 = jnp.pad(w3, ((0, 0), (0, c3p - c3)))
        b3 = jnp.pad(b3, ((0, 0), (0, c3p - c3)))

    # Split layer-1 weight into xyz (3 ch, f32/VPU) / points (Cp ch, bf16/MXU).
    if has_pts:
        cp = x_pts.shape[-1]
        assert w1.shape[0] == 3 + cp
        w1x = w1[:3, :].astype(jnp.float32)
        w1p = w1[3:, :].astype(jnp.bfloat16)
    else:
        w1x = w1.astype(jnp.float32)
        w1p = None

    budget, limit = _vmem_budget_and_limit()
    tg, tk = _choose_tiles(ng, K, has_pts, c1, c2, c3p, budget)
    ng_pad = _round_up(_round_up(ng, 8), tg)

    # Pad whole groups only (sliced off afterwards) -> padded rows can never
    # pollute a real group's max.  K is never padded (tk divides K exactly).
    x_xyz = x_xyz.astype(jnp.float32)
    if ng_pad != ng:
        x_xyz = jnp.pad(x_xyz, ((0, ng_pad - ng), (0, 0), (0, 0)))
    if has_pts:
        x_pts = x_pts.astype(jnp.bfloat16)
        if ng_pad != ng:
            x_pts = jnp.pad(x_pts, ((0, ng_pad - ng), (0, 0), (0, 0)))

    b1 = b1.astype(jnp.float32)
    b2 = b2.astype(jnp.float32)
    b3 = b3.astype(jnp.float32)
    w2 = w2.astype(jnp.bfloat16)
    w3 = w3.astype(jnp.bfloat16)

    # TODO(synk): the constant operands below are double-buffered by default;
    # pipeline_mode=pl.Buffered(1) would reclaim ~0.2 MiB VMEM once its lowering
    # support is confirmed on all target generations.
    const = lambda a: pl.BlockSpec(a.shape, lambda i, k: (0, 0))
    in_arrays = [x_xyz]
    in_specs = [pl.BlockSpec((tg, tk, 3), lambda i, k: (i, k, 0))]
    if has_pts:
        in_arrays.append(x_pts)
        in_specs.append(pl.BlockSpec((tg, tk, x_pts.shape[-1]),
                                     lambda i, k: (i, k, 0)))
    in_arrays.append(w1x)
    in_specs.append(const(w1x))
    if has_pts:
        in_arrays.append(w1p)
        in_specs.append(const(w1p))
    in_arrays += [b1, w2, b2, w3, b3]
    in_specs += [const(b1), const(w2), const(b2), const(w3), const(b3)]

    out = pl.pallas_call(
        functools.partial(_sa_mlp_kernel, has_pts=has_pts),
        out_shape=jax.ShapeDtypeStruct((ng_pad, c3p), jnp.float32),
        grid=(ng_pad // tg, K // tk),
        in_specs=in_specs,
        out_specs=pl.BlockSpec((tg, c3p), lambda i, k: (i, 0)),
        compiler_params=pltpu.CompilerParams(
            dimension_semantics=("parallel", "arbitrary"),
            vmem_limit_bytes=limit),
    )(*in_arrays)
    return out[:ng, :c3]


# ---------------------------------------------------------------------------
# Plain-JAX glue: farthest point sampling, ball query, gathers
# ---------------------------------------------------------------------------
def index_points(points, idx):
    # points: [B, N, C], idx: [B, ...] -> [B, ..., C]
    return jax.vmap(lambda p, i: p[i])(points, idx)


def farthest_point_sample(xyz, npoint):
    # xyz: [B, N, 3] -> idx [B, npoint]; deterministic start at index 0
    B, N, _ = xyz.shape

    def body(i, state):
        centroids, dist, farthest = state
        centroids = centroids.at[:, i].set(farthest)
        centroid = jax.vmap(lambda p, f: p[f])(xyz, farthest)[:, None, :]  # [B,1,3]
        d = jnp.sum((xyz - centroid) ** 2, axis=-1)                        # [B,N]
        dist = jnp.minimum(dist, d)
        farthest = jnp.argmax(dist, axis=-1).astype(jnp.int32)
        return centroids, dist, farthest

    centroids = jnp.zeros((B, npoint), dtype=jnp.int32)
    dist = jnp.full((B, N), 1e10, dtype=jnp.float32)
    farthest = jnp.zeros((B,), dtype=jnp.int32)
    centroids, _, _ = jax.lax.fori_loop(0, npoint, body, (centroids, dist, farthest))
    return centroids


def query_ball_point(radius, nsample, xyz, new_xyz):
    # Partial selection (top_k) instead of a full sort over N.
    # TODO(synk): pytorch3d.ball_query pads deficient balls with -1/zeros; here
    # deficient balls duplicate the first in-radius neighbour (classic
    # PointNet++) and fully-empty balls fall back to index 0 (no OOB gather).
    B, N, _ = xyz.shape
    sqrdists = jnp.sum((new_xyz[:, :, None, :] - xyz[:, None, :, :]) ** 2, axis=-1)
    neg_idx = jnp.where(sqrdists > radius ** 2,
                        -N,
                        -jnp.arange(N, dtype=jnp.int32))
    vals, _ = jax.lax.top_k(neg_idx, nsample)        # largest => smallest indices
    group_idx = -vals                                # ascending; invalid -> N
    group_first = group_idx[:, :, :1]
    group_first = jnp.where(group_first >= N, 0, group_first)
    group_idx = jnp.where(group_idx >= N, group_first, group_idx)
    return group_idx


# ---------------------------------------------------------------------------
# Set abstraction layer + encoder
# ---------------------------------------------------------------------------
def set_abstraction(xyz_cf, points_cf, *, npoint, radius, nsample, ws, bs):
    # xyz_cf: [B, 3, N] (torch channel-first); points_cf: [B, D, N] or None
    xyz = jnp.transpose(xyz_cf, (0, 2, 1))
    points = None if points_cf is None else jnp.transpose(points_cf, (0, 2, 1))

    fps_idx = farthest_point_sample(xyz, npoint)
    new_xyz = index_points(xyz, fps_idx)                          # [B, S, 3]
    idx = query_ball_point(radius, nsample, xyz, new_xyz)         # [B, S, K]
    grouped_xyz = index_points(xyz, idx)                          # [B, S, K, 3]
    grouped_xyz_norm = grouped_xyz - new_xyz[:, :, None, :]

    B, S, K, _ = grouped_xyz_norm.shape
    x_xyz = grouped_xyz_norm.reshape(B * S, K, 3)
    if points is not None:
        # TODO(synk): gather grouped features inside the Pallas kernel
        # (scalar-prefetch idx + per-row DMA from points kept in pl.ANY) to
        # avoid materializing this B*S*K*D tensor in HBM.
        grouped_points = index_points(points, idx)                # [B, S, K, D]
        x_pts = grouped_points.reshape(B * S, K, -1)
    else:
        x_pts = None

    feat = sa_mlp_groupmax(x_xyz, x_pts, tuple(ws), tuple(bs))    # [B*S, Cout]
    feat = feat.reshape(B, S, -1)
    return jnp.transpose(new_xyz, (0, 2, 1)), jnp.transpose(feat, (0, 2, 1))


def pointnet2_dense_encoder(xyz, params, *, npoint1, npoint2):
    # xyz: [B, 3, N]  (in_channels=3 -> norm is None, matching the torch module)
    assert xyz.shape[1] == 3
    l1_xyz, l1_points = set_abstraction(
        xyz, None, npoint=npoint1, radius=0.04, nsample=32,
        ws=params["sa1_w"], bs=params["sa1_b"])
    l2_xyz, l2_points = set_abstraction(
        l1_xyz, l1_points, npoint=npoint2, radius=0.08, nsample=64,
        ws=params["sa2_w"], bs=params["sa2_b"])
    return l2_xyz, l2_points


# ---------------------------------------------------------------------------
# Deterministic parameter init (conv 1x1 + folded eval-mode BatchNorm)
# ---------------------------------------------------------------------------
def init_sa_params(key, in_channel, mlp):
    # TODO(synk): train-mode BatchNorm batch statistics are not reproduced;
    # eval-mode BN (running_mean=0, running_var=1) is folded into W/b.
    ws, bs = [], []
    last = in_channel
    eps = 1e-5
    for out_c in mlp:
        key, k1, k2, k3, k4 = jax.random.split(key, 5)
        w = jax.random.normal(k1, (last, out_c), jnp.float32) / jnp.sqrt(float(last))
        b = 0.01 * jax.random.normal(k2, (out_c,), jnp.float32)
        gamma = 1.0 + 0.1 * jax.random.normal(k3, (out_c,), jnp.float32)
        beta = 0.1 * jax.random.normal(k4, (out_c,), jnp.float32)
        run_mean = jnp.zeros((out_c,), jnp.float32)
        run_var = jnp.ones((out_c,), jnp.float32)
        s = gamma / jnp.sqrt(run_var + eps)
        t = beta - run_mean * s
        ws.append(w * s[None, :])
        bs.append((b * s + t).reshape(1, out_c))
        last = out_c
    return ws, bs, key


if __name__ == "__main__":
    key = jax.random.PRNGKey(0)
    B, N = 2, 128
    npoint1, npoint2 = 64, 16     # small shapes; nsample1=32, nsample2=64 as in module

    key, kx = jax.random.split(key)
    xyz = jax.random.uniform(kx, (B, 3, N), jnp.float32)

    sa1_w, sa1_b, key = init_sa_params(key, 3, [64, 64, 128])
    sa2_w, sa2_b, key = init_sa_params(key, 128 + 3, [128, 128, 288])
    params = dict(sa1_w=sa1_w, sa1_b=sa1_b, sa2_w=sa2_w, sa2_b=sa2_b)

    fwd = jax.jit(functools.partial(pointnet2_dense_encoder,
                                    npoint1=npoint1, npoint2=npoint2))
    l2_xyz, l2_points = fwd(xyz, params)
    jax.block_until_ready((l2_xyz, l2_points))

    assert l2_xyz.shape == (B, 3, npoint2)
    assert l2_points.shape == (B, 288, npoint2)
    assert bool(jnp.all(jnp.isfinite(l2_points)))
    print("KERNEL_OK")
</pallas_src>

<mosaic_0001>
module attributes {stable_mosaic.version = 11 : i64} {
  func.func @_sa_mlp_kernel(%arg0: i32, %arg1: i32, %arg2: memref<64x16x3xf32, #tpu.memory_space<vmem>>, %arg3: memref<3x64xf32, #tpu.memory_space<vmem>>, %arg4: memref<1x64xf32, #tpu.memory_space<vmem>>, %arg5: memref<64x64xbf16, #tpu.memory_space<vmem>>, %arg6: memref<1x64xf32, #tpu.memory_space<vmem>>, %arg7: memref<64x128xbf16, #tpu.memory_space<vmem>>, %arg8: memref<1x128xf32, #tpu.memory_space<vmem>>, %arg9: memref<64x128xf32, #tpu.memory_space<vmem>>) attributes {dimension_semantics = [#tpu.dimension_semantics<parallel>, #tpu.dimension_semantics<arbitrary>], iteration_bounds = array<i64: 2, 2>, scalar_prefetch = 0 : i64, scratch_operands = 0 : i64, tpu.core_type = #tpu.core_type<tc>, window_params = [{transform_indices = @transform_0, window_bounds = array<i64: 64, 16, 3>}, {pipeline_mode = #tpu.pipeline_mode<synchronous>, transform_indices = @transform_1, window_bounds = array<i64: 3, 64>}, {pipeline_mode = #tpu.pipeline_mode<synchronous>, transform_indices = @transform_2, window_bounds = array<i64: 1, 64>}, {pipeline_mode = #tpu.pipeline_mode<synchronous>, transform_indices = @transform_3, window_bounds = array<i64: 64, 64>}, {pipeline_mode = #tpu.pipeline_mode<synchronous>, transform_indices = @transform_4, window_bounds = array<i64: 1, 64>}, {pipeline_mode = #tpu.pipeline_mode<synchronous>, transform_indices = @transform_5, window_bounds = array<i64: 64, 128>}, {pipeline_mode = #tpu.pipeline_mode<synchronous>, transform_indices = @transform_6, window_bounds = array<i64: 1, 128>}, {transform_indices = @transform_7, window_bounds = array<i64: 64, 128>}]} {
    %c0 = arith.constant 0 : index
    %c0_0 = arith.constant 0 : index
    %c0_1 = arith.constant 0 : index
    %0 = vector.load %arg2[%c0, %c0_0, %c0_1] : memref<64x16x3xf32, #tpu.memory_space<vmem>>, vector<64x16x3xf32>
    %1 = vector.shape_cast %0 : vector<64x16x3xf32> to vector<1024x3xf32>
    %2 = vector.extract_strided_slice %1 {offsets = [0, 0], sizes = [1024, 1], strides = [1, 1]} : vector<1024x3xf32> to vector<1024x1xf32>
    %c0_2 = arith.constant 0 : index
    %c0_3 = arith.constant 0 : index
    %3 = vector.load %arg3[%c0_2, %c0_3] : memref<3x64xf32, #tpu.memory_space<vmem>>, vector<1x64xf32>
    %4 = vector.broadcast %2 : vector<1024x1xf32> to vector<1024x64xf32>
    %5 = vector.broadcast %3 : vector<1x64xf32> to vector<1024x64xf32>
    %6 = arith.mulf %4, %5 : vector<1024x64xf32>
    %7 = vector.extract_strided_slice %1 {offsets = [0, 1], sizes = [1024, 1], strides = [1, 1]} : vector<1024x3xf32> to vector<1024x1xf32>
    %c1 = arith.constant 1 : index
    %c0_4 = arith.constant 0 : index
    %8 = vector.load %arg3[%c1, %c0_4] : memref<3x64xf32, #tpu.memory_space<vmem>>, vector<1x64xf32>
    %9 = vector.broadcast %7 : vector<1024x1xf32> to vector<1024x64xf32>
    %10 = vector.broadcast %8 : vector<1x64xf32> to vector<1024x64xf32>
    %11 = arith.mulf %9, %10 : vector<1024x64xf32>
    %12 = arith.addf %6, %11 : vector<1024x64xf32>
    %13 = vector.extract_strided_slice %1 {offsets = [0, 2], sizes = [1024, 1], strides = [1, 1]} : vector<1024x3xf32> to vector<1024x1xf32>
    %c2 = arith.constant 2 : index
    %c0_5 = arith.constant 0 : index
    %14 = vector.load %arg3[%c2, %c0_5] : memref<3x64xf32, #tpu.memory_space<vmem>>, vector<1x64xf32>
    %15 = vector.broadcast %13 : vector<1024x1xf32> to vector<1024x64xf32>
    %16 = vector.broadcast %14 : vector<1x64xf32> to vector<1024x64xf32>
    %17 = arith.mulf %15, %16 : vector<1024x64xf32>
    %18 = arith.addf %12, %17 : vector<1024x64xf32>
    %c0_6 = arith.constant 0 : index
    %c0_7 = arith.constant 0 : index
    %19 = vector.load %arg4[%c0_6, %c0_7] : memref<1x64xf32, #tpu.memory_space<vmem>>, vector<1x64xf32>
    %20 = vector.broadcast %19 : vector<1x64xf32> to vector<1024x64xf32>
    %21 = arith.addf %18, %20 : vector<1024x64xf32>
    %cst = arith.constant 0.000000e+00 : f32
    %22 = vector.broadcast %cst : f32 to vector<1024x64xf32>
    %23 = arith.maximumf %21, %22 : vector<1024x64xf32>
    %24 = arith.truncf %23 : vector<1024x64xf32> to vector<1024x64xbf16>
    %c0_8 = arith.constant 0 : index
    %c0_9 = arith.constant 0 : index
    %25 = vector.load %arg5[%c0_8, %c0_9] : memref<64x64xbf16, #tpu.memory_space<vmem>>, vector<64x64xbf16>
    %cst_10 = arith.constant dense<0.000000e+00> : vector<1024x64xf32>
    %26 = tpu.matmul %24, %25, %cst_10 {dimension_numbers = #tpu.dot_dimension_numbers<[1], [0], [0], [1], [0, 0, 1, 1], [], []>} : vector<1024x64xbf16>, vector<64x64xbf16>, vector<1024x64xf32> -> vector<1024x64xf32>
    %c0_11 = arith.constant 0 : index
    %c0_12 = arith.constant 0 : index
    %27 = vector.load %arg6[%c0_11, %c0_12] : memref<1x64xf32, #tpu.memory_space<vmem>>, vector<1x64xf32>
    %28 = vector.broadcast %27 : vector<1x64xf32> to vector<1024x64xf32>
    %29 = arith.addf %26, %28 : vector<1024x64xf32>
    %cst_13 = arith.constant 0.000000e+00 : f32
    %30 = vector.broadcast %cst_13 : f32 to vector<1024x64xf32>
    %31 = arith.maximumf %29, %30 : vector<1024x64xf32>
    %32 = arith.truncf %31 : vector<1024x64xf32> to vector<1024x64xbf16>
    %c0_14 = arith.constant 0 : index
    %c0_15 = arith.constant 0 : index
    %33 = vector.load %arg7[%c0_14, %c0_15] : memref<64x128xbf16, #tpu.memory_space<vmem>>, vector<64x128xbf16>
    %cst_16 = arith.constant dense<0.000000e+00> : vector<1024x128xf32>
    %34 = tpu.matmul %32, %33, %cst_16 {dimension_numbers = #tpu.dot_dimension_numbers<[1], [0], [0], [1], [0, 0, 1, 1], [], []>} : vector<1024x64xbf16>, vector<64x128xbf16>, vector<1024x128xf32> -> vector<1024x128xf32>
    %c0_17 = arith.constant 0 : index
    %c0_18 = arith.constant 0 : index
    %35 = vector.load %arg8[%c0_17, %c0_18] : memref<1x128xf32, #tpu.memory_space<vmem>>, vector<1x128xf32>
    %36 = vector.broadcast %35 : vector<1x128xf32> to vector<1024x128xf32>
    %37 = arith.addf %34, %36 : vector<1024x128xf32>
    %cst_19 = arith.constant 0.000000e+00 : f32
    %38 = vector.broadcast %cst_19 : f32 to vector<1024x128xf32>
    %39 = arith.maximumf %37, %38 : vector<1024x128xf32>
    %40 = vector.shape_cast %39 : vector<1024x128xf32> to vector<64x16x128xf32>
    %cst_20 = arith.constant dense<0xFF800000> : vector<64x128xf32>
    %41 = vector.multi_reduction <maximumf>, %40, %cst_20 [1] : vector<64x16x128xf32> to vector<64x128xf32>
    %c0_i32 = arith.constant 0 : i32
    %42 = arith.cmpi eq, %arg1, %c0_i32 : i32
    %43 = arith.extui %42 : i1 to i32
    %c0_i32_21 = arith.constant 0 : i32
    %44 = arith.cmpi ne, %43, %c0_i32_21 : i32
    scf.if %44 {
      %cst_26 = arith.constant 0xFF800000 : f32
      %48 = vector.broadcast %cst_26 : f32 to vector<64x128xf32>
      %c0_27 = arith.constant 0 : index
      %c0_28 = arith.constant 0 : index
      %49 = vector.load %arg9[%c0_27, %c0_28] : memref<64x128xf32, #tpu.memory_space<vmem>>, vector<64x128xf32>
      tpu.vector_store %arg9[%c0_27, %c0_28], %48 {strides = array<i32>} : memref<64x128xf32, #tpu.memory_space<vmem>>, vector<64x128xf32>,
    } else {
    }
    %c0_22 = arith.constant 0 : index
    %c0_23 = arith.constant 0 : index
    %45 = vector.load %arg9[%c0_22, %c0_23] : memref<64x128xf32, #tpu.memory_space<vmem>>, vector<64x128xf32>
    %46 = arith.maximumf %45, %41 : vector<64x128xf32>
    %c0_24 = arith.constant 0 : index
    %c0_25 = arith.constant 0 : index
    %47 = vector.load %arg9[%c0_24, %c0_25] : memref<64x128xf32, #tpu.memory_space<vmem>>, vector<64x128xf32>
    tpu.vector_store %arg9[%c0_24, %c0_25], %46 {strides = array<i32>} : memref<64x128xf32, #tpu.memory_space<vmem>>, vector<64x128xf32>,
    return
  }
  func.func @transform_0(%arg0: i32, %arg1: i32) -> (i32, i32, i32) {
    %c0_i32 = arith.constant 0 : i32
    %c0_i32_0 = arith.constant 0 : i32
    return %arg0, %arg1, %c0_i32 : i32, i32, i32
  }
  func.func @transform_1(%arg0: i32, %arg1: i32) -> (i32, i32) {
    %c0_i32 = arith.constant 0 : i32
    %c0_i32_0 = arith.constant 0 : i32
    %c0_i32_1 = arith.constant 0 : i32
    return %c0_i32, %c0_i32_0 : i32, i32
  }
  func.func @transform_2(%arg0: i32, %arg1: i32) -> (i32, i32) {
    %c0_i32 = arith.constant 0 : i32
    %c0_i32_0 = arith.constant 0 : i32
    %c0_i32_1 = arith.constant 0 : i32
    return %c0_i32, %c0_i32_0 : i32, i32
  }
  func.func @transform_3(%arg0: i32, %arg1: i32) -> (i32, i32) {
    %c0_i32 = arith.constant 0 : i32
    %c0_i32_0 = arith.constant 0 : i32
    %c0_i32_1 = arith.constant 0 : i32
    return %c0_i32, %c0_i32_0 : i32, i32
  }
  func.func @transform_4(%arg0: i32, %arg1: i32) -> (i32, i32) {
    %c0_i32 = arith.constant 0 : i32
    %c0_i32_0 = arith.constant 0 : i32
    %c0_i32_1 = arith.constant 0 : i32
    return %c0_i32, %c0_i32_0 : i32, i32
  }
  func.func @transform_5(%arg0: i32, %arg1: i32) -> (i32, i32) {
    %c0_i32 = arith.constant 0 : i32
    %c0_i32_0 = arith.constant 0 : i32
    %c0_i32_1 = arith.constant 0 : i32
    return %c0_i32, %c0_i32_0 : i32, i32
  }
  func.func @transform_6(%arg0: i32, %arg1: i32) -> (i32, i32) {
    %c0_i32 = arith.constant 0 : i32
    %c0_i32_0 = arith.constant 0 : i32
    %c0_i32_1 = arith.constant 0 : i32
    return %c0_i32, %c0_i32_0 : i32, i32
  }
  func.func @transform_7(%arg0: i32, %arg1: i32) -> (i32, i32) {
    %c0_i32 = arith.constant 0 : i32
    %c0_i32_0 = arith.constant 0 : i32
    return %arg0, %c0_i32 : i32, i32
  }
}

module attributes {stable_mosaic.version = 11 : i64} {
  func.func @_sa_mlp_kernel(%arg0: i32, %arg1: i32, %arg2: memref<16x16x3xf32, #tpu.memory_space<vmem>>, %arg3: memref<16x16x128xbf16, #tpu.memory_space<vmem>>, %arg4: memref<3x128xf32, #tpu.memory_space<vmem>>, %arg5: memref<128x128xbf16, #tpu.memory_space<vmem>>, %arg6: memref<1x128xf32, #tpu.memory_space<vmem>>, %arg7: memref<128x128xbf16, #tpu.memory_space<vmem>>, %arg8: memref<1x128xf32, #tpu.memory_space<vmem>>, %arg9: memref<128x384xbf16, #tpu.memory_space<vmem>>, %arg10: memref<1x384xf32, #tpu.memory_space<vmem>>, %arg11: memref<16x384xf32, #tpu.memory_space<vmem>>) attributes {dimension_semantics = [#tpu.dimension_semantics<parallel>, #tpu.dimension_semantics<arbitrary>], iteration_bounds = array<i64: 2, 4>, scalar_prefetch = 0 : i64, scratch_operands = 0 : i64, tpu.core_type = #tpu.core_type<tc>, window_params = [{transform_indices = @transform_0, window_bounds = array<i64: 16, 16, 3>}, {transform_indices = @transform_1, window_bounds = array<i64: 16, 16, 128>}, {pipeline_mode = #tpu.pipeline_mode<synchronous>, transform_indices = @transform_2, window_bounds = array<i64: 3, 128>}, {pipeline_mode = #tpu.pipeline_mode<synchronous>, transform_indices = @transform_3, window_bounds = array<i64: 128, 128>}, {pipeline_mode = #tpu.pipeline_mode<synchronous>, transform_indices = @transform_4, window_bounds = array<i64: 1, 128>}, {pipeline_mode = #tpu.pipeline_mode<synchronous>, transform_indices = @transform_5, window_bounds = array<i64: 128, 128>}, {pipeline_mode = #tpu.pipeline_mode<synchronous>, transform_indices = @transform_6, window_bounds = array<i64: 1, 128>}, {pipeline_mode = #tpu.pipeline_mode<synchronous>, transform_indices = @transform_7, window_bounds = array<i64: 128, 384>}, {pipeline_mode = #tpu.pipeline_mode<synchronous>, transform_indices = @transform_8, window_bounds = array<i64: 1, 384>}, {transform_indices = @transform_9, window_bounds = array<i64: 16, 384>}]} {
    %c0 = arith.constant 0 : index
    %c0_0 = arith.constant 0 : index
    %c0_1 = arith.constant 0 : index
    %0 = vector.load %arg2[%c0, %c0_0, %c0_1] : memref<16x16x3xf32, #tpu.memory_space<vmem>>, vector<16x16x3xf32>
    %1 = vector.shape_cast %0 : vector<16x16x3xf32> to vector<256x3xf32>
    %2 = vector.extract_strided_slice %1 {offsets = [0, 0], sizes = [256, 1], strides = [1, 1]} : vector<256x3xf32> to vector<256x1xf32>
    %c0_2 = arith.constant 0 : index
    %c0_3 = arith.constant 0 : index
    %3 = vector.load %arg4[%c0_2, %c0_3] : memref<3x128xf32, #tpu.memory_space<vmem>>, vector<1x128xf32>
    %4 = vector.broadcast %2 : vector<256x1xf32> to vector<256x128xf32>
    %5 = vector.broadcast %3 : vector<1x128xf32> to vector<256x128xf32>
    %6 = arith.mulf %4, %5 : vector<256x128xf32>
    %7 = vector.extract_strided_slice %1 {offsets = [0, 1], sizes = [256, 1], strides = [1, 1]} : vector<256x3xf32> to vector<256x1xf32>
    %c1 = arith.constant 1 : index
    %c0_4 = arith.constant 0 : index
    %8 = vector.load %arg4[%c1, %c0_4] : memref<3x128xf32, #tpu.memory_space<vmem>>, vector<1x128xf32>
    %9 = vector.broadcast %7 : vector<256x1xf32> to vector<256x128xf32>
    %10 = vector.broadcast %8 : vector<1x128xf32> to vector<256x128xf32>
    %11 = arith.mulf %9, %10 : vector<256x128xf32>
    %12 = arith.addf %6, %11 : vector<256x128xf32>
    %13 = vector.extract_strided_slice %1 {offsets = [0, 2], sizes = [256, 1], strides = [1, 1]} : vector<256x3xf32> to vector<256x1xf32>
    %c2 = arith.constant 2 : index
    %c0_5 = arith.constant 0 : index
    %14 = vector.load %arg4[%c2, %c0_5] : memref<3x128xf32, #tpu.memory_space<vmem>>, vector<1x128xf32>
    %15 = vector.broadcast %13 : vector<256x1xf32> to vector<256x128xf32>
    %16 = vector.broadcast %14 : vector<1x128xf32> to vector<256x128xf32>
    %17 = arith.mulf %15, %16 : vector<256x128xf32>
    %18 = arith.addf %12, %17 : vector<256x128xf32>
    %c0_6 = arith.constant 0 : index
    %c0_7 = arith.constant 0 : index
    %c0_8 = arith.constant 0 : index
    %19 = vector.load %arg3[%c0_6, %c0_7, %c0_8] : memref<16x16x128xbf16, #tpu.memory_space<vmem>>, vector<16x16x128xbf16>
    %20 = vector.shape_cast %19 : vector<16x16x128xbf16> to vector<256x128xbf16>
    %c0_9 = arith.constant 0 : index
    %c0_10 = arith.constant 0 : index
    %21 = vector.load %arg5[%c0_9, %c0_10] : memref<128x128xbf16, #tpu.memory_space<vmem>>, vector<128x128xbf16>
    %cst = arith.constant dense<0.000000e+00> : vector<256x128xf32>
    %22 = tpu.matmul %20, %21, %cst {dimension_numbers = #tpu.dot_dimension_numbers<[1], [0], [0], [1], [0, 0, 1, 1], [], []>} : vector<256x128xbf16>, vector<128x128xbf16>, vector<256x128xf32> -> vector<256x128xf32>
    %23 = arith.addf %18, %22 : vector<256x128xf32>
    %c0_11 = arith.constant 0 : index
    %c0_12 = arith.constant 0 : index
    %24 = vector.load %arg6[%c0_11, %c0_12] : memref<1x128xf32, #tpu.memory_space<vmem>>, vector<1x128xf32>
    %25 = vector.broadcast %24 : vector<1x128xf32> to vector<256x128xf32>
    %26 = arith.addf %23, %25 : vector<256x128xf32>
    %cst_13 = arith.constant 0.000000e+00 : f32
    %27 = vector.broadcast %cst_13 : f32 to vector<256x128xf32>
    %28 = arith.maximumf %26, %27 : vector<256x128xf32>
    %29 = arith.truncf %28 : vector<256x128xf32> to vector<256x128xbf16>
    %c0_14 = arith.constant 0 : index
    %c0_15 = arith.constant 0 : index
    %30 = vector.load %arg7[%c0_14, %c0_15] : memref<128x128xbf16, #tpu.memory_space<vmem>>, vector<128x128xbf16>
    %cst_16 = arith.constant dense<0.000000e+00> : vector<256x128xf32>
    %31 = tpu.matmul %29, %30, %cst_16 {dimension_numbers = #tpu.dot_dimension_numbers<[1], [0], [0], [1], [0, 0, 1, 1], [], []>} : vector<256x128xbf16>, vector<128x128xbf16>, vector<256x128xf32> -> vector<256x128xf32>
    %c0_17 = arith.constant 0 : index
    %c0_18 = arith.constant 0 : index
    %32 = vector.load %arg8[%c0_17, %c0_18] : memref<1x128xf32, #tpu.memory_space<vmem>>, vector<1x128xf32>
    %33 = vector.broadcast %32 : vector<1x128xf32> to vector<256x128xf32>
    %34 = arith.addf %31, %33 : vector<256x128xf32>
    %cst_19 = arith.constant 0.000000e+00 : f32
    %35 = vector.broadcast %cst_19 : f32 to vector<256x128xf32>
    %36 = arith.maximumf %34, %35 : vector<256x128xf32>
    %37 = arith.truncf %36 : vector<256x128xf32> to vector<256x128xbf16>
    %c0_20 = arith.constant 0 : index
    %c0_21 = arith.constant 0 : index
    %38 = vector.load %arg9[%c0_20, %c0_21] : memref<128x384xbf16, #tpu.memory_space<vmem>>, vector<128x384xbf16>
    %cst_22 = arith.constant dense<0.000000e+00> : vector<256x384xf32>
    %39 = tpu.matmul %37, %38, %cst_22 {dimension_numbers = #tpu.dot_dimension_numbers<[1], [0], [0], [1], [0, 0, 1, 1], [], []>} : vector<256x128xbf16>, vector<128x384xbf16>, vector<256x384xf32> -> vector<256x384xf32>
    %c0_23 = arith.constant 0 : index
    %c0_24 = arith.constant 0 : index
    %40 = vector.load %arg10[%c0_23, %c0_24] : memref<1x384xf32, #tpu.memory_space<vmem>>, vector<1x384xf32>
    %41 = vector.broadcast %40 : vector<1x384xf32> to vector<256x384xf32>
    %42 = arith.addf %39, %41 : vector<256x384xf32>
    %cst_25 = arith.constant 0.000000e+00 : f32
    %43 = vector.broadcast %cst_25 : f32 to vector<256x384xf32>
    %44 = arith.maximumf %42, %43 : vector<256x384xf32>
    %45 = vector.shape_cast %44 : vector<256x384xf32> to vector<16x16x384xf32>
    %cst_26 = arith.constant dense<0xFF800000> : vector<16x384xf32>
    %46 = vector.multi_reduction <maximumf>, %45, %cst_26 [1] : vector<16x16x384xf32> to vector<16x384xf32>
    %c0_i32 = arith.constant 0 : i32
    %47 = arith.cmpi eq, %arg1, %c0_i32 : i32
    %48 = arith.extui %47 : i1 to i32
    %c0_i32_27 = arith.constant 0 : i32
    %49 = arith.cmpi ne, %48, %c0_i32_27 : i32
    scf.if %49 {
      %cst_32 = arith.constant 0xFF800000 : f32
      %53 = vector.broadcast %cst_32 : f32 to vector<16x384xf32>
      %c0_33 = arith.constant 0 : index
      %c0_34 = arith.constant 0 : index
      %54 = vector.load %arg11[%c0_33, %c0_34] : memref<16x384xf32, #tpu.memory_space<vmem>>, vector<16x384xf32>
      tpu.vector_store %arg11[%c0_33, %c0_34], %53 {strides = array<i32>} : memref<16x384xf32, #tpu.memory_space<vmem>>, vector<16x384xf32>,
    } else {
    }
    %c0_28 = arith.constant 0 : index
    %c0_29 = arith.constant 0 : index
    %50 = vector.load %arg11[%c0_28, %c0_29] : memref<16x384xf32, #tpu.memory_space<vmem>>, vector<16x384xf32>
    %51 = arith.maximumf %50, %46 : vector<16x384xf32>
    %c0_30 = arith.constant 0 : index
    %c0_31 = arith.constant 0 : index
    %52 = vector.load %arg11[%c0_30, %c0_31] : memref<16x384xf32, #tpu.memory_space<vmem>>, vector<16x384xf32>
    tpu.vector_store %arg11[%c0_30, %c0_31], %51 {strides = array<i32>} : memref<16x384xf32, #tpu.memory_space<vmem>>, vector<16x384xf32>,
    return
  }
  func.func @transform_0(%arg0: i32, %arg1: i32) -> (i32, i32, i32) {
    %c0_i32 = arith.constant 0 : i32
    %c0_i32_0 = arith.constant 0 : i32
    return %arg0, %arg1, %c0_i32 : i32, i32, i32
  }
  func.func @transform_1(%arg0: i32, %arg1: i32) -> (i32, i32, i32) {
    %c0_i32 = arith.constant 0 : i32
    %c0_i32_0 = arith.constant 0 : i32
    return %arg0, %arg1, %c0_i32 : i32, i32, i32
  }
  func.func @transform_2(%arg0: i32, %arg1: i32) -> (i32, i32) {
    %c0_i32 = arith.constant 0 : i32
    %c0_i32_0 = arith.constant 0 : i32
    %c0_i32_1 = arith.constant 0 : i32
    return %c0_i32, %c0_i32_0 : i32, i32
  }
  func.func @transform_3(%arg0: i32, %arg1: i32) -> (i32, i32) {
    %c0_i32 = arith.constant 0 : i32
    %c0_i32_0 = arith.constant 0 : i32
    %c0_i32_1 = arith.constant 0 : i32
    return %c0_i32, %c0_i32_0 : i32, i32
  }
  func.func @transform_4(%arg0: i32, %arg1: i32) -> (i32, i32) {
    %c0_i32 = arith.constant 0 : i32
    %c0_i32_0 = arith.constant 0 : i32
    %c0_i32_1 = arith.constant 0 : i32
    return %c0_i32, %c0_i32_0 : i32, i32
  }
  func.func @transform_5(%arg0: i32, %arg1: i32) -> (i32, i32) {
    %c0_i32 = arith.constant 0 : i32
    %c0_i32_0 = arith.constant 0 : i32
    %c0_i32_1 = arith.constant 0 : i32
    return %c0_i32, %c0_i32_0 : i32, i32
  }
  func.func @transform_6(%arg0: i32, %arg1: i32) -> (i32, i32) {
    %c0_i32 = arith.constant 0 : i32
    %c0_i32_0 = arith.constant 0 : i32
    %c0_i32_1 = arith.constant 0 : i32
    return %c0_i32, %c0_i32_0 : i32, i32
  }
  func.func @transform_7(%arg0: i32, %arg1: i32) -> (i32, i32) {
    %c0_i32 = arith.constant 0 : i32
    %c0_i32_0 = arith.constant 0 : i32
    %c0_i32_1 = arith.constant 0 : i32
    return %c0_i32, %c0_i32_0 : i32, i32
  }
  func.func @transform_8(%arg0: i32, %arg1: i32) -> (i32, i32) {
    %c0_i32 = arith.constant 0 : i32
    %c0_i32_0 = arith.constant 0 : i32
    %c0_i32_1 = arith.constant 0 : i32
    return %c0_i32, %c0_i32_0 : i32, i32
  }
  func.func @transform_9(%arg0: i32, %arg1: i32) -> (i32, i32) {
    %c0_i32 = arith.constant 0 : i32
    %c0_i32_0 = arith.constant 0 : i32
    return %arg0, %c0_i32 : i32, i32
  }
}

</mosaic_0001>

<llo_original>
// kernel: custom-call.14
$region0: #{custom-call.14}
  %s0 = inlined_call_operand.vmem [shape: f32[2,128], index: 0, kind: output, shape index: {}]

// kernel: custom-call.15
$region0: #{custom-call.15}
  %s0 = inlined_call_operand.vmem [shape: f32[2,64], index: 0, kind: output, shape index: {}]

// kernel: neg.7
$region0: #{neg.7}
  #allocation0 [shape = 's32[1]{0}', space=sflag, size = 0x4, scoped, tag = 'scoped memory for neg.7']
  %s0 = inlined_call_operand.vmem [shape: s32[2,16,64], index: 0, kind: input, shape index: {}]
  %s1 = inlined_call_operand.vmem [shape: s32[2,16,64], index: 1, kind: output, shape index: {}]
  %v2 = vld [vmem:[%s0] sm:$0xff]
  %3 = xla_tuple %v2
  %4 = xla_tuple %3
  %v5 = vsub.s32 0, %v2
  %6 = xla_tuple %v5
  %7 = vst [vmem:[%s1] sm:$0xff] %v5
  %s8 = scalar_lea.vmem %s0, 64
  %v9 = vld [vmem:[%s8] sm:$0xff]
  %10 = xla_tuple %v9
  %11 = xla_tuple %10
  %v12 = vsub.s32 0, %v9
  %13 = xla_tuple %v12
  %s14 = scalar_lea.vmem %s1, 64
  %15 = vst [vmem:[%s14] sm:$0xff] %v12
  %s16 = scalar_lea.vmem %s0, 8
  %v17 = vld [vmem:[%s16] sm:$0xff]
  %18 = xla_tuple %v17
  %19 = xla_tuple %18
  %v20 = vsub.s32 0, %v17
  %21 = xla_tuple %v20
  %s22 = scalar_lea.vmem %s1, 8
  %23 = vst [vmem:[%s22] sm:$0xff] %v20
  %s24 = scalar_lea.vmem %s0, 72
  %v25 = vld [vmem:[%s24] sm:$0xff]
  %26 = xla_tuple %v25
  %27 = xla_tuple %26
  %v28 = vsub.s32 0, %v25
  %29 = xla_tuple %v28
  %s30 = scalar_lea.vmem %s1, 72
  %31 = vst [vmem:[%s30] sm:$0xff] %v28
  %s32 = scalar_lea.vmem %s0, 16
  %v33 = vld [vmem:[%s32] sm:$0xff]
  %34 = xla_tuple %v33
  %35 = xla_tuple %34
  %v36 = vsub.s32 0, %v33
  %37 = xla_tuple %v36
  %s38 = scalar_lea.vmem %s1, 16
  %39 = vst [vmem:[%s38] sm:$0xff] %v36
  %s40 = scalar_lea.vmem %s0, 80
  %v41 = vld [vmem:[%s40] sm:$0xff]
  %42 = xla_tuple %v41
  %43 = xla_tuple %42
  %v44 = vsub.s32 0, %v41
  %45 = xla_tuple %v44
  %s46 = scalar_lea.vmem %s1, 80
  %47 = vst [vmem:[%s46] sm:$0xff] %v44
  %s48 = scalar_lea.vmem %s0, 24
  %v49 = vld [vmem:[%s48] sm:$0xff]
  %50 = xla_tuple %v49
  %51 = xla_tuple %50
  %v52 = vsub.s32 0, %v49
  %53 = xla_tuple %v52
  %s54 = scalar_lea.vmem %s1, 24
  %55 = vst [vmem:[%s54] sm:$0xff] %v52
  %s56 = scalar_lea.vmem %s0, 88
  %v57 = vld [vmem:[%s56] sm:$0xff]
  %58 = xla_tuple %v57
  %59 = xla_tuple %58
  %v60 = vsub.s32 0, %v57
  %61 = xla_tuple %v60
  %s62 = scalar_lea.vmem %s1, 88
  %63 = vst [vmem:[%s62] sm:$0xff] %v60
  %s64 = scalar_lea.vmem %s0, 32
  %v65 = vld [vmem:[%s64] sm:$0xff]
  %66 = xla_tuple %v65
  %67 = xla_tuple %66
  %v68 = vsub.s32 0, %v65
  %69 = xla_tuple %v68
  %s70 = scalar_lea.vmem %s1, 32
  %71 = vst [vmem:[%s70] sm:$0xff] %v68
  %s72 = scalar_lea.vmem %s0, 96
  %v73 = vld [vmem:[%s72] sm:$0xff]
  %74 = xla_tuple %v73
  %75 = xla_tuple %74
  %v76 = vsub.s32 0, %v73
  %77 = xla_tuple %v76
  %s78 = scalar_lea.vmem %s1, 96
  %79 = vst [vmem:[%s78] sm:$0xff] %v76
  %s80 = scalar_lea.vmem %s0, 40
  %v81 = vld [vmem:[%s80] sm:$0xff]
  %82 = xla_tuple %v81
  %83 = xla_tuple %82
  %v84 = vsub.s32 0, %v81
  %85 = xla_tuple %v84
  %s86 = scalar_lea.vmem %s1, 40
  %87 = vst [vmem:[%s86] sm:$0xff] %v84
  %s88 = scalar_lea.vmem %s0, 104
  %v89 = vld [vmem:[%s88] sm:$0xff]
  %90 = xla_tuple %v89
  %91 = xla_tuple %90
  %v92 = vsub.s32 0, %v89
  %93 = xla_tuple %v92
  %s94 = scalar_lea.vmem %s1, 104
  %95 = vst [vmem:[%s94] sm:$0xff] %v92
  %s96 = scalar_lea.vmem %s0, 48
  %v97 = vld [vmem:[%s96] sm:$0xff]
  %98 = xla_tuple %v97
  %99 = xla_tuple %98
  %v100 = vsub.s32 0, %v97
  %101 = xla_tuple %v100
  %s102 = scalar_lea.vmem %s1, 48
  %103 = vst [vmem:[%s102] sm:$0xff] %v100
  %s104 = scalar_lea.vmem %s0, 112
  %v105 = vld [vmem:[%s104] sm:$0xff]
  %106 = xla_tuple %v105
  %107 = xla_tuple %106
  %v108 = vsub.s32 0, %v105
  %109 = xla_tuple %v108
  %s110 = scalar_lea.vmem %s1, 112
  %111 = vst [vmem:[%s110] sm:$0xff] %v108
  %s112 = scalar_lea.vmem %s0, 56
  %v113 = vld [vmem:[%s112] sm:$0xff]
  %114 = xla_tuple %v113
  %115 = xla_tuple %114
  %v116 = vsub.s32 0, %v113
  %117 = xla_tuple %v116
  %s118 = scalar_lea.vmem %s1, 56
  %119 = vst [vmem:[%s118] sm:$0xff] %v116
  %s120 = scalar_lea.vmem %s0, 120
  %v121 = vld [vmem:[%s120] sm:$0xff]
  %122 = xla_tuple %v121
  %123 = xla_tuple %122
  %v124 = vsub.s32 0, %v121
  %125 = xla_tuple %v124
  %s126 = scalar_lea.vmem %s1, 120
  %127 = vst [vmem:[%s126] sm:$0xff] %v124

// kernel: pointnet2_dense_encoder.2
$region0: #{pointnet2_dense_encoder.2}
  #allocation0 [shape = 'u32[]', space=smem, size = 0x4, offset = 0x4, fixed_abs, tag = 'smem constant byte address 0x4 - core index']
  #allocation1 [shape = 'u32[144,128]{1,0:T(1,128)}', space=vmem, size = 0x12000, scoped, tag = 'internal scratch']
  %s0 = inlined_call_operand.vmem [shape: f32[128,32,3], index: 0, kind: input, shape index: {}]
  %s1 = inlined_call_operand.vmem [shape: f32[3,64], index: 1, kind: input, shape index: {}]
  %s2 = inlined_call_operand.vmem [shape: f32[1,64], index: 2, kind: input, shape index: {}]
  %s3 = inlined_call_operand.vmem [shape: bf16[64,64], index: 3, kind: input, shape index: {}]
  %s4 = inlined_call_operand.vmem [shape: f32[1,64], index: 4, kind: input, shape index: {}]
  %s5 = inlined_call_operand.vmem [shape: bf16[64,128], index: 5, kind: input, shape index: {}]
  %s6 = inlined_call_operand.vmem [shape: f32[1,128], index: 6, kind: input, shape index: {}]
  %s7 = inlined_call_operand.vmem [shape: f32[128,128], index: 7, kind: output, shape index: {}]
  %s8 = sld [smem:[#allocation0]]
  $region103: #{pointnet2_dense_encoder.2} parent=0
    _
  %s10 = ssub.s32 1, %s8
  %s11 = scalar_select 0, %s10, %s8
  $region1: #{pointnet2_dense_encoder.2} parent=0
    #allocation2 [shape = 'u8[1048576]{0}', space=vmem, size = 0x100000, scoped, tag = 'input window, operand 0']
    loop: start=0, step=1, limit=6
    $region2: #{pointnet2_dense_encoder.2} parent=1 // loop_pre_header
      _
    $region3: #{pointnet2_dense_encoder.2} parent=1 // loop_header
      %s13 = sphi 0, %s17
      %p14 = scmp.ge.s32.totalorder %s13, 6
      %s20 = sphi 0, %s32
      %s21 = sphi 0, %s28
      %s22 = sphi 0, %s20
      %s23 = sphi 0, %s21
      %s24 = sphi 0, %s22
      %s25 = sphi 0, %s23
      %s37 = sphi 0, %s39
      %s40 = sphi 0, %s37
      %s41 = sphi 0, %s40
      %s57 = sphi 0, %s41
      %s61 = sphi 0, %s61
      %s63 = sphi 0, %s61
      %s64 = sphi 0, %s63
      %s78 = sphi 0, %s64
      %s82 = sphi 0, %s82
      %s84 = sphi 0, %s82
      %s85 = sphi 0, %s84
      %s99 = sphi 0, %s85
      %s103 = sphi 0, %s103
      %s105 = sphi 0, %s103
      %s106 = sphi 0, %s105
      %s120 = sphi 0, %s106
      %s124 = sphi 0, %s124
      %s126 = sphi 0, %s124
      %s127 = sphi 0, %s126
      %s141 = sphi 0, %s127
      %s145 = sphi 0, %s145
      %s147 = sphi 0, %s145
      %s148 = sphi 0, %s147
      %s162 = sphi 0, %s148
      %s166 = sphi 0, %s166
      %s168 = sphi 0, %s166
      %s169 = sphi 0, %s168
      %s183 = sphi 0, %s169
      %s189 = sphi 0, %s191
      %s192 = sphi 0, %s189
      %s193 = sphi 0, %s192
      %s209 = sphi 0, %s193
    $region4: #{pointnet2_dense_encoder.2} parent=1 // loop_header_branch
      %16 = sbr.rel (%p14) target = $region8
    $region5: #{pointnet2_dense_encoder.2} parent=1 // loop_body
      %s18 = ssub.s32 %s13, 1
      %s19 = ssub.s32 %s13, 2
      %s26 = sadd.s32 1, %s21
      %p27 = scmp.ge.s32.totalorder %s26, 2
      %s28 = scalar_select %p27, 0, %s26
      %s29 = sadd.s32 1, %s20
      %s30 = scalar_select %p27, %s29, %s20
      %p31 = scmp.ge.s32.totalorder %s30, 2
      %s32 = scalar_select %p31, 0, %s30
      %s33 = ssub.s32 %s20, %s32
      %s34 = ssub.s32 %s21, %s28
      %s35 = sor.u32 %s33, %s34
      %p36 = scmp.eq.s32.totalorder %s35, 0
      %s38 = sadd.s32 %s37, 1
      %s39 = scalar_select %p36, %s37, %s38
      %p42 = pneg %p36
      %p43 = scmp.eq.s32.totalorder %s13, 3
      %p44 = por %p42, %p43
      %p45 = scmp.ne.s32.totalorder %s37, %s40
      %p46 = scmp.eq.s32.totalorder %s13, 0
      %p47 = por %p45, %p46
      %p48 = scmp.ne.s32.totalorder %s37, %s40
      %p49 = scmp.eq.s32.totalorder %s18, 3
      %p50 = por %p48, %p49
      %p51 = scmp.ne.s32.totalorder %s40, %s41
      %p52 = scmp.eq.s32.totalorder %s18, 0
      %p53 = por %p51, %p52
      %p54 = scmp.ne.s32.totalorder %s40, %s41
      %p55 = scmp.eq.s32.totalorder %s19, 3
      %p56 = por %p54, %p55
      %p58 = scmp.ne.s32.totalorder %s41, %s57
      %p59 = scmp.eq.s32.totalorder %s19, 0
      %p60 = por %p58, %p59
      %s62 = sadd.s32 %s61, 1
      %p65 = scmp.eq.s32.totalorder %s13, 3
      %p66 = scmp.ne.s32.totalorder %s61, %s63
      %p67 = scmp.eq.s32.totalorder %s13, 0
      %p68 = por %p66, %p67
      %p69 = scmp.ne.s32.totalorder %s61, %s63
      %p70 = scmp.eq.s32.totalorder %s18, 3
      %p71 = por %p69, %p70
      %p72 = scmp.ne.s32.totalorder %s63, %s64
      %p73 = scmp.eq.s32.totalorder %s18, 0
      %p74 = por %p72, %p73
      %p75 = scmp.ne.s32.totalorder %s63, %s64
      %p76 = scmp.eq.s32.totalorder %s19, 3
      %p77 = por %p75, %p76
      %p79 = scmp.ne.s32.totalorder %s64, %s78
      %p80 = scmp.eq.s32.totalorder %s19, 0
      %p81 = por %p79, %p80
      %s83 = sadd.s32 %s82, 1
      %p86 = scmp.eq.s32.totalorder %s13, 3
      %p87 = scmp.ne.s32.totalorder %s82, %s84
      %p88 = scmp.eq.s32.totalorder %s13, 0
      %p89 = por %p87, %p88
      %p90 = scmp.ne.s32.totalorder %s82, %s84
      %p91 = scmp.eq.s32.totalorder %s18, 3
      %p92 = por %p90, %p91
      %p93 = scmp.ne.s32.totalorder %s84, %s85
      %p94 = scmp.eq.s32.totalorder %s18, 0
      %p95 = por %p93, %p94
      %p96 = scmp.ne.s32.totalorder %s84, %s85
      %p97 = scmp.eq.s32.totalorder %s19, 3
      %p98 = por %p96, %p97
      %p100 = scmp.ne.s32.totalorder %s85, %s99
      %p101 = scmp.eq.s32.totalorder %s19, 0
      %p102 = por %p100, %p101
      %s104 = sadd.s32 %s103, 1
      %p107 = scmp.eq.s32.totalorder %s13, 3
      %p108 = scmp.ne.s32.totalorder %s103, %s105
      %p109 = scmp.eq.s32.totalorder %s13, 0
      %p110 = por %p108, %p109
      %p111 = scmp.ne.s32.totalorder %s103, %s105
      %p112 = scmp.eq.s32.totalorder %s18, 3
      %p113 = por %p111, %p112
      %p114 = scmp.ne.s32.totalorder %s105, %s106
      %p115 = scmp.eq.s32.totalorder %s18, 0
      %p116 = por %p114, %p115
      %p117 = scmp.ne.s32.totalorder %s105, %s106
      %p118 = scmp.eq.s32.totalorder %s19, 3
      %p119 = por %p117, %p118
      %p121 = scmp.ne.s32.totalorder %s106, %s120
      %p122 = scmp.eq.s32.totalorder %s19, 0
      %p123 = por %p121, %p122
      %s125 = sadd.s32 %s124, 1
      %p128 = scmp.eq.s32.totalorder %s13, 3
      %p129 = scmp.ne.s32.totalorder %s124, %s126
      %p130 = scmp.eq.s32.totalorder %s13, 0
      %p131 = por %p129, %p130
      %p132 = scmp.ne.s32.totalorder %s124, %s126
      %p133 = scmp.eq.s32.totalorder %s18, 3
      %p134 = por %p132, %p133
      %p135 = scmp.ne.s32.totalorder %s126, %s127
      %p136 = scmp.eq.s32.totalorder %s18, 0
      %p137 = por %p135, %p136
      %p138 = scmp.ne.s32.totalorder %s126, %s127
      %p139 = scmp.eq.s32.totalorder %s19, 3
      %p140 = por %p138, %p139
      %p142 = scmp.ne.s32.totalorder %s127, %s141
      %p143 = scmp.eq.s32.totalorder %s19, 0
      %p144 = por %p142, %p143
      %s146 = sadd.s32 %s145, 1
      %p149 = scmp.eq.s32.totalorder %s13, 3
      %p150 = scmp.ne.s32.totalorder %s145, %s147
      %p151 = scmp.eq.s32.totalorder %s13, 0
      %p152 = por %p150, %p151
      %p153 = scmp.ne.s32.totalorder %s145, %s147
      %p154 = scmp.eq.s32.totalorder %s18, 3
      %p155 = por %p153, %p154
      %p156 = scmp.ne.s32.totalorder %s147, %s148
      %p157 = scmp.eq.s32.totalorder %s18, 0
      %p158 = por %p156, %p157
      %p159 = scmp.ne.s32.totalorder %s147, %s148
      %p160 = scmp.eq.s32.totalorder %s19, 3
      %p161 = por %p159, %p160
      %p163 = scmp.ne.s32.totalorder %s148, %s162
      %p164 = scmp.eq.s32.totalorder %s19, 0
      %p165 = por %p163, %p164
      %s167 = sadd.s32 %s166, 1
      %p170 = scmp.eq.s32.totalorder %s13, 3
      %p171 = scmp.ne.s32.totalorder %s166, %s168
      %p172 = scmp.eq.s32.totalorder %s13, 0
      %p173 = por %p171, %p172
      %p174 = scmp.ne.s32.totalorder %s166, %s168
      %p175 = scmp.eq.s32.totalorder %s18, 3
      %p176 = por %p174, %p175
      %p177 = scmp.ne.s32.totalorder %s168, %s169
      %p178 = scmp.eq.s32.totalorder %s18, 0
      %p179 = por %p177, %p178
      %p180 = scmp.ne.s32.totalorder %s168, %s169
      %p181 = scmp.eq.s32.totalorder %s19, 3
      %p182 = por %p180, %p181
      %p184 = scmp.ne.s32.totalorder %s169, %s183
      %p185 = scmp.eq.s32.totalorder %s19, 0
      %p186 = por %p184, %p185
      %s187 = ssub.s32 %s20, %s32
      %p188 = scmp.eq.s32.totalorder %s187, 0
      %s190 = sadd.s32 %s189, 1
      %s191 = scalar_select %p188, %s189, %s190
      %p194 = pneg %p188
      %p195 = scmp.eq.s32.totalorder %s13, 3
      %p196 = por %p194, %p195
      %p197 = scmp.ne.s32.totalorder %s189, %s192
      %p198 = scmp.eq.s32.totalorder %s13, 0
      %p199 = por %p197, %p198
      %p200 = scmp.ne.s32.totalorder %s189, %s192
      %p201 = scmp.eq.s32.totalorder %s18, 3
      %p202 = por %p200, %p201
      %p203 = scmp.ne.s32.totalorder %s192, %s193
      %p204 = scmp.eq.s32.totalorder %s18, 0
      %p205 = por %p203, %p204
      %p206 = scmp.ne.s32.totalorder %s192, %s193
      %p207 = scmp.eq.s32.totalorder %s19, 3
      %p208 = por %p206, %p207
      %p210 = scmp.ne.s32.totalorder %s193, %s209
      %p211 = scmp.eq.s32.totalorder %s19, 0
      %p212 = por %p210, %p211
      %p213 = scmp.le.s32.totalorder 1, %s13
      %p214 = scmp.lt.s32.totalorder %s13, 5
      %p215 = pnand %p213, %p214
      %p216 = pneg %p215
      // Predicated region
      $region9: #{pointnet2_dense_encoder.2} parent=5 // pred_check
        _
      $region10: #{pointnet2_dense_encoder.2} parent=5 // pred_check_branch
        %218 = sbr.rel (%p215) target = $region12
      $region11: #{pointnet2_dense_encoder.2} parent=5 // pred_region
        %s219 = ssub.s32 %s13, 1
        // Predicated region
        $region13: #{pointnet2_dense_encoder.2} parent=11 // pred_check
          %p220 = pneg %p74
        $region14: #{pointnet2_dense_encoder.2} parent=11 // pred_check_branch
          %222 = sbr.rel (%p220) target = $region16
        $region15: #{pointnet2_dense_encoder.2} parent=11 // pred_region
          _
        $region16: #{pointnet2_dense_encoder.2} parent=11 // pred_fallthru
          _
        // Predicated region
        $region17: #{pointnet2_dense_encoder.2} parent=11 // pred_check
          %p223 = pneg %p95
        $region18: #{pointnet2_dense_encoder.2} parent=11 // pred_check_branch
          %225 = sbr.rel (%p223) target = $region20
        $region19: #{pointnet2_dense_encoder.2} parent=11 // pred_region
          _
        $region20: #{pointnet2_dense_encoder.2} parent=11 // pred_fallthru
          _
        // Predicated region
        $region21: #{pointnet2_dense_encoder.2} parent=11 // pred_check
          %p226 = pneg %p116
        $region22: #{pointnet2_dense_encoder.2} parent=11 // pred_check_branch
          %228 = sbr.rel (%p226) target = $region24
        $region23: #{pointnet2_dense_encoder.2} parent=11 // pred_region
          _
        $region24: #{pointnet2_dense_encoder.2} parent=11 // pred_fallthru
          _
        // Predicated region
        $region25: #{pointnet2_dense_encoder.2} parent=11 // pred_check
          %p229 = pneg %p137
        $region26: #{pointnet2_dense_encoder.2} parent=11 // pred_check_branch
          %231 = sbr.rel (%p229) target = $region28
        $region27: #{pointnet2_dense_encoder.2} parent=11 // pred_region
          _
        $region28: #{pointnet2_dense_encoder.2} parent=11 // pred_fallthru
          _
        // Predicated region
        $region29: #{pointnet2_dense_encoder.2} parent=11 // pred_check
          %p232 = pneg %p158
        $region30: #{pointnet2_dense_encoder.2} parent=11 // pred_check_branch
          %234 = sbr.rel (%p232) target = $region32
        $region31: #{pointnet2_dense_encoder.2} parent=11 // pred_region
          _
        $region32: #{pointnet2_dense_encoder.2} parent=11 // pred_fallthru
          _
        // Predicated region
        $region33: #{pointnet2_dense_encoder.2} parent=11 // pred_check
          %p235 = pneg %p179
        $region34: #{pointnet2_dense_encoder.2} parent=11 // pred_check_branch
          %237 = sbr.rel (%p235) target = $region36
        $region35: #{pointnet2_dense_encoder.2} parent=11 // pred_region
          _
        $region36: #{pointnet2_dense_encoder.2} parent=11 // pred_fallthru
          _
      $region12: #{pointnet2_dense_encoder.2} parent=5 // pred_fallthru
        _
      %p238 = scmp.lt.s32.totalorder %s13, 4
      // Predicated region
      $region37: #{pointnet2_dense_encoder.2} parent=5 // pred_check
        %p239 = pneg %p238
      $region38: #{pointnet2_dense_encoder.2} parent=5 // pred_check_branch
        %241 = sbr.rel (%p239) target = $region40
      $region39: #{pointnet2_dense_encoder.2} parent=5 // pred_region
        // Predicated region
        $region41: #{pointnet2_dense_encoder.2} parent=39 // pred_check
          %p242 = pneg %p47
        $region42: #{pointnet2_dense_encoder.2} parent=39 // pred_check_branch
          %244 = sbr.rel (%p242) target = $region44
        $region43: #{pointnet2_dense_encoder.2} parent=39 // pred_region
          %s245 = sand.u32 %s37, 1
          %s246 = sand.u32 %s37, 1
          %s247 = smul.addr %s246, 1024
          %s248 = scalar_lea.vmem [#allocation2], %s247
          %s249 = smul.u32 64, %s20
          %s250 = smul.u32 2, %s21
          %s251 = smul.addr %s249, 4
          %s252 = sadd.s32 %s250, %s251
          %s253 = smul.addr %s252, 8
          %s254 = scalar_lea.vmem %s0, %s253
          // Predicated region
          $region45: #{pointnet2_dense_encoder.2} parent=43 // pred_check
            _
          $region46: #{pointnet2_dense_encoder.2} parent=43 // pred_check_branch
            %256 = sbr.rel (0) target = $region48
          $region47: #{pointnet2_dense_encoder.2} parent=43 // pred_region
            // Predicated region
            $region49: #{pointnet2_dense_encoder.2} parent=47 // pred_check
              _
            $region50: #{pointnet2_dense_encoder.2} parent=47 // pred_check_branch
              %258 = sbr.rel (0) target = $region52
            $region51: #{pointnet2_dense_encoder.2} parent=47 // pred_region
              // Predicated region
              $region64: #{pointnet2_dense_encoder.2} parent=51 // pred_check
                _
              $region65: #{pointnet2_dense_encoder.2} parent=51 // pred_check_branch
                %527 = sbr.rel (0) target = $region67
              $region66: #{pointnet2_dense_encoder.2} parent=51 // pred_region
                loop: start=0, step=1, limit=1
                $region68: #{pointnet2_dense_encoder.2} parent=66 // loop_pre_header
                  _
                $region69: #{pointnet2_dense_encoder.2} parent=66 // loop_header
                  %s529 = sphi 0, %s533
                  %p530 = scmp.ge.s32.totalorder %s529, 1
                  %s534 = sphi %s254, %s254
                  %s535 = sphi %s248, %s248
                $region70: #{pointnet2_dense_encoder.2} parent=66 // loop_header_branch
                  %532 = sbr.rel (%p530) target = $region74
                $region71: #{pointnet2_dense_encoder.2} parent=66 // loop_body
                  %v536 = vld [vmem:[%s534] sm:$0xff]
                  %537 = vst [vmem:[%s535] sm:$0xff] %v536
                  %v538 = vld [vmem:[%s534 + $0x8] sm:$0xff]
                  %539 = vst [vmem:[%s535 + $0x8] sm:$0xff] %v538
                  %v540 = vld [vmem:[%s534 + $0x20] sm:$0xff]
                  %541 = vst [vmem:[%s535 + $0x10] sm:$0xff] %v540
                  %v542 = vld [vmem:[%s534 + $0x28] sm:$0xff]
                  %543 = vst [vmem:[%s535 + $0x18] sm:$0xff] %v542
                  %v544 = vld [vmem:[%s534 + $0x40] sm:$0xff]
                  %545 = vst [vmem:[%s535 + $0x20] sm:$0xff] %v544
                  %v546 = vld [vmem:[%s534 + $0x48] sm:$0xff]
                  %547 = vst [vmem:[%s535 + $0x28] sm:$0xff] %v546
                  %v548 = vld [vmem:[%s534 + $0x60] sm:$0xff]
                  %549 = vst [vmem:[%s535 + $0x30] sm:$0xff] %v548
                  %v550 = vld [vmem:[%s534 + $0x68] sm:$0xff]
                  %551 = vst [vmem:[%s535 + $0x38] sm:$0xff] %v550
                  %v552 = vld [vmem:[%s534 + $0x80] sm:$0xff]
                  %553 = vst [vmem:[%s535 + $0x40] sm:$0xff] %v552
                  %v554 = vld [vmem:[%s534 + $0x88] sm:$0xff]
                  %555 = vst [vmem:[%s535 + $0x48] sm:$0xff] %v554
                  %v556 = vld [vmem:[%s534 + $0xa0] sm:$0xff]
                  %557 = vst [vmem:[%s535 + $0x50] sm:$0xff] %v556
                  %v558 = vld [vmem:[%s534 + $0xa8] sm:$0xff]
                  %559 = vst [vmem:[%s535 + $0x58] sm:$0xff] %v558
                  %v560 = vld [vmem:[%s534 + $0xc0] sm:$0xff]
                  %561 = vst [vmem:[%s535 + $0x60] sm:$0xff] %v560
                  %v562 = vld [vmem:[%s534 + $0xc8] sm:$0xff]
                  %563 = vst [vmem:[%s535 + $0x68] sm:$0xff] %v562
                  %v564 = vld [vmem:[%s534 + $0xe0] sm:$0xff]
                  %565 = vst [vmem:[%s535 + $0x70] sm:$0xff] %v564
                  %v566 = vld [vmem:[%s534 + $0xe8] sm:$0xff]
                  %567 = vst [vmem:[%s535 + $0x78] sm:$0xff] %v566
                  %v568 = vld [vmem:[%s534 + $0x100] sm:$0xff]
                  %569 = vst [vmem:[%s535 + $0x80] sm:$0xff] %v568
                  %v570 = vld [vmem:[%s534 + $0x108] sm:$0xff]
                  %571 = vst [vmem:[%s535 + $0x88] sm:$0xff] %v570
                  %v572 = vld [vmem:[%s534 + $0x120] sm:$0xff]
                  %573 = vst [vmem:[%s535 + $0x90] sm:$0xff] %v572
                  %v574 = vld [vmem:[%s534 + $0x128] sm:$0xff]
                  %575 = vst [vmem:[%s535 + $0x98] sm:$0xff] %v574
                  %v576 = vld [vmem:[%s534 + $0x140] sm:$0xff]
                  %577 = vst [vmem:[%s535 + $0xa0] sm:$0xff] %v576
                  %v578 = vld [vmem:[%s534 + $0x148] sm:$0xff]
                  %579 = vst [vmem:[%s535 + $0xa8] sm:$0xff] %v578
                  %v580 = vld [vmem:[%s534 + $0x160] sm:$0xff]
                  %581 = vst [vmem:[%s535 + $0xb0] sm:$0xff] %v580
                  %v582 = vld [vmem:[%s534 + $0x168] sm:$0xff]
                  %583 = vst [vmem:[%s535 + $0xb8] sm:$0xff] %v582
                  %v584 = vld [vmem:[%s534 + $0x180] sm:$0xff]
                  %585 = vst [vmem:[%s535 + $0xc0] sm:$0xff] %v584
                  %v586 = vld [vmem:[%s534 + $0x188] sm:$0xff]
                  %587 = vst [vmem:[%s535 + $0xc8] sm:$0xff] %v586
                  %v588 = vld [vmem:[%s534 + $0x1a0] sm:$0xff]
                  %589 = vst [vmem:[%s535 + $0xd0] sm:$0xff] %v588
                  %v590 = vld [vmem:[%s534 + $0x1a8] sm:$0xff]
                  %591 = vst [vmem:[%s535 + $0xd8] sm:$0xff] %v590
                  %v592 = vld [vmem:[%s534 + $0x1c0] sm:$0xff]
                  %593 = vst [vmem:[%s535 + $0xe0] sm:$0xff] %v592
                  %v594 = vld [vmem:[%s534 + $0x1c8] sm:$0xff]
                  %595 = vst [vmem:[%s535 + $0xe8] sm:$0xff] %v594
                  %v596 = vld [vmem:[%s534 + $0x1e0] sm:$0xff]
                  %597 = vst [vmem:[%s535 + $0xf0] sm:$0xff] %v596
                  %v598 = vld [vmem:[%s534 + $0x1e8] sm:$0xff]
                  %599 = vst [vmem:[%s535 + $0xf8] sm:$0xff] %v598
                  %v600 = vld [vmem:[%s534 + $0x200] sm:$0xff]
                  %601 = vst [vmem:[%s535 + $0x100] sm:$0xff] %v600
                  %v602 = vld [vmem:[%s534 + $0x208] sm:$0xff]
                  %603 = vst [vmem:[%s535 + $0x108] sm:$0xff] %v602
                  %v604 = vld [vmem:[%s534 + $0x220] sm:$0xff]
                  %605 = vst [vmem:[%s535 + $0x110] sm:$0xff] %v604
                  %v606 = vld [vmem:[%s534 + $0x228] sm:$0xff]
                  %607 = vst [vmem:[%s535 + $0x118] sm:$0xff] %v606
                  %v608 = vld [vmem:[%s534 + $0x240] sm:$0xff]
                  %609 = vst [vmem:[%s535 + $0x120] sm:$0xff] %v608
                  %v610 = vld [vmem:[%s534 + $0x248] sm:$0xff]
                  %611 = vst [vmem:[%s535 + $0x128] sm:$0xff] %v610
                  %v612 = vld [vmem:[%s534 + $0x260] sm:$0xff]
                  %613 = vst [vmem:[%s535 + $0x130] sm:$0xff] %v612
                  %v614 = vld [vmem:[%s534 + $0x268] sm:$0xff]
                  %615 = vst [vmem:[%s535 + $0x138] sm:$0xff] %v614
                  %v616 = vld [vmem:[%s534 + $0x280] sm:$0xff]
                  %617 = vst [vmem:[%s535 + $0x140] sm:$0xff] %v616
                  %v618 = vld [vmem:[%s534 + $0x288] sm:$0xff]
                  %619 = vst [vmem:[%s535 + $0x148] sm:$0xff] %v618
                  %v620 = vld [vmem:[%s534 + $0x2a0] sm:$0xff]
                  %621 = vst [vmem:[%s535 + $0x150] sm:$0xff] %v620
                  %v622 = vld [vmem:[%s534 + $0x2a8] sm:$0xff]
                  %623 = vst [vmem:[%s535 + $0x158] sm:$0xff] %v622
                  %v624 = vld [vmem:[%s534 + $0x2c0] sm:$0xff]
                  %625 = vst [vmem:[%s535 + $0x160] sm:$0xff] %v624
                  %v626 = vld [vmem:[%s534 + $0x2c8] sm:$0xff]
                  %627 = vst [vmem:[%s535 + $0x168] sm:$0xff] %v626
                  %v628 = vld [vmem:[%s534 + $0x2e0] sm:$0xff]
                  %629 = vst [vmem:[%s535 + $0x170] sm:$0xff] %v628
                  %v630 = vld [vmem:[%s534 + $0x2e8] sm:$0xff]
                  %631 = vst [vmem:[%s535 + $0x178] sm:$0xff] %v630
                  %v632 = vld [vmem:[%s534 + $0x300] sm:$0xff]
                  %633 = vst [vmem:[%s535 + $0x180] sm:$0xff] %v632
                  %v634 = vld [vmem:[%s534 + $0x308] sm:$0xff]
                  %635 = vst [vmem:[%s535 + $0x188] sm:$0xff] %v634
                  %v636 = vld [vmem:[%s534 + $0x320] sm:$0xff]
                  %637 = vst [vmem:[%s535 + $0x190] sm:$0xff] %v636
                  %v638 = vld [vmem:[%s534 + $0x328] sm:$0xff]
                  %639 = vst [vmem:[%s535 + $0x198] sm:$0xff] %v638
                  %v640 = vld [vmem:[%s534 + $0x340] sm:$0xff]
                  %641 = vst [vmem:[%s535 + $0x1a0] sm:$0xff] %v640
                  %v642 = vld [vmem:[%s534 + $0x348] sm:$0xff]
                  %643 = vst [vmem:[%s535 + $0x1a8] sm:$0xff] %v642
                  %v644 = vld [vmem:[%s534 + $0x360] sm:$0xff]
                  %645 = vst [vmem:[%s535 + $0x1b0] sm:$0xff] %v644
                  %v646 = vld [vmem:[%s534 + $0x368] sm:$0xff]
                  %647 = vst [vmem:[%s535 + $0x1b8] sm:$0xff] %v646
                  %v648 = vld [vmem:[%s534 + $0x380] sm:$0xff]
                  %649 = vst [vmem:[%s535 + $0x1c0] sm:$0xff] %v648
                  %v650 = vld [vmem:[%s534 + $0x388] sm:$0xff]
                  %651 = vst [vmem:[%s535 + $0x1c8] sm:$0xff] %v650
                  %v652 = vld [vmem:[%s534 + $0x3a0] sm:$0xff]
                  %653 = vst [vmem:[%s535 + $0x1d0] sm:$0xff] %v652
                  %v654 = vld [vmem:[%s534 + $0x3a8] sm:$0xff]
                  %655 = vst [vmem:[%s535 + $0x1d8] sm:$0xff] %v654
                  %v656 = vld [vmem:[%s534 + $0x3c0] sm:$0xff]
                  %657 = vst [vmem:[%s535 + $0x1e0] sm:$0xff] %v656
                  %v658 = vld [vmem:[%s534 + $0x3c8] sm:$0xff]
                  %659 = vst [vmem:[%s535 + $0x1e8] sm:$0xff] %v658
                  %v660 = vld [vmem:[%s534 + $0x3e0] sm:$0xff]
                  %661 = vst [vmem:[%s535 + $0x1f0] sm:$0xff] %v660
                  %v662 = vld [vmem:[%s534 + $0x3e8] sm:$0xff]
                  %663 = vst [vmem:[%s535 + $0x1f8] sm:$0xff] %v662
                  %v664 = vld [vmem:[%s534 + $0x400] sm:$0xff]
                  %665 = vst [vmem:[%s535 + $0x200] sm:$0xff] %v664
                  %v666 = vld [vmem:[%s534 + $0x408] sm:$0xff]
                  %667 = vst [vmem:[%s535 + $0x208] sm:$0xff] %v666
                  %v668 = vld [vmem:[%s534 + $0x420] sm:$0xff]
                  %669 = vst [vmem:[%s535 + $0x210] sm:$0xff] %v668
                  %v670 = vld [vmem:[%s534 + $0x428] sm:$0xff]
                  %671 = vst [vmem:[%s535 + $0x218] sm:$0xff] %v670
                  %v672 = vld [vmem:[%s534 + $0x440] sm:$0xff]
                  %673 = vst [vmem:[%s535 + $0x220] sm:$0xff] %v672
                  %v674 = vld [vmem:[%s534 + $0x448] sm:$0xff]
                  %675 = vst [vmem:[%s535 + $0x228] sm:$0xff] %v674
                  %v676 = vld [vmem:[%s534 + $0x460] sm:$0xff]
                  %677 = vst [vmem:[%s535 + $0x230] sm:$0xff] %v676
                  %v678 = vld [vmem:[%s534 + $0x468] sm:$0xff]
                  %679 = vst [vmem:[%s535 + $0x238] sm:$0xff] %v678
                  %v680 = vld [vmem:[%s534 + $0x480] sm:$0xff]
                  %681 = vst [vmem:[%s535 + $0x240] sm:$0xff] %v680
                  %v682 = vld [vmem:[%s534 + $0x488] sm:$0xff]
                  %683 = vst [vmem:[%s535 + $0x248] sm:$0xff] %v682
                  %v684 = vld [vmem:[%s534 + $0x4a0] sm:$0xff]
                  %685 = vst [vmem:[%s535 + $0x250] sm:$0xff] %v684
                  %v686 = vld [vmem:[%s534 + $0x4a8] sm:$0xff]
                  %687 = vst [vmem:[%s535 + $0x258] sm:$0xff] %v686
                  %v688 = vld [vmem:[%s534 + $0x4c0] sm:$0xff]
                  %689 = vst [vmem:[%s535 + $0x260] sm:$0xff] %v688
                  %v690 = vld [vmem:[%s534 + $0x4c8] sm:$0xff]
                  %691 = vst [vmem:[%s535 + $0x268] sm:$0xff] %v690
                  %v692 = vld [vmem:[%s534 + $0x4e0] sm:$0xff]
                  %693 = vst [vmem:[%s535 + $0x270] sm:$0xff] %v692
                  %v694 = vld [vmem:[%s534 + $0x4e8] sm:$0xff]
                  %695 = vst [vmem:[%s535 + $0x278] sm:$0xff] %v694
                  %v696 = vld [vmem:[%s534 + $0x500] sm:$0xff]
                  %697 = vst [vmem:[%s535 + $0x280] sm:$0xff] %v696
                  %v698 = vld [vmem:[%s534 + $0x508] sm:$0xff]
                  %699 = vst [vmem:[%s535 + $0x288] sm:$0xff] %v698
                  %v700 = vld [vmem:[%s534 + $0x520] sm:$0xff]
                  %701 = vst [vmem:[%s535 + $0x290] sm:$0xff] %v700
                  %v702 = vld [vmem:[%s534 + $0x528] sm:$0xff]
                  %703 = vst [vmem:[%s535 + $0x298] sm:$0xff] %v702
                  %v704 = vld [vmem:[%s534 + $0x540] sm:$0xff]
                  %705 = vst [vmem:[%s535 + $0x2a0] sm:$0xff] %v704
                  %v706 = vld [vmem:[%s534 + $0x548] sm:$0xff]
                  %707 = vst [vmem:[%s535 + $0x2a8] sm:$0xff] %v706
                  %v708 = vld [vmem:[%s534 + $0x560] sm:$0xff]
                  %709 = vst [vmem:[%s535 + $0x2b0] sm:$0xff] %v708
                  %v710 = vld [vmem:[%s534 + $0x568] sm:$0xff]
                  %711 = vst [vmem:[%s535 + $0x2b8] sm:$0xff] %v710
                  %v712 = vld [vmem:[%s534 + $0x580] sm:$0xff]
                  %713 = vst [vmem:[%s535 + $0x2c0] sm:$0xff] %v712
                  %v714 = vld [vmem:[%s534 + $0x588] sm:$0xff]
                  %715 = vst [vmem:[%s535 + $0x2c8] sm:$0xff] %v714
                  %v716 = vld [vmem:[%s534 + $0x5a0] sm:$0xff]
                  %717 = vst [vmem:[%s535 + $0x2d0] sm:$0xff] %v716
                  %v718 = vld [vmem:[%s534 + $0x5a8] sm:$0xff]
                  %719 = vst [vmem:[%s535 + $0x2d8] sm:$0xff] %v718
                  %v720 = vld [vmem:[%s534 + $0x5c0] sm:$0xff]
                  %721 = vst [vmem:[%s535 + $0x2e0] sm:$0xff] %v720
                  %v722 = vld [vmem:[%s534 + $0x5c8] sm:$0xff]
                  %723 = vst [vmem:[%s535 + $0x2e8] sm:$0xff] %v722
                  %v724 = vld [vmem:[%s534 + $0x5e0] sm:$0xff]
                  %725 = vst [vmem:[%s535 + $0x2f0] sm:$0xff] %v724
                  %v726 = vld [vmem:[%s534 + $0x5e8] sm:$0xff]
                  %727 = vst [vmem:[%s535 + $0x2f8] sm:$0xff] %v726
                  %v728 = vld [vmem:[%s534 + $0x600] sm:$0xff]
                  %729 = vst [vmem:[%s535 + $0x300] sm:$0xff] %v728
                  %v730 = vld [vmem:[%s534 + $0x608] sm:$0xff]
                  %731 = vst [vmem:[%s535 + $0x308] sm:$0xff] %v730
                  %v732 = vld [vmem:[%s534 + $0x620] sm:$0xff]
                  %733 = vst [vmem:[%s535 + $0x310] sm:$0xff] %v732
                  %v734 = vld [vmem:[%s534 + $0x628] sm:$0xff]
                  %735 = vst [vmem:[%s535 + $0x318] sm:$0xff] %v734
                  %v736 = vld [vmem:[%s534 + $0x640] sm:$0xff]
                  %737 = vst [vmem:[%s535 + $0x320] sm:$0xff] %v736
                  %v738 = vld [vmem:[%s534 + $0x648] sm:$0xff]
                  %739 = vst [vmem:[%s535 + $0x328] sm:$0xff] %v738
                  %v740 = vld [vmem:[%s534 + $0x660] sm:$0xff]
                  %741 = vst [vmem:[%s535 + $0x330] sm:$0xff] %v740
                  %v742 = vld [vmem:[%s534 + $0x668] sm:$0xff]
                  %743 = vst [vmem:[%s535 + $0x338] sm:$0xff] %v742
                  %v744 = vld [vmem:[%s534 + $0x680] sm:$0xff]
                  %745 = vst [vmem:[%s535 + $0x340] sm:$0xff] %v744
                  %v746 = vld [vmem:[%s534 + $0x688] sm:$0xff]
                  %747 = vst [vmem:[%s535 + $0x348] sm:$0xff] %v746
                  %v748 = vld [vmem:[%s534 + $0x6a0] sm:$0xff]
                  %749 = vst [vmem:[%s535 + $0x350] sm:$0xff] %v748
                  %v750 = vld [vmem:[%s534 + $0x6a8] sm:$0xff]
                  %751 = vst [vmem:[%s535 + $0x358] sm:$0xff] %v750
                  %v752 = vld [vmem:[%s534 + $0x6c0] sm:$0xff]
                  %753 = vst [vmem:[%s535 + $0x360] sm:$0xff] %v752
                  %v754 = vld [vmem:[%s534 + $0x6c8] sm:$0xff]
                  %755 = vst [vmem:[%s535 + $0x368] sm:$0xff] %v754
                  %v756 = vld [vmem:[%s534 + $0x6e0] sm:$0xff]
                  %757 = vst [vmem:[%s535 + $0x370] sm:$0xff] %v756
                  %v758 = vld [vmem:[%s534 + $0x6e8] sm:$0xff]
                  %759 = vst [vmem:[%s535 + $0x378] sm:$0xff] %v758
                  %v760 = vld [vmem:[%s534 + $0x700] sm:$0xff]
                  %761 = vst [vmem:[%s535 + $0x380] sm:$0xff] %v760
                  %v762 = vld [vmem:[%s534 + $0x708] sm:$0xff]
                  %763 = vst [vmem:[%s535 + $0x388] sm:$0xff] %v762
                  %v764 = vld [vmem:[%s534 + $0x720] sm:$0xff]
                  %765 = vst [vmem:[%s535 + $0x390] sm:$0xff] %v764
                  %v766 = vld [vmem:[%s534 + $0x728] sm:$0xff]
                  %767 = vst [vmem:[%s535 + $0x398] sm:$0xff] %v766
                  %v768 = vld [vmem:[%s534 + $0x740] sm:$0xff]
                  %769 = vst [vmem:[%s535 + $0x3a0] sm:$0xff] %v768
                  %v770 = vld [vmem:[%s534 + $0x748] sm:$0xff]
                  %771 = vst [vmem:[%s535 + $0x3a8] sm:$0xff] %v770
                  %v772 = vld [vmem:[%s534 + $0x760] sm:$0xff]
                  %773 = vst [vmem:[%s535 + $0x3b0] sm:$0xff] %v772
                  %v774 = vld [vmem:[%s534 + $0x768] sm:$0xff]
                  %775 = vst [vmem:[%s535 + $0x3b8] sm:$0xff] %v774
                  %v776 = vld [vmem:[%s534 + $0x780] sm:$0xff]
                  %777 = vst [vmem:[%s535 + $0x3c0] sm:$0xff] %v776
                  %v778 = vld [vmem:[%s534 + $0x788] sm:$0xff]
                  %779 = vst [vmem:[%s535 + $0x3c8] sm:$0xff] %v778
                  %v780 = vld [vmem:[%s534 + $0x7a0] sm:$0xff]
                  %781 = vst [vmem:[%s535 + $0x3d0] sm:$0xff] %v780
                  %v782 = vld [vmem:[%s534 + $0x7a8] sm:$0xff]
                  %783 = vst [vmem:[%s535 + $0x3d8] sm:$0xff] %v782
                  %v784 = vld [vmem:[%s534 + $0x7c0] sm:$0xff]
                  %785 = vst [vmem:[%s535 + $0x3e0] sm:$0xff] %v784
                  %v786 = vld [vmem:[%s534 + $0x7c8] sm:$0xff]
                  %787 = vst [vmem:[%s535 + $0x3e8] sm:$0xff] %v786
                  %v788 = vld [vmem:[%s534 + $0x7e0] sm:$0xff]
                  %789 = vst [vmem:[%s535 + $0x3f0] sm:$0xff] %v788
                  %v790 = vld [vmem:[%s534 + $0x7e8] sm:$0xff]
                  %791 = vst [vmem:[%s535 + $0x3f8] sm:$0xff] %v790
                $region72: #{pointnet2_dense_encoder.2} parent=66 // loop_footer
                  %s533 = sadd.s32 1, %s529
                $region73: #{pointnet2_dense_encoder.2} parent=66 // loop_footer_branch
                  %528 = sbr.rel target = $region69
                $region74: #{pointnet2_dense_encoder.2} parent=66 // loop_exit
                  _
              $region67: #{pointnet2_dense_encoder.2} parent=51 // pred_fallthru
                _
              // Predicated region
              $region75: #{pointnet2_dense_encoder.2} parent=51 // pred_check
                _
              $region76: #{pointnet2_dense_encoder.2} parent=51 // pred_check_branch
                %793 = sbr.rel target = $region78
              $region77: #{pointnet2_dense_encoder.2} parent=51 // pred_region
                _
              $region78: #{pointnet2_dense_encoder.2} parent=51 // pred_fallthru
                _
            $region52: #{pointnet2_dense_encoder.2} parent=47 // pred_fallthru
              _
            // Predicated region
            $region53: #{pointnet2_dense_encoder.2} parent=47 // pred_check
              _
            $region54: #{pointnet2_dense_encoder.2} parent=47 // pred_check_branch
              %260 = sbr.rel target = $region56
            $region55: #{pointnet2_dense_encoder.2} parent=47 // pred_region
              loop: start=0, step=1, limit=1
              $region57: #{pointnet2_dense_encoder.2} parent=55 // loop_pre_header
                _
              $region58: #{pointnet2_dense_encoder.2} parent=55 // loop_header
                %s263 = sphi 0, %s267
                %p264 = scmp.ge.s32.totalorder %s263, 1
                %s268 = sphi %s254, %s254
                %s269 = sphi %s248, %s248
              $region59: #{pointnet2_dense_encoder.2} parent=55 // loop_header_branch
                %266 = sbr.rel (%p264) target = $region63
              $region60: #{pointnet2_dense_encoder.2} parent=55 // loop_body
                %v270 = vld [vmem:[%s268] sm:$0xff]
                %271 = vst [vmem:[%s269] sm:$0xff] %v270
                %v272 = vld [vmem:[%s268 + $0x8] sm:$0xff]
                %273 = vst [vmem:[%s269 + $0x8] sm:$0xff] %v272
                %v274 = vld [vmem:[%s268 + $0x20] sm:$0xff]
                %275 = vst [vmem:[%s269 + $0x10] sm:$0xff] %v274
                %v276 = vld [vmem:[%s268 + $0x28] sm:$0xff]
                %277 = vst [vmem:[%s269 + $0x18] sm:$0xff] %v276
                %v278 = vld [vmem:[%s268 + $0x40] sm:$0xff]
                %279 = vst [vmem:[%s269 + $0x20] sm:$0xff] %v278
                %v280 = vld [vmem:[%s268 + $0x48] sm:$0xff]
                %281 = vst [vmem:[%s269 + $0x28] sm:$0xff] %v280
                %v282 = vld [vmem:[%s268 + $0x60] sm:$0xff]
                %283 = vst [vmem:[%s269 + $0x30] sm:$0xff] %v282
                %v284 = vld [vmem:[%s268 + $0x68] sm:$0xff]
                %285 = vst [vmem:[%s269 + $0x38] sm:$0xff] %v284
                %v286 = vld [vmem:[%s268 + $0x80] sm:$0xff]
                %287 = vst [vmem:[%s269 + $0x40] sm:$0xff] %v286
                %v288 = vld [vmem:[%s268 + $0x88] sm:$0xff]
                %289 = vst [vmem:[%s269 + $0x48] sm:$0xff] %v288
                %v290 = vld [vmem:[%s268 + $0xa0] sm:$0xff]
                %291 = vst [vmem:[%s269 + $0x50] sm:$0xff] %v290
                %v292 = vld [vmem:[%s268 + $0xa8] sm:$0xff]
                %293 = vst [vmem:[%s269 + $0x58] sm:$0xff] %v292
                %v294 = vld [vmem:[%s268 + $0xc0] sm:$0xff]
                %295 = vst [vmem:[%s269 + $0x60] sm:$0xff] %v294
                %v296 = vld [vmem:[%s268 + $0xc8] sm:$0xff]
                %297 = vst [vmem:[%s269 + $0x68] sm:$0xff] %v296
                %v298 = vld [vmem:[%s268 + $0xe0] sm:$0xff]
                %299 = vst [vmem:[%s269 + $0x70] sm:$0xff] %v298
                %v300 = vld [vmem:[%s268 + $0xe8] sm:$0xff]
                %301 = vst [vmem:[%s269 + $0x78] sm:$0xff] %v300
                %v302 = vld [vmem:[%s268 + $0x100] sm:$0xff]
                %303 = vst [vmem:[%s269 + $0x80] sm:$0xff] %v302
                %v304 = vld [vmem:[%s268 + $0x108] sm:$0xff]
                %305 = vst [vmem:[%s269 + $0x88] sm:$0xff] %v304
                %v306 = vld [vmem:[%s268 + $0x120] sm:$0xff]
                %307 = vst [vmem:[%s269 + $0x90] sm:$0xff] %v306
                %v308 = vld [vmem:[%s268 + $0x128] sm:$0xff]
                %309 = vst [vmem:[%s269 + $0x98] sm:$0xff] %v308
                %v310 = vld [vmem:[%s268 + $0x140] sm:$0xff]
                %311 = vst [vmem:[%s269 + $0xa0] sm:$0xff] %v310
                %v312 = vld [vmem:[%s268 + $0x148] sm:$0xff]
                %313 = vst [vmem:[%s269 + $0xa8] sm:$0xff] %v312
                %v314 = vld [vmem:[%s268 + $0x160] sm:$0xff]
                %315 = vst [vmem:[%s269 + $0xb0] sm:$0xff] %v314
                %v316 = vld [vmem:[%s268 + $0x168] sm:$0xff]
                %317 = vst [vmem:[%s269 + $0xb8] sm:$0xff] %v316
                %v318 = vld [vmem:[%s268 + $0x180] sm:$0xff]
                %319 = vst [vmem:[%s269 + $0xc0] sm:$0xff] %v318
                %v320 = vld [vmem:[%s268 + $0x188] sm:$0xff]
                %321 = vst [vmem:[%s269 + $0xc8] sm:$0xff] %v320
                %v322 = vld [vmem:[%s268 + $0x1a0] sm:$0xff]
                %323 = vst [vmem:[%s269 + $0xd0] sm:$0xff] %v322
                %v324 = vld [vmem:[%s268 + $0x1a8] sm:$0xff]
                %325 = vst [vmem:[%s269 + $0xd8] sm:$0xff] %v324
                %v326 = vld [vmem:[%s268 + $0x1c0] sm:$0xff]
                %327 = vst [vmem:[%s269 + $0xe0] sm:$0xff] %v326
                %v328 = vld [vmem:[%s268 + $0x1c8] sm:$0xff]
                %329 = vst [vmem:[%s269 + $0xe8] sm:$0xff] %v328
                %v330 = vld [vmem:[%s268 + $0x1e0] sm:$0xff]
                %331 = vst [vmem:[%s269 + $0xf0] sm:$0xff] %v330
                %v332 = vld [vmem:[%s268 + $0x1e8] sm:$0xff]
                %333 = vst [vmem:[%s269 + $0xf8] sm:$0xff] %v332
                %v334 = vld [vmem:[%s268 + $0x200] sm:$0xff]
                %335 = vst [vmem:[%s269 + $0x100] sm:$0xff] %v334
                %v336 = vld [vmem:[%s268 + $0x208] sm:$0xff]
                %337 = vst [vmem:[%s269 + $0x108] sm:$0xff] %v336
                %v338 = vld [vmem:[%s268 + $0x220] sm:$0xff]
                %339 = vst [vmem:[%s269 + $0x110] sm:$0xff] %v338
                %v340 = vld [vmem:[%s268 + $0x228] sm:$0xff]
                %341 = vst [vmem:[%s269 + $0x118] sm:$0xff] %v340
                %v342 = vld [vmem:[%s268 + $0x240] sm:$0xff]
                %343 = vst [vmem:[%s269 + $0x120] sm:$0xff] %v342
                %v344 = vld [vmem:[%s268 + $0x248] sm:$0xff]
                %345 = vst [vmem:[%s269 + $0x128] sm:$0xff] %v344
                %v346 = vld [vmem:[%s268 + $0x260] sm:$0xff]
                %347 = vst [vmem:[%s269 + $0x130] sm:$0xff] %v346
                %v348 = vld [vmem:[%s268 + $0x268] sm:$0xff]
                %349 = vst [vmem:[%s269 + $0x138] sm:$0xff] %v348
                %v350 = vld [vmem:[%s268 + $0x280] sm:$0xff]
                %351 = vst [vmem:[%s269 + $0x140] sm:$0xff] %v350
                %v352 = vld [vmem:[%s268 + $0x288] sm:$0xff]
                %353 = vst [vmem:[%s269 + $0x148] sm:$0xff] %v352
                %v354 = vld [vmem:[%s268 + $0x2a0] sm:$0xff]
                %355 = vst [vmem:[%s269 + $0x150] sm:$0xff] %v354
                %v356 = vld [vmem:[%s268 + $0x2a8] sm:$0xff]
                %357 = vst [vmem:[%s269 + $0x158] sm:$0xff] %v356
                %v358 = vld [vmem:[%s268 + $0x2c0] sm:$0xff]
                %359 = vst [vmem:[%s269 + $0x160] sm:$0xff] %v358
                %v360 = vld [vmem:[%s268 + $0x2c8] sm:$0xff]
                %361 = vst [vmem:[%s269 + $0x168] sm:$0xff] %v360
                %v362 = vld [vmem:[%s268 + $0x2e0] sm:$0xff]
                %363 = vst [vmem:[%s269 + $0x170] sm:$0xff] %v362
                %v364 = vld [vmem:[%s268 + $0x2e8] sm:$0xff]
                %365 = vst [vmem:[%s269 + $0x178] sm:$0xff] %v364
                %v366 = vld [vmem:[%s268 + $0x300] sm:$0xff]
                %367 = vst [vmem:[%s269 + $0x180] sm:$0xff] %v366
                %v368 = vld [vmem:[%s268 + $0x308] sm:$0xff]
                %369 = vst [vmem:[%s269 + $0x188] sm:$0xff] %v368
                %v370 = vld [vmem:[%s268 + $0x320] sm:$0xff]
                %371 = vst [vmem:[%s269 + $0x190] sm:$0xff] %v370
                %v372 = vld [vmem:[%s268 + $0x328] sm:$0xff]
                %373 = vst [vmem:[%s269 + $0x198] sm:$0xff] %v372
                %v374 = vld [vmem:[%s268 + $0x340] sm:$0xff]
                %375 = vst [vmem:[%s269 + $0x1a0] sm:$0xff] %v374
                %v376 = vld [vmem:[%s268 + $0x348] sm:$0xff]
                %377 = vst [vmem:[%s269 + $0x1a8] sm:$0xff] %v376
                %v378 = vld [vmem:[%s268 + $0x360] sm:$0xff]
                %379 = vst [vmem:[%s269 + $0x1b0] sm:$0xff] %v378
                %v380 = vld [vmem:[%s268 + $0x368] sm:$0xff]
                %381 = vst [vmem:[%s269 + $0x1b8] sm:$0xff] %v380
                %v382 = vld [vmem:[%s268 + $0x380] sm:$0xff]
                %383 = vst [vmem:[%s269 + $0x1c0] sm:$0xff] %v382
                %v384 = vld [vmem:[%s268 + $0x388] sm:$0xff]
                %385 = vst [vmem:[%s269 + $0x1c8] sm:$0xff] %v384
                %v386 = vld [vmem:[%s268 + $0x3a0] sm:$0xff]
                %387 = vst [vmem:[%s269 + $0x1d0] sm:$0xff] %v386
                %v388 = vld [vmem:[%s268 + $0x3a8] sm:$0xff]
                %389 = vst [vmem:[%s269 + $0x1d8] sm:$0xff] %v388
                %v390 = vld [vmem:[%s268 + $0x3c0] sm:$0xff]
                %391 = vst [vmem:[%s269 + $0x1e0] sm:$0xff] %v390
                %v392 = vld [vmem:[%s268 + $0x3c8] sm:$0xff]
                %393 = vst [vmem:[%s269 + $0x1e8] sm:$0xff] %v392
                %v394 = vld [vmem:[%s268 + $0x3e0] sm:$0xff]
                %395 = vst [vmem:[%s269 + $0x1f0] sm:$0xff] %v394
                %v396 = vld [vmem:[%s268 + $0x3e8] sm:$0xff]
                %397 = vst [vmem:[%s269 + $0x1f8] sm:$0xff] %v396
                %v398 = vld [vmem:[%s268 + $0x400] sm:$0xff]
                %399 = vst [vmem:[%s269 + $0x200] sm:$0xff] %v398
                %v400 = vld [vmem:[%s268 + $0x408] sm:$0xff]
                %401 = vst [vmem:[%s269 + $0x208] sm:$0xff] %v400
                %v402 = vld [vmem:[%s268 + $0x420] sm:$0xff]
                %403 = vst [vmem:[%s269 + $0x210] sm:$0xff] %v402
                %v404 = vld [vmem:[%s268 + $0x428] sm:$0xff]
                %405 = vst [vmem:[%s269 + $0x218] sm:$0xff] %v404
                %v406 = vld [vmem:[%s268 + $0x440] sm:$0xff]
                %407 = vst [vmem:[%s269 + $0x220] sm:$0xff] %v406
                %v408 = vld [vmem:[%s268 + $0x448] sm:$0xff]
                %409 = vst [vmem:[%s269 + $0x228] sm:$0xff] %v408
                %v410 = vld [vmem:[%s268 + $0x460] sm:$0xff]
                %411 = vst [vmem:[%s269 + $0x230] sm:$0xff] %v410
                %v412 = vld [vmem:[%s268 + $0x468] sm:$0xff]
                %413 = vst [vmem:[%s269 + $0x238] sm:$0xff] %v412
                %v414 = vld [vmem:[%s268 + $0x480] sm:$0xff]
                %415 = vst [vmem:[%s269 + $0x240] sm:$0xff] %v414
                %v416 = vld [vmem:[%s268 + $0x488] sm:$0xff]
                %417 = vst [vmem:[%s269 + $0x248] sm:$0xff] %v416
                %v418 = vld [vmem:[%s268 + $0x4a0] sm:$0xff]
                %419 = vst [vmem:[%s269 + $0x250] sm:$0xff] %v418
                %v420 = vld [vmem:[%s268 + $0x4a8] sm:$0xff]
                %421 = vst [vmem:[%s269 + $0x258] sm:$0xff] %v420
                %v422 = vld [vmem:[%s268 + $0x4c0] sm:$0xff]
                %423 = vst [vmem:[%s269 + $0x260] sm:$0xff] %v422
                %v424 = vld [vmem:[%s268 + $0x4c8] sm:$0xff]
                %425 = vst [vmem:[%s269 + $0x268] sm:$0xff] %v424
                %v426 = vld [vmem:[%s268 + $0x4e0] sm:$0xff]
                %427 = vst [vmem:[%s269 + $0x270] sm:$0xff] %v426
                %v428 = vld [vmem:[%s268 + $0x4e8] sm:$0xff]
                %429 = vst [vmem:[%s269 + $0x278] sm:$0xff] %v428
                %v430 = vld [vmem:[%s268 + $0x500] sm:$0xff]
                %431 = vst [vmem:[%s269 + $0x280] sm:$0xff] %v430
                %v432 = vld [vmem:[%s268 + $0x508] sm:$0xff]
                %433 = vst [vmem:[%s269 + $0x288] sm:$0xff] %v432
                %v434 = vld [vmem:[%s268 + $0x520] sm:$0xff]
                %435 = vst [vmem:[%s269 + $0x290] sm:$0xff] %v434
                %v436 = vld [vmem:[%s268 + $0x528] sm:$0xff]
                %437 = vst [vmem:[%s269 + $0x298] sm:$0xff] %v436
                %v438 = vld [vmem:[%s268 + $0x540] sm:$0xff]
                %439 = vst [vmem:[%s269 + $0x2a0] sm:$0xff] %v438
                %v440 = vld [vmem:[%s268 + $0x548] sm:$0xff]
                %441 = vst [vmem:[%s269 + $0x2a8] sm:$0xff] %v440
                %v442 = vld [vmem:[%s268 + $0x560] sm:$0xff]
                %443 = vst [vmem:[%s269 + $0x2b0] sm:$0xff] %v442
                %v444 = vld [vmem:[%s268 + $0x568] sm:$0xff]
                %445 = vst [vmem:[%s269 + $0x2b8] sm:$0xff] %v444
                %v446 = vld [vmem:[%s268 + $0x580] sm:$0xff]
                %447 = vst [vmem:[%s269 + $0x2c0] sm:$0xff] %v446
                %v448 = vld [vmem:[%s268 + $0x588] sm:$0xff]
                %449 = vst [vmem:[%s269 + $0x2c8] sm:$0xff] %v448
                %v450 = vld [vmem:[%s268 + $0x5a0] sm:$0xff]
                %451 = vst [vmem:[%s269 + $0x2d0] sm:$0xff] %v450
                %v452 = vld [vmem:[%s268 + $0x5a8] sm:$0xff]
                %453 = vst [vmem:[%s269 + $0x2d8] sm:$0xff] %v452
                %v454 = vld [vmem:[%s268 + $0x5c0] sm:$0xff]
                %455 = vst [vmem:[%s269 + $0x2e0] sm:$0xff] %v454
                %v456 = vld [vmem:[%s268 + $0x5c8] sm:$0xff]
                %457 = vst [vmem:[%s269 + $0x2e8] sm:$0xff] %v456
                %v458 = vld [vmem:[%s268 + $0x5e0] sm:$0xff]
                %459 = vst [vmem:[%s269 + $0x2f0] sm:$0xff] %v458
                %v460 = vld [vmem:[%s268 + $0x5e8] sm:$0xff]
                %461 = vst [vmem:[%s269 + $0x2f8] sm:$0xff] %v460
                %v462 = vld [vmem:[%s268 + $0x600] sm:$0xff]
                %463 = vst [vmem:[%s269 + $0x300] sm:$0xff] %v462
                %v464 = vld [vmem:[%s268 + $0x608] sm:$0xff]
                %465 = vst [vmem:[%s269 + $0x308] sm:$0xff] %v464
                %v466 = vld [vmem:[%s268 + $0x620] sm:$0xff]
                %467 = vst [vmem:[%s269 + $0x310] sm:$0xff] %v466
                %v468 = vld [vmem:[%s268 + $0x628] sm:$0xff]
                %469 = vst [vmem:[%s269 + $0x318] sm:$0xff] %v468
                %v470 = vld [vmem:[%s268 + $0x640] sm:$0xff]
                %471 = vst [vmem:[%s269 + $0x320] sm:$0xff] %v470
                %v472 = vld [vmem:[%s268 + $0x648] sm:$0xff]
                %473 = vst [vmem:[%s269 + $0x328] sm:$0xff] %v472
                %v474 = vld [vmem:[%s268 + $0x660] sm:$0xff]
                %475 = vst [vmem:[%s269 + $0x330] sm:$0xff] %v474
                %v476 = vld [vmem:[%s268 + $0x668] sm:$0xff]
                %477 = vst [vmem:[%s269 + $0x338] sm:$0xff] %v476
                %v478 = vld [vmem:[%s268 + $0x680] sm:$0xff]
                %479 = vst [vmem:[%s269 + $0x340] sm:$0xff] %v478
                %v480 = vld [vmem:[%s268 + $0x688] sm:$0xff]
                %481 = vst [vmem:[%s269 + $0x348] sm:$0xff] %v480
                %v482 = vld [vmem:[%s268 + $0x6a0] sm:$0xff]
                %483 = vst [vmem:[%s269 + $0x350] sm:$0xff] %v482
                %v484 = vld [vmem:[%s268 + $0x6a8] sm:$0xff]
                %485 = vst [vmem:[%s269 + $0x358] sm:$0xff] %v484
                %v486 = vld [vmem:[%s268 + $0x6c0] sm:$0xff]
                %487 = vst [vmem:[%s269 + $0x360] sm:$0xff] %v486
                %v488 = vld [vmem:[%s268 + $0x6c8] sm:$0xff]
                %489 = vst [vmem:[%s269 + $0x368] sm:$0xff] %v488
                %v490 = vld [vmem:[%s268 + $0x6e0] sm:$0xff]
                %491 = vst [vmem:[%s269 + $0x370] sm:$0xff] %v490
                %v492 = vld [vmem:[%s268 + $0x6e8] sm:$0xff]
                %493 = vst [vmem:[%s269 + $0x378] sm:$0xff] %v492
                %v494 = vld [vmem:[%s268 + $0x700] sm:$0xff]
                %495 = vst [vmem:[%s269 + $0x380] sm:$0xff] %v494
                %v496 = vld [vmem:[%s268 + $0x708] sm:$0xff]
                %497 = vst [vmem:[%s269 + $0x388] sm:$0xff] %v496
                %v498 = vld [vmem:[%s268 + $0x720] sm:$0xff]
                %499 = vst [vmem:[%s269 + $0x390] sm:$0xff] %v498
                %v500 = vld [vmem:[%s268 + $0x728] sm:$0xff]
                %501 = vst [vmem:[%s269 + $0x398] sm:$0xff] %v500
                %v502 = vld [vmem:[%s268 + $0x740] sm:$0xff]
                %503 = vst [vmem:[%s269 + $0x3a0] sm:$0xff] %v502
                %v504 = vld [vmem:[%s268 + $0x748] sm:$0xff]
                %505 = vst [vmem:[%s269 + $0x3a8] sm:$0xff] %v504
                %v506 = vld [vmem:[%s268 + $0x760] sm:$0xff]
                %507 = vst [vmem:[%s269 + $0x3b0] sm:$0xff] %v506
                %v508 = vld [vmem:[%s268 + $0x768] sm:$0xff]
                %509 = vst [vmem:[%s269 + $0x3b8] sm:$0xff] %v508
                %v510 = vld [vmem:[%s268 + $0x780] sm:$0xff]
                %511 = vst [vmem:[%s269 + $0x3c0] sm:$0xff] %v510
                %v512 = vld [vmem:[%s268 + $0x788] sm:$0xff]
                %513 = vst [vmem:[%s269 + $0x3c8] sm:$0xff] %v512
                %v514 = vld [vmem:[%s268 + $0x7a0] sm:$0xff]
                %515 = vst [vmem:[%s269 + $0x3d0] sm:$0xff] %v514
                %v516 = vld [vmem:[%s268 + $0x7a8] sm:$0xff]
                %517 = vst [vmem:[%s269 + $0x3d8] sm:$0xff] %v516
                %v518 = vld [vmem:[%s268 + $0x7c0] sm:$0xff]
                %519 = vst [vmem:[%s269 + $0x3e0] sm:$0xff] %v518
                %v520 = vld [vmem:[%s268 + $0x7c8] sm:$0xff]
                %521 = vst [vmem:[%s269 + $0x3e8] sm:$0xff] %v520
                %v522 = vld [vmem:[%s268 + $0x7e0] sm:$0xff]
                %523 = vst [vmem:[%s269 + $0x3f0] sm:$0xff] %v522
                %v524 = vld [vmem:[%s268 + $0x7e8] sm:$0xff]
                %525 = vst [vmem:[%s269 + $0x3f8] sm:$0xff] %v524
              $region61: #{pointnet2_dense_encoder.2} parent=55 // loop_footer
                %s267 = sadd.s32 1, %s263
              $region62: #{pointnet2_dense_encoder.2} parent=55 // loop_footer_branch
                %262 = sbr.rel target = $region58
              $region63: #{pointnet2_dense_encoder.2} parent=55 // loop_exit
                _
            $region56: #{pointnet2_dense_encoder.2} parent=47 // pred_fallthru
              _
          $region48: #{pointnet2_dense_encoder.2} parent=43 // pred_fallthru
            _
          %794 = vnop
        $region44: #{pointnet2_dense_encoder.2} parent=39 // pred_fallthru
          _
      $region40: #{pointnet2_dense_encoder.2} parent=5 // pred_fallthru
        _
      %p795 = scmp.le.s32.totalorder 1, %s13
      %p796 = scmp.lt.s32.totalorder %s13, 5
      %p797 = pnand %p795, %p796
      %p798 = pneg %p797
      // Predicated region
      $region79: #{pointnet2_dense_encoder.2} parent=5 // pred_check
        _
      $region80: #{pointnet2_dense_encoder.2} parent=5 // pred_check_branch
        %800 = sbr.rel (%p797) target = $region82
      $region81: #{pointnet2_dense_encoder.2} parent=5 // pred_region
        %s801 = ssub.s32 %s13, 1
        %s802 = sand.u32 %s40, 1
        %s803 = sand.u32 %s40, 1
        %s804 = smul.addr %s803, 1024
        %s805 = scalar_lea.vmem [#allocation2], %s804
        // Predicated region
        $region83: #{pointnet2_dense_encoder.2} parent=81 // pred_check
          %p806 = pneg %p53
        $region84: #{pointnet2_dense_encoder.2} parent=81 // pred_check_branch
          %808 = sbr.rel (%p806) target = $region86
        $region85: #{pointnet2_dense_encoder.2} parent=81 // pred_region
          _
        $region86: #{pointnet2_dense_encoder.2} parent=81 // pred_fallthru
          _
        %s809 = sand.u32 %s40, 1
        %s810 = sand.u32 %s40, 1
        %s811 = smul.addr %s810, 1024
        %s812 = scalar_lea.vmem [#allocation2], %s811
        %p813 = pneg %p53
        %p814 = pneg %p50
        %p815 = pneg %p74
        %p816 = pneg %p71
        %p817 = pneg %p95
        %p818 = pneg %p92
        %p819 = pneg %p116
        %p820 = pneg %p113
        %p821 = pneg %p137
        %p822 = pneg %p134
        %p823 = pneg %p158
        %p824 = pneg %p155
        %p825 = pneg %p179
        %p826 = pneg %p176
        %p827 = pneg %p205
        %p828 = pneg %p202
        %s829 = smul.u32 8, %s22
        %p830 = scmp.lt.s32.totalorder %s829, 15
        %s831 = scalar_select %p830, %s829, 15
        %s832 = smul.addr %s831, 8
        %s833 = scalar_lea.vmem %s7, %s832
        %s834 = smul.u32 64, %s22
        %s835 = smul.u32 2, %s23
        %s836 = smul.u32 8, %s22
        %p837 = scmp.lt.s32.totalorder %s836, 15
        %s838 = scalar_select %p837, %s836, 15
        %s839 = smul.addr %s838, 8
        %s840 = scalar_lea.vmem %s7, %s839
        %s841 = smul.u32 8, %s22
        %v843 = vld [vmem:[%s805] sm:$0xff]
        %v844 = vld [vmem:[%s805 + $0x8] sm:$0xff]
        %v845 = vld [vmem:[%s805 + $0x10] sm:$0xff]
        %v846 = vld [vmem:[%s805 + $0x18] sm:$0xff]
        %v847 = vld [vmem:[%s805 + $0x20] sm:$0xff]
        %v848 = vld [vmem:[%s805 + $0x28] sm:$0xff]
        %v849 = vld [vmem:[%s805 + $0x30] sm:$0xff]
        %v850 = vld [vmem:[%s805 + $0x38] sm:$0xff]
        %v851 = vld [vmem:[%s805 + $0x40] sm:$0xff]
        %v852 = vld [vmem:[%s805 + $0x48] sm:$0xff]
        %v853 = vld [vmem:[%s805 + $0x50] sm:$0xff]
        %v854 = vld [vmem:[%s805 + $0x58] sm:$0xff]
        %v855 = vld [vmem:[%s805 + $0x60] sm:$0xff]
        %v856 = vld [vmem:[%s805 + $0x68] sm:$0xff]
        %v857 = vld [vmem:[%s805 + $0x70] sm:$0xff]
        %v858 = vld [vmem:[%s805 + $0x78] sm:$0xff]
        %v859 = vld [vmem:[%s805 + $0x80] sm:$0xff]
        %v860 = vld [vmem:[%s805 + $0x88] sm:$0xff]
        %v861 = vld [vmem:[%s805 + $0x90] sm:$0xff]
        %v862 = vld [vmem:[%s805 + $0x98] sm:$0xff]
        %v863 = vld [vmem:[%s805 + $0xa0] sm:$0xff]
        %v864 = vld [vmem:[%s805 + $0xa8] sm:$0xff]
        %v865 = vld [vmem:[%s805 + $0xb0] sm:$0xff]
        %v866 = vld [vmem:[%s805 + $0xb8] sm:$0xff]
        %v867 = vld [vmem:[%s805 + $0xc0] sm:$0xff]
        %v868 = vld [vmem:[%s805 + $0xc8] sm:$0xff]
        %v869 = vld [vmem:[%s805 + $0xd0] sm:$0xff]
        %v870 = vld [vmem:[%s805 + $0xd8] sm:$0xff]
        %v871 = vld [vmem:[%s805 + $0xe0] sm:$0xff]
        %v872 = vld [vmem:[%s805 + $0xe8] sm:$0xff]
        %v873 = vld [vmem:[%s805 + $0xf0] sm:$0xff]
        %v874 = vld [vmem:[%s805 + $0xf8] sm:$0xff]
        %v875 = vld [vmem:[%s805 + $0x100] sm:$0xff]
        %v876 = vld [vmem:[%s805 + $0x108] sm:$0xff]
        %v877 = vld [vmem:[%s805 + $0x110] sm:$0xff]
        %v878 = vld [vmem:[%s805 + $0x118] sm:$0xff]
        %v879 = vld [vmem:[%s805 + $0x120] sm:$0xff]
        %v880 = vld [vmem:[%s805 + $0x128] sm:$0xff]
        %v881 = vld [vmem:[%s805 + $0x130] sm:$0xff]
        %v882 = vld [vmem:[%s805 + $0x138] sm:$0xff]
        %v883 = vld [vmem:[%s805 + $0x140] sm:$0xff]
        %v884 = vld [vmem:[%s805 + $0x148] sm:$0xff]
        %v885 = vld [vmem:[%s805 + $0x150] sm:$0xff]
        %v886 = vld [vmem:[%s805 + $0x158] sm:$0xff]
        %v887 = vld [vmem:[%s805 + $0x160] sm:$0xff]
        %v888 = vld [vmem:[%s805 + $0x168] sm:$0xff]
        %v889 = vld [vmem:[%s805 + $0x170] sm:$0xff]
        %v890 = vld [vmem:[%s805 + $0x178] sm:$0xff]
        %v891 = vld [vmem:[%s805 + $0x180] sm:$0xff]
        %v892 = vld [vmem:[%s805 + $0x188] sm:$0xff]
        %v893 = vld [vmem:[%s805 + $0x190] sm:$0xff]
        %v894 = vld [vmem:[%s805 + $0x198] sm:$0xff]
        %v895 = vld [vmem:[%s805 + $0x1a0] sm:$0xff]
        %v896 = vld [vmem:[%s805 + $0x1a8] sm:$0xff]
        %v897 = vld [vmem:[%s805 + $0x1b0] sm:$0xff]
        %v898 = vld [vmem:[%s805 + $0x1b8] sm:$0xff]
        %v899 = vld [vmem:[%s805 + $0x1c0] sm:$0xff]
        %v900 = vld [vmem:[%s805 + $0x1c8] sm:$0xff]
        %v901 = vld [vmem:[%s805 + $0x1d0] sm:$0xff]
        %v902 = vld [vmem:[%s805 + $0x1d8] sm:$0xff]
        %v903 = vld [vmem:[%s805 + $0x1e0] sm:$0xff]
        %v904 = vld [vmem:[%s805 + $0x1e8] sm:$0xff]
        %v905 = vld [vmem:[%s805 + $0x1f0] sm:$0xff]
        %v906 = vld [vmem:[%s805 + $0x1f8] sm:$0xff]
        %v907 = vld [vmem:[%s805 + $0x200] sm:$0xff]
        %v908 = vld [vmem:[%s805 + $0x208] sm:$0xff]
        %v909 = vld [vmem:[%s805 + $0x210] sm:$0xff]
        %v910 = vld [vmem:[%s805 + $0x218] sm:$0xff]
        %v911 = vld [vmem:[%s805 + $0x220] sm:$0xff]
        %v912 = vld [vmem:[%s805 + $0x228] sm:$0xff]
        %v913 = vld [vmem:[%s805 + $0x230] sm:$0xff]
        %v914 = vld [vmem:[%s805 + $0x238] sm:$0xff]
        %v915 = vld [vmem:[%s805 + $0x240] sm:$0xff]
        %v916 = vld [vmem:[%s805 + $0x248] sm:$0xff]
        %v917 = vld [vmem:[%s805 + $0x250] sm:$0xff]
        %v918 = vld [vmem:[%s805 + $0x258] sm:$0xff]
        %v919 = vld [vmem:[%s805 + $0x260] sm:$0xff]
        %v920 = vld [vmem:[%s805 + $0x268] sm:$0xff]
        %v921 = vld [vmem:[%s805 + $0x270] sm:$0xff]
        %v922 = vld [vmem:[%s805 + $0x278] sm:$0xff]
        %v923 = vld [vmem:[%s805 + $0x280] sm:$0xff]
        %v924 = vld [vmem:[%s805 + $0x288] sm:$0xff]
        %v925 = vld [vmem:[%s805 + $0x290] sm:$0xff]
        %v926 = vld [vmem:[%s805 + $0x298] sm:$0xff]
        %v927 = vld [vmem:[%s805 + $0x2a0] sm:$0xff]
        %v928 = vld [vmem:[%s805 + $0x2a8] sm:$0xff]
        %v929 = vld [vmem:[%s805 + $0x2b0] sm:$0xff]
        %v930 = vld [vmem:[%s805 + $0x2b8] sm:$0xff]
        %v931 = vld [vmem:[%s805 + $0x2c0] sm:$0xff]
        %v932 = vld [vmem:[%s805 + $0x2c8] sm:$0xff]
        %v933 = vld [vmem:[%s805 + $0x2d0] sm:$0xff]
        %v934 = vld [vmem:[%s805 + $0x2d8] sm:$0xff]
        %v935 = vld [vmem:[%s805 + $0x2e0] sm:$0xff]
        %v936 = vld [vmem:[%s805 + $0x2e8] sm:$0xff]
        %v937 = vld [vmem:[%s805 + $0x2f0] sm:$0xff]
        %v938 = vld [vmem:[%s805 + $0x2f8] sm:$0xff]
        %v939 = vld [vmem:[%s805 + $0x300] sm:$0xff]
        %v940 = vld [vmem:[%s805 + $0x308] sm:$0xff]
        %v941 = vld [vmem:[%s805 + $0x310] sm:$0xff]
        %v942 = vld [vmem:[%s805 + $0x318] sm:$0xff]
        %v943 = vld [vmem:[%s805 + $0x320] sm:$0xff]
        %v944 = vld [vmem:[%s805 + $0x328] sm:$0xff]
        %v945 = vld [vmem:[%s805 + $0x330] sm:$0xff]
        %v946 = vld [vmem:[%s805 + $0x338] sm:$0xff]
        %v947 = vld [vmem:[%s805 + $0x340] sm:$0xff]
        %v948 = vld [vmem:[%s805 + $0x348] sm:$0xff]
        %v949 = vld [vmem:[%s805 + $0x350] sm:$0xff]
        %v950 = vld [vmem:[%s805 + $0x358] sm:$0xff]
        %v951 = vld [vmem:[%s805 + $0x360] sm:$0xff]
        %v952 = vld [vmem:[%s805 + $0x368] sm:$0xff]
        %v953 = vld [vmem:[%s805 + $0x370] sm:$0xff]
        %v954 = vld [vmem:[%s805 + $0x378] sm:$0xff]
        %v955 = vld [vmem:[%s805 + $0x380] sm:$0xff]
        %v956 = vld [vmem:[%s805 + $0x388] sm:$0xff]
        %v957 = vld [vmem:[%s805 + $0x390] sm:$0xff]
        %v958 = vld [vmem:[%s805 + $0x398] sm:$0xff]
        %v959 = vld [vmem:[%s805 + $0x3a0] sm:$0xff]
        %v960 = vld [vmem:[%s805 + $0x3a8] sm:$0xff]
        %v961 = vld [vmem:[%s805 + $0x3b0] sm:$0xff]
        %v962 = vld [vmem:[%s805 + $0x3b8] sm:$0xff]
        %v963 = vld [vmem:[%s805 + $0x3c0] sm:$0xff]
        %v964 = vld [vmem:[%s805 + $0x3c8] sm:$0xff]
        %v965 = vld [vmem:[%s805 + $0x3d0] sm:$0xff]
        %v966 = vld [vmem:[%s805 + $0x3d8] sm:$0xff]
        %v967 = vld [vmem:[%s805 + $0x3e0] sm:$0xff]
        %v968 = vld [vmem:[%s805 + $0x3e8] sm:$0xff]
        %v969 = vld [vmem:[%s805 + $0x3f0] sm:$0xff]
        %v970 = vld [vmem:[%s805 + $0x3f8] sm:$0xff]
        %v971 = vld [vmem:[%s1] sm:$0x1]
        %973 = vset.pattern.permute.xlu0 0
        %974 = vperm.xlu0 %973, %v843
        %v975 = vpop.permute.xlu0 %974
        %978 = vset.pattern.permute.xlu0 0
        %979 = vperm.xlu0 %978, %v844
        %v980 = vpop.permute.xlu0 %979
        %983 = vset.pattern.permute.xlu0 0
        %984 = vperm.xlu0 %983, %v845
        %v985 = vpop.permute.xlu0 %984
        %988 = vset.pattern.permute.xlu0 0
        %989 = vperm.xlu0 %988, %v846
        %v990 = vpop.permute.xlu0 %989
        %993 = vset.pattern.permute.xlu0 0
        %994 = vperm.xlu0 %993, %v847
        %v995 = vpop.permute.xlu0 %994
        %998 = vset.pattern.permute.xlu0 0
        %999 = vperm.xlu0 %998, %v848
        %v1000 = vpop.permute.xlu0 %999
        %1003 = vset.pattern.permute.xlu0 0
        %1004 = vperm.xlu0 %1003, %v849
        %v1005 = vpop.permute.xlu0 %1004
        %1008 = vset.pattern.permute.xlu0 0
        %1009 = vperm.xlu0 %1008, %v850
        %v1010 = vpop.permute.xlu0 %1009
        %1013 = vset.pattern.permute.xlu0 0
        %1014 = vperm.xlu0 %1013, %v851
        %v1015 = vpop.permute.xlu0 %1014
        %1018 = vset.pattern.permute.xlu0 0
        %1019 = vperm.xlu0 %1018, %v852
        %v1020 = vpop.permute.xlu0 %1019
        %1023 = vset.pattern.permute.xlu0 0
        %1024 = vperm.xlu0 %1023, %v853
        %v1025 = vpop.permute.xlu0 %1024
        %1028 = vset.pattern.permute.xlu0 0
        %1029 = vperm.xlu0 %1028, %v854
        %v1030 = vpop.permute.xlu0 %1029
        %1033 = vset.pattern.permute.xlu0 0
        %1034 = vperm.xlu0 %1033, %v855
        %v1035 = vpop.permute.xlu0 %1034
        %1038 = vset.pattern.permute.xlu0 0
        %1039 = vperm.xlu0 %1038, %v856
        %v1040 = vpop.permute.xlu0 %1039
        %1043 = vset.pattern.permute.xlu0 0
        %1044 = vperm.xlu0 %1043, %v857
        %v1045 = vpop.permute.xlu0 %1044
        %1048 = vset.pattern.permute.xlu0 0
        %1049 = vperm.xlu0 %1048, %v858
        %v1050 = vpop.permute.xlu0 %1049
        %1053 = vset.pattern.permute.xlu0 0
        %1054 = vperm.xlu0 %1053, %v859
        %v1055 = vpop.permute.xlu0 %1054
        %1058 = vset.pattern.permute.xlu0 0
        %1059 = vperm.xlu0 %1058, %v860
        %v1060 = vpop.permute.xlu0 %1059
        %1063 = vset.pattern.permute.xlu0 0
        %1064 = vperm.xlu0 %1063, %v861
        %v1065 = vpop.permute.xlu0 %1064
        %1068 = vset.pattern.permute.xlu0 0
        %1069 = vperm.xlu0 %1068, %v862
        %v1070 = vpop.permute.xlu0 %1069
        %1073 = vset.pattern.permute.xlu0 0
        %1074 = vperm.xlu0 %1073, %v863
        %v1075 = vpop.permute.xlu0 %1074
        %1078 = vset.pattern.permute.xlu0 0
        %1079 = vperm.xlu0 %1078, %v864
        %v1080 = vpop.permute.xlu0 %1079
        %1083 = vset.pattern.permute.xlu0 0
        %1084 = vperm.xlu0 %1083, %v865
        %v1085 = vpop.permute.xlu0 %1084
        %1088 = vset.pattern.permute.xlu0 0
        %1089 = vperm.xlu0 %1088, %v866
        %v1090 = vpop.permute.xlu0 %1089
        %1093 = vset.pattern.permute.xlu0 0
        %1094 = vperm.xlu0 %1093, %v867
        %v1095 = vpop.permute.xlu0 %1094
        %1098 = vset.pattern.permute.xlu0 0
        %1099 = vperm.xlu0 %1098, %v868
        %v1100 = vpop.permute.xlu0 %1099
        %1103 = vset.pattern.permute.xlu0 0
        %1104 = vperm.xlu0 %1103, %v869
        %v1105 = vpop.permute.xlu0 %1104
        %1108 = vset.pattern.permute.xlu0 0
        %1109 = vperm.xlu0 %1108, %v870
        %v1110 = vpop.permute.xlu0 %1109
        %1113 = vset.pattern.permute.xlu0 0
        %1114 = vperm.xlu0 %1113, %v871
        %v1115 = vpop.permute.xlu0 %1114
        %1118 = vset.pattern.permute.xlu0 0
        %1119 = vperm.xlu0 %1118, %v872
        %v1120 = vpop.permute.xlu0 %1119
        %1123 = vset.pattern.permute.xlu0 0
        %1124 = vperm.xlu0 %1123, %v873
        %v1125 = vpop.permute.xlu0 %1124
        %1128 = vset.pattern.permute.xlu0 0
        %1129 = vperm.xlu0 %1128, %v874
        %v1130 = vpop.permute.xlu0 %1129
        %1133 = vset.pattern.permute.xlu0 0
        %1134 = vperm.xlu0 %1133, %v875
        %v1135 = vpop.permute.xlu0 %1134
        %1138 = vset.pattern.permute.xlu0 0
        %1139 = vperm.xlu0 %1138, %v876
        %v1140 = vpop.permute.xlu0 %1139
        %1143 = vset.pattern.permute.xlu0 0
        %1144 = vperm.xlu0 %1143, %v877
        %v1145 = vpop.permute.xlu0 %1144
        %1148 = vset.pattern.permute.xlu0 0
        %1149 = vperm.xlu0 %1148, %v878
        %v1150 = vpop.permute.xlu0 %1149
        %1153 = vset.pattern.permute.xlu0 0
        %1154 = vperm.xlu0 %1153, %v879
        %v1155 = vpop.permute.xlu0 %1154
        %1158 = vset.pattern.permute.xlu0 0
        %1159 = vperm.xlu0 %1158, %v880
        %v1160 = vpop.permute.xlu0 %1159
        %1163 = vset.pattern.permute.xlu0 0
        %1164 = vperm.xlu0 %1163, %v881
        %v1165 = vpop.permute.xlu0 %1164
        %1168 = vset.pattern.permute.xlu0 0
        %1169 = vperm.xlu0 %1168, %v882
        %v1170 = vpop.permute.xlu0 %1169
        %1173 = vset.pattern.permute.xlu0 0
        %1174 = vperm.xlu0 %1173, %v883
        %v1175 = vpop.permute.xlu0 %1174
        %1178 = vset.pattern.permute.xlu0 0
        %1179 = vperm.xlu0 %1178, %v884
        %v1180 = vpop.permute.xlu0 %1179
        %1183 = vset.pattern.permute.xlu0 0
        %1184 = vperm.xlu0 %1183, %v885
        %v1185 = vpop.permute.xlu0 %1184
        %1188 = vset.pattern.permute.xlu0 0
        %1189 = vperm.xlu0 %1188, %v886
        %v1190 = vpop.permute.xlu0 %1189
        %1193 = vset.pattern.permute.xlu0 0
        %1194 = vperm.xlu0 %1193, %v887
        %v1195 = vpop.permute.xlu0 %1194
        %1198 = vset.pattern.permute.xlu0 0
        %1199 = vperm.xlu0 %1198, %v888
        %v1200 = vpop.permute.xlu0 %1199
        %1203 = vset.pattern.permute.xlu0 0
        %1204 = vperm.xlu0 %1203, %v889
        %v1205 = vpop.permute.xlu0 %1204
        %1208 = vset.pattern.permute.xlu0 0
        %1209 = vperm.xlu0 %1208, %v890
        %v1210 = vpop.permute.xlu0 %1209
        %1213 = vset.pattern.permute.xlu0 0
        %1214 = vperm.xlu0 %1213, %v891
        %v1215 = vpop.permute.xlu0 %1214
        %1218 = vset.pattern.permute.xlu0 0
        %1219 = vperm.xlu0 %1218, %v892
        %v1220 = vpop.permute.xlu0 %1219
        %1223 = vset.pattern.permute.xlu0 0
        %1224 = vperm.xlu0 %1223, %v893
        %v1225 = vpop.permute.xlu0 %1224
        %1228 = vset.pattern.permute.xlu0 0
        %1229 = vperm.xlu0 %1228, %v894
        %v1230 = vpop.permute.xlu0 %1229
        %1233 = vset.pattern.permute.xlu0 0
        %1234 = vperm.xlu0 %1233, %v895
        %v1235 = vpop.permute.xlu0 %1234
        %1238 = vset.pattern.permute.xlu0 0
        %1239 = vperm.xlu0 %1238, %v896
        %v1240 = vpop.permute.xlu0 %1239
        %1243 = vset.pattern.permute.xlu0 0
        %1244 = vperm.xlu0 %1243, %v897
        %v1245 = vpop.permute.xlu0 %1244
        %1248 = vset.pattern.permute.xlu0 0
        %1249 = vperm.xlu0 %1248, %v898
        %v1250 = vpop.permute.xlu0 %1249
        %1253 = vset.pattern.permute.xlu0 0
        %1254 = vperm.xlu0 %1253, %v899
        %v1255 = vpop.permute.xlu0 %1254
        %1258 = vset.pattern.permute.xlu0 0
        %1259 = vperm.xlu0 %1258, %v900
        %v1260 = vpop.permute.xlu0 %1259
        %1263 = vset.pattern.permute.xlu0 0
        %1264 = vperm.xlu0 %1263, %v901
        %v1265 = vpop.permute.xlu0 %1264
        %1268 = vset.pattern.permute.xlu0 0
        %1269 = vperm.xlu0 %1268, %v902
        %v1270 = vpop.permute.xlu0 %1269
        %1273 = vset.pattern.permute.xlu0 0
        %1274 = vperm.xlu0 %1273, %v903
        %v1275 = vpop.permute.xlu0 %1274
        %1278 = vset.pattern.permute.xlu0 0
        %1279 = vperm.xlu0 %1278, %v904
        %v1280 = vpop.permute.xlu0 %1279
        %1283 = vset.pattern.permute.xlu0 0
        %1284 = vperm.xlu0 %1283, %v905
        %v1285 = vpop.permute.xlu0 %1284
        %1288 = vset.pattern.permute.xlu0 0
        %1289 = vperm.xlu0 %1288, %v906
        %v1290 = vpop.permute.xlu0 %1289
        %1293 = vset.pattern.permute.xlu0 0
        %1294 = vperm.xlu0 %1293, %v907
        %v1295 = vpop.permute.xlu0 %1294
        %1298 = vset.pattern.permute.xlu0 0
        %1299 = vperm.xlu0 %1298, %v908
        %v1300 = vpop.permute.xlu0 %1299
        %1303 = vset.pattern.permute.xlu0 0
        %1304 = vperm.xlu0 %1303, %v909
        %v1305 = vpop.permute.xlu0 %1304
        %1308 = vset.pattern.permute.xlu0 0
        %1309 = vperm.xlu0 %1308, %v910
        %v1310 = vpop.permute.xlu0 %1309
        %1313 = vset.pattern.permute.xlu0 0
        %1314 = vperm.xlu0 %1313, %v911
        %v1315 = vpop.permute.xlu0 %1314
        %1318 = vset.pattern.permute.xlu0 0
        %1319 = vperm.xlu0 %1318, %v912
        %v1320 = vpop.permute.xlu0 %1319
        %1323 = vset.pattern.permute.xlu0 0
        %1324 = vperm.xlu0 %1323, %v913
        %v1325 = vpop.permute.xlu0 %1324
        %1328 = vset.pattern.permute.xlu0 0
        %1329 = vperm.xlu0 %1328, %v914
        %v1330 = vpop.permute.xlu0 %1329
        %1333 = vset.pattern.permute.xlu0 0
        %1334 = vperm.xlu0 %1333, %v915
        %v1335 = vpop.permute.xlu0 %1334
        %1338 = vset.pattern.permute.xlu0 0
        %1339 = vperm.xlu0 %1338, %v916
        %v1340 = vpop.permute.xlu0 %1339
        %1343 = vset.pattern.permute.xlu0 0
        %1344 = vperm.xlu0 %1343, %v917
        %v1345 = vpop.permute.xlu0 %1344
        %1348 = vset.pattern.permute.xlu0 0
        %1349 = vperm.xlu0 %1348, %v918
        %v1350 = vpop.permute.xlu0 %1349
        %1353 = vset.pattern.permute.xlu0 0
        %1354 = vperm.xlu0 %1353, %v919
        %v1355 = vpop.permute.xlu0 %1354
        %1358 = vset.pattern.permute.xlu0 0
        %1359 = vperm.xlu0 %1358, %v920
        %v1360 = vpop.permute.xlu0 %1359
        %1363 = vset.pattern.permute.xlu0 0
        %1364 = vperm.xlu0 %1363, %v921
        %v1365 = vpop.permute.xlu0 %1364
        %1368 = vset.pattern.permute.xlu0 0
        %1369 = vperm.xlu0 %1368, %v922
        %v1370 = vpop.permute.xlu0 %1369
        %1373 = vset.pattern.permute.xlu0 0
        %1374 = vperm.xlu0 %1373, %v923
        %v1375 = vpop.permute.xlu0 %1374
        %1378 = vset.pattern.permute.xlu0 0
        %1379 = vperm.xlu0 %1378, %v924
        %v1380 = vpop.permute.xlu0 %1379
        %1383 = vset.pattern.permute.xlu0 0
        %1384 = vperm.xlu0 %1383, %v925
        %v1385 = vpop.permute.xlu0 %1384
        %1388 = vset.pattern.permute.xlu0 0
        %1389 = vperm.xlu0 %1388, %v926
        %v1390 = vpop.permute.xlu0 %1389
        %1393 = vset.pattern.permute.xlu0 0
        %1394 = vperm.xlu0 %1393, %v927
        %v1395 = vpop.permute.xlu0 %1394
        %1398 = vset.pattern.permute.xlu0 0
        %1399 = vperm.xlu0 %1398, %v928
        %v1400 = vpop.permute.xlu0 %1399
        %1403 = vset.pattern.permute.xlu0 0
        %1404 = vperm.xlu0 %1403, %v929
        %v1405 = vpop.permute.xlu0 %1404
        %1408 = vset.pattern.permute.xlu0 0
        %1409 = vperm.xlu0 %1408, %v930
        %v1410 = vpop.permute.xlu0 %1409
        %1413 = vset.pattern.permute.xlu0 0
        %1414 = vperm.xlu0 %1413, %v931
        %v1415 = vpop.permute.xlu0 %1414
        %1418 = vset.pattern.permute.xlu0 0
        %1419 = vperm.xlu0 %1418, %v932
        %v1420 = vpop.permute.xlu0 %1419
        %1423 = vset.pattern.permute.xlu0 0
        %1424 = vperm.xlu0 %1423, %v933
        %v1425 = vpop.permute.xlu0 %1424
        %1428 = vset.pattern.permute.xlu0 0
        %1429 = vperm.xlu0 %1428, %v934
        %v1430 = vpop.permute.xlu0 %1429
        %1433 = vset.pattern.permute.xlu0 0
        %1434 = vperm.xlu0 %1433, %v935
        %v1435 = vpop.permute.xlu0 %1434
        %1438 = vset.pattern.permute.xlu0 0
        %1439 = vperm.xlu0 %1438, %v936
        %v1440 = vpop.permute.xlu0 %1439
        %1443 = vset.pattern.permute.xlu0 0
        %1444 = vperm.xlu0 %1443, %v937
        %v1445 = vpop.permute.xlu0 %1444
        %1448 = vset.pattern.permute.xlu0 0
        %1449 = vperm.xlu0 %1448, %v938
        %v1450 = vpop.permute.xlu0 %1449
        %1453 = vset.pattern.permute.xlu0 0
        %1454 = vperm.xlu0 %1453, %v939
        %v1455 = vpop.permute.xlu0 %1454
        %1458 = vset.pattern.permute.xlu0 0
        %1459 = vperm.xlu0 %1458, %v940
        %v1460 = vpop.permute.xlu0 %1459
        %1463 = vset.pattern.permute.xlu0 0
        %1464 = vperm.xlu0 %1463, %v941
        %v1465 = vpop.permute.xlu0 %1464
        %1468 = vset.pattern.permute.xlu0 0
        %1469 = vperm.xlu0 %1468, %v942
        %v1470 = vpop.permute.xlu0 %1469
        %1473 = vset.pattern.permute.xlu0 0
        %1474 = vperm.xlu0 %1473, %v943
        %v1475 = vpop.permute.xlu0 %1474
        %1478 = vset.pattern.permute.xlu0 0
        %1479 = vperm.xlu0 %1478, %v944
        %v1480 = vpop.permute.xlu0 %1479
        %1483 = vset.pattern.permute.xlu0 0
        %1484 = vperm.xlu0 %1483, %v945
        %v1485 = vpop.permute.xlu0 %1484
        %1488 = vset.pattern.permute.xlu0 0
        %1489 = vperm.xlu0 %1488, %v946
        %v1490 = vpop.permute.xlu0 %1489
        %1493 = vset.pattern.permute.xlu0 0
        %1494 = vperm.xlu0 %1493, %v947
        %v1495 = vpop.permute.xlu0 %1494
        %1498 = vset.pattern.permute.xlu0 0
        %1499 = vperm.xlu0 %1498, %v948
        %v1500 = vpop.permute.xlu0 %1499
        %1503 = vset.pattern.permute.xlu0 0
        %1504 = vperm.xlu0 %1503, %v949
        %v1505 = vpop.permute.xlu0 %1504
        %1508 = vset.pattern.permute.xlu0 0
        %1509 = vperm.xlu0 %1508, %v950
        %v1510 = vpop.permute.xlu0 %1509
        %1513 = vset.pattern.permute.xlu0 0
        %1514 = vperm.xlu0 %1513, %v951
        %v1515 = vpop.permute.xlu0 %1514
        %1518 = vset.pattern.permute.xlu0 0
        %1519 = vperm.xlu0 %1518, %v952
        %v1520 = vpop.permute.xlu0 %1519
        %1523 = vset.pattern.permute.xlu0 0
        %1524 = vperm.xlu0 %1523, %v953
        %v1525 = vpop.permute.xlu0 %1524
        %1528 = vset.pattern.permute.xlu0 0
        %1529 = vperm.xlu0 %1528, %v954
        %v1530 = vpop.permute.xlu0 %1529
        %1533 = vset.pattern.permute.xlu0 0
        %1534 = vperm.xlu0 %1533, %v955
        %v1535 = vpop.permute.xlu0 %1534
        %1538 = vset.pattern.permute.xlu0 0
        %1539 = vperm.xlu0 %1538, %v956
        %v1540 = vpop.permute.xlu0 %1539
        %1543 = vset.pattern.permute.xlu0 0
        %1544 = vperm.xlu0 %1543, %v957
        %v1545 = vpop.permute.xlu0 %1544
        %1548 = vset.pattern.permute.xlu0 0
        %1549 = vperm.xlu0 %1548, %v958
        %v1550 = vpop.permute.xlu0 %1549
        %1553 = vset.pattern.permute.xlu0 0
        %1554 = vperm.xlu0 %1553, %v959
        %v1555 = vpop.permute.xlu0 %1554
        %1558 = vset.pattern.permute.xlu0 0
        %1559 = vperm.xlu0 %1558, %v960
        %v1560 = vpop.permute.xlu0 %1559
        %1563 = vset.pattern.permute.xlu0 0
        %1564 = vperm.xlu0 %1563, %v961
        %v1565 = vpop.permute.xlu0 %1564
        %1568 = vset.pattern.permute.xlu0 0
        %1569 = vperm.xlu0 %1568, %v962
        %v1570 = vpop.permute.xlu0 %1569
        %1573 = vset.pattern.permute.xlu0 0
        %1574 = vperm.xlu0 %1573, %v963
        %v1575 = vpop.permute.xlu0 %1574
        %1578 = vset.pattern.permute.xlu0 0
        %1579 = vperm.xlu0 %1578, %v964
        %v1580 = vpop.permute.xlu0 %1579
        %1583 = vset.pattern.permute.xlu0 0
        %1584 = vperm.xlu0 %1583, %v965
        %v1585 = vpop.permute.xlu0 %1584
        %1588 = vset.pattern.permute.xlu0 0
        %1589 = vperm.xlu0 %1588, %v966
        %v1590 = vpop.permute.xlu0 %1589
        %1593 = vset.pattern.permute.xlu0 0
        %1594 = vperm.xlu0 %1593, %v967
        %v1595 = vpop.permute.xlu0 %1594
        %1598 = vset.pattern.permute.xlu0 0
        %1599 = vperm.xlu0 %1598, %v968
        %v1600 = vpop.permute.xlu0 %1599
        %1603 = vset.pattern.permute.xlu0 0
        %1604 = vperm.xlu0 %1603, %v969
        %v1605 = vpop.permute.xlu0 %1604
        %1608 = vset.pattern.permute.xlu0 0
        %1609 = vperm.xlu0 %1608, %v970
        %v1610 = vpop.permute.xlu0 %1609
        %v1612 = vlaneseq
        %v1613 = vshrl.u32 %v1612, 7
        %v1614 = vsub.s32 0, %v1613
        %v1615 = vrot.slane %v971, %v1614
        %v1616 = vmul.f32 %v975, %v1615
        %v1617 = vmul.f32 %v980, %v1615
        %v1618 = vmul.f32 %v985, %v1615
        %v1619 = vmul.f32 %v990, %v1615
        %v1620 = vmul.f32 %v995, %v1615
        %v1621 = vmul.f32 %v1000, %v1615
        %v1622 = vmul.f32 %v1005, %v1615
        %v1623 = vmul.f32 %v1010, %v1615
        %v1624 = vmul.f32 %v1015, %v1615
        %v1625 = vmul.f32 %v1020, %v1615
        %v1626 = vmul.f32 %v1025, %v1615
        %v1627 = vmul.f32 %v1030, %v1615
        %v1628 = vmul.f32 %v1035, %v1615
        %v1629 = vmul.f32 %v1040, %v1615
        %v1630 = vmul.f32 %v1045, %v1615
        %v1631 = vmul.f32 %v1050, %v1615
        %v1632 = vmul.f32 %v1055, %v1615
        %v1633 = vmul.f32 %v1060, %v1615
        %v1634 = vmul.f32 %v1065, %v1615
        %v1635 = vmul.f32 %v1070, %v1615
        %v1636 = vmul.f32 %v1075, %v1615
        %v1637 = vmul.f32 %v1080, %v1615
        %v1638 = vmul.f32 %v1085, %v1615
        %v1639 = vmul.f32 %v1090, %v1615
        %v1640 = vmul.f32 %v1095, %v1615
        %v1641 = vmul.f32 %v1100, %v1615
        %v1642 = vmul.f32 %v1105, %v1615
        %v1643 = vmul.f32 %v1110, %v1615
        %v1644 = vmul.f32 %v1115, %v1615
        %v1645 = vmul.f32 %v1120, %v1615
        %v1646 = vmul.f32 %v1125, %v1615
        %v1647 = vmul.f32 %v1130, %v1615
        %v1648 = vmul.f32 %v1135, %v1615
        %v1649 = vmul.f32 %v1140, %v1615
        %v1650 = vmul.f32 %v1145, %v1615
        %v1651 = vmul.f32 %v1150, %v1615
        %v1652 = vmul.f32 %v1155, %v1615
        %v1653 = vmul.f32 %v1160, %v1615
        %v1654 = vmul.f32 %v1165, %v1615
        %v1655 = vmul.f32 %v1170, %v1615
        %v1656 = vmul.f32 %v1175, %v1615
        %v1657 = vmul.f32 %v1180, %v1615
        %v1658 = vmul.f32 %v1185, %v1615
        %v1659 = vmul.f32 %v1190, %v1615
        %v1660 = vmul.f32 %v1195, %v1615
        %v1661 = vmul.f32 %v1200, %v1615
        %v1662 = vmul.f32 %v1205, %v1615
        %v1663 = vmul.f32 %v1210, %v1615
        %v1664 = vmul.f32 %v1215, %v1615
        %v1665 = vmul.f32 %v1220, %v1615
        %v1666 = vmul.f32 %v1225, %v1615
        %v1667 = vmul.f32 %v1230, %v1615
        %v1668 = vmul.f32 %v1235, %v1615
        %v1669 = vmul.f32 %v1240, %v1615
        %v1670 = vmul.f32 %v1245, %v1615
        %v1671 = vmul.f32 %v1250, %v1615
        %v1672 = vmul.f32 %v1255, %v1615
        %v1673 = vmul.f32 %v1260, %v1615
        %v1674 = vmul.f32 %v1265, %v1615
        %v1675 = vmul.f32 %v1270, %v1615
        %v1676 = vmul.f32 %v1275, %v1615
        %v1677 = vmul.f32 %v1280, %v1615
        %v1678 = vmul.f32 %v1285, %v1615
        %v1679 = vmul.f32 %v1290, %v1615
        %v1680 = vmul.f32 %v1295, %v1615
        %v1681 = vmul.f32 %v1300, %v1615
        %v1682 = vmul.f32 %v1305, %v1615
        %v1683 = vmul.f32 %v1310, %v1615
        %v1684 = vmul.f32 %v1315, %v1615
        %v1685 = vmul.f32 %v1320, %v1615
        %v1686 = vmul.f32 %v1325, %v1615
        %v1687 = vmul.f32 %v1330, %v1615
        %v1688 = vmul.f32 %v1335, %v1615
        %v1689 = vmul.f32 %v1340, %v1615
        %v1690 = vmul.f32 %v1345, %v1615
        %v1691 = vmul.f32 %v1350, %v1615
        %v1692 = vmul.f32 %v1355, %v1615
        %v1693 = vmul.f32 %v1360, %v1615
        %v1694 = vmul.f32 %v1365, %v1615
        %v1695 = vmul.f32 %v1370, %v1615
        %v1696 = vmul.f32 %v1375, %v1615
        %v1697 = vmul.f32 %v1380, %v1615
        %v1698 = vmul.f32 %v1385, %v1615
        %v1699 = vmul.f32 %v1390, %v1615
        %v1700 = vmul.f32 %v1395, %v1615
        %v1701 = vmul.f32 %v1400, %v1615
        %v1702 = vmul.f32 %v1405, %v1615
        %v1703 = vmul.f32 %v1410, %v1615
        %v1704 = vmul.f32 %v1415, %v1615
        %v1705 = vmul.f32 %v1420, %v1615
        %v1706 = vmul.f32 %v1425, %v1615
        %v1707 = vmul.f32 %v1430, %v1615
        %v1708 = vmul.f32 %v1435, %v1615
        %v1709 = vmul.f32 %v1440, %v1615
        %v1710 = vmul.f32 %v1445, %v1615
        %v1711 = vmul.f32 %v1450, %v1615
        %v1712 = vmul.f32 %v1455, %v1615
        %v1713 = vmul.f32 %v1460, %v1615
        %v1714 = vmul.f32 %v1465, %v1615
        %v1715 = vmul.f32 %v1470, %v1615
        %v1716 = vmul.f32 %v1475, %v1615
        %v1717 = vmul.f32 %v1480, %v1615
        %v1718 = vmul.f32 %v1485, %v1615
        %v1719 = vmul.f32 %v1490, %v1615
        %v1720 = vmul.f32 %v1495, %v1615
        %v1721 = vmul.f32 %v1500, %v1615
        %v1722 = vmul.f32 %v1505, %v1615
        %v1723 = vmul.f32 %v1510, %v1615
        %v1724 = vmul.f32 %v1515, %v1615
        %v1725 = vmul.f32 %v1520, %v1615
        %v1726 = vmul.f32 %v1525, %v1615
        %v1727 = vmul.f32 %v1530, %v1615
        %v1728 = vmul.f32 %v1535, %v1615
        %v1729 = vmul.f32 %v1540, %v1615
        %v1730 = vmul.f32 %v1545, %v1615
        %v1731 = vmul.f32 %v1550, %v1615
        %v1732 = vmul.f32 %v1555, %v1615
        %v1733 = vmul.f32 %v1560, %v1615
        %v1734 = vmul.f32 %v1565, %v1615
        %v1735 = vmul.f32 %v1570, %v1615
        %v1736 = vmul.f32 %v1575, %v1615
        %v1737 = vmul.f32 %v1580, %v1615
        %v1738 = vmul.f32 %v1585, %v1615
        %v1739 = vmul.f32 %v1590, %v1615
        %v1740 = vmul.f32 %v1595, %v1615
        %v1741 = vmul.f32 %v1600, %v1615
        %v1742 = vmul.f32 %v1605, %v1615
        %v1743 = vmul.f32 %v1610, %v1615
        %v1744 = vld [vmem:[%s1 + $0x1] sm:$0x1]
        %1745 = vset.pattern.permute.xlu0 1
        %1746 = vperm.xlu0 %1745, %v843
        %v1747 = vpop.permute.xlu0 %1746
        %1749 = vset.pattern.permute.xlu0 1
        %1750 = vperm.xlu0 %1749, %v844
        %v1751 = vpop.permute.xlu0 %1750
        %1753 = vset.pattern.permute.xlu0 1
        %1754 = vperm.xlu0 %1753, %v845
        %v1755 = vpop.permute.xlu0 %1754
        %1757 = vset.pattern.permute.xlu0 1
        %1758 = vperm.xlu0 %1757, %v846
        %v1759 = vpop.permute.xlu0 %1758
        %1761 = vset.pattern.permute.xlu0 1
        %1762 = vperm.xlu0 %1761, %v847
        %v1763 = vpop.permute.xlu0 %1762
        %1765 = vset.pattern.permute.xlu0 1
        %1766 = vperm.xlu0 %1765, %v848
        %v1767 = vpop.permute.xlu0 %1766
        %1769 = vset.pattern.permute.xlu0 1
        %1770 = vperm.xlu0 %1769, %v849
        %v1771 = vpop.permute.xlu0 %1770
        %1773 = vset.pattern.permute.xlu0 1
        %1774 = vperm.xlu0 %1773, %v850
        %v1775 = vpop.permute.xlu0 %1774
        %1777 = vset.pattern.permute.xlu0 1
        %1778 = vperm.xlu0 %1777, %v851
        %v1779 = vpop.permute.xlu0 %1778
        %1781 = vset.pattern.permute.xlu0 1
        %1782 = vperm.xlu0 %1781, %v852
        %v1783 = vpop.permute.xlu0 %1782
        %1785 = vset.pattern.permute.xlu0 1
        %1786 = vperm.xlu0 %1785, %v853
        %v1787 = vpop.permute.xlu0 %1786
        %1789 = vset.pattern.permute.xlu0 1
        %1790 = vperm.xlu0 %1789, %v854
        %v1791 = vpop.permute.xlu0 %1790
        %1793 = vset.pattern.permute.xlu0 1
        %1794 = vperm.xlu0 %1793, %v855
        %v1795 = vpop.permute.xlu0 %1794
        %1797 = vset.pattern.permute.xlu0 1
        %1798 = vperm.xlu0 %1797, %v856
        %v1799 = vpop.permute.xlu0 %1798
        %1801 = vset.pattern.permute.xlu0 1
        %1802 = vperm.xlu0 %1801, %v857
        %v1803 = vpop.permute.xlu0 %1802
        %1805 = vset.pattern.permute.xlu0 1
        %1806 = vperm.xlu0 %1805, %v858
        %v1807 = vpop.permute.xlu0 %1806
        %1809 = vset.pattern.permute.xlu0 1
        %1810 = vperm.xlu0 %1809, %v859
        %v1811 = vpop.permute.xlu0 %1810
        %1813 = vset.pattern.permute.xlu0 1
        %1814 = vperm.xlu0 %1813, %v860
        %v1815 = vpop.permute.xlu0 %1814
        %1817 = vset.pattern.permute.xlu0 1
        %1818 = vperm.xlu0 %1817, %v861
        %v1819 = vpop.permute.xlu0 %1818
        %1821 = vset.pattern.permute.xlu0 1
        %1822 = vperm.xlu0 %1821, %v862
        %v1823 = vpop.permute.xlu0 %1822
        %1825 = vset.pattern.permute.xlu0 1
        %1826 = vperm.xlu0 %1825, %v863
        %v1827 = vpop.permute.xlu0 %1826
        %1829 = vset.pattern.permute.xlu0 1
        %1830 = vperm.xlu0 %1829, %v864
        %v1831 = vpop.permute.xlu0 %1830
        %1833 = vset.pattern.permute.xlu0 1
        %1834 = vperm.xlu0 %1833, %v865
        %v1835 = vpop.permute.xlu0 %1834
        %1837 = vset.pattern.permute.xlu0 1
        %1838 = vperm.xlu0 %1837, %v866
        %v1839 = vpop.permute.xlu0 %1838
        %1841 = vset.pattern.permute.xlu0 1
        %1842 = vperm.xlu0 %1841, %v867
        %v1843 = vpop.permute.xlu0 %1842
        %1845 = vset.pattern.permute.xlu0 1
        %1846 = vperm.xlu0 %1845, %v868
        %v1847 = vpop.permute.xlu0 %1846
        %1849 = vset.pattern.permute.xlu0 1
        %1850 = vperm.xlu0 %1849, %v869
        %v1851 = vpop.permute.xlu0 %1850
        %1853 = vset.pattern.permute.xlu0 1
        %1854 = vperm.xlu0 %1853, %v870
        %v1855 = vpop.permute.xlu0 %1854
        %1857 = vset.pattern.permute.xlu0 1
        %1858 = vperm.xlu0 %1857, %v871
        %v1859 = vpop.permute.xlu0 %1858
        %1861 = vset.pattern.permute.xlu0 1
        %1862 = vperm.xlu0 %1861, %v872
        %v1863 = vpop.permute.xlu0 %1862
        %1865 = vset.pattern.permute.xlu0 1
        %1866 = vperm.xlu0 %1865, %v873
        %v1867 = vpop.permute.xlu0 %1866
        %1869 = vset.pattern.permute.xlu0 1
        %1870 = vperm.xlu0 %1869, %v874
        %v1871 = vpop.permute.xlu0 %1870
        %1873 = vset.pattern.permute.xlu0 1
        %1874 = vperm.xlu0 %1873, %v875
        %v1875 = vpop.permute.xlu0 %1874
        %1877 = vset.pattern.permute.xlu0 1
        %1878 = vperm.xlu0 %1877, %v876
        %v1879 = vpop.permute.xlu0 %1878
        %1881 = vset.pattern.permute.xlu0 1
        %1882 = vperm.xlu0 %1881, %v877
        %v1883 = vpop.permute.xlu0 %1882
        %1885 = vset.pattern.permute.xlu0 1
        %1886 = vperm.xlu0 %1885, %v878
        %v1887 = vpop.permute.xlu0 %1886
        %1889 = vset.pattern.permute.xlu0 1
        %1890 = vperm.xlu0 %1889, %v879
        %v1891 = vpop.permute.xlu0 %1890
        %1893 = vset.pattern.permute.xlu0 1
        %1894 = vperm.xlu0 %1893, %v880
        %v1895 = vpop.permute.xlu0 %1894
        %1897 = vset.pattern.permute.xlu0 1
        %1898 = vperm.xlu0 %1897, %v881
        %v1899 = vpop.permute.xlu0 %1898
        %1901 = vset.pattern.permute.xlu0 1
        %1902 = vperm.xlu0 %1901, %v882
        %v1903 = vpop.permute.xlu0 %1902
        %1905 = vset.pattern.permute.xlu0 1
        %1906 = vperm.xlu0 %1905, %v883
        %v1907 = vpop.permute.xlu0 %1906
        %1909 = vset.pattern.permute.xlu0 1
        %1910 = vperm.xlu0 %1909, %v884
        %v1911 = vpop.permute.xlu0 %1910
        %1913 = vset.pattern.permute.xlu0 1
        %1914 = vperm.xlu0 %1913, %v885
        %v1915 = vpop.permute.xlu0 %1914
        %1917 = vset.pattern.permute.xlu0 1
        %1918 = vperm.xlu0 %1917, %v886
        %v1919 = vpop.permute.xlu0 %1918
        %1921 = vset.pattern.permute.xlu0 1
        %1922 = vperm.xlu0 %1921, %v887
        %v1923 = vpop.permute.xlu0 %1922
        %1925 = vset.pattern.permute.xlu0 1
        %1926 = vperm.xlu0 %1925, %v888
        %v1927 = vpop.permute.xlu0 %1926
        %1929 = vset.pattern.permute.xlu0 1
        %1930 = vperm.xlu0 %1929, %v889
        %v1931 = vpop.permute.xlu0 %1930
        %1933 = vset.pattern.permute.xlu0 1
        %1934 = vperm.xlu0 %1933, %v890
        %v1935 = vpop.permute.xlu0 %1934
        %1937 = vset.pattern.permute.xlu0 1
        %1938 = vperm.xlu0 %1937, %v891
        %v1939 = vpop.permute.xlu0 %1938
        %1941 = vset.pattern.permute.xlu0 1
        %1942 = vperm.xlu0 %1941, %v892
        %v1943 = vpop.permute.xlu0 %1942
        %1945 = vset.pattern.permute.xlu0 1
        %1946 = vperm.xlu0 %1945, %v893
        %v1947 = vpop.permute.xlu0 %1946
        %1949 = vset.pattern.permute.xlu0 1
        %1950 = vperm.xlu0 %1949, %v894
        %v1951 = vpop.permute.xlu0 %1950
        %1953 = vset.pattern.permute.xlu0 1
        %1954 = vperm.xlu0 %1953, %v895
        %v1955 = vpop.permute.xlu0 %1954
        %1957 = vset.pattern.permute.xlu0 1
        %1958 = vperm.xlu0 %1957, %v896
        %v1959 = vpop.permute.xlu0 %1958
        %1961 = vset.pattern.permute.xlu0 1
        %1962 = vperm.xlu0 %1961, %v897
        %v1963 = vpop.permute.xlu0 %1962
        %1965 = vset.pattern.permute.xlu0 1
        %1966 = vperm.xlu0 %1965, %v898
        %v1967 = vpop.permute.xlu0 %1966
        %1969 = vset.pattern.permute.xlu0 1
        %1970 = vperm.xlu0 %1969, %v899
        %v1971 = vpop.permute.xlu0 %1970
        %1973 = vset.pattern.permute.xlu0 1
        %1974 = vperm.xlu0 %1973, %v900
        %v1975 = vpop.permute.xlu0 %1974
        %1977 = vset.pattern.permute.xlu0 1
        %1978 = vperm.xlu0 %1977, %v901
        %v1979 = vpop.permute.xlu0 %1978
        %1981 = vset.pattern.permute.xlu0 1
        %1982 = vperm.xlu0 %1981, %v902
        %v1983 = vpop.permute.xlu0 %1982
        %1985 = vset.pattern.permute.xlu0 1
        %1986 = vperm.xlu0 %1985, %v903
        %v1987 = vpop.permute.xlu0 %1986
        %1989 = vset.pattern.permute.xlu0 1
        %1990 = vperm.xlu0 %1989, %v904
        %v1991 = vpop.permute.xlu0 %1990
        %1993 = vset.pattern.permute.xlu0 1
        %1994 = vperm.xlu0 %1993, %v905
        %v1995 = vpop.permute.xlu0 %1994
        %1997 = vset.pattern.permute.xlu0 1
        %1998 = vperm.xlu0 %1997, %v906
        %v1999 = vpop.permute.xlu0 %1998
        %2001 = vset.pattern.permute.xlu0 1
        %2002 = vperm.xlu0 %2001, %v907
        %v2003 = vpop.permute.xlu0 %2002
        %2005 = vset.pattern.permute.xlu0 1
        %2006 = vperm.xlu0 %2005, %v908
        %v2007 = vpop.permute.xlu0 %2006
        %2009 = vset.pattern.permute.xlu0 1
        %2010 = vperm.xlu0 %2009, %v909
        %v2011 = vpop.permute.xlu0 %2010
        %2013 = vset.pattern.permute.xlu0 1
        %2014 = vperm.xlu0 %2013, %v910
        %v2015 = vpop.permute.xlu0 %2014
        %2017 = vset.pattern.permute.xlu0 1
        %2018 = vperm.xlu0 %2017, %v911
        %v2019 = vpop.permute.xlu0 %2018
        %2021 = vset.pattern.permute.xlu0 1
        %2022 = vperm.xlu0 %2021, %v912
        %v2023 = vpop.permute.xlu0 %2022
        %2025 = vset.pattern.permute.xlu0 1
        %2026 = vperm.xlu0 %2025, %v913
        %v2027 = vpop.permute.xlu0 %2026
        %2029 = vset.pattern.permute.xlu0 1
        %2030 = vperm.xlu0 %2029, %v914
        %v2031 = vpop.permute.xlu0 %2030
        %2033 = vset.pattern.permute.xlu0 1
        %2034 = vperm.xlu0 %2033, %v915
        %v2035 = vpop.permute.xlu0 %2034
        %2037 = vset.pattern.permute.xlu0 1
        %2038 = vperm.xlu0 %2037, %v916
        %v2039 = vpop.permute.xlu0 %2038
        %2041 = vset.pattern.permute.xlu0 1
        %2042 = vperm.xlu0 %2041, %v917
        %v2043 = vpop.permute.xlu0 %2042
        %2045 = vset.pattern.permute.xlu0 1
        %2046 = vperm.xlu0 %2045, %v918
        %v2047 = vpop.permute.xlu0 %2046
        %2049 = vset.pattern.permute.xlu0 1
        %2050 = vperm.xlu0 %2049, %v919
        %v2051 = vpop.permute.xlu0 %2050
        %2053 = vset.pattern.permute.xlu0 1
        %2054 = vperm.xlu0 %2053, %v920
        %v2055 = vpop.permute.xlu0 %2054
        %2057 = vset.pattern.permute.xlu0 1
        %2058 = vperm.xlu0 %2057, %v921
        %v2059 = vpop.permute.xlu0 %2058
        %2061 = vset.pattern.permute.xlu0 1
        %2062 = vperm.xlu0 %2061, %v922
        %v2063 = vpop.permute.xlu0 %2062
        %2065 = vset.pattern.permute.xlu0 1
        %2066 = vperm.xlu0 %2065, %v923
        %v2067 = vpop.permute.xlu0 %2066
        %2069 = vset.pattern.permute.xlu0 1
        %2070 = vperm.xlu0 %2069, %v924
        %v2071 = vpop.permute.xlu0 %2070
        %2073 = vset.pattern.permute.xlu0 1
        %2074 = vperm.xlu0 %2073, %v925
        %v2075 = vpop.permute.xlu0 %2074
        %2077 = vset.pattern.permute.xlu0 1
        %2078 = vperm.xlu0 %2077, %v926
        %v2079 = vpop.permute.xlu0 %2078
        %2081 = vset.pattern.permute.xlu0 1
        %2082 = vperm.xlu0 %2081, %v927
        %v2083 = vpop.permute.xlu0 %2082
        %2085 = vset.pattern.permute.xlu0 1
        %2086 = vperm.xlu0 %2085, %v928
        %v2087 = vpop.permute.xlu0 %2086
        %2089 = vset.pattern.permute.xlu0 1
        %2090 = vperm.xlu0 %2089, %v929
        %v2091 = vpop.permute.xlu0 %2090
        %2093 = vset.pattern.permute.xlu0 1
        %2094 = vperm.xlu0 %2093, %v930
        %v2095 = vpop.permute.xlu0 %2094
        %2097 = vset.pattern.permute.xlu0 1
        %2098 = vperm.xlu0 %2097, %v931
        %v2099 = vpop.permute.xlu0 %2098
        %2101 = vset.pattern.permute.xlu0 1
        %2102 = vperm.xlu0 %2101, %v932
        %v2103 = vpop.permute.xlu0 %2102
        %2105 = vset.pattern.permute.xlu0 1
        %2106 = vperm.xlu0 %2105, %v933
        %v2107 = vpop.permute.xlu0 %2106
        %2109 = vset.pattern.permute.xlu0 1
        %2110 = vperm.xlu0 %2109, %v934
        %v2111 = vpop.permute.xlu0 %2110
        %2113 = vset.pattern.permute.xlu0 1
        %2114 = vperm.xlu0 %2113, %v935
        %v2115 = vpop.permute.xlu0 %2114
        %2117 = vset.pattern.permute.xlu0 1
        %2118 = vperm.xlu0 %2117, %v936
        %v2119 = vpop.permute.xlu0 %2118
        %2121 = vset.pattern.permute.xlu0 1
        %2122 = vperm.xlu0 %2121, %v937
        %v2123 = vpop.permute.xlu0 %2122
        %2125 = vset.pattern.permute.xlu0 1
        %2126 = vperm.xlu0 %2125, %v938
        %v2127 = vpop.permute.xlu0 %2126
        %2129 = vset.pattern.permute.xlu0 1
        %2130 = vperm.xlu0 %2129, %v939
        %v2131 = vpop.permute.xlu0 %2130
        %2133 = vset.pattern.permute.xlu0 1
        %2134 = vperm.xlu0 %2133, %v940
        %v2135 = vpop.permute.xlu0 %2134
        %2137 = vset.pattern.permute.xlu0 1
        %2138 = vperm.xlu0 %2137, %v941
        %v2139 = vpop.permute.xlu0 %2138
        %2141 = vset.pattern.permute.xlu0 1
        %2142 = vperm.xlu0 %2141, %v942
        %v2143 = vpop.permute.xlu0 %2142
        %2145 = vset.pattern.permute.xlu0 1
        %2146 = vperm.xlu0 %2145, %v943
        %v2147 = vpop.permute.xlu0 %2146
        %2149 = vset.pattern.permute.xlu0 1
        %2150 = vperm.xlu0 %2149, %v944
        %v2151 = vpop.permute.xlu0 %2150
        %2153 = vset.pattern.permute.xlu0 1
        %2154 = vperm.xlu0 %2153, %v945
        %v2155 = vpop.permute.xlu0 %2154
        %2157 = vset.pattern.permute.xlu0 1
        %2158 = vperm.xlu0 %2157, %v946
        %v2159 = vpop.permute.xlu0 %2158
        %2161 = vset.pattern.permute.xlu0 1
        %2162 = vperm.xlu0 %2161, %v947
        %v2163 = vpop.permute.xlu0 %2162
        %2165 = vset.pattern.permute.xlu0 1
        %2166 = vperm.xlu0 %2165, %v948
        %v2167 = vpop.permute.xlu0 %2166
        %2169 = vset.pattern.permute.xlu0 1
        %2170 = vperm.xlu0 %2169, %v949
        %v2171 = vpop.permute.xlu0 %2170
        %2173 = vset.pattern.permute.xlu0 1
        %2174 = vperm.xlu0 %2173, %v950
        %v2175 = vpop.permute.xlu0 %2174
        %2177 = vset.pattern.permute.xlu0 1
        %2178 = vperm.xlu0 %2177, %v951
        %v2179 = vpop.permute.xlu0 %2178
        %2181 = vset.pattern.permute.xlu0 1
        %2182 = vperm.xlu0 %2181, %v952
        %v2183 = vpop.permute.xlu0 %2182
        %2185 = vset.pattern.permute.xlu0 1
        %2186 = vperm.xlu0 %2185, %v953
        %v2187 = vpop.permute.xlu0 %2186
        %2189 = vset.pattern.permute.xlu0 1
        %2190 = vperm.xlu0 %2189, %v954
        %v2191 = vpop.permute.xlu0 %2190
        %2193 = vset.pattern.permute.xlu0 1
        %2194 = vperm.xlu0 %2193, %v955
        %v2195 = vpop.permute.xlu0 %2194
        %2197 = vset.pattern.permute.xlu0 1
        %2198 = vperm.xlu0 %2197, %v956
        %v2199 = vpop.permute.xlu0 %2198
        %2201 = vset.pattern.permute.xlu0 1
        %2202 = vperm.xlu0 %2201, %v957
        %v2203 = vpop.permute.xlu0 %2202
        %2205 = vset.pattern.permute.xlu0 1
        %2206 = vperm.xlu0 %2205, %v958
        %v2207 = vpop.permute.xlu0 %2206
        %2209 = vset.pattern.permute.xlu0 1
        %2210 = vperm.xlu0 %2209, %v959
        %v2211 = vpop.permute.xlu0 %2210
        %2213 = vset.pattern.permute.xlu0 1
        %2214 = vperm.xlu0 %2213, %v960
        %v2215 = vpop.permute.xlu0 %2214
        %2217 = vset.pattern.permute.xlu0 1
        %2218 = vperm.xlu0 %2217, %v961
        %v2219 = vpop.permute.xlu0 %2218
        %2221 = vset.pattern.permute.xlu0 1
        %2222 = vperm.xlu0 %2221, %v962
        %v2223 = vpop.permute.xlu0 %2222
        %2225 = vset.pattern.permute.xlu0 1
        %2226 = vperm.xlu0 %2225, %v963
        %v2227 = vpop.permute.xlu0 %2226
        %2229 = vset.pattern.permute.xlu0 1
        %2230 = vperm.xlu0 %2229, %v964
        %v2231 = vpop.permute.xlu0 %2230
        %2233 = vset.pattern.permute.xlu0 1
        %2234 = vperm.xlu0 %2233, %v965
        %v2235 = vpop.permute.xlu0 %2234
        %2237 = vset.pattern.permute.xlu0 1
        %2238 = vperm.xlu0 %2237, %v966
        %v2239 = vpop.permute.xlu0 %2238
        %2241 = vset.pattern.permute.xlu0 1
        %2242 = vperm.xlu0 %2241, %v967
        %v2243 = vpop.permute.xlu0 %2242
        %2245 = vset.pattern.permute.xlu0 1
        %2246 = vperm.xlu0 %2245, %v968
        %v2247 = vpop.permute.xlu0 %2246
        %2249 = vset.pattern.permute.xlu0 1
        %2250 = vperm.xlu0 %2249, %v969
        %v2251 = vpop.permute.xlu0 %2250
        %2253 = vset.pattern.permute.xlu0 1
        %2254 = vperm.xlu0 %2253, %v970
        %v2255 = vpop.permute.xlu0 %2254
        %v2257 = vlaneseq
        %v2258 = vshrl.u32 %v2257, 7
        %v2259 = vsub.s32 0, %v2258
        %v2260 = vrot.slane %v1744, %v2259
        %v2261 = vmul.f32 %v1747, %v2260
        %v2262 = vmul.f32 %v1751, %v2260
        %v2263 = vmul.f32 %v1755, %v2260
        %v2264 = vmul.f32 %v1759, %v2260
        %v2265 = vmul.f32 %v1763, %v2260
        %v2266 = vmul.f32 %v1767, %v2260
        %v2267 = vmul.f32 %v1771, %v2260
        %v2268 = vmul.f32 %v1775, %v2260
        %v2269 = vmul.f32 %v1779, %v2260
        %v2270 = vmul.f32 %v1783, %v2260
        %v2271 = vmul.f32 %v1787, %v2260
        %v2272 = vmul.f32 %v1791, %v2260
        %v2273 = vmul.f32 %v1795, %v2260
        %v2274 = vmul.f32 %v1799, %v2260
        %v2275 = vmul.f32 %v1803, %v2260
        %v2276 = vmul.f32 %v1807, %v2260
        %v2277 = vmul.f32 %v1811, %v2260
        %v2278 = vmul.f32 %v1815, %v2260
        %v2279 = vmul.f32 %v1819, %v2260
        %v2280 = vmul.f32 %v1823, %v2260
        %v2281 = vmul.f32 %v1827, %v2260
        %v2282 = vmul.f32 %v1831, %v2260
        %v2283 = vmul.f32 %v1835, %v2260
        %v2284 = vmul.f32 %v1839, %v2260
        %v2285 = vmul.f32 %v1843, %v2260
        %v2286 = vmul.f32 %v1847, %v2260
        %v2287 = vmul.f32 %v1851, %v2260
        %v2288 = vmul.f32 %v1855, %v2260
        %v2289 = vmul.f32 %v1859, %v2260
        %v2290 = vmul.f32 %v1863, %v2260
        %v2291 = vmul.f32 %v1867, %v2260
        %v2292 = vmul.f32 %v1871, %v2260
        %v2293 = vmul.f32 %v1875, %v2260
        %v2294 = vmul.f32 %v1879, %v2260
        %v2295 = vmul.f32 %v1883, %v2260
        %v2296 = vmul.f32 %v1887, %v2260
        %v2297 = vmul.f32 %v1891, %v2260
        %v2298 = vmul.f32 %v1895, %v2260
        %v2299 = vmul.f32 %v1899, %v2260
        %v2300 = vmul.f32 %v1903, %v2260
        %v2301 = vmul.f32 %v1907, %v2260
        %v2302 = vmul.f32 %v1911, %v2260
        %v2303 = vmul.f32 %v1915, %v2260
        %v2304 = vmul.f32 %v1919, %v2260
        %v2305 = vmul.f32 %v1923, %v2260
        %v2306 = vmul.f32 %v1927, %v2260
        %v2307 = vmul.f32 %v1931, %v2260
        %v2308 = vmul.f32 %v1935, %v2260
        %v2309 = vmul.f32 %v1939, %v2260
        %v2310 = vmul.f32 %v1943, %v2260
        %v2311 = vmul.f32 %v1947, %v2260
        %v2312 = vmul.f32 %v1951, %v2260
        %v2313 = vmul.f32 %v1955, %v2260
        %v2314 = vmul.f32 %v1959, %v2260
        %v2315 = vmul.f32 %v1963, %v2260
        %v2316 = vmul.f32 %v1967, %v2260
        %v2317 = vmul.f32 %v1971, %v2260
        %v2318 = vmul.f32 %v1975, %v2260
        %v2319 = vmul.f32 %v1979, %v2260
        %v2320 = vmul.f32 %v1983, %v2260
        %v2321 = vmul.f32 %v1987, %v2260
        %v2322 = vmul.f32 %v1991, %v2260
        %v2323 = vmul.f32 %v1995, %v2260
        %v2324 = vmul.f32 %v1999, %v2260
        %v2325 = vmul.f32 %v2003, %v2260
        %v2326 = vmul.f32 %v2007, %v2260
        %v2327 = vmul.f32 %v2011, %v2260
        %v2328 = vmul.f32 %v2015, %v2260
        %v2329 = vmul.f32 %v2019, %v2260
        %v2330 = vmul.f32 %v2023, %v2260
        %v2331 = vmul.f32 %v2027, %v2260
        %v2332 = vmul.f32 %v2031, %v2260
        %v2333 = vmul.f32 %v2035, %v2260
        %v2334 = vmul.f32 %v2039, %v2260
        %v2335 = vmul.f32 %v2043, %v2260
        %v2336 = vmul.f32 %v2047, %v2260
        %v2337 = vmul.f32 %v2051, %v2260
        %v2338 = vmul.f32 %v2055, %v2260
        %v2339 = vmul.f32 %v2059, %v2260
        %v2340 = vmul.f32 %v2063, %v2260
        %v2341 = vmul.f32 %v2067, %v2260
        %v2342 = vmul.f32 %v2071, %v2260
        %v2343 = vmul.f32 %v2075, %v2260
        %v2344 = vmul.f32 %v2079, %v2260
        %v2345 = vmul.f32 %v2083, %v2260
        %v2346 = vmul.f32 %v2087, %v2260
        %v2347 = vmul.f32 %v2091, %v2260
        %v2348 = vmul.f32 %v2095, %v2260
        %v2349 = vmul.f32 %v2099, %v2260
        %v2350 = vmul.f32 %v2103, %v2260
        %v2351 = vmul.f32 %v2107, %v2260
        %v2352 = vmul.f32 %v2111, %v2260
        %v2353 = vmul.f32 %v2115, %v2260
        %v2354 = vmul.f32 %v2119, %v2260
        %v2355 = vmul.f32 %v2123, %v2260
        %v2356 = vmul.f32 %v2127, %v2260
        %v2357 = vmul.f32 %v2131, %v2260
        %v2358 = vmul.f32 %v2135, %v2260
        %v2359 = vmul.f32 %v2139, %v2260
        %v2360 = vmul.f32 %v2143, %v2260
        %v2361 = vmul.f32 %v2147, %v2260
        %v2362 = vmul.f32 %v2151, %v2260
        %v2363 = vmul.f32 %v2155, %v2260
        %v2364 = vmul.f32 %v2159, %v2260
        %v2365 = vmul.f32 %v2163, %v2260
        %v2366 = vmul.f32 %v2167, %v2260
        %v2367 = vmul.f32 %v2171, %v2260
        %v2368 = vmul.f32 %v2175, %v2260
        %v2369 = vmul.f32 %v2179, %v2260
        %v2370 = vmul.f32 %v2183, %v2260
        %v2371 = vmul.f32 %v2187, %v2260
        %v2372 = vmul.f32 %v2191, %v2260
        %v2373 = vmul.f32 %v2195, %v2260
        %v2374 = vmul.f32 %v2199, %v2260
        %v2375 = vmul.f32 %v2203, %v2260
        %v2376 = vmul.f32 %v2207, %v2260
        %v2377 = vmul.f32 %v2211, %v2260
        %v2378 = vmul.f32 %v2215, %v2260
        %v2379 = vmul.f32 %v2219, %v2260
        %v2380 = vmul.f32 %v2223, %v2260
        %v2381 = vmul.f32 %v2227, %v2260
        %v2382 = vmul.f32 %v2231, %v2260
        %v2383 = vmul.f32 %v2235, %v2260
        %v2384 = vmul.f32 %v2239, %v2260
        %v2385 = vmul.f32 %v2243, %v2260
        %v2386 = vmul.f32 %v2247, %v2260
        %v2387 = vmul.f32 %v2251, %v2260
        %v2388 = vmul.f32 %v2255, %v2260
        %v2389 = vadd.f32 %v1616, %v2261
        %v2390 = vadd.f32 %v1617, %v2262
        %v2391 = vadd.f32 %v1618, %v2263
        %v2392 = vadd.f32 %v1619, %v2264
        %v2393 = vadd.f32 %v1620, %v2265
        %v2394 = vadd.f32 %v1621, %v2266
        %v2395 = vadd.f32 %v1622, %v2267
        %v2396 = vadd.f32 %v1623, %v2268
        %v2397 = vadd.f32 %v1624, %v2269
        %v2398 = vadd.f32 %v1625, %v2270
        %v2399 = vadd.f32 %v1626, %v2271
        %v2400 = vadd.f32 %v1627, %v2272
        %v2401 = vadd.f32 %v1628, %v2273
        %v2402 = vadd.f32 %v1629, %v2274
        %v2403 = vadd.f32 %v1630, %v2275
        %v2404 = vadd.f32 %v1631, %v2276
        %v2405 = vadd.f32 %v1632, %v2277
        %v2406 = vadd.f32 %v1633, %v2278
        %v2407 = vadd.f32 %v1634, %v2279
        %v2408 = vadd.f32 %v1635, %v2280
        %v2409 = vadd.f32 %v1636, %v2281
        %v2410 = vadd.f32 %v1637, %v2282
        %v2411 = vadd.f32 %v1638, %v2283
        %v2412 = vadd.f32 %v1639, %v2284
        %v2413 = vadd.f32 %v1640, %v2285
        %v2414 = vadd.f32 %v1641, %v2286
        %v2415 = vadd.f32 %v1642, %v2287
        %v2416 = vadd.f32 %v1643, %v2288
        %v2417 = vadd.f32 %v1644, %v2289
        %v2418 = vadd.f32 %v1645, %v2290
        %v2419 = vadd.f32 %v1646, %v2291
        %v2420 = vadd.f32 %v1647, %v2292
        %v2421 = vadd.f32 %v1648, %v2293
        %v2422 = vadd.f32 %v1649, %v2294
        %v2423 = vadd.f32 %v1650, %v2295
        %v2424 = vadd.f32 %v1651, %v2296
        %v2425 = vadd.f32 %v1652, %v2297
        %v2426 = vadd.f32 %v1653, %v2298
        %v2427 = vadd.f32 %v1654, %v2299
        %v2428 = vadd.f32 %v1655, %v2300
        %v2429 = vadd.f32 %v1656, %v2301
        %v2430 = vadd.f32 %v1657, %v2302
        %v2431 = vadd.f32 %v1658, %v2303
        %v2432 = vadd.f32 %v1659, %v2304
        %v2433 = vadd.f32 %v1660, %v2305
        %v2434 = vadd.f32 %v1661, %v2306
        %v2435 = vadd.f32 %v1662, %v2307
        %v2436 = vadd.f32 %v1663, %v2308
        %v2437 = vadd.f32 %v1664, %v2309
        %v2438 = vadd.f32 %v1665, %v2310
        %v2439 = vadd.f32 %v1666, %v2311
        %v2440 = vadd.f32 %v1667, %v2312
        %v2441 = vadd.f32 %v1668, %v2313
        %v2442 = vadd.f32 %v1669, %v2314
        %v2443 = vadd.f32 %v1670, %v2315
        %v2444 = vadd.f32 %v1671, %v2316
        %v2445 = vadd.f32 %v1672, %v2317
        %v2446 = vadd.f32 %v1673, %v2318
        %v2447 = vadd.f32 %v1674, %v2319
        %v2448 = vadd.f32 %v1675, %v2320
        %v2449 = vadd.f32 %v1676, %v2321
        %v2450 = vadd.f32 %v1677, %v2322
        %v2451 = vadd.f32 %v1678, %v2323
        %v2452 = vadd.f32 %v1679, %v2324
        %v2453 = vadd.f32 %v1680, %v2325
        %v2454 = vadd.f32 %v1681, %v2326
        %v2455 = vadd.f32 %v1682, %v2327
        %v2456 = vadd.f32 %v1683, %v2328
        %v2457 = vadd.f32 %v1684, %v2329
        %v2458 = vadd.f32 %v1685, %v2330
        %v2459 = vadd.f32 %v1686, %v2331
        %v2460 = vadd.f32 %v1687, %v2332
        %v2461 = vadd.f32 %v1688, %v2333
        %v2462 = vadd.f32 %v1689, %v2334
        %v2463 = vadd.f32 %v1690, %v2335
        %v2464 = vadd.f32 %v1691, %v2336
        %v2465 = vadd.f32 %v1692, %v2337
        %v2466 = vadd.f32 %v1693, %v2338
        %v2467 = vadd.f32 %v1694, %v2339
        %v2468 = vadd.f32 %v1695, %v2340
        %v2469 = vadd.f32 %v1696, %v2341
        %v2470 = vadd.f32 %v1697, %v2342
        %v2471 = vadd.f32 %v1698, %v2343
        %v2472 = vadd.f32 %v1699, %v2344
        %v2473 = vadd.f32 %v1700, %v2345
        %v2474 = vadd.f32 %v1701, %v2346
        %v2475 = vadd.f32 %v1702, %v2347
        %v2476 = vadd.f32 %v1703, %v2348
        %v2477 = vadd.f32 %v1704, %v2349
        %v2478 = vadd.f32 %v1705, %v2350
        %v2479 = vadd.f32 %v1706, %v2351
        %v2480 = vadd.f32 %v1707, %v2352
        %v2481 = vadd.f32 %v1708, %v2353
        %v2482 = vadd.f32 %v1709, %v2354
        %v2483 = vadd.f32 %v1710, %v2355
        %v2484 = vadd.f32 %v1711, %v2356
        %v2485 = vadd.f32 %v1712, %v2357
        %v2486 = vadd.f32 %v1713, %v2358
        %v2487 = vadd.f32 %v1714, %v2359
        %v2488 = vadd.f32 %v1715, %v2360
        %v2489 = vadd.f32 %v1716, %v2361
        %v2490 = vadd.f32 %v1717, %v2362
        %v2491 = vadd.f32 %v1718, %v2363
        %v2492 = vadd.f32 %v1719, %v2364
        %v2493 = vadd.f32 %v1720, %v2365
        %v2494 = vadd.f32 %v1721, %v2366
        %v2495 = vadd.f32 %v1722, %v2367
        %v2496 = vadd.f32 %v1723, %v2368
        %v2497 = vadd.f32 %v1724, %v2369
        %v2498 = vadd.f32 %v1725, %v2370
        %v2499 = vadd.f32 %v1726, %v2371
        %v2500 = vadd.f32 %v1727, %v2372
        %v2501 = vadd.f32 %v1728, %v2373
        %v2502 = vadd.f32 %v1729, %v2374
        %v2503 = vadd.f32 %v1730, %v2375
        %v2504 = vadd.f32 %v1731, %v2376
        %v2505 = vadd.f32 %v1732, %v2377
        %v2506 = vadd.f32 %v1733, %v2378
        %v2507 = vadd.f32 %v1734, %v2379
        %v2508 = vadd.f32 %v1735, %v2380
        %v2509 = vadd.f32 %v1736, %v2381
        %v2510 = vadd.f32 %v1737, %v2382
        %v2511 = vadd.f32 %v1738, %v2383
        %v2512 = vadd.f32 %v1739, %v2384
        %v2513 = vadd.f32 %v1740, %v2385
        %v2514 = vadd.f32 %v1741, %v2386
        %v2515 = vadd.f32 %v1742, %v2387
        %v2516 = vadd.f32 %v1743, %v2388
        %v2517 = vld [vmem:[%s1 + $0x2] sm:$0x1]
        %2518 = vset.pattern.permute.xlu0 2
        %2519 = vperm.xlu0 %2518, %v843
        %v2520 = vpop.permute.xlu0 %2519
        %2522 = vset.pattern.permute.xlu0 2
        %2523 = vperm.xlu0 %2522, %v844
        %v2524 = vpop.permute.xlu0 %2523
        %2526 = vset.pattern.permute.xlu0 2
        %2527 = vperm.xlu0 %2526, %v845
        %v2528 = vpop.permute.xlu0 %2527
        %2530 = vset.pattern.permute.xlu0 2
        %2531 = vperm.xlu0 %2530, %v846
        %v2532 = vpop.permute.xlu0 %2531
        %2534 = vset.pattern.permute.xlu0 2
        %2535 = vperm.xlu0 %2534, %v847
        %v2536 = vpop.permute.xlu0 %2535
        %2538 = vset.pattern.permute.xlu0 2
        %2539 = vperm.xlu0 %2538, %v848
        %v2540 = vpop.permute.xlu0 %2539
        %2542 = vset.pattern.permute.xlu0 2
        %2543 = vperm.xlu0 %2542, %v849
        %v2544 = vpop.permute.xlu0 %2543
        %2546 = vset.pattern.permute.xlu0 2
        %2547 = vperm.xlu0 %2546, %v850
        %v2548 = vpop.permute.xlu0 %2547
        %2550 = vset.pattern.permute.xlu0 2
        %2551 = vperm.xlu0 %2550, %v851
        %v2552 = vpop.permute.xlu0 %2551
        %2554 = vset.pattern.permute.xlu0 2
        %2555 = vperm.xlu0 %2554, %v852
        %v2556 = vpop.permute.xlu0 %2555
        %2558 = vset.pattern.permute.xlu0 2
        %2559 = vperm.xlu0 %2558, %v853
        %v2560 = vpop.permute.xlu0 %2559
        %2562 = vset.pattern.permute.xlu0 2
        %2563 = vperm.xlu0 %2562, %v854
        %v2564 = vpop.permute.xlu0 %2563
        %2566 = vset.pattern.permute.xlu0 2
        %2567 = vperm.xlu0 %2566, %v855
        %v2568 = vpop.permute.xlu0 %2567
        %2570 = vset.pattern.permute.xlu0 2
        %2571 = vperm.xlu0 %2570, %v856
        %v2572 = vpop.permute.xlu0 %2571
        %2574 = vset.pattern.permute.xlu0 2
        %2575 = vperm.xlu0 %2574, %v857
        %v2576 = vpop.permute.xlu0 %2575
        %2578 = vset.pattern.permute.xlu0 2
        %2579 = vperm.xlu0 %2578, %v858
        %v2580 = vpop.permute.xlu0 %2579
        %2582 = vset.pattern.permute.xlu0 2
        %2583 = vperm.xlu0 %2582, %v859
        %v2584 = vpop.permute.xlu0 %2583
        %2586 = vset.pattern.permute.xlu0 2
        %2587 = vperm.xlu0 %2586, %v860
        %v2588 = vpop.permute.xlu0 %2587
        %2590 = vset.pattern.permute.xlu0 2
        %2591 = vperm.xlu0 %2590, %v861
        %v2592 = vpop.permute.xlu0 %2591
        %2594 = vset.pattern.permute.xlu0 2
        %2595 = vperm.xlu0 %2594, %v862
        %v2596 = vpop.permute.xlu0 %2595
        %2598 = vset.pattern.permute.xlu0 2
        %2599 = vperm.xlu0 %2598, %v863
        %v2600 = vpop.permute.xlu0 %2599
        %2602 = vset.pattern.permute.xlu0 2
        %2603 = vperm.xlu0 %2602, %v864
        %v2604 = vpop.permute.xlu0 %2603
        %2606 = vset.pattern.permute.xlu0 2
        %2607 = vperm.xlu0 %2606, %v865
        %v2608 = vpop.permute.xlu0 %2607
        %2610 = vset.pattern.permute.xlu0 2
        %2611 = vperm.xlu0 %2610, %v866
        %v2612 = vpop.permute.xlu0 %2611
        %2614 = vset.pattern.permute.xlu0 2
        %2615 = vperm.xlu0 %2614, %v867
        %v2616 = vpop.permute.xlu0 %2615
        %2618 = vset.pattern.permute.xlu0 2
        %2619 = vperm.xlu0 %2618, %v868
        %v2620 = vpop.permute.xlu0 %2619
        %2622 = vset.pattern.permute.xlu0 2
        %2623 = vperm.xlu0 %2622, %v869
        %v2624 = vpop.permute.xlu0 %2623
        %2626 = vset.pattern.permute.xlu0 2
        %2627 = vperm.xlu0 %2626, %v870
        %v2628 = vpop.permute.xlu0 %2627
        %2630 = vset.pattern.permute.xlu0 2
        %2631 = vperm.xlu0 %2630, %v871
        %v2632 = vpop.permute.xlu0 %2631
        %2634 = vset.pattern.permute.xlu0 2
        %2635 = vperm.xlu0 %2634, %v872
        %v2636 = vpop.permute.xlu0 %2635
        %2638 = vset.pattern.permute.xlu0 2
        %2639 = vperm.xlu0 %2638, %v873
        %v2640 = vpop.permute.xlu0 %2639
        %2642 = vset.pattern.permute.xlu0 2
        %2643 = vperm.xlu0 %2642, %v874
        %v2644 = vpop.permute.xlu0 %2643
        %2646 = vset.pattern.permute.xlu0 2
        %2647 = vperm.xlu0 %2646, %v875
        %v2648 = vpop.permute.xlu0 %2647
        %2650 = vset.pattern.permute.xlu0 2
        %2651 = vperm.xlu0 %2650, %v876
        %v2652 = vpop.permute.xlu0 %2651
        %2654 = vset.pattern.permute.xlu0 2
        %2655 = vperm.xlu0 %2654, %v877
        %v2656 = vpop.permute.xlu0 %2655
        %2658 = vset.pattern.permute.xlu0 2
        %2659 = vperm.xlu0 %2658, %v878
        %v2660 = vpop.permute.xlu0 %2659
        %2662 = vset.pattern.permute.xlu0 2
        %2663 = vperm.xlu0 %2662, %v879
        %v2664 = vpop.permute.xlu0 %2663
        %2666 = vset.pattern.permute.xlu0 2
        %2667 = vperm.xlu0 %2666, %v880
        %v2668 = vpop.permute.xlu0 %2667
        %2670 = vset.pattern.permute.xlu0 2
        %2671 = vperm.xlu0 %2670, %v881
        %v2672 = vpop.permute.xlu0 %2671
        %2674 = vset.pattern.permute.xlu0 2
        %2675 = vperm.xlu0 %2674, %v882
        %v2676 = vpop.permute.xlu0 %2675
        %2678 = vset.pattern.permute.xlu0 2
        %2679 = vperm.xlu0 %2678, %v883
        %v2680 = vpop.permute.xlu0 %2679
        %2682 = vset.pattern.permute.xlu0 2
        %2683 = vperm.xlu0 %2682, %v884
        %v2684 = vpop.permute.xlu0 %2683
        %2686 = vset.pattern.permute.xlu0 2
        %2687 = vperm.xlu0 %2686, %v885
        %v2688 = vpop.permute.xlu0 %2687
        %2690 = vset.pattern.permute.xlu0 2
        %2691 = vperm.xlu0 %2690, %v886
        %v2692 = vpop.permute.xlu0 %2691
        %2694 = vset.pattern.permute.xlu0 2
        %2695 = vperm.xlu0 %2694, %v887
        %v2696 = vpop.permute.xlu0 %2695
        %2698 = vset.pattern.permute.xlu0 2
        %2699 = vperm.xlu0 %2698, %v888
        %v2700 = vpop.permute.xlu0 %2699
        %2702 = vset.pattern.permute.xlu0 2
        %2703 = vperm.xlu0 %2702, %v889
        %v2704 = vpop.permute.xlu0 %2703
        %2706 = vset.pattern.permute.xlu0 2
        %2707 = vperm.xlu0 %2706, %v890
        %v2708 = vpop.permute.xlu0 %2707
        %2710 = vset.pattern.permute.xlu0 2
        %2711 = vperm.xlu0 %2710, %v891
        %v2712 = vpop.permute.xlu0 %2711
        %2714 = vset.pattern.permute.xlu0 2
        %2715 = vperm.xlu0 %2714, %v892
        %v2716 = vpop.permute.xlu0 %2715
        %2718 = vset.pattern.permute.xlu0 2
        %2719 = vperm.xlu0 %2718, %v893
        %v2720 = vpop.permute.xlu0 %2719
        %2722 = vset.pattern.permute.xlu0 2
        %2723 = vperm.xlu0 %2722, %v894
        %v2724 = vpop.permute.xlu0 %2723
        %2726 = vset.pattern.permute.xlu0 2
        %2727 = vperm.xlu0 %2726, %v895
        %v2728 = vpop.permute.xlu0 %2727
        %2730 = vset.pattern.permute.xlu0 2
        %2731 = vperm.xlu0 %2730, %v896
        %v2732 = vpop.permute.xlu0 %2731
        %2734 = vset.pattern.permute.xlu0 2
        %2735 = vperm.xlu0 %2734, %v897
        %v2736 = vpop.permute.xlu0 %2735
        %2738 = vset.pattern.permute.xlu0 2
        %2739 = vperm.xlu0 %2738, %v898
        %v2740 = vpop.permute.xlu0 %2739
        %2742 = vset.pattern.permute.xlu0 2
        %2743 = vperm.xlu0 %2742, %v899
        %v2744 = vpop.permute.xlu0 %2743
        %2746 = vset.pattern.permute.xlu0 2
        %2747 = vperm.xlu0 %2746, %v900
        %v2748 = vpop.permute.xlu0 %2747
        %2750 = vset.pattern.permute.xlu0 2
        %2751 = vperm.xlu0 %2750, %v901
        %v2752 = vpop.permute.xlu0 %2751
        %2754 = vset.pattern.permute.xlu0 2
        %2755 = vperm.xlu0 %2754, %v902
        %v2756 = vpop.permute.xlu0 %2755
        %2758 = vset.pattern.permute.xlu0 2
        %2759 = vperm.xlu0 %2758, %v903
        %v2760 = vpop.permute.xlu0 %2759
        %2762 = vset.pattern.permute.xlu0 2
        %2763 = vperm.xlu0 %2762, %v904
        %v2764 = vpop.permute.xlu0 %2763
        %2766 = vset.pattern.permute.xlu0 2
        %2767 = vperm.xlu0 %2766, %v905
        %v2768 = vpop.permute.xlu0 %2767
        %2770 = vset.pattern.permute.xlu0 2
        %2771 = vperm.xlu0 %2770, %v906
        %v2772 = vpop.permute.xlu0 %2771
        %2774 = vset.pattern.permute.xlu0 2
        %2775 = vperm.xlu0 %2774, %v907
        %v2776 = vpop.permute.xlu0 %2775
        %2778 = vset.pattern.permute.xlu0 2
        %2779 = vperm.xlu0 %2778, %v908
        %v2780 = vpop.permute.xlu0 %2779
        %2782 = vset.pattern.permute.xlu0 2
        %2783 = vperm.xlu0 %2782, %v909
        %v2784 = vpop.permute.xlu0 %2783
        %2786 = vset.pattern.permute.xlu0 2
        %2787 = vperm.xlu0 %2786, %v910
        %v2788 = vpop.permute.xlu0 %2787
        %2790 = vset.pattern.permute.xlu0 2
        %2791 = vperm.xlu0 %2790, %v911
        %v2792 = vpop.permute.xlu0 %2791
        %2794 = vset.pattern.permute.xlu0 2
        %2795 = vperm.xlu0 %2794, %v912
        %v2796 = vpop.permute.xlu0 %2795
        %2798 = vset.pattern.permute.xlu0 2
        %2799 = vperm.xlu0 %2798, %v913
        %v2800 = vpop.permute.xlu0 %2799
        %2802 = vset.pattern.permute.xlu0 2
        %2803 = vperm.xlu0 %2802, %v914
        %v2804 = vpop.permute.xlu0 %2803
        %2806 = vset.pattern.permute.xlu0 2
        %2807 = vperm.xlu0 %2806, %v915
        %v2808 = vpop.permute.xlu0 %2807
        %2810 = vset.pattern.permute.xlu0 2
        %2811 = vperm.xlu0 %2810, %v916
        %v2812 = vpop.permute.xlu0 %2811
        %2814 = vset.pattern.permute.xlu0 2
        %2815 = vperm.xlu0 %2814, %v917
        %v2816 = vpop.permute.xlu0 %2815
        %2818 = vset.pattern.permute.xlu0 2
        %2819 = vperm.xlu0 %2818, %v918
        %v2820 = vpop.permute.xlu0 %2819
        %2822 = vset.pattern.permute.xlu0 2
        %2823 = vperm.xlu0 %2822, %v919
        %v2824 = vpop.permute.xlu0 %2823
        %2826 = vset.pattern.permute.xlu0 2
        %2827 = vperm.xlu0 %2826, %v920
        %v2828 = vpop.permute.xlu0 %2827
        %2830 = vset.pattern.permute.xlu0 2
        %2831 = vperm.xlu0 %2830, %v921
        %v2832 = vpop.permute.xlu0 %2831
        %2834 = vset.pattern.permute.xlu0 2
        %2835 = vperm.xlu0 %2834, %v922
        %v2836 = vpop.permute.xlu0 %2835
        %2838 = vset.pattern.permute.xlu0 2
        %2839 = vperm.xlu0 %2838, %v923
        %v2840 = vpop.permute.xlu0 %2839
        %2842 = vset.pattern.permute.xlu0 2
        %2843 = vperm.xlu0 %2842, %v924
        %v2844 = vpop.permute.xlu0 %2843
        %2846 = vset.pattern.permute.xlu0 2
        %2847 = vperm.xlu0 %2846, %v925
        %v2848 = vpop.permute.xlu0 %2847
        %2850 = vset.pattern.permute.xlu0 2
        %2851 = vperm.xlu0 %2850, %v926
        %v2852 = vpop.permute.xlu0 %2851
        %2854 = vset.pattern.permute.xlu0 2
        %2855 = vperm.xlu0 %2854, %v927
        %v2856 = vpop.permute.xlu0 %2855
        %2858 = vset.pattern.permute.xlu0 2
        %2859 = vperm.xlu0 %2858, %v928
        %v2860 = vpop.permute.xlu0 %2859
        %2862 = vset.pattern.permute.xlu0 2
        %2863 = vperm.xlu0 %2862, %v929
        %v2864 = vpop.permute.xlu0 %2863
        %2866 = vset.pattern.permute.xlu0 2
        %2867 = vperm.xlu0 %2866, %v930
        %v2868 = vpop.permute.xlu0 %2867
        %2870 = vset.pattern.permute.xlu0 2
        %2871 = vperm.xlu0 %2870, %v931
        %v2872 = vpop.permute.xlu0 %2871
        %2874 = vset.pattern.permute.xlu0 2
        %2875 = vperm.xlu0 %2874, %v932
        %v2876 = vpop.permute.xlu0 %2875
        %2878 = vset.pattern.permute.xlu0 2
        %2879 = vperm.xlu0 %2878, %v933
        %v2880 = vpop.permute.xlu0 %2879
        %2882 = vset.pattern.permute.xlu0 2
        %2883 = vperm.xlu0 %2882, %v934
        %v2884 = vpop.permute.xlu0 %2883
        %2886 = vset.pattern.permute.xlu0 2
        %2887 = vperm.xlu0 %2886, %v935
        %v2888 = vpop.permute.xlu0 %2887
        %2890 = vset.pattern.permute.xlu0 2
        %2891 = vperm.xlu0 %2890, %v936
        %v2892 = vpop.permute.xlu0 %2891
        %2894 = vset.pattern.permute.xlu0 2
        %2895 = vperm.xlu0 %2894, %v937
        %v2896 = vpop.permute.xlu0 %2895
        %2898 = vset.pattern.permute.xlu0 2
        %2899 = vperm.xlu0 %2898, %v938
        %v2900 = vpop.permute.xlu0 %2899
        %2902 = vset.pattern.permute.xlu0 2
        %2903 = vperm.xlu0 %2902, %v939
        %v2904 = vpop.permute.xlu0 %2903
        %2906 = vset.pattern.permute.xlu0 2
        %2907 = vperm.xlu0 %2906, %v940
        %v2908 = vpop.permute.xlu0 %2907
        %2910 = vset.pattern.permute.xlu0 2
        %2911 = vperm.xlu0 %2910, %v941
        %v2912 = vpop.permute.xlu0 %2911
        %2914 = vset.pattern.permute.xlu0 2
        %2915 = vperm.xlu0 %2914, %v942
        %v2916 = vpop.permute.xlu0 %2915
        %2918 = vset.pattern.permute.xlu0 2
        %2919 = vperm.xlu0 %2918, %v943
        %v2920 = vpop.permute.xlu0 %2919
        %2922 = vset.pattern.permute.xlu0 2
        %2923 = vperm.xlu0 %2922, %v944
        %v2924 = vpop.permute.xlu0 %2923
        %2926 = vset.pattern.permute.xlu0 2
        %2927 = vperm.xlu0 %2926, %v945
        %v2928 = vpop.permute.xlu0 %2927
        %2930 = vset.pattern.permute.xlu0 2
        %2931 = vperm.xlu0 %2930, %v946
        %v2932 = vpop.permute.xlu0 %2931
        %2934 = vset.pattern.permute.xlu0 2
        %2935 = vperm.xlu0 %2934, %v947
        %v2936 = vpop.permute.xlu0 %2935
        %2938 = vset.pattern.permute.xlu0 2
        %2939 = vperm.xlu0 %2938, %v948
        %v2940 = vpop.permute.xlu0 %2939
        %2942 = vset.pattern.permute.xlu0 2
        %2943 = vperm.xlu0 %2942, %v949
        %v2944 = vpop.permute.xlu0 %2943
        %2946 = vset.pattern.permute.xlu0 2
        %2947 = vperm.xlu0 %2946, %v950
        %v2948 = vpop.permute.xlu0 %2947
        %2950 = vset.pattern.permute.xlu0 2
        %2951 = vperm.xlu0 %2950, %v951
        %v2952 = vpop.permute.xlu0 %2951
        %2954 = vset.pattern.permute.xlu0 2
        %2955 = vperm.xlu0 %2954, %v952
        %v2956 = vpop.permute.xlu0 %2955
        %2958 = vset.pattern.permute.xlu0 2
        %2959 = vperm.xlu0 %2958, %v953
        %v2960 = vpop.permute.xlu0 %2959
        %2962 = vset.pattern.permute.xlu0 2
        %2963 = vperm.xlu0 %2962, %v954
        %v2964 = vpop.permute.xlu0 %2963
        %2966 = vset.pattern.permute.xlu0 2
        %2967 = vperm.xlu0 %2966, %v955
        %v2968 = vpop.permute.xlu0 %2967
        %2970 = vset.pattern.permute.xlu0 2
        %2971 = vperm.xlu0 %2970, %v956
        %v2972 = vpop.permute.xlu0 %2971
        %2974 = vset.pattern.permute.xlu0 2
        %2975 = vperm.xlu0 %2974, %v957
        %v2976 = vpop.permute.xlu0 %2975
        %2978 = vset.pattern.permute.xlu0 2
        %2979 = vperm.xlu0 %2978, %v958
        %v2980 = vpop.permute.xlu0 %2979
        %2982 = vset.pattern.permute.xlu0 2
        %2983 = vperm.xlu0 %2982, %v959
        %v2984 = vpop.permute.xlu0 %2983
        %2986 = vset.pattern.permute.xlu0 2
        %2987 = vperm.xlu0 %2986, %v960
        %v2988 = vpop.permute.xlu0 %2987
        %2990 = vset.pattern.permute.xlu0 2
        %2991 = vperm.xlu0 %2990, %v961
        %v2992 = vpop.permute.xlu0 %2991
        %2994 = vset.pattern.permute.xlu0 2
        %2995 = vperm.xlu0 %2994, %v962
        %v2996 = vpop.permute.xlu0 %2995
        %2998 = vset.pattern.permute.xlu0 2
        %2999 = vperm.xlu0 %2998, %v963
        %v3000 = vpop.permute.xlu0 %2999
        %3002 = vset.pattern.permute.xlu0 2
        %3003 = vperm.xlu0 %3002, %v964
        %v3004 = vpop.permute.xlu0 %3003
        %3006 = vset.pattern.permute.xlu0 2
        %3007 = vperm.xlu0 %3006, %v965
        %v3008 = vpop.permute.xlu0 %3007
        %3010 = vset.pattern.permute.xlu0 2
        %3011 = vperm.xlu0 %3010, %v966
        %v3012 = vpop.permute.xlu0 %3011
        %3014 = vset.pattern.permute.xlu0 2
        %3015 = vperm.xlu0 %3014, %v967
        %v3016 = vpop.permute.xlu0 %3015
        %3018 = vset.pattern.permute.xlu0 2
        %3019 = vperm.xlu0 %3018, %v968
        %v3020 = vpop.permute.xlu0 %3019
        %3022 = vset.pattern.permute.xlu0 2
        %3023 = vperm.xlu0 %3022, %v969
        %v3024 = vpop.permute.xlu0 %3023
        %3026 = vset.pattern.permute.xlu0 2
        %3027 = vperm.xlu0 %3026, %v970
        %v3028 = vpop.permute.xlu0 %3027
        %v3030 = vlaneseq
        %v3031 = vshrl.u32 %v3030, 7
        %v3032 = vsub.s32 0, %v3031
        %v3033 = vrot.slane %v2517, %v3032
        %v3034 = vmul.f32 %v2520, %v3033
        %v3035 = vmul.f32 %v2524, %v3033
        %v3036 = vmul.f32 %v2528, %v3033
        %v3037 = vmul.f32 %v2532, %v3033
        %v3038 = vmul.f32 %v2536, %v3033
        %v3039 = vmul.f32 %v2540, %v3033
        %v3040 = vmul.f32 %v2544, %v3033
        %v3041 = vmul.f32 %v2548, %v3033
        %v3042 = vmul.f32 %v2552, %v3033
        %v3043 = vmul.f32 %v2556, %v3033
        %v3044 = vmul.f32 %v2560, %v3033
        %v3045 = vmul.f32 %v2564, %v3033
        %v3046 = vmul.f32 %v2568, %v3033
        %v3047 = vmul.f32 %v2572, %v3033
        %v3048 = vmul.f32 %v2576, %v3033
        %v3049 = vmul.f32 %v2580, %v3033
        %v3050 = vmul.f32 %v2584, %v3033
        %v3051 = vmul.f32 %v2588, %v3033
        %v3052 = vmul.f32 %v2592, %v3033
        %v3053 = vmul.f32 %v2596, %v3033
        %v3054 = vmul.f32 %v2600, %v3033
        %v3055 = vmul.f32 %v2604, %v3033
        %v3056 = vmul.f32 %v2608, %v3033
        %v3057 = vmul.f32 %v2612, %v3033
        %v3058 = vmul.f32 %v2616, %v3033
        %v3059 = vmul.f32 %v2620, %v3033
        %v3060 = vmul.f32 %v2624, %v3033
        %v3061 = vmul.f32 %v2628, %v3033
        %v3062 = vmul.f32 %v2632, %v3033
        %v3063 = vmul.f32 %v2636, %v3033
        %v3064 = vmul.f32 %v2640, %v3033
        %v3065 = vmul.f32 %v2644, %v3033
        %v3066 = vmul.f32 %v2648, %v3033
        %v3067 = vmul.f32 %v2652, %v3033
        %v3068 = vmul.f32 %v2656, %v3033
        %v3069 = vmul.f32 %v2660, %v3033
        %v3070 = vmul.f32 %v2664, %v3033
        %v3071 = vmul.f32 %v2668, %v3033
        %v3072 = vmul.f32 %v2672, %v3033
        %v3073 = vmul.f32 %v2676, %v3033
        %v3074 = vmul.f32 %v2680, %v3033
        %v3075 = vmul.f32 %v2684, %v3033
        %v3076 = vmul.f32 %v2688, %v3033
        %v3077 = vmul.f32 %v2692, %v3033
        %v3078 = vmul.f32 %v2696, %v3033
        %v3079 = vmul.f32 %v2700, %v3033
        %v3080 = vmul.f32 %v2704, %v3033
        %v3081 = vmul.f32 %v2708, %v3033
        %v3082 = vmul.f32 %v2712, %v3033
        %v3083 = vmul.f32 %v2716, %v3033
        %v3084 = vmul.f32 %v2720, %v3033
        %v3085 = vmul.f32 %v2724, %v3033
        %v3086 = vmul.f32 %v2728, %v3033
        %v3087 = vmul.f32 %v2732, %v3033
        %v3088 = vmul.f32 %v2736, %v3033
        %v3089 = vmul.f32 %v2740, %v3033
        %v3090 = vmul.f32 %v2744, %v3033
        %v3091 = vmul.f32 %v2748, %v3033
        %v3092 = vmul.f32 %v2752, %v3033
        %v3093 = vmul.f32 %v2756, %v3033
        %v3094 = vmul.f32 %v2760, %v3033
        %v3095 = vmul.f32 %v2764, %v3033
        %v3096 = vmul.f32 %v2768, %v3033
        %v3097 = vmul.f32 %v2772, %v3033
        %v3098 = vmul.f32 %v2776, %v3033
        %v3099 = vmul.f32 %v2780, %v3033
        %v3100 = vmul.f32 %v2784, %v3033
        %v3101 = vmul.f32 %v2788, %v3033
        %v3102 = vmul.f32 %v2792, %v3033
        %v3103 = vmul.f32 %v2796, %v3033
        %v3104 = vmul.f32 %v2800, %v3033
        %v3105 = vmul.f32 %v2804, %v3033
        %v3106 = vmul.f32 %v2808, %v3033
        %v3107 = vmul.f32 %v2812, %v3033
        %v3108 = vmul.f32 %v2816, %v3033
        %v3109 = vmul.f32 %v2820, %v3033
        %v3110 = vmul.f32 %v2824, %v3033
        %v3111 = vmul.f32 %v2828, %v3033
        %v3112 = vmul.f32 %v2832, %v3033
        %v3113 = vmul.f32 %v2836, %v3033
        %v3114 = vmul.f32 %v2840, %v3033
        %v3115 = vmul.f32 %v2844, %v3033
        %v3116 = vmul.f32 %v2848, %v3033
        %v3117 = vmul.f32 %v2852, %v3033
        %v3118 = vmul.f32 %v2856, %v3033
        %v3119 = vmul.f32 %v2860, %v3033
        %v3120 = vmul.f32 %v2864, %v3033
        %v3121 = vmul.f32 %v2868, %v3033
        %v3122 = vmul.f32 %v2872, %v3033
        %v3123 = vmul.f32 %v2876, %v3033
        %v3124 = vmul.f32 %v2880, %v3033
        %v3125 = vmul.f32 %v2884, %v3033
        %v3126 = vmul.f32 %v2888, %v3033
        %v3127 = vmul.f32 %v2892, %v3033
        %v3128 = vmul.f32 %v2896, %v3033
        %v3129 = vmul.f32 %v2900, %v3033
        %v3130 = vmul.f32 %v2904, %v3033
        %v3131 = vmul.f32 %v2908, %v3033
        %v3132 = vmul.f32 %v2912, %v3033
        %v3133 = vmul.f32 %v2916, %v3033
        %v3134 = vmul.f32 %v2920, %v3033
        %v3135 = vmul.f32 %v2924, %v3033
        %v3136 = vmul.f32 %v2928, %v3033
        %v3137 = vmul.f32 %v2932, %v3033
        %v3138 = vmul.f32 %v2936, %v3033
        %v3139 = vmul.f32 %v2940, %v3033
        %v3140 = vmul.f32 %v2944, %v3033
        %v3141 = vmul.f32 %v2948, %v3033
        %v3142 = vmul.f32 %v2952, %v3033
        %v3143 = vmul.f32 %v2956, %v3033
        %v3144 = vmul.f32 %v2960, %v3033
        %v3145 = vmul.f32 %v2964, %v3033
        %v3146 = vmul.f32 %v2968, %v3033
        %v3147 = vmul.f32 %v2972, %v3033
        %v3148 = vmul.f32 %v2976, %v3033
        %v3149 = vmul.f32 %v2980, %v3033
        %v3150 = vmul.f32 %v2984, %v3033
        %v3151 = vmul.f32 %v2988, %v3033
        %v3152 = vmul.f32 %v2992, %v3033
        %v3153 = vmul.f32 %v2996, %v3033
        %v3154 = vmul.f32 %v3000, %v3033
        %v3155 = vmul.f32 %v3004, %v3033
        %v3156 = vmul.f32 %v3008, %v3033
        %v3157 = vmul.f32 %v3012, %v3033
        %v3158 = vmul.f32 %v3016, %v3033
        %v3159 = vmul.f32 %v3020, %v3033
        %v3160 = vmul.f32 %v3024, %v3033
        %v3161 = vmul.f32 %v3028, %v3033
        %v3162 = vadd.f32 %v2389, %v3034
        %v3163 = vadd.f32 %v2390, %v3035
        %v3164 = vadd.f32 %v2391, %v3036
        %v3165 = vadd.f32 %v2392, %v3037
        %v3166 = vadd.f32 %v2393, %v3038
        %v3167 = vadd.f32 %v2394, %v3039
        %v3168 = vadd.f32 %v2395, %v3040
        %v3169 = vadd.f32 %v2396, %v3041
        %v3170 = vadd.f32 %v2397, %v3042
        %v3171 = vadd.f32 %v2398, %v3043
        %v3172 = vadd.f32 %v2399, %v3044
        %v3173 = vadd.f32 %v2400, %v3045
        %v3174 = vadd.f32 %v2401, %v3046
        %v3175 = vadd.f32 %v2402, %v3047
        %v3176 = vadd.f32 %v2403, %v3048
        %v3177 = vadd.f32 %v2404, %v3049
        %v3178 = vadd.f32 %v2405, %v3050
        %v3179 = vadd.f32 %v2406, %v3051
        %v3180 = vadd.f32 %v2407, %v3052
        %v3181 = vadd.f32 %v2408, %v3053
        %v3182 = vadd.f32 %v2409, %v3054
        %v3183 = vadd.f32 %v2410, %v3055
        %v3184 = vadd.f32 %v2411, %v3056
        %v3185 = vadd.f32 %v2412, %v3057
        %v3186 = vadd.f32 %v2413, %v3058
        %v3187 = vadd.f32 %v2414, %v3059
        %v3188 = vadd.f32 %v2415, %v3060
        %v3189 = vadd.f32 %v2416, %v3061
        %v3190 = vadd.f32 %v2417, %v3062
        %v3191 = vadd.f32 %v2418, %v3063
        %v3192 = vadd.f32 %v2419, %v3064
        %v3193 = vadd.f32 %v2420, %v3065
        %v3194 = vadd.f32 %v2421, %v3066
        %v3195 = vadd.f32 %v2422, %v3067
        %v3196 = vadd.f32 %v2423, %v3068
        %v3197 = vadd.f32 %v2424, %v3069
        %v3198 = vadd.f32 %v2425, %v3070
        %v3199 = vadd.f32 %v2426, %v3071
        %v3200 = vadd.f32 %v2427, %v3072
        %v3201 = vadd.f32 %v2428, %v3073
        %v3202 = vadd.f32 %v2429, %v3074
        %v3203 = vadd.f32 %v2430, %v3075
        %v3204 = vadd.f32 %v2431, %v3076
        %v3205 = vadd.f32 %v2432, %v3077
        %v3206 = vadd.f32 %v2433, %v3078
        %v3207 = vadd.f32 %v2434, %v3079
        %v3208 = vadd.f32 %v2435, %v3080
        %v3209 = vadd.f32 %v2436, %v3081
        %v3210 = vadd.f32 %v2437, %v3082
        %v3211 = vadd.f32 %v2438, %v3083
        %v3212 = vadd.f32 %v2439, %v3084
        %v3213 = vadd.f32 %v2440, %v3085
        %v3214 = vadd.f32 %v2441, %v3086
        %v3215 = vadd.f32 %v2442, %v3087
        %v3216 = vadd.f32 %v2443, %v3088
        %v3217 = vadd.f32 %v2444, %v3089
        %v3218 = vadd.f32 %v2445, %v3090
        %v3219 = vadd.f32 %v2446, %v3091
        %v3220 = vadd.f32 %v2447, %v3092
        %v3221 = vadd.f32 %v2448, %v3093
        %v3222 = vadd.f32 %v2449, %v3094
        %v3223 = vadd.f32 %v2450, %v3095
        %v3224 = vadd.f32 %v2451, %v3096
        %v3225 = vadd.f32 %v2452, %v3097
        %v3226 = vadd.f32 %v2453, %v3098
        %v3227 = vadd.f32 %v2454, %v3099
        %v3228 = vadd.f32 %v2455, %v3100
        %v3229 = vadd.f32 %v2456, %v3101
        %v3230 = vadd.f32 %v2457, %v3102
        %v3231 = vadd.f32 %v2458, %v3103
        %v3232 = vadd.f32 %v2459, %v3104
        %v3233 = vadd.f32 %v2460, %v3105
        %v3234 = vadd.f32 %v2461, %v3106
        %v3235 = vadd.f32 %v2462, %v3107
        %v3236 = vadd.f32 %v2463, %v3108
        %v3237 = vadd.f32 %v2464, %v3109
        %v3238 = vadd.f32 %v2465, %v3110
        %v3239 = vadd.f32 %v2466, %v3111
        %v3240 = vadd.f32 %v2467, %v3112
        %v3241 = vadd.f32 %v2468, %v3113
        %v3242 = vadd.f32 %v2469, %v3114
        %v3243 = vadd.f32 %v2470, %v3115
        %v3244 = vadd.f32 %v2471, %v3116
        %v3245 = vadd.f32 %v2472, %v3117
        %v3246 = vadd.f32 %v2473, %v3118
        %v3247 = vadd.f32 %v2474, %v3119
        %v3248 = vadd.f32 %v2475, %v3120
        %v3249 = vadd.f32 %v2476, %v3121
        %v3250 = vadd.f32 %v2477, %v3122
        %v3251 = vadd.f32 %v2478, %v3123
        %v3252 = vadd.f32 %v2479, %v3124
        %v3253 = vadd.f32 %v2480, %v3125
        %v3254 = vadd.f32 %v2481, %v3126
        %v3255 = vadd.f32 %v2482, %v3127
        %v3256 = vadd.f32 %v2483, %v3128
        %v3257 = vadd.f32 %v2484, %v3129
        %v3258 = vadd.f32 %v2485, %v3130
        %v3259 = vadd.f32 %v2486, %v3131
        %v3260 = vadd.f32 %v2487, %v3132
        %v3261 = vadd.f32 %v2488, %v3133
        %v3262 = vadd.f32 %v2489, %v3134
        %v3263 = vadd.f32 %v2490, %v3135
        %v3264 = vadd.f32 %v2491, %v3136
        %v3265 = vadd.f32 %v2492, %v3137
        %v3266 = vadd.f32 %v2493, %v3138
        %v3267 = vadd.f32 %v2494, %v3139
        %v3268 = vadd.f32 %v2495, %v3140
        %v3269 = vadd.f32 %v2496, %v3141
        %v3270 = vadd.f32 %v2497, %v3142
        %v3271 = vadd.f32 %v2498, %v3143
        %v3272 = vadd.f32 %v2499, %v3144
        %v3273 = vadd.f32 %v2500, %v3145
        %v3274 = vadd.f32 %v2501, %v3146
        %v3275 = vadd.f32 %v2502, %v3147
        %v3276 = vadd.f32 %v2503, %v3148
        %v3277 = vadd.f32 %v2504, %v3149
        %v3278 = vadd.f32 %v2505, %v3150
        %v3279 = vadd.f32 %v2506, %v3151
        %v3280 = vadd.f32 %v2507, %v3152
        %v3281 = vadd.f32 %v2508, %v3153
        %v3282 = vadd.f32 %v2509, %v3154
        %v3283 = vadd.f32 %v2510, %v3155
        %v3284 = vadd.f32 %v2511, %v3156
        %v3285 = vadd.f32 %v2512, %v3157
        %v3286 = vadd.f32 %v2513, %v3158
        %v3287 = vadd.f32 %v2514, %v3159
        %v3288 = vadd.f32 %v2515, %v3160
        %v3289 = vadd.f32 %v2516, %v3161
        %v3290 = vld [vmem:[%s2] sm:$0x1]
        %v3292 = vlaneseq
        %v3293 = vshrl.u32 %v3292, 7
        %v3294 = vsub.s32 0, %v3293
        %v3295 = vrot.slane %v3290, %v3294
        %v3297 = vadd.f32 %v3162, %v3295
        %v3298 = vadd.f32 %v3163, %v3295
        %v3299 = vadd.f32 %v3164, %v3295
        %v3300 = vadd.f32 %v3165, %v3295
        %v3301 = vadd.f32 %v3166, %v3295
        %v3302 = vadd.f32 %v3167, %v3295
        %v3303 = vadd.f32 %v3168, %v3295
        %v3304 = vadd.f32 %v3169, %v3295
        %v3305 = vadd.f32 %v3170, %v3295
        %v3306 = vadd.f32 %v3171, %v3295
        %v3307 = vadd.f32 %v3172, %v3295
        %v3308 = vadd.f32 %v3173, %v3295
        %v3309 = vadd.f32 %v3174, %v3295
        %v3310 = vadd.f32 %v3175, %v3295
        %v3311 = vadd.f32 %v3176, %v3295
        %v3312 = vadd.f32 %v3177, %v3295
        %v3313 = vadd.f32 %v3178, %v3295
        %v3314 = vadd.f32 %v3179, %v3295
        %v3315 = vadd.f32 %v3180, %v3295
        %v3316 = vadd.f32 %v3181, %v3295
        %v3317 = vadd.f32 %v3182, %v3295
        %v3318 = vadd.f32 %v3183, %v3295
        %v3319 = vadd.f32 %v3184, %v3295
        %v3320 = vadd.f32 %v3185, %v3295
        %v3321 = vadd.f32 %v3186, %v3295
        %v3322 = vadd.f32 %v3187, %v3295
        %v3323 = vadd.f32 %v3188, %v3295
        %v3324 = vadd.f32 %v3189, %v3295
        %v3325 = vadd.f32 %v3190, %v3295
        %v3326 = vadd.f32 %v3191, %v3295
        %v3327 = vadd.f32 %v3192, %v3295
        %v3328 = vadd.f32 %v3193, %v3295
        %v3329 = vadd.f32 %v3194, %v3295
        %v3330 = vadd.f32 %v3195, %v3295
        %v3331 = vadd.f32 %v3196, %v3295
        %v3332 = vadd.f32 %v3197, %v3295
        %v3333 = vadd.f32 %v3198, %v3295
        %v3334 = vadd.f32 %v3199, %v3295
        %v3335 = vadd.f32 %v3200, %v3295
        %v3336 = vadd.f32 %v3201, %v3295
        %v3337 = vadd.f32 %v3202, %v3295
        %v3338 = vadd.f32 %v3203, %v3295
        %v3339 = vadd.f32 %v3204, %v3295
        %v3340 = vadd.f32 %v3205, %v3295
        %v3341 = vadd.f32 %v3206, %v3295
        %v3342 = vadd.f32 %v3207, %v3295
        %v3343 = vadd.f32 %v3208, %v3295
        %v3344 = vadd.f32 %v3209, %v3295
        %v3345 = vadd.f32 %v3210, %v3295
        %v3346 = vadd.f32 %v3211, %v3295
        %v3347 = vadd.f32 %v3212, %v3295
        %v3348 = vadd.f32 %v3213, %v3295
        %v3349 = vadd.f32 %v3214, %v3295
        %v3350 = vadd.f32 %v3215, %v3295
        %v3351 = vadd.f32 %v3216, %v3295
        %v3352 = vadd.f32 %v3217, %v3295
        %v3353 = vadd.f32 %v3218, %v3295
        %v3354 = vadd.f32 %v3219, %v3295
        %v3355 = vadd.f32 %v3220, %v3295
        %v3356 = vadd.f32 %v3221, %v3295
        %v3357 = vadd.f32 %v3222, %v3295
        %v3358 = vadd.f32 %v3223, %v3295
        %v3359 = vadd.f32 %v3224, %v3295
        %v3360 = vadd.f32 %v3225, %v3295
        %v3361 = vadd.f32 %v3226, %v3295
        %v3362 = vadd.f32 %v3227, %v3295
        %v3363 = vadd.f32 %v3228, %v3295
        %v3364 = vadd.f32 %v3229, %v3295
        %v3365 = vadd.f32 %v3230, %v3295
        %v3366 = vadd.f32 %v3231, %v3295
        %v3367 = vadd.f32 %v3232, %v3295
        %v3368 = vadd.f32 %v3233, %v3295
        %v3369 = vadd.f32 %v3234, %v3295
        %v3370 = vadd.f32 %v3235, %v3295
        %v3371 = vadd.f32 %v3236, %v3295
        %v3372 = vadd.f32 %v3237, %v3295
        %v3373 = vadd.f32 %v3238, %v3295
        %v3374 = vadd.f32 %v3239, %v3295
        %v3375 = vadd.f32 %v3240, %v3295
        %v3376 = vadd.f32 %v3241, %v3295
        %v3377 = vadd.f32 %v3242, %v3295
        %v3378 = vadd.f32 %v3243, %v3295
        %v3379 = vadd.f32 %v3244, %v3295
        %v3380 = vadd.f32 %v3245, %v3295
        %v3381 = vadd.f32 %v3246, %v3295
        %v3382 = vadd.f32 %v3247, %v3295
        %v3383 = vadd.f32 %v3248, %v3295
        %v3384 = vadd.f32 %v3249, %v3295
        %v3385 = vadd.f32 %v3250, %v3295
        %v3386 = vadd.f32 %v3251, %v3295
        %v3387 = vadd.f32 %v3252, %v3295
        %v3388 = vadd.f32 %v3253, %v3295
        %v3389 = vadd.f32 %v3254, %v3295
        %v3390 = vadd.f32 %v3255, %v3295
        %v3391 = vadd.f32 %v3256, %v3295
        %v3392 = vadd.f32 %v3257, %v3295
        %v3393 = vadd.f32 %v3258, %v3295
        %v3394 = vadd.f32 %v3259, %v3295
        %v3395 = vadd.f32 %v3260, %v3295
        %v3396 = vadd.f32 %v3261, %v3295
        %v3397 = vadd.f32 %v3262, %v3295
        %v3398 = vadd.f32 %v3263, %v3295
        %v3399 = vadd.f32 %v3264, %v3295
        %v3400 = vadd.f32 %v3265, %v3295
        %v3401 = vadd.f32 %v3266, %v3295
        %v3402 = vadd.f32 %v3267, %v3295
        %v3403 = vadd.f32 %v3268, %v3295
        %v3404 = vadd.f32 %v3269, %v3295
        %v3405 = vadd.f32 %v3270, %v3295
        %v3406 = vadd.f32 %v3271, %v3295
        %v3407 = vadd.f32 %v3272, %v3295
        %v3408 = vadd.f32 %v3273, %v3295
        %v3409 = vadd.f32 %v3274, %v3295
        %v3410 = vadd.f32 %v3275, %v3295
        %v3411 = vadd.f32 %v3276, %v3295
        %v3412 = vadd.f32 %v3277, %v3295
        %v3413 = vadd.f32 %v3278, %v3295
        %v3414 = vadd.f32 %v3279, %v3295
        %v3415 = vadd.f32 %v3280, %v3295
        %v3416 = vadd.f32 %v3281, %v3295
        %v3417 = vadd.f32 %v3282, %v3295
        %v3418 = vadd.f32 %v3283, %v3295
        %v3419 = vadd.f32 %v3284, %v3295
        %v3420 = vadd.f32 %v3285, %v3295
        %v3421 = vadd.f32 %v3286, %v3295
        %v3422 = vadd.f32 %v3287, %v3295
        %v3423 = vadd.f32 %v3288, %v3295
        %v3424 = vadd.f32 %v3289, %v3295
        %v3425 = vmax.f32 %v3297, 0.0
        %v3426 = vmax.f32 %v3298, 0.0
        %v3427 = vmax.f32 %v3299, 0.0
        %v3428 = vmax.f32 %v3300, 0.0
        %v3429 = vmax.f32 %v3301, 0.0
        %v3430 = vmax.f32 %v3302, 0.0
        %v3431 = vmax.f32 %v3303, 0.0
        %v3432 = vmax.f32 %v3304, 0.0
        %v3433 = vmax.f32 %v3305, 0.0
        %v3434 = vmax.f32 %v3306, 0.0
        %v3435 = vmax.f32 %v3307, 0.0
        %v3436 = vmax.f32 %v3308, 0.0
        %v3437 = vmax.f32 %v3309, 0.0
        %v3438 = vmax.f32 %v3310, 0.0
        %v3439 = vmax.f32 %v3311, 0.0
        %v3440 = vmax.f32 %v3312, 0.0
        %v3441 = vmax.f32 %v3313, 0.0
        %v3442 = vmax.f32 %v3314, 0.0
        %v3443 = vmax.f32 %v3315, 0.0
        %v3444 = vmax.f32 %v3316, 0.0
        %v3445 = vmax.f32 %v3317, 0.0
        %v3446 = vmax.f32 %v3318, 0.0
        %v3447 = vmax.f32 %v3319, 0.0
        %v3448 = vmax.f32 %v3320, 0.0
        %v3449 = vmax.f32 %v3321, 0.0
        %v3450 = vmax.f32 %v3322, 0.0
        %v3451 = vmax.f32 %v3323, 0.0
        %v3452 = vmax.f32 %v3324, 0.0
        %v3453 = vmax.f32 %v3325, 0.0
        %v3454 = vmax.f32 %v3326, 0.0
        %v3455 = vmax.f32 %v3327, 0.0
        %v3456 = vmax.f32 %v3328, 0.0
        %v3457 = vmax.f32 %v3329, 0.0
        %v3458 = vmax.f32 %v3330, 0.0
        %v3459 = vmax.f32 %v3331, 0.0
        %v3460 = vmax.f32 %v3332, 0.0
        %v3461 = vmax.f32 %v3333, 0.0
        %v3462 = vmax.f32 %v3334, 0.0
        %v3463 = vmax.f32 %v3335, 0.0
        %v3464 = vmax.f32 %v3336, 0.0
        %v3465 = vmax.f32 %v3337, 0.0
        %v3466 = vmax.f32 %v3338, 0.0
        %v3467 = vmax.f32 %v3339, 0.0
        %v3468 = vmax.f32 %v3340, 0.0
        %v3469 = vmax.f32 %v3341, 0.0
        %v3470 = vmax.f32 %v3342, 0.0
        %v3471 = vmax.f32 %v3343, 0.0
        %v3472 = vmax.f32 %v3344, 0.0
        %v3473 = vmax.f32 %v3345, 0.0
        %v3474 = vmax.f32 %v3346, 0.0
        %v3475 = vmax.f32 %v3347, 0.0
        %v3476 = vmax.f32 %v3348, 0.0
        %v3477 = vmax.f32 %v3349, 0.0
        %v3478 = vmax.f32 %v3350, 0.0
        %v3479 = vmax.f32 %v3351, 0.0
        %v3480 = vmax.f32 %v3352, 0.0
        %v3481 = vmax.f32 %v3353, 0.0
        %v3482 = vmax.f32 %v3354, 0.0
        %v3483 = vmax.f32 %v3355, 0.0
        %v3484 = vmax.f32 %v3356, 0.0
        %v3485 = vmax.f32 %v3357, 0.0
        %v3486 = vmax.f32 %v3358, 0.0
        %v3487 = vmax.f32 %v3359, 0.0
        %v3488 = vmax.f32 %v3360, 0.0
        %v3489 = vmax.f32 %v3361, 0.0
        %v3490 = vmax.f32 %v3362, 0.0
        %v3491 = vmax.f32 %v3363, 0.0
        %v3492 = vmax.f32 %v3364, 0.0
        %v3493 = vmax.f32 %v3365, 0.0
        %v3494 = vmax.f32 %v3366, 0.0
        %v3495 = vmax.f32 %v3367, 0.0
        %v3496 = vmax.f32 %v3368, 0.0
        %v3497 = vmax.f32 %v3369, 0.0
        %v3498 = vmax.f32 %v3370, 0.0
        %v3499 = vmax.f32 %v3371, 0.0
        %v3500 = vmax.f32 %v3372, 0.0
        %v3501 = vmax.f32 %v3373, 0.0
        %v3502 = vmax.f32 %v3374, 0.0
        %v3503 = vmax.f32 %v3375, 0.0
        %v3504 = vmax.f32 %v3376, 0.0
        %v3505 = vmax.f32 %v3377, 0.0
        %v3506 = vmax.f32 %v3378, 0.0
        %v3507 = vmax.f32 %v3379, 0.0
        %v3508 = vmax.f32 %v3380, 0.0
        %v3509 = vmax.f32 %v3381, 0.0
        %v3510 = vmax.f32 %v3382, 0.0
        %v3511 = vmax.f32 %v3383, 0.0
        %v3512 = vmax.f32 %v3384, 0.0
        %v3513 = vmax.f32 %v3385, 0.0
        %v3514 = vmax.f32 %v3386, 0.0
        %v3515 = vmax.f32 %v3387, 0.0
        %v3516 = vmax.f32 %v3388, 0.0
        %v3517 = vmax.f32 %v3389, 0.0
        %v3518 = vmax.f32 %v3390, 0.0
        %v3519 = vmax.f32 %v3391, 0.0
        %v3520 = vmax.f32 %v3392, 0.0
        %v3521 = vmax.f32 %v3393, 0.0
        %v3522 = vmax.f32 %v3394, 0.0
        %v3523 = vmax.f32 %v3395, 0.0
        %v3524 = vmax.f32 %v3396, 0.0
        %v3525 = vmax.f32 %v3397, 0.0
        %v3526 = vmax.f32 %v3398, 0.0
        %v3527 = vmax.f32 %v3399, 0.0
        %v3528 = vmax.f32 %v3400, 0.0
        %v3529 = vmax.f32 %v3401, 0.0
        %v3530 = vmax.f32 %v3402, 0.0
        %v3531 = vmax.f32 %v3403, 0.0
        %v3532 = vmax.f32 %v3404, 0.0
        %v3533 = vmax.f32 %v3405, 0.0
        %v3534 = vmax.f32 %v3406, 0.0
        %v3535 = vmax.f32 %v3407, 0.0
        %v3536 = vmax.f32 %v3408, 0.0
        %v3537 = vmax.f32 %v3409, 0.0
        %v3538 = vmax.f32 %v3410, 0.0
        %v3539 = vmax.f32 %v3411, 0.0
        %v3540 = vmax.f32 %v3412, 0.0
        %v3541 = vmax.f32 %v3413, 0.0
        %v3542 = vmax.f32 %v3414, 0.0
        %v3543 = vmax.f32 %v3415, 0.0
        %v3544 = vmax.f32 %v3416, 0.0
        %v3545 = vmax.f32 %v3417, 0.0
        %v3546 = vmax.f32 %v3418, 0.0
        %v3547 = vmax.f32 %v3419, 0.0
        %v3548 = vmax.f32 %v3420, 0.0
        %v3549 = vmax.f32 %v3421, 0.0
        %v3550 = vmax.f32 %v3422, 0.0
        %v3551 = vmax.f32 %v3423, 0.0
        %v3552 = vmax.f32 %v3424, 0.0
        %v3553 = vpack.c.bf16 %v3426, %v3425
        %v3554 = vpack.c.bf16 %v3428, %v3427
        %v3555 = vpack.c.bf16 %v3430, %v3429
        %v3556 = vpack.c.bf16 %v3432, %v3431
        %v3557 = vpack.c.bf16 %v3434, %v3433
        %v3558 = vpack.c.bf16 %v3436, %v3435
        %v3559 = vpack.c.bf16 %v3438, %v3437
        %v3560 = vpack.c.bf16 %v3440, %v3439
        %v3561 = vpack.c.bf16 %v3442, %v3441
        %v3562 = vpack.c.bf16 %v3444, %v3443
        %v3563 = vpack.c.bf16 %v3446, %v3445
        %v3564 = vpack.c.bf16 %v3448, %v3447
        %v3565 = vpack.c.bf16 %v3450, %v3449
        %v3566 = vpack.c.bf16 %v3452, %v3451
        %v3567 = vpack.c.bf16 %v3454, %v3453
        %v3568 = vpack.c.bf16 %v3456, %v3455
        %v3569 = vpack.c.bf16 %v3458, %v3457
        %v3570 = vpack.c.bf16 %v3460, %v3459
        %v3571 = vpack.c.bf16 %v3462, %v3461
        %v3572 = vpack.c.bf16 %v3464, %v3463
        %v3573 = vpack.c.bf16 %v3466, %v3465
        %v3574 = vpack.c.bf16 %v3468, %v3467
        %v3575 = vpack.c.bf16 %v3470, %v3469
        %v3576 = vpack.c.bf16 %v3472, %v3471
        %v3577 = vpack.c.bf16 %v3474, %v3473
        %v3578 = vpack.c.bf16 %v3476, %v3475
        %v3579 = vpack.c.bf16 %v3478, %v3477
        %v3580 = vpack.c.bf16 %v3480, %v3479
        %v3581 = vpack.c.bf16 %v3482, %v3481
        %v3582 = vpack.c.bf16 %v3484, %v3483
        %v3583 = vpack.c.bf16 %v3486, %v3485
        %v3584 = vpack.c.bf16 %v3488, %v3487
        %v3585 = vpack.c.bf16 %v3490, %v3489
        %v3586 = vpack.c.bf16 %v3492, %v3491
        %v3587 = vpack.c.bf16 %v3494, %v3493
        %v3588 = vpack.c.bf16 %v3496, %v3495
        %v3589 = vpack.c.bf16 %v3498, %v3497
        %v3590 = vpack.c.bf16 %v3500, %v3499
        %v3591 = vpack.c.bf16 %v3502, %v3501
        %v3592 = vpack.c.bf16 %v3504, %v3503
        %v3593 = vpack.c.bf16 %v3506, %v3505
        %v3594 = vpack.c.bf16 %v3508, %v3507
        %v3595 = vpack.c.bf16 %v3510, %v3509
        %v3596 = vpack.c.bf16 %v3512, %v3511
        %v3597 = vpack.c.bf16 %v3514, %v3513
        %v3598 = vpack.c.bf16 %v3516, %v3515
        %v3599 = vpack.c.bf16 %v3518, %v3517
        %v3600 = vpack.c.bf16 %v3520, %v3519
        %v3601 = vpack.c.bf16 %v3522, %v3521
        %v3602 = vpack.c.bf16 %v3524, %v3523
        %v3603 = vpack.c.bf16 %v3526, %v3525
        %v3604 = vpack.c.bf16 %v3528, %v3527
        %v3605 = vpack.c.bf16 %v3530, %v3529
        %v3606 = vpack.c.bf16 %v3532, %v3531
        %v3607 = vpack.c.bf16 %v3534, %v3533
        %v3608 = vpack.c.bf16 %v3536, %v3535
        %v3609 = vpack.c.bf16 %v3538, %v3537
        %v3610 = vpack.c.bf16 %v3540, %v3539
        %v3611 = vpack.c.bf16 %v3542, %v3541
        %v3612 = vpack.c.bf16 %v3544, %v3543
        %v3613 = vpack.c.bf16 %v3546, %v3545
        %v3614 = vpack.c.bf16 %v3548, %v3547
        %v3615 = vpack.c.bf16 %v3550, %v3549
        %v3616 = vpack.c.bf16 %v3552, %v3551
        %v3617 = vld [vmem:[%s3] sm:$0xf]
        %v3618 = vld [vmem:[%s3 + $0x4] sm:$0xf]
        %v3619 = vld [vmem:[%s3 + $0x8] sm:$0xf]
        %v3620 = vld [vmem:[%s3 + $0xc] sm:$0xf]
        %v3621 = vld [vmem:[%s3 + $0x10] sm:$0xf]
        %v3622 = vld [vmem:[%s3 + $0x14] sm:$0xf]
        %v3623 = vld [vmem:[%s3 + $0x18] sm:$0xf]
        %v3624 = vld [vmem:[%s3 + $0x1c] sm:$0xf]
        %v3625 = vld [vmem:[%s4] sm:$0x1]
        %v3627 = vlaneseq
        %v3628 = vshrl.u32 %v3627, 7
        %v3629 = vsub.s32 0, %v3628
        %v3630 = vrot.slane %v3625, %v3629
        %v3640 = vunpack.c.l.b16 %v3617
        %v3641 = vunpack.c.l.b16 %v3618
        %v3642 = vunpack.c.l.b16 %v3619
        %v3643 = vunpack.c.l.b16 %v3620
        %v3644 = vunpack.c.l.b16 %v3621
        %v3645 = vunpack.c.l.b16 %v3622
        %v3646 = vunpack.c.l.b16 %v3623
        %v3647 = vunpack.c.l.b16 %v3624
        %v3648 = vpack.c.b16 %v3641, %v3640
        %v3649 = vpack.c.b16 %v3643, %v3642
        %v3650 = vpack.c.b16 %v3645, %v3644
        %v3651 = vpack.c.b16 %v3647, %v3646
        %vm3656 = vcmask 523264
        %v3658 = vsel %vm3656, %v3553, 0
        %v3661 = vsel %vm3656, %v3554, 0
        %v3664 = vsel %vm3656, %v3555, 0
        %v3667 = vsel %vm3656, %v3556, 0
        %v3670 = vsel %vm3656, %v3557, 0
        %v3673 = vsel %vm3656, %v3558, 0
        %v3676 = vsel %vm3656, %v3559, 0
        %v3679 = vsel %vm3656, %v3560, 0
        %v3682 = vsel %vm3656, %v3561, 0
        %v3685 = vsel %vm3656, %v3562, 0
        %v3688 = vsel %vm3656, %v3563, 0
        %v3691 = vsel %vm3656, %v3564, 0
        %v3694 = vsel %vm3656, %v3565, 0
        %v3697 = vsel %vm3656, %v3566, 0
        %v3700 = vsel %vm3656, %v3567, 0
        %v3703 = vsel %vm3656, %v3568, 0
        %v3706 = vsel %vm3656, %v3569, 0
        %v3709 = vsel %vm3656, %v3570, 0
        %v3712 = vsel %vm3656, %v3571, 0
        %v3715 = vsel %vm3656, %v3572, 0
        %v3718 = vsel %vm3656, %v3573, 0
        %v3721 = vsel %vm3656, %v3574, 0
        %v3724 = vsel %vm3656, %v3575, 0
        %v3727 = vsel %vm3656, %v3576, 0
        %v3730 = vsel %vm3656, %v3577, 0
        %v3733 = vsel %vm3656, %v3578, 0
        %v3736 = vsel %vm3656, %v3579, 0
        %v3739 = vsel %vm3656, %v3580, 0
        %v3742 = vsel %vm3656, %v3581, 0
        %v3745 = vsel %vm3656, %v3582, 0
        %v3748 = vsel %vm3656, %v3583, 0
        %v3751 = vsel %vm3656, %v3584, 0
        %v3754 = vsel %vm3656, %v3585, 0
        %v3757 = vsel %vm3656, %v3586, 0
        %v3760 = vsel %vm3656, %v3587, 0
        %v3763 = vsel %vm3656, %v3588, 0
        %v3766 = vsel %vm3656, %v3589, 0
        %v3769 = vsel %vm3656, %v3590, 0
        %v3772 = vsel %vm3656, %v3591, 0
        %v3775 = vsel %vm3656, %v3592, 0
        %v3778 = vsel %vm3656, %v3593, 0
        %v3781 = vsel %vm3656, %v3594, 0
        %v3784 = vsel %vm3656, %v3595, 0
        %v3787 = vsel %vm3656, %v3596, 0
        %v3790 = vsel %vm3656, %v3597, 0
        %v3793 = vsel %vm3656, %v3598, 0
        %v3796 = vsel %vm3656, %v3599, 0
        %v3799 = vsel %vm3656, %v3600, 0
        %v3802 = vsel %vm3656, %v3601, 0
        %v3805 = vsel %vm3656, %v3602, 0
        %v3808 = vsel %vm3656, %v3603, 0
        %v3811 = vsel %vm3656, %v3604, 0
        %v3814 = vsel %vm3656, %v3605, 0
        %v3817 = vsel %vm3656, %v3606, 0
        %v3820 = vsel %vm3656, %v3607, 0
        %v3823 = vsel %vm3656, %v3608, 0
        %v3826 = vsel %vm3656, %v3609, 0
        %v3829 = vsel %vm3656, %v3610, 0
        %v3832 = vsel %vm3656, %v3611, 0
        %v3835 = vsel %vm3656, %v3612, 0
        %v3838 = vsel %vm3656, %v3613, 0
        %v3841 = vsel %vm3656, %v3614, 0
        %v3844 = vsel %vm3656, %v3615, 0
        %v3847 = vsel %vm3656, %v3616, 0
        %3849 = vmatprep.subr.bf16.mxu0 0
        %3850 = vmatpush1.bf16.msra.mxu0 %v3648
        %3851 = vmatprep.subr.bf16.mxu0 0
        %3852 = vmatpush1.bf16.msra.mxu0 %v3649
        %3853 = vmatprep.subr.bf16.mxu0 0
        %3854 = vmatpush1.bf16.msra.mxu0 %v3650
        %3855 = vmatprep.subr.bf16.mxu0 0
        %3856 = vmatpush1.bf16.msra.mxu0 %v3651
        %3857 = vmatprep.subr.bf16.mxu0 0
        %3858 = vmatpush1.bf16.msra.mxu0 0
        %3859 = vmatprep.subr.bf16.mxu0 0
        %3860 = vmatpush1.bf16.msra.mxu0 0
        %3861 = vmatprep.subr.bf16.mxu0 0
        %3862 = vmatpush1.bf16.msra.mxu0 0
        %3863 = vmatprep.subr.bf16.mxu0 0
        %3864 = vmatpush1.bf16.msra.mxu0 0
        %3865 = vmatprep.subr.bf16.mxu0 0
        %3866 = vmatpush1.bf16.msra.mxu0 0
        %3867 = vmatprep.subr.bf16.mxu0 0
        %3868 = vmatpush1.bf16.msra.mxu0 0
        %3869 = vmatprep.subr.bf16.mxu0 0
        %3870 = vmatpush1.bf16.msra.mxu0 0
        %3871 = vmatprep.subr.bf16.mxu0 0
        %3872 = vmatpush1.bf16.msra.mxu0 0
        %3873 = vmatprep.subr.bf16.mxu0 0
        %3874 = vmatpush1.bf16.msra.mxu0 0
        %3875 = vmatprep.subr.bf16.mxu0 0
        %3876 = vmatpush1.bf16.msra.mxu0 0
        %3877 = vmatprep.subr.bf16.mxu0 0
        %3878 = vmatpush1.bf16.msra.mxu0 0
        %3879 = vmatprep.subr.bf16.mxu0 0
        %3880 = vmatpush1.bf16.msra.mxu0 0
        %3881 = vmatprep.mubr.bf16.mxu0 0
        %3882 = vmatmul.mubr.bf16.gmra.mrb[0].mxu0 %v3658
        %v3883 = vpop.f32.mrb[0].mxu0
        %v3884 = vadd.f32 %v3630, %v3883
        %v3885 = vpop.f32.mrb[0].mxu0
        %v3886 = vpop.f32.mrb[0].mxu0
        %v3887 = vadd.f32 %v3630, %v3886
        %v3888 = vpop.f32.mrb[0].mxu0
        %3889 = vmatprep.mubr.bf16.mxu0 0
        %3890 = vmatmul.mubr.bf16.gmra.mrb[0].mxu0 %v3661
        %v3891 = vpop.f32.mrb[0].mxu0
        %v3892 = vadd.f32 %v3630, %v3891
        %v3893 = vpop.f32.mrb[0].mxu0
        %v3894 = vpop.f32.mrb[0].mxu0
        %v3895 = vadd.f32 %v3630, %v3894
        %v3896 = vpop.f32.mrb[0].mxu0
        %3897 = vmatprep.mubr.bf16.mxu0 0
        %3898 = vmatmul.mubr.bf16.gmra.mrb[0].mxu0 %v3664
        %v3899 = vpop.f32.mrb[0].mxu0
        %v3900 = vadd.f32 %v3630, %v3899
        %v3901 = vpop.f32.mrb[0].mxu0
        %v3902 = vpop.f32.mrb[0].mxu0
        %v3903 = vadd.f32 %v3630, %v3902
        %v3904 = vpop.f32.mrb[0].mxu0
        %3905 = vmatprep.mubr.bf16.mxu0 0
        %3906 = vmatmul.mubr.bf16.gmra.mrb[0].mxu0 %v3667
        %v3907 = vpop.f32.mrb[0].mxu0
        %v3908 = vadd.f32 %v3630, %v3907
        %v3909 = vpop.f32.mrb[0].mxu0
        %v3910 = vpop.f32.mrb[0].mxu0
        %v3911 = vadd.f32 %v3630, %v3910
        %v3912 = vpop.f32.mrb[0].mxu0
        %3913 = vmatprep.mubr.bf16.mxu0 0
        %3914 = vmatmul.mubr.bf16.gmra.mrb[0].mxu0 %v3670
        %v3915 = vpop.f32.mrb[0].mxu0
        %v3916 = vadd.f32 %v3630, %v3915
        %v3917 = vpop.f32.mrb[0].mxu0
        %v3918 = vpop.f32.mrb[0].mxu0
        %v3919 = vadd.f32 %v3630, %v3918
        %v3920 = vpop.f32.mrb[0].mxu0
        %3921 = vmatprep.mubr.bf16.mxu0 0
        %3922 = vmatmul.mubr.bf16.gmra.mrb[0].mxu0 %v3673
        %v3923 = vpop.f32.mrb[0].mxu0
        %v3924 = vadd.f32 %v3630, %v3923
        %v3925 = vpop.f32.mrb[0].mxu0
        %v3926 = vpop.f32.mrb[0].mxu0
        %v3927 = vadd.f32 %v3630, %v3926
        %v3928 = vpop.f32.mrb[0].mxu0
        %3929 = vmatprep.mubr.bf16.mxu0 0
        %3930 = vmatmul.mubr.bf16.gmra.mrb[0].mxu0 %v3676
        %v3931 = vpop.f32.mrb[0].mxu0
        %v3932 = vadd.f32 %v3630, %v3931
        %v3933 = vpop.f32.mrb[0].mxu0
        %v3934 = vpop.f32.mrb[0].mxu0
        %v3935 = vadd.f32 %v3630, %v3934
        %v3936 = vpop.f32.mrb[0].mxu0
        %3937 = vmatprep.mubr.bf16.mxu0 0
        %3938 = vmatmul.mubr.bf16.gmra.mrb[0].mxu0 %v3679
        %v3939 = vpop.f32.mrb[0].mxu0
        %v3940 = vadd.f32 %v3630, %v3939
        %v3941 = vpop.f32.mrb[0].mxu0
        %v3942 = vpop.f32.mrb[0].mxu0
        %v3943 = vadd.f32 %v3630, %v3942
        %v3944 = vpop.f32.mrb[0].mxu0
        %3945 = vmatprep.mubr.bf16.mxu0 0
        %3946 = vmatmul.mubr.bf16.gmra.mrb[0].mxu0 %v3682
        %v3947 = vpop.f32.mrb[0].mxu0
        %v3948 = vadd.f32 %v3630, %v3947
        %v3949 = vpop.f32.mrb[0].mxu0
        %v3950 = vpop.f32.mrb[0].mxu0
        %v3951 = vadd.f32 %v3630, %v3950
        %v3952 = vpop.f32.mrb[0].mxu0
        %3953 = vmatprep.mubr.bf16.mxu0 0
        %3954 = vmatmul.mubr.bf16.gmra.mrb[0].mxu0 %v3685
        %v3955 = vpop.f32.mrb[0].mxu0
        %v3956 = vadd.f32 %v3630, %v3955
        %v3957 = vpop.f32.mrb[0].mxu0
        %v3958 = vpop.f32.mrb[0].mxu0
        %v3959 = vadd.f32 %v3630, %v3958
        %v3960 = vpop.f32.mrb[0].mxu0
        %3961 = vmatprep.mubr.bf16.mxu0 0
        %3962 = vmatmul.mubr.bf16.gmra.mrb[0].mxu0 %v3688
        %v3963 = vpop.f32.mrb[0].mxu0
        %v3964 = vadd.f32 %v3630, %v3963
        %v3965 = vpop.f32.mrb[0].mxu0
        %v3966 = vpop.f32.mrb[0].mxu0
        %v3967 = vadd.f32 %v3630, %v3966
        %v3968 = vpop.f32.mrb[0].mxu0
        %3969 = vmatprep.mubr.bf16.mxu0 0
        %3970 = vmatmul.mubr.bf16.gmra.mrb[0].mxu0 %v3691
        %v3971 = vpop.f32.mrb[0].mxu0
        %v3972 = vadd.f32 %v3630, %v3971
        %v3973 = vpop.f32.mrb[0].mxu0
        %v3974 = vpop.f32.mrb[0].mxu0
        %v3975 = vadd.f32 %v3630, %v3974
        %v3976 = vpop.f32.mrb[0].mxu0
        %3977 = vmatprep.mubr.bf16.mxu0 0
        %3978 = vmatmul.mubr.bf16.gmra.mrb[0].mxu0 %v3694
        %v3979 = vpop.f32.mrb[0].mxu0
        %v3980 = vadd.f32 %v3630, %v3979
        %v3981 = vpop.f32.mrb[0].mxu0
        %v3982 = vpop.f32.mrb[0].mxu0
        %v3983 = vadd.f32 %v3630, %v3982
        %v3984 = vpop.f32.mrb[0].mxu0
        %3985 = vmatprep.mubr.bf16.mxu0 0
        %3986 = vmatmul.mubr.bf16.gmra.mrb[0].mxu0 %v3697
        %v3987 = vpop.f32.mrb[0].mxu0
        %v3988 = vadd.f32 %v3630, %v3987
        %v3989 = vpop.f32.mrb[0].mxu0
        %v3990 = vpop.f32.mrb[0].mxu0
        %v3991 = vadd.f32 %v3630, %v3990
        %v3992 = vpop.f32.mrb[0].mxu0
        %3993 = vmatprep.mubr.bf16.mxu0 0
        %3994 = vmatmul.mubr.bf16.gmra.mrb[0].mxu0 %v3700
        %v3995 = vpop.f32.mrb[0].mxu0
        %v3996 = vadd.f32 %v3630, %v3995
        %v3997 = vpop.f32.mrb[0].mxu0
        %v3998 = vpop.f32.mrb[0].mxu0
        %v3999 = vadd.f32 %v3630, %v3998
        %v4000 = vpop.f32.mrb[0].mxu0
        %4001 = vmatprep.mubr.bf16.mxu0 0
        %4002 = vmatmul.mubr.bf16.gmra.mrb[0].mxu0 %v3703
        %v4003 = vpop.f32.mrb[0].mxu0
        %v4004 = vadd.f32 %v3630, %v4003
        %v4005 = vpop.f32.mrb[0].mxu0
        %v4006 = vpop.f32.mrb[0].mxu0
        %v4007 = vadd.f32 %v3630, %v4006
        %v4008 = vpop.f32.mrb[0].mxu0
        %4009 = vmatprep.mubr.bf16.mxu0 0
        %4010 = vmatmul.mubr.bf16.gmra.mrb[0].mxu0 %v3706
        %v4011 = vpop.f32.mrb[0].mxu0
        %v4012 = vadd.f32 %v3630, %v4011
        %v4013 = vpop.f32.mrb[0].mxu0
        %v4014 = vpop.f32.mrb[0].mxu0
        %v4015 = vadd.f32 %v3630, %v4014
        %v4016 = vpop.f32.mrb[0].mxu0
        %4017 = vmatprep.mubr.bf16.mxu0 0
        %4018 = vmatmul.mubr.bf16.gmra.mrb[0].mxu0 %v3709
        %v4019 = vpop.f32.mrb[0].mxu0
        %v4020 = vadd.f32 %v3630, %v4019
        %v4021 = vpop.f32.mrb[0].mxu0
        %v4022 = vpop.f32.mrb[0].mxu0
        %v4023 = vadd.f32 %v3630, %v4022
        %v4024 = vpop.f32.mrb[0].mxu0
        %4025 = vmatprep.mubr.bf16.mxu0 0
        %4026 = vmatmul.mubr.bf16.gmra.mrb[0].mxu0 %v3712
        %v4027 = vpop.f32.mrb[0].mxu0
        %v4028 = vadd.f32 %v3630, %v4027
        %v4029 = vpop.f32.mrb[0].mxu0
        %v4030 = vpop.f32.mrb[0].mxu0
        %v4031 = vadd.f32 %v3630, %v4030
        %v4032 = vpop.f32.mrb[0].mxu0
        %4033 = vmatprep.mubr.bf16.mxu0 0
        %4034 = vmatmul.mubr.bf16.gmra.mrb[0].mxu0 %v3715
        %v4035 = vpop.f32.mrb[0].mxu0
        %v4036 = vadd.f32 %v3630, %v4035
        %v4037 = vpop.f32.mrb[0].mxu0
        %v4038 = vpop.f32.mrb[0].mxu0
        %v4039 = vadd.f32 %v3630, %v4038
        %v4040 = vpop.f32.mrb[0].mxu0
        %4041 = vmatprep.mubr.bf16.mxu0 0
        %4042 = vmatmul.mubr.bf16.gmra.mrb[0].mxu0 %v3718
        %v4043 = vpop.f32.mrb[0].mxu0
        %v4044 = vadd.f32 %v3630, %v4043
        %v4045 = vpop.f32.mrb[0].mxu0
        %v4046 = vpop.f32.mrb[0].mxu0
        %v4047 = vadd.f32 %v3630, %v4046
        %v4048 = vpop.f32.mrb[0].mxu0
        %4049 = vmatprep.mubr.bf16.mxu0 0
        %4050 = vmatmul.mubr.bf16.gmra.mrb[0].mxu0 %v3721
        %v4051 = vpop.f32.mrb[0].mxu0
        %v4052 = vadd.f32 %v3630, %v4051
        %v4053 = vpop.f32.mrb[0].mxu0
        %v4054 = vpop.f32.mrb[0].mxu0
        %v4055 = vadd.f32 %v3630, %v4054
        %v4056 = vpop.f32.mrb[0].mxu0
        %4057 = vmatprep.mubr.bf16.mxu0 0
        %4058 = vmatmul.mubr.bf16.gmra.mrb[0].mxu0 %v3724
        %v4059 = vpop.f32.mrb[0].mxu0
        %v4060 = vadd.f32 %v3630, %v4059
        %v4061 = vpop.f32.mrb[0].mxu0
        %v4062 = vpop.f32.mrb[0].mxu0
        %v4063 = vadd.f32 %v3630, %v4062
        %v4064 = vpop.f32.mrb[0].mxu0
        %4065 = vmatprep.mubr.bf16.mxu0 0
        %4066 = vmatmul.mubr.bf16.gmra.mrb[0].mxu0 %v3727
        %v4067 = vpop.f32.mrb[0].mxu0
        %v4068 = vadd.f32 %v3630, %v4067
        %v4069 = vpop.f32.mrb[0].mxu0
        %v4070 = vpop.f32.mrb[0].mxu0
        %v4071 = vadd.f32 %v3630, %v4070
        %v4072 = vpop.f32.mrb[0].mxu0
        %4073 = vmatprep.mubr.bf16.mxu0 0
        %4074 = vmatmul.mubr.bf16.gmra.mrb[0].mxu0 %v3730
        %v4075 = vpop.f32.mrb[0].mxu0
        %v4076 = vadd.f32 %v3630, %v4075
        %v4077 = vpop.f32.mrb[0].mxu0
        %v4078 = vpop.f32.mrb[0].mxu0
        %v4079 = vadd.f32 %v3630, %v4078
        %v4080 = vpop.f32.mrb[0].mxu0
        %4081 = vmatprep.mubr.bf16.mxu0 0
        %4082 = vmatmul.mubr.bf16.gmra.mrb[0].mxu0 %v3733
        %v4083 = vpop.f32.mrb[0].mxu0
        %v4084 = vadd.f32 %v3630, %v4083
        %v4085 = vpop.f32.mrb[0].mxu0
        %v4086 = vpop.f32.mrb[0].mxu0
        %v4087 = vadd.f32 %v3630, %v4086
        %v4088 = vpop.f32.mrb[0].mxu0
        %4089 = vmatprep.mubr.bf16.mxu0 0
        %4090 = vmatmul.mubr.bf16.gmra.mrb[0].mxu0 %v3736
        %v4091 = vpop.f32.mrb[0].mxu0
        %v4092 = vadd.f32 %v3630, %v4091
        %v4093 = vpop.f32.mrb[0].mxu0
        %v4094 = vpop.f32.mrb[0].mxu0
        %v4095 = vadd.f32 %v3630, %v4094
        %v4096 = vpop.f32.mrb[0].mxu0
        %4097 = vmatprep.mubr.bf16.mxu0 0
        %4098 = vmatmul.mubr.bf16.gmra.mrb[0].mxu0 %v3739
        %v4099 = vpop.f32.mrb[0].mxu0
        %v4100 = vadd.f32 %v3630, %v4099
        %v4101 = vpop.f32.mrb[0].mxu0
        %v4102 = vpop.f32.mrb[0].mxu0
        %v4103 = vadd.f32 %v3630, %v4102
        %v4104 = vpop.f32.mrb[0].mxu0
        %4105 = vmatprep.mubr.bf16.mxu0 0
        %4106 = vmatmul.mubr.bf16.gmra.mrb[0].mxu0 %v3742
        %v4107 = vpop.f32.mrb[0].mxu0
        %v4108 = vadd.f32 %v3630, %v4107
        %v4109 = vpop.f32.mrb[0].mxu0
        %v4110 = vpop.f32.mrb[0].mxu0
        %v4111 = vadd.f32 %v3630, %v4110
        %v4112 = vpop.f32.mrb[0].mxu0
        %4113 = vmatprep.mubr.bf16.mxu0 0
        %4114 = vmatmul.mubr.bf16.gmra.mrb[0].mxu0 %v3745
        %v4115 = vpop.f32.mrb[0].mxu0
        %v4116 = vadd.f32 %v3630, %v4115
        %v4117 = vpop.f32.mrb[0].mxu0
        %v4118 = vpop.f32.mrb[0].mxu0
        %v4119 = vadd.f32 %v3630, %v4118
        %v4120 = vpop.f32.mrb[0].mxu0
        %4121 = vmatprep.mubr.bf16.mxu0 0
        %4122 = vmatmul.mubr.bf16.gmra.mrb[0].mxu0 %v3748
        %v4123 = vpop.f32.mrb[0].mxu0
        %v4124 = vadd.f32 %v3630, %v4123
        %v4125 = vpop.f32.mrb[0].mxu0
        %v4126 = vpop.f32.mrb[0].mxu0
        %v4127 = vadd.f32 %v3630, %v4126
        %v4128 = vpop.f32.mrb[0].mxu0
        %4129 = vmatprep.mubr.bf16.mxu0 0
        %4130 = vmatmul.mubr.bf16.gmra.mrb[0].mxu0 %v3751
        %v4131 = vpop.f32.mrb[0].mxu0
        %v4132 = vadd.f32 %v3630, %v4131
        %v4133 = vpop.f32.mrb[0].mxu0
        %v4134 = vpop.f32.mrb[0].mxu0
        %v4135 = vadd.f32 %v3630, %v4134
        %v4136 = vpop.f32.mrb[0].mxu0
        %4137 = vmatprep.mubr.bf16.mxu0 0
        %4138 = vmatmul.mubr.bf16.gmra.mrb[0].mxu0 %v3754
        %v4139 = vpop.f32.mrb[0].mxu0
        %v4140 = vadd.f32 %v3630, %v4139
        %v4141 = vpop.f32.mrb[0].mxu0
        %v4142 = vpop.f32.mrb[0].mxu0
        %v4143 = vadd.f32 %v3630, %v4142
        %v4144 = vpop.f32.mrb[0].mxu0
        %4145 = vmatprep.mubr.bf16.mxu0 0
        %4146 = vmatmul.mubr.bf16.gmra.mrb[0].mxu0 %v3757
        %v4147 = vpop.f32.mrb[0].mxu0
        %v4148 = vadd.f32 %v3630, %v4147
        %v4149 = vpop.f32.mrb[0].mxu0
        %v4150 = vpop.f32.mrb[0].mxu0
        %v4151 = vadd.f32 %v3630, %v4150
        %v4152 = vpop.f32.mrb[0].mxu0
        %4153 = vmatprep.mubr.bf16.mxu0 0
        %4154 = vmatmul.mubr.bf16.gmra.mrb[0].mxu0 %v3760
        %v4155 = vpop.f32.mrb[0].mxu0
        %v4156 = vadd.f32 %v3630, %v4155
        %v4157 = vpop.f32.mrb[0].mxu0
        %v4158 = vpop.f32.mrb[0].mxu0
        %v4159 = vadd.f32 %v3630, %v4158
        %v4160 = vpop.f32.mrb[0].mxu0
        %4161 = vmatprep.mubr.bf16.mxu0 0
        %4162 = vmatmul.mubr.bf16.gmra.mrb[0].mxu0 %v3763
        %v4163 = vpop.f32.mrb[0].mxu0
        %v4164 = vadd.f32 %v3630, %v4163
        %v4165 = vpop.f32.mrb[0].mxu0
        %v4166 = vpop.f32.mrb[0].mxu0
        %v4167 = vadd.f32 %v3630, %v4166
        %v4168 = vpop.f32.mrb[0].mxu0
        %4169 = vmatprep.mubr.bf16.mxu0 0
        %4170 = vmatmul.mubr.bf16.gmra.mrb[0].mxu0 %v3766
        %v4171 = vpop.f32.mrb[0].mxu0
        %v4172 = vadd.f32 %v3630, %v4171
        %v4173 = vpop.f32.mrb[0].mxu0
        %v4174 = vpop.f32.mrb[0].mxu0
        %v4175 = vadd.f32 %v3630, %v4174
        %v4176 = vpop.f32.mrb[0].mxu0
        %4177 = vmatprep.mubr.bf16.mxu0 0
        %4178 = vmatmul.mubr.bf16.gmra.mrb[0].mxu0 %v3769
        %v4179 = vpop.f32.mrb[0].mxu0
        %v4180 = vadd.f32 %v3630, %v4179
        %v4181 = vpop.f32.mrb[0].mxu0
        %v4182 = vpop.f32.mrb[0].mxu0
        %v4183 = vadd.f32 %v3630, %v4182
        %v4184 = vpop.f32.mrb[0].mxu0
        %4185 = vmatprep.mubr.bf16.mxu0 0
        %4186 = vmatmul.mubr.bf16.gmra.mrb[0].mxu0 %v3772
        %v4187 = vpop.f32.mrb[0].mxu0
        %v4188 = vadd.f32 %v3630, %v4187
        %v4189 = vpop.f32.mrb[0].mxu0
        %v4190 = vpop.f32.mrb[0].mxu0
        %v4191 = vadd.f32 %v3630, %v4190
        %v4192 = vpop.f32.mrb[0].mxu0
        %4193 = vmatprep.mubr.bf16.mxu0 0
        %4194 = vmatmul.mubr.bf16.gmra.mrb[0].mxu0 %v3775
        %v4195 = vpop.f32.mrb[0].mxu0
        %v4196 = vadd.f32 %v3630, %v4195
        %v4197 = vpop.f32.mrb[0].mxu0
        %v4198 = vpop.f32.mrb[0].mxu0
        %v4199 = vadd.f32 %v3630, %v4198
        %v4200 = vpop.f32.mrb[0].mxu0
        %4201 = vmatprep.mubr.bf16.mxu0 0
        %4202 = vmatmul.mubr.bf16.gmra.mrb[0].mxu0 %v3778
        %v4203 = vpop.f32.mrb[0].mxu0
        %v4204 = vadd.f32 %v3630, %v4203
        %v4205 = vpop.f32.mrb[0].mxu0
        %v4206 = vpop.f32.mrb[0].mxu0
        %v4207 = vadd.f32 %v3630, %v4206
        %v4208 = vpop.f32.mrb[0].mxu0
        %4209 = vmatprep.mubr.bf16.mxu0 0
        %4210 = vmatmul.mubr.bf16.gmra.mrb[0].mxu0 %v3781
        %v4211 = vpop.f32.mrb[0].mxu0
        %v4212 = vadd.f32 %v3630, %v4211
        %v4213 = vpop.f32.mrb[0].mxu0
        %v4214 = vpop.f32.mrb[0].mxu0
        %v4215 = vadd.f32 %v3630, %v4214
        %v4216 = vpop.f32.mrb[0].mxu0
        %4217 = vmatprep.mubr.bf16.mxu0 0
        %4218 = vmatmul.mubr.bf16.gmra.mrb[0].mxu0 %v3784
        %v4219 = vpop.f32.mrb[0].mxu0
        %v4220 = vadd.f32 %v3630, %v4219
        %v4221 = vpop.f32.mrb[0].mxu0
        %v4222 = vpop.f32.mrb[0].mxu0
        %v4223 = vadd.f32 %v3630, %v4222
        %v4224 = vpop.f32.mrb[0].mxu0
        %4225 = vmatprep.mubr.bf16.mxu0 0
        %4226 = vmatmul.mubr.bf16.gmra.mrb[0].mxu0 %v3787
        %v4227 = vpop.f32.mrb[0].mxu0
        %v4228 = vadd.f32 %v3630, %v4227
        %v4229 = vpop.f32.mrb[0].mxu0
        %v4230 = vpop.f32.mrb[0].mxu0
        %v4231 = vadd.f32 %v3630, %v4230
        %v4232 = vpop.f32.mrb[0].mxu0
        %4233 = vmatprep.mubr.bf16.mxu0 0
        %4234 = vmatmul.mubr.bf16.gmra.mrb[0].mxu0 %v3790
        %v4235 = vpop.f32.mrb[0].mxu0
        %v4236 = vadd.f32 %v3630, %v4235
        %v4237 = vpop.f32.mrb[0].mxu0
        %v4238 = vpop.f32.mrb[0].mxu0
        %v4239 = vadd.f32 %v3630, %v4238
        %v4240 = vpop.f32.mrb[0].mxu0
        %4241 = vmatprep.mubr.bf16.mxu0 0
        %4242 = vmatmul.mubr.bf16.gmra.mrb[0].mxu0 %v3793
        %v4243 = vpop.f32.mrb[0].mxu0
        %v4244 = vadd.f32 %v3630, %v4243
        %v4245 = vpop.f32.mrb[0].mxu0
        %v4246 = vpop.f32.mrb[0].mxu0
        %v4247 = vadd.f32 %v3630, %v4246
        %v4248 = vpop.f32.mrb[0].mxu0
        %4249 = vmatprep.mubr.bf16.mxu0 0
        %4250 = vmatmul.mubr.bf16.gmra.mrb[0].mxu0 %v3796
        %v4251 = vpop.f32.mrb[0].mxu0
        %v4252 = vadd.f32 %v3630, %v4251
        %v4253 = vpop.f32.mrb[0].mxu0
        %v4254 = vpop.f32.mrb[0].mxu0
        %v4255 = vadd.f32 %v3630, %v4254
        %v4256 = vpop.f32.mrb[0].mxu0
        %4257 = vmatprep.mubr.bf16.mxu0 0
        %4258 = vmatmul.mubr.bf16.gmra.mrb[0].mxu0 %v3799
        %v4259 = vpop.f32.mrb[0].mxu0
        %v4260 = vadd.f32 %v3630, %v4259
        %v4261 = vpop.f32.mrb[0].mxu0
        %v4262 = vpop.f32.mrb[0].mxu0
        %v4263 = vadd.f32 %v3630, %v4262
        %v4264 = vpop.f32.mrb[0].mxu0
        %4265 = vmatprep.mubr.bf16.mxu0 0
        %4266 = vmatmul.mubr.bf16.gmra.mrb[0].mxu0 %v3802
        %v4267 = vpop.f32.mrb[0].mxu0
        %v4268 = vadd.f32 %v3630, %v4267
        %v4269 = vpop.f32.mrb[0].mxu0
        %v4270 = vpop.f32.mrb[0].mxu0
        %v4271 = vadd.f32 %v3630, %v4270
        %v4272 = vpop.f32.mrb[0].mxu0
        %4273 = vmatprep.mubr.bf16.mxu0 0
        %4274 = vmatmul.mubr.bf16.gmra.mrb[0].mxu0 %v3805
        %v4275 = vpop.f32.mrb[0].mxu0
        %v4276 = vadd.f32 %v3630, %v4275
        %v4277 = vpop.f32.mrb[0].mxu0
        %v4278 = vpop.f32.mrb[0].mxu0
        %v4279 = vadd.f32 %v3630, %v4278
        %v4280 = vpop.f32.mrb[0].mxu0
        %4281 = vmatprep.mubr.bf16.mxu0 0
        %4282 = vmatmul.mubr.bf16.gmra.mrb[0].mxu0 %v3808
        %v4283 = vpop.f32.mrb[0].mxu0
        %v4284 = vadd.f32 %v3630, %v4283
        %v4285 = vpop.f32.mrb[0].mxu0
        %v4286 = vpop.f32.mrb[0].mxu0
        %v4287 = vadd.f32 %v3630, %v4286
        %v4288 = vpop.f32.mrb[0].mxu0
        %4289 = vmatprep.mubr.bf16.mxu0 0
        %4290 = vmatmul.mubr.bf16.gmra.mrb[0].mxu0 %v3811
        %v4291 = vpop.f32.mrb[0].mxu0
        %v4292 = vadd.f32 %v3630, %v4291
        %v4293 = vpop.f32.mrb[0].mxu0
        %v4294 = vpop.f32.mrb[0].mxu0
        %v4295 = vadd.f32 %v3630, %v4294
        %v4296 = vpop.f32.mrb[0].mxu0
        %4297 = vmatprep.mubr.bf16.mxu0 0
        %4298 = vmatmul.mubr.bf16.gmra.mrb[0].mxu0 %v3814
        %v4299 = vpop.f32.mrb[0].mxu0
        %v4300 = vadd.f32 %v3630, %v4299
        %v4301 = vpop.f32.mrb[0].mxu0
        %v4302 = vpop.f32.mrb[0].mxu0
        %v4303 = vadd.f32 %v3630, %v4302
        %v4304 = vpop.f32.mrb[0].mxu0
        %4305 = vmatprep.mubr.bf16.mxu0 0
        %4306 = vmatmul.mubr.bf16.gmra.mrb[0].mxu0 %v3817
        %v4307 = vpop.f32.mrb[0].mxu0
        %v4308 = vadd.f32 %v3630, %v4307
        %v4309 = vpop.f32.mrb[0].mxu0
        %v4310 = vpop.f32.mrb[0].mxu0
        %v4311 = vadd.f32 %v3630, %v4310
        %v4312 = vpop.f32.mrb[0].mxu0
        %4313 = vmatprep.mubr.bf16.mxu0 0
        %4314 = vmatmul.mubr.bf16.gmra.mrb[0].mxu0 %v3820
        %v4315 = vpop.f32.mrb[0].mxu0
        %v4316 = vadd.f32 %v3630, %v4315
        %v4317 = vpop.f32.mrb[0].mxu0
        %v4318 = vpop.f32.mrb[0].mxu0
        %v4319 = vadd.f32 %v3630, %v4318
        %v4320 = vpop.f32.mrb[0].mxu0
        %4321 = vmatprep.mubr.bf16.mxu0 0
        %4322 = vmatmul.mubr.bf16.gmra.mrb[0].mxu0 %v3823
        %v4323 = vpop.f32.mrb[0].mxu0
        %v4324 = vadd.f32 %v3630, %v4323
        %v4325 = vpop.f32.mrb[0].mxu0
        %v4326 = vpop.f32.mrb[0].mxu0
        %v4327 = vadd.f32 %v3630, %v4326
        %v4328 = vpop.f32.mrb[0].mxu0
        %4329 = vmatprep.mubr.bf16.mxu0 0
        %4330 = vmatmul.mubr.bf16.gmra.mrb[0].mxu0 %v3826
        %v4331 = vpop.f32.mrb[0].mxu0
        %v4332 = vadd.f32 %v3630, %v4331
        %v4333 = vpop.f32.mrb[0].mxu0
        %v4334 = vpop.f32.mrb[0].mxu0
        %v4335 = vadd.f32 %v3630, %v4334
        %v4336 = vpop.f32.mrb[0].mxu0
        %4337 = vmatprep.mubr.bf16.mxu0 0
        %4338 = vmatmul.mubr.bf16.gmra.mrb[0].mxu0 %v3829
        %v4339 = vpop.f32.mrb[0].mxu0
        %v4340 = vadd.f32 %v3630, %v4339
        %v4341 = vpop.f32.mrb[0].mxu0
        %v4342 = vpop.f32.mrb[0].mxu0
        %v4343 = vadd.f32 %v3630, %v4342
        %v4344 = vpop.f32.mrb[0].mxu0
        %4345 = vmatprep.mubr.bf16.mxu0 0
        %4346 = vmatmul.mubr.bf16.gmra.mrb[0].mxu0 %v3832
        %v4347 = vpop.f32.mrb[0].mxu0
        %v4348 = vadd.f32 %v3630, %v4347
        %v4349 = vpop.f32.mrb[0].mxu0
        %v4350 = vpop.f32.mrb[0].mxu0
        %v4351 = vadd.f32 %v3630, %v4350
        %v4352 = vpop.f32.mrb[0].mxu0
        %4353 = vmatprep.mubr.bf16.mxu0 0
        %4354 = vmatmul.mubr.bf16.gmra.mrb[0].mxu0 %v3835
        %v4355 = vpop.f32.mrb[0].mxu0
        %v4356 = vadd.f32 %v3630, %v4355
        %v4357 = vpop.f32.mrb[0].mxu0
        %v4358 = vpop.f32.mrb[0].mxu0
        %v4359 = vadd.f32 %v3630, %v4358
        %v4360 = vpop.f32.mrb[0].mxu0
        %4361 = vmatprep.mubr.bf16.mxu0 0
        %4362 = vmatmul.mubr.bf16.gmra.mrb[0].mxu0 %v3838
        %v4363 = vpop.f32.mrb[0].mxu0
        %v4364 = vadd.f32 %v3630, %v4363
        %v4365 = vpop.f32.mrb[0].mxu0
        %v4366 = vpop.f32.mrb[0].mxu0
        %v4367 = vadd.f32 %v3630, %v4366
        %v4368 = vpop.f32.mrb[0].mxu0
        %4369 = vmatprep.mubr.bf16.mxu0 0
        %4370 = vmatmul.mubr.bf16.gmra.mrb[0].mxu0 %v3841
        %v4371 = vpop.f32.mrb[0].mxu0
        %v4372 = vadd.f32 %v3630, %v4371
        %v4373 = vpop.f32.mrb[0].mxu0
        %v4374 = vpop.f32.mrb[0].mxu0
        %v4375 = vadd.f32 %v3630, %v4374
        %v4376 = vpop.f32.mrb[0].mxu0
        %4377 = vmatprep.mubr.bf16.mxu0 0
        %4378 = vmatmul.mubr.bf16.gmra.mrb[0].mxu0 %v3844
        %v4379 = vpop.f32.mrb[0].mxu0
        %v4380 = vadd.f32 %v3630, %v4379
        %v4381 = vpop.f32.mrb[0].mxu0
        %v4382 = vpop.f32.mrb[0].mxu0
        %v4383 = vadd.f32 %v3630, %v4382
        %v4384 = vpop.f32.mrb[0].mxu0
        %4385 = vmatprep.mubr.bf16.mxu0 0
        %4386 = vmatmul.mubr.bf16.gmra.mrb[0].mxu0 %v3847
        %v4387 = vpop.f32.mrb[0].mxu0
        %v4388 = vadd.f32 %v3630, %v4387
        %v4389 = vpop.f32.mrb[0].mxu0
        %v4390 = vpop.f32.mrb[0].mxu0
        %v4391 = vadd.f32 %v3630, %v4390
        %v4392 = vpop.f32.mrb[0].mxu0
        %4393 = vdwg.mxu0
        %v4394 = vmax.f32 %v3884, 0.0
        %v4395 = vmax.f32 %v3887, 0.0
        %v4396 = vmax.f32 %v3892, 0.0
        %v4397 = vmax.f32 %v3895, 0.0
        %v4398 = vmax.f32 %v3900, 0.0
        %v4399 = vmax.f32 %v3903, 0.0
        %v4400 = vmax.f32 %v3908, 0.0
        %v4401 = vmax.f32 %v3911, 0.0
        %v4402 = vmax.f32 %v3916, 0.0
        %v4403 = vmax.f32 %v3919, 0.0
        %v4404 = vmax.f32 %v3924, 0.0
        %v4405 = vmax.f32 %v3927, 0.0
        %v4406 = vmax.f32 %v3932, 0.0
        %v4407 = vmax.f32 %v3935, 0.0
        %v4408 = vmax.f32 %v3940, 0.0
        %v4409 = vmax.f32 %v3943, 0.0
        %v4410 = vmax.f32 %v3948, 0.0
        %v4411 = vmax.f32 %v3951, 0.0
        %v4412 = vmax.f32 %v3956, 0.0
        %v4413 = vmax.f32 %v3959, 0.0
        %v4414 = vmax.f32 %v3964, 0.0
        %v4415 = vmax.f32 %v3967, 0.0
        %v4416 = vmax.f32 %v3972, 0.0
        %v4417 = vmax.f32 %v3975, 0.0
        %v4418 = vmax.f32 %v3980, 0.0
        %v4419 = vmax.f32 %v3983, 0.0
        %v4420 = vmax.f32 %v3988, 0.0
        %v4421 = vmax.f32 %v3991, 0.0
        %v4422 = vmax.f32 %v3996, 0.0
        %v4423 = vmax.f32 %v3999, 0.0
        %v4424 = vmax.f32 %v4004, 0.0
        %v4425 = vmax.f32 %v4007, 0.0
        %v4426 = vmax.f32 %v4012, 0.0
        %v4427 = vmax.f32 %v4015, 0.0
        %v4428 = vmax.f32 %v4020, 0.0
        %v4429 = vmax.f32 %v4023, 0.0
        %v4430 = vmax.f32 %v4028, 0.0
        %v4431 = vmax.f32 %v4031, 0.0
        %v4432 = vmax.f32 %v4036, 0.0
        %v4433 = vmax.f32 %v4039, 0.0
        %v4434 = vmax.f32 %v4044, 0.0
        %v4435 = vmax.f32 %v4047, 0.0
        %v4436 = vmax.f32 %v4052, 0.0
        %v4437 = vmax.f32 %v4055, 0.0
        %v4438 = vmax.f32 %v4060, 0.0
        %v4439 = vmax.f32 %v4063, 0.0
        %v4440 = vmax.f32 %v4068, 0.0
        %v4441 = vmax.f32 %v4071, 0.0
        %v4442 = vmax.f32 %v4076, 0.0
        %v4443 = vmax.f32 %v4079, 0.0
        %v4444 = vmax.f32 %v4084, 0.0
        %v4445 = vmax.f32 %v4087, 0.0
        %v4446 = vmax.f32 %v4092, 0.0
        %v4447 = vmax.f32 %v4095, 0.0
        %v4448 = vmax.f32 %v4100, 0.0
        %v4449 = vmax.f32 %v4103, 0.0
        %v4450 = vmax.f32 %v4108, 0.0
        %v4451 = vmax.f32 %v4111, 0.0
        %v4452 = vmax.f32 %v4116, 0.0
        %v4453 = vmax.f32 %v4119, 0.0
        %v4454 = vmax.f32 %v4124, 0.0
        %v4455 = vmax.f32 %v4127, 0.0
        %v4456 = vmax.f32 %v4132, 0.0
        %v4457 = vmax.f32 %v4135, 0.0
        %v4458 = vmax.f32 %v4140, 0.0
        %v4459 = vmax.f32 %v4143, 0.0
        %v4460 = vmax.f32 %v4148, 0.0
        %v4461 = vmax.f32 %v4151, 0.0
        %v4462 = vmax.f32 %v4156, 0.0
        %v4463 = vmax.f32 %v4159, 0.0
        %v4464 = vmax.f32 %v4164, 0.0
        %v4465 = vmax.f32 %v4167, 0.0
        %v4466 = vmax.f32 %v4172, 0.0
        %v4467 = vmax.f32 %v4175, 0.0
        %v4468 = vmax.f32 %v4180, 0.0
        %v4469 = vmax.f32 %v4183, 0.0
        %v4470 = vmax.f32 %v4188, 0.0
        %v4471 = vmax.f32 %v4191, 0.0
        %v4472 = vmax.f32 %v4196, 0.0
        %v4473 = vmax.f32 %v4199, 0.0
        %v4474 = vmax.f32 %v4204, 0.0
        %v4475 = vmax.f32 %v4207, 0.0
        %v4476 = vmax.f32 %v4212, 0.0
        %v4477 = vmax.f32 %v4215, 0.0
        %v4478 = vmax.f32 %v4220, 0.0
        %v4479 = vmax.f32 %v4223, 0.0
        %v4480 = vmax.f32 %v4228, 0.0
        %v4481 = vmax.f32 %v4231, 0.0
        %v4482 = vmax.f32 %v4236, 0.0
        %v4483 = vmax.f32 %v4239, 0.0
        %v4484 = vmax.f32 %v4244, 0.0
        %v4485 = vmax.f32 %v4247, 0.0
        %v4486 = vmax.f32 %v4252, 0.0
        %v4487 = vmax.f32 %v4255, 0.0
        %v4488 = vmax.f32 %v4260, 0.0
        %v4489 = vmax.f32 %v4263, 0.0
        %v4490 = vmax.f32 %v4268, 0.0
        %v4491 = vmax.f32 %v4271, 0.0
        %v4492 = vmax.f32 %v4276, 0.0
        %v4493 = vmax.f32 %v4279, 0.0
        %v4494 = vmax.f32 %v4284, 0.0
        %v4495 = vmax.f32 %v4287, 0.0
        %v4496 = vmax.f32 %v4292, 0.0
        %v4497 = vmax.f32 %v4295, 0.0
        %v4498 = vmax.f32 %v4300, 0.0
        %v4499 = vmax.f32 %v4303, 0.0
        %v4500 = vmax.f32 %v4308, 0.0
        %v4501 = vmax.f32 %v4311, 0.0
        %v4502 = vmax.f32 %v4316, 0.0
        %v4503 = vmax.f32 %v4319, 0.0
        %v4504 = vmax.f32 %v4324, 0.0
        %v4505 = vmax.f32 %v4327, 0.0
        %v4506 = vmax.f32 %v4332, 0.0
        %v4507 = vmax.f32 %v4335, 0.0
        %v4508 = vmax.f32 %v4340, 0.0
        %v4509 = vmax.f32 %v4343, 0.0
        %v4510 = vmax.f32 %v4348, 0.0
        %v4511 = vmax.f32 %v4351, 0.0
        %v4512 = vmax.f32 %v4356, 0.0
        %v4513 = vmax.f32 %v4359, 0.0
        %v4514 = vmax.f32 %v4364, 0.0
        %v4515 = vmax.f32 %v4367, 0.0
        %v4516 = vmax.f32 %v4372, 0.0
        %v4517 = vmax.f32 %v4375, 0.0
        %v4518 = vmax.f32 %v4380, 0.0
        %v4519 = vmax.f32 %v4383, 0.0
        %v4520 = vmax.f32 %v4388, 0.0
        %v4521 = vmax.f32 %v4391, 0.0
        %v4522 = vpack.c.bf16 %v4395, %v4394
        %v4523 = vpack.c.bf16 %v4397, %v4396
        %v4524 = vpack.c.bf16 %v4399, %v4398
        %v4525 = vpack.c.bf16 %v4401, %v4400
        %v4526 = vpack.c.bf16 %v4403, %v4402
        %v4527 = vpack.c.bf16 %v4405, %v4404
        %v4528 = vpack.c.bf16 %v4407, %v4406
        %v4529 = vpack.c.bf16 %v4409, %v4408
        %v4530 = vpack.c.bf16 %v4411, %v4410
        %v4531 = vpack.c.bf16 %v4413, %v4412
        %v4532 = vpack.c.bf16 %v4415, %v4414
        %v4533 = vpack.c.bf16 %v4417, %v4416
        %v4534 = vpack.c.bf16 %v4419, %v4418
        %v4535 = vpack.c.bf16 %v4421, %v4420
        %v4536 = vpack.c.bf16 %v4423, %v4422
        %v4537 = vpack.c.bf16 %v4425, %v4424
        %v4538 = vpack.c.bf16 %v4427, %v4426
        %v4539 = vpack.c.bf16 %v4429, %v4428
        %v4540 = vpack.c.bf16 %v4431, %v4430
        %v4541 = vpack.c.bf16 %v4433, %v4432
        %v4542 = vpack.c.bf16 %v4435, %v4434
        %v4543 = vpack.c.bf16 %v4437, %v4436
        %v4544 = vpack.c.bf16 %v4439, %v4438
        %v4545 = vpack.c.bf16 %v4441, %v4440
        %v4546 = vpack.c.bf16 %v4443, %v4442
        %v4547 = vpack.c.bf16 %v4445, %v4444
        %v4548 = vpack.c.bf16 %v4447, %v4446
        %v4549 = vpack.c.bf16 %v4449, %v4448
        %v4550 = vpack.c.bf16 %v4451, %v4450
        %v4551 = vpack.c.bf16 %v4453, %v4452
        %v4552 = vpack.c.bf16 %v4455, %v4454
        %v4553 = vpack.c.bf16 %v4457, %v4456
        %v4554 = vpack.c.bf16 %v4459, %v4458
        %v4555 = vpack.c.bf16 %v4461, %v4460
        %v4556 = vpack.c.bf16 %v4463, %v4462
        %v4557 = vpack.c.bf16 %v4465, %v4464
        %v4558 = vpack.c.bf16 %v4467, %v4466
        %v4559 = vpack.c.bf16 %v4469, %v4468
        %v4560 = vpack.c.bf16 %v4471, %v4470
        %v4561 = vpack.c.bf16 %v4473, %v4472
        %v4562 = vpack.c.bf16 %v4475, %v4474
        %v4563 = vpack.c.bf16 %v4477, %v4476
        %v4564 = vpack.c.bf16 %v4479, %v4478
        %v4565 = vpack.c.bf16 %v4481, %v4480
        %v4566 = vpack.c.bf16 %v4483, %v4482
        %v4567 = vpack.c.bf16 %v4485, %v4484
        %v4568 = vpack.c.bf16 %v4487, %v4486
        %v4569 = vpack.c.bf16 %v4489, %v4488
        %v4570 = vpack.c.bf16 %v4491, %v4490
        %v4571 = vpack.c.bf16 %v4493, %v4492
        %v4572 = vpack.c.bf16 %v4495, %v4494
        %v4573 = vpack.c.bf16 %v4497, %v4496
        %v4574 = vpack.c.bf16 %v4499, %v4498
        %v4575 = vpack.c.bf16 %v4501, %v4500
        %v4576 = vpack.c.bf16 %v4503, %v4502
        %v4577 = vpack.c.bf16 %v4505, %v4504
        %v4578 = vpack.c.bf16 %v4507, %v4506
        %v4579 = vpack.c.bf16 %v4509, %v4508
        %v4580 = vpack.c.bf16 %v4511, %v4510
        %v4581 = vpack.c.bf16 %v4513, %v4512
        %v4582 = vpack.c.bf16 %v4515, %v4514
        %v4583 = vpack.c.bf16 %v4517, %v4516
        %v4584 = vpack.c.bf16 %v4519, %v4518
        %v4585 = vpack.c.bf16 %v4521, %v4520
        %v4586 = vld [vmem:[%s5] sm:$0xf]
        %v4587 = vld [vmem:[%s5 + $0x4] sm:$0xf]
        %v4588 = vld [vmem:[%s5 + $0x8] sm:$0xf]
        %v4589 = vld [vmem:[%s5 + $0xc] sm:$0xf]
        %v4590 = vld [vmem:[%s5 + $0x10] sm:$0xf]
        %v4591 = vld [vmem:[%s5 + $0x14] sm:$0xf]
        %v4592 = vld [vmem:[%s5 + $0x18] sm:$0xf]
        %v4593 = vld [vmem:[%s5 + $0x1c] sm:$0xf]
        %v4594 = vld [vmem:[%s6] sm:$0x1]
        %v4596 = vlaneseq
        %v4597 = vshrl.u32 %v4596, 7
        %v4598 = vsub.s32 0, %v4597
        %v4599 = vrot.slane %v4594, %v4598
        %v4609 = vunpack.c.l.b16 %v4586
        %v4610 = vunpack.c.l.b16 %v4587
        %v4611 = vunpack.c.l.b16 %v4588
        %v4612 = vunpack.c.l.b16 %v4589
        %v4613 = vunpack.c.l.b16 %v4590
        %v4614 = vunpack.c.l.b16 %v4591
        %v4615 = vunpack.c.l.b16 %v4592
        %v4616 = vunpack.c.l.b16 %v4593
        %v4617 = vpack.c.b16 %v4610, %v4609
        %v4618 = vpack.c.b16 %v4612, %v4611
        %v4619 = vpack.c.b16 %v4614, %v4613
        %v4620 = vpack.c.b16 %v4616, %v4615
        %v4626 = vsel %vm3656, %v4522, 0
        %v4629 = vsel %vm3656, %v4523, 0
        %v4632 = vsel %vm3656, %v4524, 0
        %v4635 = vsel %vm3656, %v4525, 0
        %v4638 = vsel %vm3656, %v4526, 0
        %v4641 = vsel %vm3656, %v4527, 0
        %v4644 = vsel %vm3656, %v4528, 0
        %v4647 = vsel %vm3656, %v4529, 0
        %v4650 = vsel %vm3656, %v4530, 0
        %v4653 = vsel %vm3656, %v4531, 0
        %v4656 = vsel %vm3656, %v4532, 0
        %v4659 = vsel %vm3656, %v4533, 0
        %v4662 = vsel %vm3656, %v4534, 0
        %v4665 = vsel %vm3656, %v4535, 0
        %v4668 = vsel %vm3656, %v4536, 0
        %v4671 = vsel %vm3656, %v4537, 0
        %v4674 = vsel %vm3656, %v4538, 0
        %v4677 = vsel %vm3656, %v4539, 0
        %v4680 = vsel %vm3656, %v4540, 0
        %v4683 = vsel %vm3656, %v4541, 0
        %v4686 = vsel %vm3656, %v4542, 0
        %v4689 = vsel %vm3656, %v4543, 0
        %v4692 = vsel %vm3656, %v4544, 0
        %v4695 = vsel %vm3656, %v4545, 0
        %v4698 = vsel %vm3656, %v4546, 0
        %v4701 = vsel %vm3656, %v4547, 0
        %v4704 = vsel %vm3656, %v4548, 0
        %v4707 = vsel %vm3656, %v4549, 0
        %v4710 = vsel %vm3656, %v4550, 0
        %v4713 = vsel %vm3656, %v4551, 0
        %v4716 = vsel %vm3656, %v4552, 0
        %v4719 = vsel %vm3656, %v4553, 0
        %v4722 = vsel %vm3656, %v4554, 0
        %v4725 = vsel %vm3656, %v4555, 0
        %v4728 = vsel %vm3656, %v4556, 0
        %v4731 = vsel %vm3656, %v4557, 0
        %v4734 = vsel %vm3656, %v4558, 0
        %v4737 = vsel %vm3656, %v4559, 0
        %v4740 = vsel %vm3656, %v4560, 0
        %v4743 = vsel %vm3656, %v4561, 0
        %v4746 = vsel %vm3656, %v4562, 0
        %v4749 = vsel %vm3656, %v4563, 0
        %v4752 = vsel %vm3656, %v4564, 0
        %v4755 = vsel %vm3656, %v4565, 0
        %v4758 = vsel %vm3656, %v4566, 0
        %v4761 = vsel %vm3656, %v4567, 0
        %v4764 = vsel %vm3656, %v4568, 0
        %v4767 = vsel %vm3656, %v4569, 0
        %v4770 = vsel %vm3656, %v4570, 0
        %v4773 = vsel %vm3656, %v4571, 0
        %v4776 = vsel %vm3656, %v4572, 0
        %v4779 = vsel %vm3656, %v4573, 0
        %v4782 = vsel %vm3656, %v4574, 0
        %v4785 = vsel %vm3656, %v4575, 0
        %v4788 = vsel %vm3656, %v4576, 0
        %v4791 = vsel %vm3656, %v4577, 0
        %v4794 = vsel %vm3656, %v4578, 0
        %v4797 = vsel %vm3656, %v4579, 0
        %v4800 = vsel %vm3656, %v4580, 0
        %v4803 = vsel %vm3656, %v4581, 0
        %v4806 = vsel %vm3656, %v4582, 0
        %v4809 = vsel %vm3656, %v4583, 0
        %v4812 = vsel %vm3656, %v4584, 0
        %v4815 = vsel %vm3656, %v4585, 0
        %4817 = vmatprep.subr.bf16.mxu0 0
        %4818 = vmatpush1.bf16.msra.mxu0 %v4617
        %4819 = vmatprep.subr.bf16.mxu0 0
        %4820 = vmatpush1.bf16.msra.mxu0 %v4618
        %4821 = vmatprep.subr.bf16.mxu0 0
        %4822 = vmatpush1.bf16.msra.mxu0 %v4619
        %4823 = vmatprep.subr.bf16.mxu0 0
        %4824 = vmatpush1.bf16.msra.mxu0 %v4620
        %4825 = vmatprep.subr.bf16.mxu0 0
        %4826 = vmatpush1.bf16.msra.mxu0 0
        %4827 = vmatprep.subr.bf16.mxu0 0
        %4828 = vmatpush1.bf16.msra.mxu0 0
        %4829 = vmatprep.subr.bf16.mxu0 0
        %4830 = vmatpush1.bf16.msra.mxu0 0
        %4831 = vmatprep.subr.bf16.mxu0 0
        %4832 = vmatpush1.bf16.msra.mxu0 0
        %4833 = vmatprep.subr.bf16.mxu0 0
        %4834 = vmatpush1.bf16.msra.mxu0 0
        %4835 = vmatprep.subr.bf16.mxu0 0
        %4836 = vmatpush1.bf16.msra.mxu0 0
        %4837 = vmatprep.subr.bf16.mxu0 0
        %4838 = vmatpush1.bf16.msra.mxu0 0
        %4839 = vmatprep.subr.bf16.mxu0 0
        %4840 = vmatpush1.bf16.msra.mxu0 0
        %4841 = vmatprep.subr.bf16.mxu0 0
        %4842 = vmatpush1.bf16.msra.mxu0 0
        %4843 = vmatprep.subr.bf16.mxu0 0
        %4844 = vmatpush1.bf16.msra.mxu0 0
        %4845 = vmatprep.subr.bf16.mxu0 0
        %4846 = vmatpush1.bf16.msra.mxu0 0
        %4847 = vmatprep.subr.bf16.mxu0 0
        %4848 = vmatpush1.bf16.msra.mxu0 0
        %4849 = vmatprep.mubr.bf16.mxu0 0
        %4850 = vmatmul.mubr.bf16.gmra.mrb[0].mxu0 %v4626
        %v4851 = vpop.f32.mrb[0].mxu0
        %v4852 = vadd.f32 %v4599, %v4851
        %v4853 = vpop.f32.mrb[0].mxu0
        %v4854 = vpop.f32.mrb[0].mxu0
        %v4855 = vadd.f32 %v4599, %v4854
        %v4856 = vpop.f32.mrb[0].mxu0
        %4857 = vmatprep.mubr.bf16.mxu0 0
        %4858 = vmatmul.mubr.bf16.gmra.mrb[0].mxu0 %v4629
        %v4859 = vpop.f32.mrb[0].mxu0
        %v4860 = vadd.f32 %v4599, %v4859
        %v4861 = vpop.f32.mrb[0].mxu0
        %v4862 = vpop.f32.mrb[0].mxu0
        %v4863 = vadd.f32 %v4599, %v4862
        %v4864 = vpop.f32.mrb[0].mxu0
        %4865 = vmatprep.mubr.bf16.mxu0 0
        %4866 = vmatmul.mubr.bf16.gmra.mrb[0].mxu0 %v4632
        %v4867 = vpop.f32.mrb[0].mxu0
        %v4868 = vadd.f32 %v4599, %v4867
        %v4869 = vpop.f32.mrb[0].mxu0
        %v4870 = vpop.f32.mrb[0].mxu0
        %v4871 = vadd.f32 %v4599, %v4870
        %v4872 = vpop.f32.mrb[0].mxu0
        %4873 = vmatprep.mubr.bf16.mxu0 0
        %4874 = vmatmul.mubr.bf16.gmra.mrb[0].mxu0 %v4635
        %v4875 = vpop.f32.mrb[0].mxu0
        %v4876 = vadd.f32 %v4599, %v4875
        %v4877 = vpop.f32.mrb[0].mxu0
        %v4878 = vpop.f32.mrb[0].mxu0
        %v4879 = vadd.f32 %v4599, %v4878
        %v4880 = vpop.f32.mrb[0].mxu0
        %4881 = vmatprep.mubr.bf16.mxu0 0
        %4882 = vmatmul.mubr.bf16.gmra.mrb[0].mxu0 %v4638
        %v4883 = vpop.f32.mrb[0].mxu0
        %v4884 = vadd.f32 %v4599, %v4883
        %v4885 = vpop.f32.mrb[0].mxu0
        %v4886 = vpop.f32.mrb[0].mxu0
        %v4887 = vadd.f32 %v4599, %v4886
        %v4888 = vpop.f32.mrb[0].mxu0
        %4889 = vmatprep.mubr.bf16.mxu0 0
        %4890 = vmatmul.mubr.bf16.gmra.mrb[0].mxu0 %v4641
        %v4891 = vpop.f32.mrb[0].mxu0
        %v4892 = vadd.f32 %v4599, %v4891
        %v4893 = vpop.f32.mrb[0].mxu0
        %v4894 = vpop.f32.mrb[0].mxu0
        %v4895 = vadd.f32 %v4599, %v4894
        %v4896 = vpop.f32.mrb[0].mxu0
        %4897 = vmatprep.mubr.bf16.mxu0 0
        %4898 = vmatmul.mubr.bf16.gmra.mrb[0].mxu0 %v4644
        %v4899 = vpop.f32.mrb[0].mxu0
        %v4900 = vadd.f32 %v4599, %v4899
        %v4901 = vpop.f32.mrb[0].mxu0
        %v4902 = vpop.f32.mrb[0].mxu0
        %v4903 = vadd.f32 %v4599, %v4902
        %v4904 = vpop.f32.mrb[0].mxu0
        %4905 = vmatprep.mubr.bf16.mxu0 0
        %4906 = vmatmul.mubr.bf16.gmra.mrb[0].mxu0 %v4647
        %v4907 = vpop.f32.mrb[0].mxu0
        %v4908 = vadd.f32 %v4599, %v4907
        %v4909 = vpop.f32.mrb[0].mxu0
        %v4910 = vpop.f32.mrb[0].mxu0
        %v4911 = vadd.f32 %v4599, %v4910
        %v4912 = vpop.f32.mrb[0].mxu0
        %4913 = vmatprep.mubr.bf16.mxu0 0
        %4914 = vmatmul.mubr.bf16.gmra.mrb[0].mxu0 %v4650
        %v4915 = vpop.f32.mrb[0].mxu0
        %v4916 = vadd.f32 %v4599, %v4915
        %v4917 = vpop.f32.mrb[0].mxu0
        %v4918 = vpop.f32.mrb[0].mxu0
        %v4919 = vadd.f32 %v4599, %v4918
        %v4920 = vpop.f32.mrb[0].mxu0
        %4921 = vmatprep.mubr.bf16.mxu0 0
        %4922 = vmatmul.mubr.bf16.gmra.mrb[0].mxu0 %v4653
        %v4923 = vpop.f32.mrb[0].mxu0
        %v4924 = vadd.f32 %v4599, %v4923
        %v4925 = vpop.f32.mrb[0].mxu0
        %v4926 = vpop.f32.mrb[0].mxu0
        %v4927 = vadd.f32 %v4599, %v4926
        %v4928 = vpop.f32.mrb[0].mxu0
        %4929 = vmatprep.mubr.bf16.mxu0 0
        %4930 = vmatmul.mubr.bf16.gmra.mrb[0].mxu0 %v4656
        %v4931 = vpop.f32.mrb[0].mxu0
        %v4932 = vadd.f32 %v4599, %v4931
        %v4933 = vpop.f32.mrb[0].mxu0
        %v4934 = vpop.f32.mrb[0].mxu0
        %v4935 = vadd.f32 %v4599, %v4934
        %v4936 = vpop.f32.mrb[0].mxu0
        %4937 = vmatprep.mubr.bf16.mxu0 0
        %4938 = vmatmul.mubr.bf16.gmra.mrb[0].mxu0 %v4659
        %v4939 = vpop.f32.mrb[0].mxu0
        %v4940 = vadd.f32 %v4599, %v4939
        %v4941 = vpop.f32.mrb[0].mxu0
        %v4942 = vpop.f32.mrb[0].mxu0
        %v4943 = vadd.f32 %v4599, %v4942
        %v4944 = vpop.f32.mrb[0].mxu0
        %4945 = vmatprep.mubr.bf16.mxu0 0
        %4946 = vmatmul.mubr.bf16.gmra.mrb[0].mxu0 %v4662
        %v4947 = vpop.f32.mrb[0].mxu0
        %v4948 = vadd.f32 %v4599, %v4947
        %v4949 = vpop.f32.mrb[0].mxu0
        %v4950 = vpop.f32.mrb[0].mxu0
        %v4951 = vadd.f32 %v4599, %v4950
        %v4952 = vpop.f32.mrb[0].mxu0
        %4953 = vmatprep.mubr.bf16.mxu0 0
        %4954 = vmatmul.mubr.bf16.gmra.mrb[0].mxu0 %v4665
        %v4955 = vpop.f32.mrb[0].mxu0
        %v4956 = vadd.f32 %v4599, %v4955
        %v4957 = vpop.f32.mrb[0].mxu0
        %v4958 = vpop.f32.mrb[0].mxu0
        %v4959 = vadd.f32 %v4599, %v4958
        %v4960 = vpop.f32.mrb[0].mxu0
        %4961 = vmatprep.mubr.bf16.mxu0 0
        %4962 = vmatmul.mubr.bf16.gmra.mrb[0].mxu0 %v4668
        %v4963 = vpop.f32.mrb[0].mxu0
        %v4964 = vadd.f32 %v4599, %v4963
        %v4965 = vpop.f32.mrb[0].mxu0
        %v4966 = vpop.f32.mrb[0].mxu0
        %v4967 = vadd.f32 %v4599, %v4966
        %v4968 = vpop.f32.mrb[0].mxu0
        %4969 = vmatprep.mubr.bf16.mxu0 0
        %4970 = vmatmul.mubr.bf16.gmra.mrb[0].mxu0 %v4671
        %v4971 = vpop.f32.mrb[0].mxu0
        %v4972 = vadd.f32 %v4599, %v4971
        %v4973 = vpop.f32.mrb[0].mxu0
        %v4974 = vpop.f32.mrb[0].mxu0
        %v4975 = vadd.f32 %v4599, %v4974
        %v4976 = vpop.f32.mrb[0].mxu0
        %4977 = vmatprep.mubr.bf16.mxu0 0
        %4978 = vmatmul.mubr.bf16.gmra.mrb[0].mxu0 %v4674
        %v4979 = vpop.f32.mrb[0].mxu0
        %v4980 = vadd.f32 %v4599, %v4979
        %v4981 = vpop.f32.mrb[0].mxu0
        %v4982 = vpop.f32.mrb[0].mxu0
        %v4983 = vadd.f32 %v4599, %v4982
        %v4984 = vpop.f32.mrb[0].mxu0
        %4985 = vmatprep.mubr.bf16.mxu0 0
        %4986 = vmatmul.mubr.bf16.gmra.mrb[0].mxu0 %v4677
        %v4987 = vpop.f32.mrb[0].mxu0
        %v4988 = vadd.f32 %v4599, %v4987
        %v4989 = vpop.f32.mrb[0].mxu0
        %v4990 = vpop.f32.mrb[0].mxu0
        %v4991 = vadd.f32 %v4599, %v4990
        %v4992 = vpop.f32.mrb[0].mxu0
        %4993 = vmatprep.mubr.bf16.mxu0 0
        %4994 = vmatmul.mubr.bf16.gmra.mrb[0].mxu0 %v4680
        %v4995 = vpop.f32.mrb[0].mxu0
        %v4996 = vadd.f32 %v4599, %v4995
        %v4997 = vpop.f32.mrb[0].mxu0
        %v4998 = vpop.f32.mrb[0].mxu0
        %v4999 = vadd.f32 %v4599, %v4998
        %v5000 = vpop.f32.mrb[0].mxu0
        %5001 = vmatprep.mubr.bf16.mxu0 0
        %5002 = vmatmul.mubr.bf16.gmra.mrb[0].mxu0 %v4683
        %v5003 = vpop.f32.mrb[0].mxu0
        %v5004 = vadd.f32 %v4599, %v5003
        %v5005 = vpop.f32.mrb[0].mxu0
        %v5006 = vpop.f32.mrb[0].mxu0
        %v5007 = vadd.f32 %v4599, %v5006
        %v5008 = vpop.f32.mrb[0].mxu0
        %5009 = vmatprep.mubr.bf16.mxu0 0
        %5010 = vmatmul.mubr.bf16.gmra.mrb[0].mxu0 %v4686
        %v5011 = vpop.f32.mrb[0].mxu0
        %v5012 = vadd.f32 %v4599, %v5011
        %v5013 = vpop.f32.mrb[0].mxu0
        %v5014 = vpop.f32.mrb[0].mxu0
        %v5015 = vadd.f32 %v4599, %v5014
        %v5016 = vpop.f32.mrb[0].mxu0
        %5017 = vmatprep.mubr.bf16.mxu0 0
        %5018 = vmatmul.mubr.bf16.gmra.mrb[0].mxu0 %v4689
        %v5019 = vpop.f32.mrb[0].mxu0
        %v5020 = vadd.f32 %v4599, %v5019
        %v5021 = vpop.f32.mrb[0].mxu0
        %v5022 = vpop.f32.mrb[0].mxu0
        %v5023 = vadd.f32 %v4599, %v5022
        %v5024 = vpop.f32.mrb[0].mxu0
        %5025 = vmatprep.mubr.bf16.mxu0 0
        %5026 = vmatmul.mubr.bf16.gmra.mrb[0].mxu0 %v4692
        %v5027 = vpop.f32.mrb[0].mxu0
        %v5028 = vadd.f32 %v4599, %v5027
        %v5029 = vpop.f32.mrb[0].mxu0
        %v5030 = vpop.f32.mrb[0].mxu0
        %v5031 = vadd.f32 %v4599, %v5030
        %v5032 = vpop.f32.mrb[0].mxu0
        %5033 = vmatprep.mubr.bf16.mxu0 0
        %5034 = vmatmul.mubr.bf16.gmra.mrb[0].mxu0 %v4695
        %v5035 = vpop.f32.mrb[0].mxu0
        %v5036 = vadd.f32 %v4599, %v5035
        %v5037 = vpop.f32.mrb[0].mxu0
        %v5038 = vpop.f32.mrb[0].mxu0
        %v5039 = vadd.f32 %v4599, %v5038
        %v5040 = vpop.f32.mrb[0].mxu0
        %5041 = vmatprep.mubr.bf16.mxu0 0
        %5042 = vmatmul.mubr.bf16.gmra.mrb[0].mxu0 %v4698
        %v5043 = vpop.f32.mrb[0].mxu0
        %v5044 = vadd.f32 %v4599, %v5043
        %v5045 = vpop.f32.mrb[0].mxu0
        %v5046 = vpop.f32.mrb[0].mxu0
        %v5047 = vadd.f32 %v4599, %v5046
        %v5048 = vpop.f32.mrb[0].mxu0
        %5049 = vmatprep.mubr.bf16.mxu0 0
        %5050 = vmatmul.mubr.bf16.gmra.mrb[0].mxu0 %v4701
        %v5051 = vpop.f32.mrb[0].mxu0
        %v5052 = vadd.f32 %v4599, %v5051
        %v5053 = vpop.f32.mrb[0].mxu0
        %v5054 = vpop.f32.mrb[0].mxu0
        %v5055 = vadd.f32 %v4599, %v5054
        %v5056 = vpop.f32.mrb[0].mxu0
        %5057 = vmatprep.mubr.bf16.mxu0 0
        %5058 = vmatmul.mubr.bf16.gmra.mrb[0].mxu0 %v4704
        %v5059 = vpop.f32.mrb[0].mxu0
        %v5060 = vadd.f32 %v4599, %v5059
        %v5061 = vpop.f32.mrb[0].mxu0
        %v5062 = vpop.f32.mrb[0].mxu0
        %v5063 = vadd.f32 %v4599, %v5062
        %v5064 = vpop.f32.mrb[0].mxu0
        %5065 = vmatprep.mubr.bf16.mxu0 0
        %5066 = vmatmul.mubr.bf16.gmra.mrb[0].mxu0 %v4707
        %v5067 = vpop.f32.mrb[0].mxu0
        %v5068 = vadd.f32 %v4599, %v5067
        %v5069 = vpop.f32.mrb[0].mxu0
        %v5070 = vpop.f32.mrb[0].mxu0
        %v5071 = vadd.f32 %v4599, %v5070
        %v5072 = vpop.f32.mrb[0].mxu0
        %5073 = vmatprep.mubr.bf16.mxu0 0
        %5074 = vmatmul.mubr.bf16.gmra.mrb[0].mxu0 %v4710
        %v5075 = vpop.f32.mrb[0].mxu0
        %v5076 = vadd.f32 %v4599, %v5075
        %v5077 = vpop.f32.mrb[0].mxu0
        %v5078 = vpop.f32.mrb[0].mxu0
        %v5079 = vadd.f32 %v4599, %v5078
        %v5080 = vpop.f32.mrb[0].mxu0
        %5081 = vmatprep.mubr.bf16.mxu0 0
        %5082 = vmatmul.mubr.bf16.gmra.mrb[0].mxu0 %v4713
        %v5083 = vpop.f32.mrb[0].mxu0
        %v5084 = vadd.f32 %v4599, %v5083
        %v5085 = vpop.f32.mrb[0].mxu0
        %v5086 = vpop.f32.mrb[0].mxu0
        %v5087 = vadd.f32 %v4599, %v5086
        %v5088 = vpop.f32.mrb[0].mxu0
        %5089 = vmatprep.mubr.bf16.mxu0 0
        %5090 = vmatmul.mubr.bf16.gmra.mrb[0].mxu0 %v4716
        %v5091 = vpop.f32.mrb[0].mxu0
        %v5092 = vadd.f32 %v4599, %v5091
        %v5093 = vpop.f32.mrb[0].mxu0
        %v5094 = vpop.f32.mrb[0].mxu0
        %v5095 = vadd.f32 %v4599, %v5094
        %v5096 = vpop.f32.mrb[0].mxu0
        %5097 = vmatprep.mubr.bf16.mxu0 0
        %5098 = vmatmul.mubr.bf16.gmra.mrb[0].mxu0 %v4719
        %v5099 = vpop.f32.mrb[0].mxu0
        %v5100 = vadd.f32 %v4599, %v5099
        %v5101 = vpop.f32.mrb[0].mxu0
        %v5102 = vpop.f32.mrb[0].mxu0
        %v5103 = vadd.f32 %v4599, %v5102
        %v5104 = vpop.f32.mrb[0].mxu0
        %5105 = vmatprep.mubr.bf16.mxu0 0
        %5106 = vmatmul.mubr.bf16.gmra.mrb[0].mxu0 %v4722
        %v5107 = vpop.f32.mrb[0].mxu0
        %v5108 = vadd.f32 %v4599, %v5107
        %v5109 = vpop.f32.mrb[0].mxu0
        %v5110 = vpop.f32.mrb[0].mxu0
        %v5111 = vadd.f32 %v4599, %v5110
        %v5112 = vpop.f32.mrb[0].mxu0
        %5113 = vmatprep.mubr.bf16.mxu0 0
        %5114 = vmatmul.mubr.bf16.gmra.mrb[0].mxu0 %v4725
        %v5115 = vpop.f32.mrb[0].mxu0
        %v5116 = vadd.f32 %v4599, %v5115
        %v5117 = vpop.f32.mrb[0].mxu0
        %v5118 = vpop.f32.mrb[0].mxu0
        %v5119 = vadd.f32 %v4599, %v5118
        %v5120 = vpop.f32.mrb[0].mxu0
        %5121 = vmatprep.mubr.bf16.mxu0 0
        %5122 = vmatmul.mubr.bf16.gmra.mrb[0].mxu0 %v4728
        %v5123 = vpop.f32.mrb[0].mxu0
        %v5124 = vadd.f32 %v4599, %v5123
        %v5125 = vpop.f32.mrb[0].mxu0
        %v5126 = vpop.f32.mrb[0].mxu0
        %v5127 = vadd.f32 %v4599, %v5126
        %v5128 = vpop.f32.mrb[0].mxu0
        %5129 = vmatprep.mubr.bf16.mxu0 0
        %5130 = vmatmul.mubr.bf16.gmra.mrb[0].mxu0 %v4731
        %v5131 = vpop.f32.mrb[0].mxu0
        %v5132 = vadd.f32 %v4599, %v5131
        %v5133 = vpop.f32.mrb[0].mxu0
        %v5134 = vpop.f32.mrb[0].mxu0
        %v5135 = vadd.f32 %v4599, %v5134
        %v5136 = vpop.f32.mrb[0].mxu0
        %5137 = vmatprep.mubr.bf16.mxu0 0
        %5138 = vmatmul.mubr.bf16.gmra.mrb[0].mxu0 %v4734
        %v5139 = vpop.f32.mrb[0].mxu0
        %v5140 = vadd.f32 %v4599, %v5139
        %v5141 = vpop.f32.mrb[0].mxu0
        %v5142 = vpop.f32.mrb[0].mxu0
        %v5143 = vadd.f32 %v4599, %v5142
        %v5144 = vpop.f32.mrb[0].mxu0
        %5145 = vmatprep.mubr.bf16.mxu0 0
        %5146 = vmatmul.mubr.bf16.gmra.mrb[0].mxu0 %v4737
        %v5147 = vpop.f32.mrb[0].mxu0
        %v5148 = vadd.f32 %v4599, %v5147
        %v5149 = vpop.f32.mrb[0].mxu0
        %v5150 = vpop.f32.mrb[0].mxu0
        %v5151 = vadd.f32 %v4599, %v5150
        %v5152 = vpop.f32.mrb[0].mxu0
        %5153 = vmatprep.mubr.bf16.mxu0 0
        %5154 = vmatmul.mubr.bf16.gmra.mrb[0].mxu0 %v4740
        %v5155 = vpop.f32.mrb[0].mxu0
        %v5156 = vadd.f32 %v4599, %v5155
        %v5157 = vpop.f32.mrb[0].mxu0
        %v5158 = vpop.f32.mrb[0].mxu0
        %v5159 = vadd.f32 %v4599, %v5158
        %v5160 = vpop.f32.mrb[0].mxu0
        %5161 = vmatprep.mubr.bf16.mxu0 0
        %5162 = vmatmul.mubr.bf16.gmra.mrb[0].mxu0 %v4743
        %v5163 = vpop.f32.mrb[0].mxu0
        %v5164 = vadd.f32 %v4599, %v5163
        %v5165 = vpop.f32.mrb[0].mxu0
        %v5166 = vpop.f32.mrb[0].mxu0
        %v5167 = vadd.f32 %v4599, %v5166
        %v5168 = vpop.f32.mrb[0].mxu0
        %5169 = vmatprep.mubr.bf16.mxu0 0
        %5170 = vmatmul.mubr.bf16.gmra.mrb[0].mxu0 %v4746
        %v5171 = vpop.f32.mrb[0].mxu0
        %v5172 = vadd.f32 %v4599, %v5171
        %v5173 = vpop.f32.mrb[0].mxu0
        %v5174 = vpop.f32.mrb[0].mxu0
        %v5175 = vadd.f32 %v4599, %v5174
        %v5176 = vpop.f32.mrb[0].mxu0
        %5177 = vmatprep.mubr.bf16.mxu0 0
        %5178 = vmatmul.mubr.bf16.gmra.mrb[0].mxu0 %v4749
        %v5179 = vpop.f32.mrb[0].mxu0
        %v5180 = vadd.f32 %v4599, %v5179
        %v5181 = vpop.f32.mrb[0].mxu0
        %v5182 = vpop.f32.mrb[0].mxu0
        %v5183 = vadd.f32 %v4599, %v5182
        %v5184 = vpop.f32.mrb[0].mxu0
        %5185 = vmatprep.mubr.bf16.mxu0 0
        %5186 = vmatmul.mubr.bf16.gmra.mrb[0].mxu0 %v4752
        %v5187 = vpop.f32.mrb[0].mxu0
        %v5188 = vadd.f32 %v4599, %v5187
        %v5189 = vpop.f32.mrb[0].mxu0
        %v5190 = vpop.f32.mrb[0].mxu0
        %v5191 = vadd.f32 %v4599, %v5190
        %v5192 = vpop.f32.mrb[0].mxu0
        %5193 = vmatprep.mubr.bf16.mxu0 0
        %5194 = vmatmul.mubr.bf16.gmra.mrb[0].mxu0 %v4755
        %v5195 = vpop.f32.mrb[0].mxu0
        %v5196 = vadd.f32 %v4599, %v5195
        %v5197 = vpop.f32.mrb[0].mxu0
        %v5198 = vpop.f32.mrb[0].mxu0
        %v5199 = vadd.f32 %v4599, %v5198
        %v5200 = vpop.f32.mrb[0].mxu0
        %5201 = vmatprep.mubr.bf16.mxu0 0
        %5202 = vmatmul.mubr.bf16.gmra.mrb[0].mxu0 %v4758
        %v5203 = vpop.f32.mrb[0].mxu0
        %v5204 = vadd.f32 %v4599, %v5203
        %v5205 = vpop.f32.mrb[0].mxu0
        %v5206 = vpop.f32.mrb[0].mxu0
        %v5207 = vadd.f32 %v4599, %v5206
        %v5208 = vpop.f32.mrb[0].mxu0
        %5209 = vmatprep.mubr.bf16.mxu0 0
        %5210 = vmatmul.mubr.bf16.gmra.mrb[0].mxu0 %v4761
        %v5211 = vpop.f32.mrb[0].mxu0
        %v5212 = vadd.f32 %v4599, %v5211
        %v5213 = vpop.f32.mrb[0].mxu0
        %v5214 = vpop.f32.mrb[0].mxu0
        %v5215 = vadd.f32 %v4599, %v5214
        %v5216 = vpop.f32.mrb[0].mxu0
        %5217 = vmatprep.mubr.bf16.mxu0 0
        %5218 = vmatmul.mubr.bf16.gmra.mrb[0].mxu0 %v4764
        %v5219 = vpop.f32.mrb[0].mxu0
        %v5220 = vadd.f32 %v4599, %v5219
        %v5221 = vpop.f32.mrb[0].mxu0
        %v5222 = vpop.f32.mrb[0].mxu0
        %v5223 = vadd.f32 %v4599, %v5222
        %v5224 = vpop.f32.mrb[0].mxu0
        %5225 = vmatprep.mubr.bf16.mxu0 0
        %5226 = vmatmul.mubr.bf16.gmra.mrb[0].mxu0 %v4767
        %v5227 = vpop.f32.mrb[0].mxu0
        %v5228 = vadd.f32 %v4599, %v5227
        %v5229 = vpop.f32.mrb[0].mxu0
        %v5230 = vpop.f32.mrb[0].mxu0
        %v5231 = vadd.f32 %v4599, %v5230
        %v5232 = vpop.f32.mrb[0].mxu0
        %5233 = vmatprep.mubr.bf16.mxu0 0
        %5234 = vmatmul.mubr.bf16.gmra.mrb[0].mxu0 %v4770
        %v5235 = vpop.f32.mrb[0].mxu0
        %v5236 = vadd.f32 %v4599, %v5235
        %v5237 = vpop.f32.mrb[0].mxu0
        %v5238 = vpop.f32.mrb[0].mxu0
        %v5239 = vadd.f32 %v4599, %v5238
        %v5240 = vpop.f32.mrb[0].mxu0
        %5241 = vmatprep.mubr.bf16.mxu0 0
        %5242 = vmatmul.mubr.bf16.gmra.mrb[0].mxu0 %v4773
        %v5243 = vpop.f32.mrb[0].mxu0
        %v5244 = vadd.f32 %v4599, %v5243
        %v5245 = vpop.f32.mrb[0].mxu0
        %v5246 = vpop.f32.mrb[0].mxu0
        %v5247 = vadd.f32 %v4599, %v5246
        %v5248 = vpop.f32.mrb[0].mxu0
        %5249 = vmatprep.mubr.bf16.mxu0 0
        %5250 = vmatmul.mubr.bf16.gmra.mrb[0].mxu0 %v4776
        %v5251 = vpop.f32.mrb[0].mxu0
        %v5252 = vadd.f32 %v4599, %v5251
        %v5253 = vpop.f32.mrb[0].mxu0
        %v5254 = vpop.f32.mrb[0].mxu0
        %v5255 = vadd.f32 %v4599, %v5254
        %v5256 = vpop.f32.mrb[0].mxu0
        %5257 = vmatprep.mubr.bf16.mxu0 0
        %5258 = vmatmul.mubr.bf16.gmra.mrb[0].mxu0 %v4779
        %v5259 = vpop.f32.mrb[0].mxu0
        %v5260 = vadd.f32 %v4599, %v5259
        %v5261 = vpop.f32.mrb[0].mxu0
        %v5262 = vpop.f32.mrb[0].mxu0
        %v5263 = vadd.f32 %v4599, %v5262
        %v5264 = vpop.f32.mrb[0].mxu0
        %5265 = vmatprep.mubr.bf16.mxu0 0
        %5266 = vmatmul.mubr.bf16.gmra.mrb[0].mxu0 %v4782
        %v5267 = vpop.f32.mrb[0].mxu0
        %v5268 = vadd.f32 %v4599, %v5267
        %v5269 = vpop.f32.mrb[0].mxu0
        %v5270 = vpop.f32.mrb[0].mxu0
        %v5271 = vadd.f32 %v4599, %v5270
        %v5272 = vpop.f32.mrb[0].mxu0
        %5273 = vmatprep.mubr.bf16.mxu0 0
        %5274 = vmatmul.mubr.bf16.gmra.mrb[0].mxu0 %v4785
        %v5275 = vpop.f32.mrb[0].mxu0
        %v5276 = vadd.f32 %v4599, %v5275
        %v5277 = vpop.f32.mrb[0].mxu0
        %v5278 = vpop.f32.mrb[0].mxu0
        %v5279 = vadd.f32 %v4599, %v5278
        %v5280 = vpop.f32.mrb[0].mxu0
        %5281 = vmatprep.mubr.bf16.mxu0 0
        %5282 = vmatmul.mubr.bf16.gmra.mrb[0].mxu0 %v4788
        %v5283 = vpop.f32.mrb[0].mxu0
        %v5284 = vadd.f32 %v4599, %v5283
        %v5285 = vpop.f32.mrb[0].mxu0
        %v5286 = vpop.f32.mrb[0].mxu0
        %v5287 = vadd.f32 %v4599, %v5286
        %v5288 = vpop.f32.mrb[0].mxu0
        %5289 = vmatprep.mubr.bf16.mxu0 0
        %5290 = vmatmul.mubr.bf16.gmra.mrb[0].mxu0 %v4791
        %v5291 = vpop.f32.mrb[0].mxu0
        %v5292 = vadd.f32 %v4599, %v5291
        %v5293 = vpop.f32.mrb[0].mxu0
        %v5294 = vpop.f32.mrb[0].mxu0
        %v5295 = vadd.f32 %v4599, %v5294
        %v5296 = vpop.f32.mrb[0].mxu0
        %5297 = vmatprep.mubr.bf16.mxu0 0
        %5298 = vmatmul.mubr.bf16.gmra.mrb[0].mxu0 %v4794
        %v5299 = vpop.f32.mrb[0].mxu0
        %v5300 = vadd.f32 %v4599, %v5299
        %v5301 = vpop.f32.mrb[0].mxu0
        %v5302 = vpop.f32.mrb[0].mxu0
        %v5303 = vadd.f32 %v4599, %v5302
        %v5304 = vpop.f32.mrb[0].mxu0
        %5305 = vmatprep.mubr.bf16.mxu0 0
        %5306 = vmatmul.mubr.bf16.gmra.mrb[0].mxu0 %v4797
        %v5307 = vpop.f32.mrb[0].mxu0
        %v5308 = vadd.f32 %v4599, %v5307
        %v5309 = vpop.f32.mrb[0].mxu0
        %v5310 = vpop.f32.mrb[0].mxu0
        %v5311 = vadd.f32 %v4599, %v5310
        %v5312 = vpop.f32.mrb[0].mxu0
        %5313 = vmatprep.mubr.bf16.mxu0 0
        %5314 = vmatmul.mubr.bf16.gmra.mrb[0].mxu0 %v4800
        %v5315 = vpop.f32.mrb[0].mxu0
        %v5316 = vadd.f32 %v4599, %v5315
        %v5317 = vpop.f32.mrb[0].mxu0
        %v5318 = vpop.f32.mrb[0].mxu0
        %v5319 = vadd.f32 %v4599, %v5318
        %v5320 = vpop.f32.mrb[0].mxu0
        %5321 = vmatprep.mubr.bf16.mxu0 0
        %5322 = vmatmul.mubr.bf16.gmra.mrb[0].mxu0 %v4803
        %v5323 = vpop.f32.mrb[0].mxu0
        %v5324 = vadd.f32 %v4599, %v5323
        %v5325 = vpop.f32.mrb[0].mxu0
        %v5326 = vpop.f32.mrb[0].mxu0
        %v5327 = vadd.f32 %v4599, %v5326
        %v5328 = vpop.f32.mrb[0].mxu0
        %5329 = vmatprep.mubr.bf16.mxu0 0
        %5330 = vmatmul.mubr.bf16.gmra.mrb[0].mxu0 %v4806
        %v5331 = vpop.f32.mrb[0].mxu0
        %v5332 = vadd.f32 %v4599, %v5331
        %v5333 = vpop.f32.mrb[0].mxu0
        %v5334 = vpop.f32.mrb[0].mxu0
        %v5335 = vadd.f32 %v4599, %v5334
        %v5336 = vpop.f32.mrb[0].mxu0
        %5337 = vmatprep.mubr.bf16.mxu0 0
        %5338 = vmatmul.mubr.bf16.gmra.mrb[0].mxu0 %v4809
        %v5339 = vpop.f32.mrb[0].mxu0
        %v5340 = vadd.f32 %v4599, %v5339
        %v5341 = vpop.f32.mrb[0].mxu0
        %v5342 = vpop.f32.mrb[0].mxu0
        %v5343 = vadd.f32 %v4599, %v5342
        %v5344 = vpop.f32.mrb[0].mxu0
        %5345 = vmatprep.mubr.bf16.mxu0 0
        %5346 = vmatmul.mubr.bf16.gmra.mrb[0].mxu0 %v4812
        %v5347 = vpop.f32.mrb[0].mxu0
        %v5348 = vadd.f32 %v4599, %v5347
        %v5349 = vpop.f32.mrb[0].mxu0
        %v5350 = vpop.f32.mrb[0].mxu0
        %v5351 = vadd.f32 %v4599, %v5350
        %v5352 = vpop.f32.mrb[0].mxu0
        %5353 = vmatprep.mubr.bf16.mxu0 0
        %5354 = vmatmul.mubr.bf16.gmra.mrb[0].mxu0 %v4815
        %v5355 = vpop.f32.mrb[0].mxu0
        %v5356 = vadd.f32 %v4599, %v5355
        %v5357 = vpop.f32.mrb[0].mxu0
        %v5358 = vpop.f32.mrb[0].mxu0
        %v5359 = vadd.f32 %v4599, %v5358
        %v5360 = vpop.f32.mrb[0].mxu0
        %5361 = vdwg.mxu0
        %v5362 = vmax.f32 %v4852, 0.0
        %v5363 = vmax.f32 %v4855, 0.0
        %v5364 = vmax.f32 %v4860, 0.0
        %v5365 = vmax.f32 %v4863, 0.0
        %v5366 = vmax.f32 %v4868, 0.0
        %v5367 = vmax.f32 %v4871, 0.0
        %v5368 = vmax.f32 %v4876, 0.0
        %v5369 = vmax.f32 %v4879, 0.0
        %v5370 = vmax.f32 %v4884, 0.0
        %v5371 = vmax.f32 %v4887, 0.0
        %v5372 = vmax.f32 %v4892, 0.0
        %v5373 = vmax.f32 %v4895, 0.0
        %v5374 = vmax.f32 %v4900, 0.0
        %v5375 = vmax.f32 %v4903, 0.0
        %v5376 = vmax.f32 %v4908, 0.0
        %v5377 = vmax.f32 %v4911, 0.0
        %v5378 = vmax.f32 %v4916, 0.0
        %v5379 = vmax.f32 %v4919, 0.0
        %v5380 = vmax.f32 %v4924, 0.0
        %v5381 = vmax.f32 %v4927, 0.0
        %v5382 = vmax.f32 %v4932, 0.0
        %v5383 = vmax.f32 %v4935, 0.0
        %v5384 = vmax.f32 %v4940, 0.0
        %v5385 = vmax.f32 %v4943, 0.0
        %v5386 = vmax.f32 %v4948, 0.0
        %v5387 = vmax.f32 %v4951, 0.0
        %v5388 = vmax.f32 %v4956, 0.0
        %v5389 = vmax.f32 %v4959, 0.0
        %v5390 = vmax.f32 %v4964, 0.0
        %v5391 = vmax.f32 %v4967, 0.0
        %v5392 = vmax.f32 %v4972, 0.0
        %v5393 = vmax.f32 %v4975, 0.0
        %v5394 = vmax.f32 %v4980, 0.0
        %v5395 = vmax.f32 %v4983, 0.0
        %v5396 = vmax.f32 %v4988, 0.0
        %v5397 = vmax.f32 %v4991, 0.0
        %v5398 = vmax.f32 %v4996, 0.0
        %v5399 = vmax.f32 %v4999, 0.0
        %v5400 = vmax.f32 %v5004, 0.0
        %v5401 = vmax.f32 %v5007, 0.0
        %v5402 = vmax.f32 %v5012, 0.0
        %v5403 = vmax.f32 %v5015, 0.0
        %v5404 = vmax.f32 %v5020, 0.0
        %v5405 = vmax.f32 %v5023, 0.0
        %v5406 = vmax.f32 %v5028, 0.0
        %v5407 = vmax.f32 %v5031, 0.0
        %v5408 = vmax.f32 %v5036, 0.0
        %v5409 = vmax.f32 %v5039, 0.0
        %v5410 = vmax.f32 %v5044, 0.0
        %v5411 = vmax.f32 %v5047, 0.0
        %v5412 = vmax.f32 %v5052, 0.0
        %v5413 = vmax.f32 %v5055, 0.0
        %v5414 = vmax.f32 %v5060, 0.0
        %v5415 = vmax.f32 %v5063, 0.0
        %v5416 = vmax.f32 %v5068, 0.0
        %v5417 = vmax.f32 %v5071, 0.0
        %v5418 = vmax.f32 %v5076, 0.0
        %v5419 = vmax.f32 %v5079, 0.0
        %v5420 = vmax.f32 %v5084, 0.0
        %v5421 = vmax.f32 %v5087, 0.0
        %v5422 = vmax.f32 %v5092, 0.0
        %v5423 = vmax.f32 %v5095, 0.0
        %v5424 = vmax.f32 %v5100, 0.0
        %v5425 = vmax.f32 %v5103, 0.0
        %v5426 = vmax.f32 %v5108, 0.0
        %v5427 = vmax.f32 %v5111, 0.0
        %v5428 = vmax.f32 %v5116, 0.0
        %v5429 = vmax.f32 %v5119, 0.0
        %v5430 = vmax.f32 %v5124, 0.0
        %v5431 = vmax.f32 %v5127, 0.0
        %v5432 = vmax.f32 %v5132, 0.0
        %v5433 = vmax.f32 %v5135, 0.0
        %v5434 = vmax.f32 %v5140, 0.0
        %v5435 = vmax.f32 %v5143, 0.0
        %v5436 = vmax.f32 %v5148, 0.0
        %v5437 = vmax.f32 %v5151, 0.0
        %v5438 = vmax.f32 %v5156, 0.0
        %v5439 = vmax.f32 %v5159, 0.0
        %v5440 = vmax.f32 %v5164, 0.0
        %v5441 = vmax.f32 %v5167, 0.0
        %v5442 = vmax.f32 %v5172, 0.0
        %v5443 = vmax.f32 %v5175, 0.0
        %v5444 = vmax.f32 %v5180, 0.0
        %v5445 = vmax.f32 %v5183, 0.0
        %v5446 = vmax.f32 %v5188, 0.0
        %v5447 = vmax.f32 %v5191, 0.0
        %v5448 = vmax.f32 %v5196, 0.0
        %v5449 = vmax.f32 %v5199, 0.0
        %v5450 = vmax.f32 %v5204, 0.0
        %v5451 = vmax.f32 %v5207, 0.0
        %v5452 = vmax.f32 %v5212, 0.0
        %v5453 = vmax.f32 %v5215, 0.0
        %v5454 = vmax.f32 %v5220, 0.0
        %v5455 = vmax.f32 %v5223, 0.0
        %v5456 = vmax.f32 %v5228, 0.0
        %v5457 = vmax.f32 %v5231, 0.0
        %v5458 = vmax.f32 %v5236, 0.0
        %v5459 = vmax.f32 %v5239, 0.0
        %v5460 = vmax.f32 %v5244, 0.0
        %v5461 = vmax.f32 %v5247, 0.0
        %v5462 = vmax.f32 %v5252, 0.0
        %v5463 = vmax.f32 %v5255, 0.0
        %v5464 = vmax.f32 %v5260, 0.0
        %v5465 = vmax.f32 %v5263, 0.0
        %v5466 = vmax.f32 %v5268, 0.0
        %v5467 = vmax.f32 %v5271, 0.0
        %v5468 = vmax.f32 %v5276, 0.0
        %v5469 = vmax.f32 %v5279, 0.0
        %v5470 = vmax.f32 %v5284, 0.0
        %v5471 = vmax.f32 %v5287, 0.0
        %v5472 = vmax.f32 %v5292, 0.0
        %v5473 = vmax.f32 %v5295, 0.0
        %v5474 = vmax.f32 %v5300, 0.0
        %v5475 = vmax.f32 %v5303, 0.0
        %v5476 = vmax.f32 %v5308, 0.0
        %v5477 = vmax.f32 %v5311, 0.0
        %v5478 = vmax.f32 %v5316, 0.0
        %v5479 = vmax.f32 %v5319, 0.0
        %v5480 = vmax.f32 %v5324, 0.0
        %v5481 = vmax.f32 %v5327, 0.0
        %v5482 = vmax.f32 %v5332, 0.0
        %v5483 = vmax.f32 %v5335, 0.0
        %v5484 = vmax.f32 %v5340, 0.0
        %v5485 = vmax.f32 %v5343, 0.0
        %v5486 = vmax.f32 %v5348, 0.0
        %v5487 = vmax.f32 %v5351, 0.0
        %v5488 = vmax.f32 %v5356, 0.0
        %v5489 = vmax.f32 %v5359, 0.0
        %v5490 = vmax.f32 %v5362, %v5363
        %v5491 = vrot.slane %v5490, 4
        %v5492 = vmax.f32 %v5490, %v5491
        %v5493 = vrot.slane %v5492, 2
        %v5494 = vmax.f32 %v5492, %v5493
        %v5495 = vrot.slane %v5494, 1
        %v5496 = vmax.f32 %v5494, %v5495
        %v5497 = vmax.f32 %v5364, %v5365
        %v5498 = vrot.slane %v5497, 4
        %v5499 = vmax.f32 %v5497, %v5498
        %v5500 = vrot.slane %v5499, 2
        %v5501 = vmax.f32 %v5499, %v5500
        %v5502 = vrot.slane %v5501, 1
        %v5503 = vmax.f32 %v5501, %v5502
        %v5504 = vmax.f32 %v5366, %v5367
        %v5505 = vrot.slane %v5504, 4
        %v5506 = vmax.f32 %v5504, %v5505
        %v5507 = vrot.slane %v5506, 2
        %v5508 = vmax.f32 %v5506, %v5507
        %v5509 = vrot.slane %v5508, 1
        %v5510 = vmax.f32 %v5508, %v5509
        %v5511 = vmax.f32 %v5368, %v5369
        %v5512 = vrot.slane %v5511, 4
        %v5513 = vmax.f32 %v5511, %v5512
        %v5514 = vrot.slane %v5513, 2
        %v5515 = vmax.f32 %v5513, %v5514
        %v5516 = vrot.slane %v5515, 1
        %v5517 = vmax.f32 %v5515, %v5516
        %v5518 = vmax.f32 %v5370, %v5371
        %v5519 = vrot.slane %v5518, 4
        %v5520 = vmax.f32 %v5518, %v5519
        %v5521 = vrot.slane %v5520, 2
        %v5522 = vmax.f32 %v5520, %v5521
        %v5523 = vrot.slane %v5522, 1
        %v5524 = vmax.f32 %v5522, %v5523
        %v5525 = vmax.f32 %v5372, %v5373
        %v5526 = vrot.slane %v5525, 4
        %v5527 = vmax.f32 %v5525, %v5526
        %v5528 = vrot.slane %v5527, 2
        %v5529 = vmax.f32 %v5527, %v5528
        %v5530 = vrot.slane %v5529, 1
        %v5531 = vmax.f32 %v5529, %v5530
        %v5532 = vmax.f32 %v5374, %v5375
        %v5533 = vrot.slane %v5532, 4
        %v5534 = vmax.f32 %v5532, %v5533
        %v5535 = vrot.slane %v5534, 2
        %v5536 = vmax.f32 %v5534, %v5535
        %v5537 = vrot.slane %v5536, 1
        %v5538 = vmax.f32 %v5536, %v5537
        %v5539 = vmax.f32 %v5376, %v5377
        %v5540 = vrot.slane %v5539, 4
        %v5541 = vmax.f32 %v5539, %v5540
        %v5542 = vrot.slane %v5541, 2
        %v5543 = vmax.f32 %v5541, %v5542
        %v5544 = vrot.slane %v5543, 1
        %v5545 = vmax.f32 %v5543, %v5544
        %v5546 = vmax.f32 %v5378, %v5379
        %v5547 = vrot.slane %v5546, 4
        %v5548 = vmax.f32 %v5546, %v5547
        %v5549 = vrot.slane %v5548, 2
        %v5550 = vmax.f32 %v5548, %v5549
        %v5551 = vrot.slane %v5550, 1
        %v5552 = vmax.f32 %v5550, %v5551
        %v5553 = vmax.f32 %v5380, %v5381
        %v5554 = vrot.slane %v5553, 4
        %v5555 = vmax.f32 %v5553, %v5554
        %v5556 = vrot.slane %v5555, 2
        %v5557 = vmax.f32 %v5555, %v5556
        %v5558 = vrot.slane %v5557, 1
        %v5559 = vmax.f32 %v5557, %v5558
        %v5560 = vmax.f32 %v5382, %v5383
        %v5561 = vrot.slane %v5560, 4
        %v5562 = vmax.f32 %v5560, %v5561
        %v5563 = vrot.slane %v5562, 2
        %v5564 = vmax.f32 %v5562, %v5563
        %v5565 = vrot.slane %v5564, 1
        %v5566 = vmax.f32 %v5564, %v5565
        %v5567 = vmax.f32 %v5384, %v5385
        %v5568 = vrot.slane %v5567, 4
        %v5569 = vmax.f32 %v5567, %v5568
        %v5570 = vrot.slane %v5569, 2
        %v5571 = vmax.f32 %v5569, %v5570
        %v5572 = vrot.slane %v5571, 1
        %v5573 = vmax.f32 %v5571, %v5572
        %v5574 = vmax.f32 %v5386, %v5387
        %v5575 = vrot.slane %v5574, 4
        %v5576 = vmax.f32 %v5574, %v5575
        %v5577 = vrot.slane %v5576, 2
        %v5578 = vmax.f32 %v5576, %v5577
        %v5579 = vrot.slane %v5578, 1
        %v5580 = vmax.f32 %v5578, %v5579
        %v5581 = vmax.f32 %v5388, %v5389
        %v5582 = vrot.slane %v5581, 4
        %v5583 = vmax.f32 %v5581, %v5582
        %v5584 = vrot.slane %v5583, 2
        %v5585 = vmax.f32 %v5583, %v5584
        %v5586 = vrot.slane %v5585, 1
        %v5587 = vmax.f32 %v5585, %v5586
        %v5588 = vmax.f32 %v5390, %v5391
        %v5589 = vrot.slane %v5588, 4
        %v5590 = vmax.f32 %v5588, %v5589
        %v5591 = vrot.slane %v5590, 2
        %v5592 = vmax.f32 %v5590, %v5591
        %v5593 = vrot.slane %v5592, 1
        %v5594 = vmax.f32 %v5592, %v5593
        %v5595 = vmax.f32 %v5392, %v5393
        %v5596 = vrot.slane %v5595, 4
        %v5597 = vmax.f32 %v5595, %v5596
        %v5598 = vrot.slane %v5597, 2
        %v5599 = vmax.f32 %v5597, %v5598
        %v5600 = vrot.slane %v5599, 1
        %v5601 = vmax.f32 %v5599, %v5600
        %v5602 = vmax.f32 %v5394, %v5395
        %v5603 = vrot.slane %v5602, 4
        %v5604 = vmax.f32 %v5602, %v5603
        %v5605 = vrot.slane %v5604, 2
        %v5606 = vmax.f32 %v5604, %v5605
        %v5607 = vrot.slane %v5606, 1
        %v5608 = vmax.f32 %v5606, %v5607
        %v5609 = vmax.f32 %v5396, %v5397
        %v5610 = vrot.slane %v5609, 4
        %v5611 = vmax.f32 %v5609, %v5610
        %v5612 = vrot.slane %v5611, 2
        %v5613 = vmax.f32 %v5611, %v5612
        %v5614 = vrot.slane %v5613, 1
        %v5615 = vmax.f32 %v5613, %v5614
        %v5616 = vmax.f32 %v5398, %v5399
        %v5617 = vrot.slane %v5616, 4
        %v5618 = vmax.f32 %v5616, %v5617
        %v5619 = vrot.slane %v5618, 2
        %v5620 = vmax.f32 %v5618, %v5619
        %v5621 = vrot.slane %v5620, 1
        %v5622 = vmax.f32 %v5620, %v5621
        %v5623 = vmax.f32 %v5400, %v5401
        %v5624 = vrot.slane %v5623, 4
        %v5625 = vmax.f32 %v5623, %v5624
        %v5626 = vrot.slane %v5625, 2
        %v5627 = vmax.f32 %v5625, %v5626
        %v5628 = vrot.slane %v5627, 1
        %v5629 = vmax.f32 %v5627, %v5628
        %v5630 = vmax.f32 %v5402, %v5403
        %v5631 = vrot.slane %v5630, 4
        %v5632 = vmax.f32 %v5630, %v5631
        %v5633 = vrot.slane %v5632, 2
        %v5634 = vmax.f32 %v5632, %v5633
        %v5635 = vrot.slane %v5634, 1
        %v5636 = vmax.f32 %v5634, %v5635
        %v5637 = vmax.f32 %v5404, %v5405
        %v5638 = vrot.slane %v5637, 4
        %v5639 = vmax.f32 %v5637, %v5638
        %v5640 = vrot.slane %v5639, 2
        %v5641 = vmax.f32 %v5639, %v5640
        %v5642 = vrot.slane %v5641, 1
        %v5643 = vmax.f32 %v5641, %v5642
        %v5644 = vmax.f32 %v5406, %v5407
        %v5645 = vrot.slane %v5644, 4
        %v5646 = vmax.f32 %v5644, %v5645
        %v5647 = vrot.slane %v5646, 2
        %v5648 = vmax.f32 %v5646, %v5647
        %v5649 = vrot.slane %v5648, 1
        %v5650 = vmax.f32 %v5648, %v5649
        %v5651 = vmax.f32 %v5408, %v5409
        %v5652 = vrot.slane %v5651, 4
        %v5653 = vmax.f32 %v5651, %v5652
        %v5654 = vrot.slane %v5653, 2
        %v5655 = vmax.f32 %v5653, %v5654
        %v5656 = vrot.slane %v5655, 1
        %v5657 = vmax.f32 %v5655, %v5656
        %v5658 = vmax.f32 %v5410, %v5411
        %v5659 = vrot.slane %v5658, 4
        %v5660 = vmax.f32 %v5658, %v5659
        %v5661 = vrot.slane %v5660, 2
        %v5662 = vmax.f32 %v5660, %v5661
        %v5663 = vrot.slane %v5662, 1
        %v5664 = vmax.f32 %v5662, %v5663
        %v5665 = vmax.f32 %v5412, %v5413
        %v5666 = vrot.slane %v5665, 4
        %v5667 = vmax.f32 %v5665, %v5666
        %v5668 = vrot.slane %v5667, 2
        %v5669 = vmax.f32 %v5667, %v5668
        %v5670 = vrot.slane %v5669, 1
        %v5671 = vmax.f32 %v5669, %v5670
        %v5672 = vmax.f32 %v5414, %v5415
        %v5673 = vrot.slane %v5672, 4
        %v5674 = vmax.f32 %v5672, %v5673
        %v5675 = vrot.slane %v5674, 2
        %v5676 = vmax.f32 %v5674, %v5675
        %v5677 = vrot.slane %v5676, 1
        %v5678 = vmax.f32 %v5676, %v5677
        %v5679 = vmax.f32 %v5416, %v5417
        %v5680 = vrot.slane %v5679, 4
        %v5681 = vmax.f32 %v5679, %v5680
        %v5682 = vrot.slane %v5681, 2
        %v5683 = vmax.f32 %v5681, %v5682
        %v5684 = vrot.slane %v5683, 1
        %v5685 = vmax.f32 %v5683, %v5684
        %v5686 = vmax.f32 %v5418, %v5419
        %v5687 = vrot.slane %v5686, 4
        %v5688 = vmax.f32 %v5686, %v5687
        %v5689 = vrot.slane %v5688, 2
        %v5690 = vmax.f32 %v5688, %v5689
        %v5691 = vrot.slane %v5690, 1
        %v5692 = vmax.f32 %v5690, %v5691
        %v5693 = vmax.f32 %v5420, %v5421
        %v5694 = vrot.slane %v5693, 4
        %v5695 = vmax.f32 %v5693, %v5694
        %v5696 = vrot.slane %v5695, 2
        %v5697 = vmax.f32 %v5695, %v5696
        %v5698 = vrot.slane %v5697, 1
        %v5699 = vmax.f32 %v5697, %v5698
        %v5700 = vmax.f32 %v5422, %v5423
        %v5701 = vrot.slane %v5700, 4
        %v5702 = vmax.f32 %v5700, %v5701
        %v5703 = vrot.slane %v5702, 2
        %v5704 = vmax.f32 %v5702, %v5703
        %v5705 = vrot.slane %v5704, 1
        %v5706 = vmax.f32 %v5704, %v5705
        %v5707 = vmax.f32 %v5424, %v5425
        %v5708 = vrot.slane %v5707, 4
        %v5709 = vmax.f32 %v5707, %v5708
        %v5710 = vrot.slane %v5709, 2
        %v5711 = vmax.f32 %v5709, %v5710
        %v5712 = vrot.slane %v5711, 1
        %v5713 = vmax.f32 %v5711, %v5712
        %v5714 = vmax.f32 %v5426, %v5427
        %v5715 = vrot.slane %v5714, 4
        %v5716 = vmax.f32 %v5714, %v5715
        %v5717 = vrot.slane %v5716, 2
        %v5718 = vmax.f32 %v5716, %v5717
        %v5719 = vrot.slane %v5718, 1
        %v5720 = vmax.f32 %v5718, %v5719
        %v5721 = vmax.f32 %v5428, %v5429
        %v5722 = vrot.slane %v5721, 4
        %v5723 = vmax.f32 %v5721, %v5722
        %v5724 = vrot.slane %v5723, 2
        %v5725 = vmax.f32 %v5723, %v5724
        %v5726 = vrot.slane %v5725, 1
        %v5727 = vmax.f32 %v5725, %v5726
        %v5728 = vmax.f32 %v5430, %v5431
        %v5729 = vrot.slane %v5728, 4
        %v5730 = vmax.f32 %v5728, %v5729
        %v5731 = vrot.slane %v5730, 2
        %v5732 = vmax.f32 %v5730, %v5731
        %v5733 = vrot.slane %v5732, 1
        %v5734 = vmax.f32 %v5732, %v5733
        %v5735 = vmax.f32 %v5432, %v5433
        %v5736 = vrot.slane %v5735, 4
        %v5737 = vmax.f32 %v5735, %v5736
        %v5738 = vrot.slane %v5737, 2
        %v5739 = vmax.f32 %v5737, %v5738
        %v5740 = vrot.slane %v5739, 1
        %v5741 = vmax.f32 %v5739, %v5740
        %v5742 = vmax.f32 %v5434, %v5435
        %v5743 = vrot.slane %v5742, 4
        %v5744 = vmax.f32 %v5742, %v5743
        %v5745 = vrot.slane %v5744, 2
        %v5746 = vmax.f32 %v5744, %v5745
        %v5747 = vrot.slane %v5746, 1
        %v5748 = vmax.f32 %v5746, %v5747
        %v5749 = vmax.f32 %v5436, %v5437
        %v5750 = vrot.slane %v5749, 4
        %v5751 = vmax.f32 %v5749, %v5750
        %v5752 = vrot.slane %v5751, 2
        %v5753 = vmax.f32 %v5751, %v5752
        %v5754 = vrot.slane %v5753, 1
        %v5755 = vmax.f32 %v5753, %v5754
        %v5756 = vmax.f32 %v5438, %v5439
        %v5757 = vrot.slane %v5756, 4
        %v5758 = vmax.f32 %v5756, %v5757
        %v5759 = vrot.slane %v5758, 2
        %v5760 = vmax.f32 %v5758, %v5759
        %v5761 = vrot.slane %v5760, 1
        %v5762 = vmax.f32 %v5760, %v5761
        %v5763 = vmax.f32 %v5440, %v5441
        %v5764 = vrot.slane %v5763, 4
        %v5765 = vmax.f32 %v5763, %v5764
        %v5766 = vrot.slane %v5765, 2
        %v5767 = vmax.f32 %v5765, %v5766
        %v5768 = vrot.slane %v5767, 1
        %v5769 = vmax.f32 %v5767, %v5768
        %v5770 = vmax.f32 %v5442, %v5443
        %v5771 = vrot.slane %v5770, 4
        %v5772 = vmax.f32 %v5770, %v5771
        %v5773 = vrot.slane %v5772, 2
        %v5774 = vmax.f32 %v5772, %v5773
        %v5775 = vrot.slane %v5774, 1
        %v5776 = vmax.f32 %v5774, %v5775
        %v5777 = vmax.f32 %v5444, %v5445
        %v5778 = vrot.slane %v5777, 4
        %v5779 = vmax.f32 %v5777, %v5778
        %v5780 = vrot.slane %v5779, 2
        %v5781 = vmax.f32 %v5779, %v5780
        %v5782 = vrot.slane %v5781, 1
        %v5783 = vmax.f32 %v5781, %v5782
        %v5784 = vmax.f32 %v5446, %v5447
        %v5785 = vrot.slane %v5784, 4
        %v5786 = vmax.f32 %v5784, %v5785
        %v5787 = vrot.slane %v5786, 2
        %v5788 = vmax.f32 %v5786, %v5787
        %v5789 = vrot.slane %v5788, 1
        %v5790 = vmax.f32 %v5788, %v5789
        %v5791 = vmax.f32 %v5448, %v5449
        %v5792 = vrot.slane %v5791, 4
        %v5793 = vmax.f32 %v5791, %v5792
        %v5794 = vrot.slane %v5793, 2
        %v5795 = vmax.f32 %v5793, %v5794
        %v5796 = vrot.slane %v5795, 1
        %v5797 = vmax.f32 %v5795, %v5796
        %v5798 = vmax.f32 %v5450, %v5451
        %v5799 = vrot.slane %v5798, 4
        %v5800 = vmax.f32 %v5798, %v5799
        %v5801 = vrot.slane %v5800, 2
        %v5802 = vmax.f32 %v5800, %v5801
        %v5803 = vrot.slane %v5802, 1
        %v5804 = vmax.f32 %v5802, %v5803
        %v5805 = vmax.f32 %v5452, %v5453
        %v5806 = vrot.slane %v5805, 4
        %v5807 = vmax.f32 %v5805, %v5806
        %v5808 = vrot.slane %v5807, 2
        %v5809 = vmax.f32 %v5807, %v5808
        %v5810 = vrot.slane %v5809, 1
        %v5811 = vmax.f32 %v5809, %v5810
        %v5812 = vmax.f32 %v5454, %v5455
        %v5813 = vrot.slane %v5812, 4
        %v5814 = vmax.f32 %v5812, %v5813
        %v5815 = vrot.slane %v5814, 2
        %v5816 = vmax.f32 %v5814, %v5815
        %v5817 = vrot.slane %v5816, 1
        %v5818 = vmax.f32 %v5816, %v5817
        %v5819 = vmax.f32 %v5456, %v5457
        %v5820 = vrot.slane %v5819, 4
        %v5821 = vmax.f32 %v5819, %v5820
        %v5822 = vrot.slane %v5821, 2
        %v5823 = vmax.f32 %v5821, %v5822
        %v5824 = vrot.slane %v5823, 1
        %v5825 = vmax.f32 %v5823, %v5824
        %v5826 = vmax.f32 %v5458, %v5459
        %v5827 = vrot.slane %v5826, 4
        %v5828 = vmax.f32 %v5826, %v5827
        %v5829 = vrot.slane %v5828, 2
        %v5830 = vmax.f32 %v5828, %v5829
        %v5831 = vrot.slane %v5830, 1
        %v5832 = vmax.f32 %v5830, %v5831
        %v5833 = vmax.f32 %v5460, %v5461
        %v5834 = vrot.slane %v5833, 4
        %v5835 = vmax.f32 %v5833, %v5834
        %v5836 = vrot.slane %v5835, 2
        %v5837 = vmax.f32 %v5835, %v5836
        %v5838 = vrot.slane %v5837, 1
        %v5839 = vmax.f32 %v5837, %v5838
        %v5840 = vmax.f32 %v5462, %v5463
        %v5841 = vrot.slane %v5840, 4
        %v5842 = vmax.f32 %v5840, %v5841
        %v5843 = vrot.slane %v5842, 2
        %v5844 = vmax.f32 %v5842, %v5843
        %v5845 = vrot.slane %v5844, 1
        %v5846 = vmax.f32 %v5844, %v5845
        %v5847 = vmax.f32 %v5464, %v5465
        %v5848 = vrot.slane %v5847, 4
        %v5849 = vmax.f32 %v5847, %v5848
        %v5850 = vrot.slane %v5849, 2
        %v5851 = vmax.f32 %v5849, %v5850
        %v5852 = vrot.slane %v5851, 1
        %v5853 = vmax.f32 %v5851, %v5852
        %v5854 = vmax.f32 %v5466, %v5467
        %v5855 = vrot.slane %v5854, 4
        %v5856 = vmax.f32 %v5854, %v5855
        %v5857 = vrot.slane %v5856, 2
        %v5858 = vmax.f32 %v5856, %v5857
        %v5859 = vrot.slane %v5858, 1
        %v5860 = vmax.f32 %v5858, %v5859
        %v5861 = vmax.f32 %v5468, %v5469
        %v5862 = vrot.slane %v5861, 4
        %v5863 = vmax.f32 %v5861, %v5862
        %v5864 = vrot.slane %v5863, 2
        %v5865 = vmax.f32 %v5863, %v5864
        %v5866 = vrot.slane %v5865, 1
        %v5867 = vmax.f32 %v5865, %v5866
        %v5868 = vmax.f32 %v5470, %v5471
        %v5869 = vrot.slane %v5868, 4
        %v5870 = vmax.f32 %v5868, %v5869
        %v5871 = vrot.slane %v5870, 2
        %v5872 = vmax.f32 %v5870, %v5871
        %v5873 = vrot.slane %v5872, 1
        %v5874 = vmax.f32 %v5872, %v5873
        %v5875 = vmax.f32 %v5472, %v5473
        %v5876 = vrot.slane %v5875, 4
        %v5877 = vmax.f32 %v5875, %v5876
        %v5878 = vrot.slane %v5877, 2
        %v5879 = vmax.f32 %v5877, %v5878
        %v5880 = vrot.slane %v5879, 1
        %v5881 = vmax.f32 %v5879, %v5880
        %v5882 = vmax.f32 %v5474, %v5475
        %v5883 = vrot.slane %v5882, 4
        %v5884 = vmax.f32 %v5882, %v5883
        %v5885 = vrot.slane %v5884, 2
        %v5886 = vmax.f32 %v5884, %v5885
        %v5887 = vrot.slane %v5886, 1
        %v5888 = vmax.f32 %v5886, %v5887
        %v5889 = vmax.f32 %v5476, %v5477
        %v5890 = vrot.slane %v5889, 4
        %v5891 = vmax.f32 %v5889, %v5890
        %v5892 = vrot.slane %v5891, 2
        %v5893 = vmax.f32 %v5891, %v5892
        %v5894 = vrot.slane %v5893, 1
        %v5895 = vmax.f32 %v5893, %v5894
        %v5896 = vmax.f32 %v5478, %v5479
        %v5897 = vrot.slane %v5896, 4
        %v5898 = vmax.f32 %v5896, %v5897
        %v5899 = vrot.slane %v5898, 2
        %v5900 = vmax.f32 %v5898, %v5899
        %v5901 = vrot.slane %v5900, 1
        %v5902 = vmax.f32 %v5900, %v5901
        %v5903 = vmax.f32 %v5480, %v5481
        %v5904 = vrot.slane %v5903, 4
        %v5905 = vmax.f32 %v5903, %v5904
        %v5906 = vrot.slane %v5905, 2
        %v5907 = vmax.f32 %v5905, %v5906
        %v5908 = vrot.slane %v5907, 1
        %v5909 = vmax.f32 %v5907, %v5908
        %v5910 = vmax.f32 %v5482, %v5483
        %v5911 = vrot.slane %v5910, 4
        %v5912 = vmax.f32 %v5910, %v5911
        %v5913 = vrot.slane %v5912, 2
        %v5914 = vmax.f32 %v5912, %v5913
        %v5915 = vrot.slane %v5914, 1
        %v5916 = vmax.f32 %v5914, %v5915
        %v5917 = vmax.f32 %v5484, %v5485
        %v5918 = vrot.slane %v5917, 4
        %v5919 = vmax.f32 %v5917, %v5918
        %v5920 = vrot.slane %v5919, 2
        %v5921 = vmax.f32 %v5919, %v5920
        %v5922 = vrot.slane %v5921, 1
        %v5923 = vmax.f32 %v5921, %v5922
        %v5924 = vmax.f32 %v5486, %v5487
        %v5925 = vrot.slane %v5924, 4
        %v5926 = vmax.f32 %v5924, %v5925
        %v5927 = vrot.slane %v5926, 2
        %v5928 = vmax.f32 %v5926, %v5927
        %v5929 = vrot.slane %v5928, 1
        %v5930 = vmax.f32 %v5928, %v5929
        %v5931 = vmax.f32 %v5488, %v5489
        %v5932 = vrot.slane %v5931, 4
        %v5933 = vmax.f32 %v5931, %v5932
        %v5934 = vrot.slane %v5933, 2
        %v5935 = vmax.f32 %v5933, %v5934
        %v5936 = vrot.slane %v5935, 1
        %v5937 = vmax.f32 %v5935, %v5936
        %p5938 = scmp.eq.s32.totalorder %s23, 0
        // Predicated region
        $region87: #{pointnet2_dense_encoder.2} parent=81 // pred_check
          %p5939 = pneg %p5938
        $region88: #{pointnet2_dense_encoder.2} parent=81 // pred_check_branch
          %5941 = sbr.rel (%p5939) target = $region90
        $region89: #{pointnet2_dense_encoder.2} parent=81 // pred_region
          %5942 = vst [vmem:[%s840] sm:$0xff] -inf
          %5943 = vst [vmem:[%s840 + $0x8] sm:$0xff] -inf
          %5944 = vst [vmem:[%s840 + $0x10] sm:$0xff] -inf
          %5945 = vst [vmem:[%s840 + $0x18] sm:$0xff] -inf
          %5946 = vst [vmem:[%s840 + $0x20] sm:$0xff] -inf
          %5947 = vst [vmem:[%s840 + $0x28] sm:$0xff] -inf
          %5948 = vst [vmem:[%s840 + $0x30] sm:$0xff] -inf
          %5949 = vst [vmem:[%s840 + $0x38] sm:$0xff] -inf
        $region90: #{pointnet2_dense_encoder.2} parent=81 // pred_fallthru
          _
        %v5950 = vld [vmem:[%s840] sm:$0xff]
        %v5951 = vld [vmem:[%s840 + $0x8] sm:$0xff]
        %v5952 = vld [vmem:[%s840 + $0x10] sm:$0xff]
        %v5953 = vld [vmem:[%s840 + $0x18] sm:$0xff]
        %v5954 = vld [vmem:[%s840 + $0x20] sm:$0xff]
        %v5955 = vld [vmem:[%s840 + $0x28] sm:$0xff]
        %v5956 = vld [vmem:[%s840 + $0x30] sm:$0xff]
        %v5957 = vld [vmem:[%s840 + $0x38] sm:$0xff]
        %vm6022 = vcmask 1041409
        %v6023 = vsel %vm6022, %v5503, %v5496
        %vm6024 = vcmask 1042434
        %v6025 = vsel %vm6024, %v5510, %v6023
        %vm6026 = vcmask 1043459
        %v6027 = vsel %vm6026, %v5517, %v6025
        %vm6028 = vcmask 1044484
        %v6029 = vsel %vm6028, %v5524, %v6027
        %vm6030 = vcmask 1045509
        %v6031 = vsel %vm6030, %v5531, %v6029
        %vm6032 = vcmask 1046534
        %v6033 = vsel %vm6032, %v5538, %v6031
        %vm6034 = vcmask 1047559
        %v6035 = vsel %vm6034, %v5545, %v6033
        %v6036 = vsel %vm6022, %v5559, %v5552
        %v6037 = vsel %vm6024, %v5566, %v6036
        %v6038 = vsel %vm6026, %v5573, %v6037
        %v6039 = vsel %vm6028, %v5580, %v6038
        %v6040 = vsel %vm6030, %v5587, %v6039
        %v6041 = vsel %vm6032, %v5594, %v6040
        %v6042 = vsel %vm6034, %v5601, %v6041
        %v6043 = vsel %vm6022, %v5615, %v5608
        %v6044 = vsel %vm6024, %v5622, %v6043
        %v6045 = vsel %vm6026, %v5629, %v6044
        %v6046 = vsel %vm6028, %v5636, %v6045
        %v6047 = vsel %vm6030, %v5643, %v6046
        %v6048 = vsel %vm6032, %v5650, %v6047
        %v6049 = vsel %vm6034, %v5657, %v6048
        %v6050 = vsel %vm6022, %v5671, %v5664
        %v6051 = vsel %vm6024, %v5678, %v6050
        %v6052 = vsel %vm6026, %v5685, %v6051
        %v6053 = vsel %vm6028, %v5692, %v6052
        %v6054 = vsel %vm6030, %v5699, %v6053
        %v6055 = vsel %vm6032, %v5706, %v6054
        %v6056 = vsel %vm6034, %v5713, %v6055
        %v6057 = vsel %vm6022, %v5727, %v5720
        %v6058 = vsel %vm6024, %v5734, %v6057
        %v6059 = vsel %vm6026, %v5741, %v6058
        %v6060 = vsel %vm6028, %v5748, %v6059
        %v6061 = vsel %vm6030, %v5755, %v6060
        %v6062 = vsel %vm6032, %v5762, %v6061
        %v6063 = vsel %vm6034, %v5769, %v6062
        %v6064 = vsel %vm6022, %v5783, %v5776
        %v6065 = vsel %vm6024, %v5790, %v6064
        %v6066 = vsel %vm6026, %v5797, %v6065
        %v6067 = vsel %vm6028, %v5804, %v6066
        %v6068 = vsel %vm6030, %v5811, %v6067
        %v6069 = vsel %vm6032, %v5818, %v6068
        %v6070 = vsel %vm6034, %v5825, %v6069
        %v6071 = vsel %vm6022, %v5839, %v5832
        %v6072 = vsel %vm6024, %v5846, %v6071
        %v6073 = vsel %vm6026, %v5853, %v6072
        %v6074 = vsel %vm6028, %v5860, %v6073
        %v6075 = vsel %vm6030, %v5867, %v6074
        %v6076 = vsel %vm6032, %v5874, %v6075
        %v6077 = vsel %vm6034, %v5881, %v6076
        %v6078 = vsel %vm6022, %v5895, %v5888
        %v6079 = vsel %vm6024, %v5902, %v6078
        %v6080 = vsel %vm6026, %v5909, %v6079
        %v6081 = vsel %vm6028, %v5916, %v6080
        %v6082 = vsel %vm6030, %v5923, %v6081
        %v6083 = vsel %vm6032, %v5930, %v6082
        %v6084 = vsel %vm6034, %v5937, %v6083
        %v6093 = vmax.f32 %v5950, %v6035
        %v6094 = vmax.f32 %v5951, %v6042
        %v6095 = vmax.f32 %v5952, %v6049
        %v6096 = vmax.f32 %v5953, %v6056
        %v6097 = vmax.f32 %v5954, %v6063
        %v6098 = vmax.f32 %v5955, %v6070
        %v6099 = vmax.f32 %v5956, %v6077
        %v6100 = vmax.f32 %v5957, %v6084
        %6101 = vst [vmem:[%s840] sm:$0xff] %v6093
        %6102 = vst [vmem:[%s840 + $0x8] sm:$0xff] %v6094
        %6103 = vst [vmem:[%s840 + $0x10] sm:$0xff] %v6095
        %6104 = vst [vmem:[%s840 + $0x18] sm:$0xff] %v6096
        %6105 = vst [vmem:[%s840 + $0x20] sm:$0xff] %v6097
        %6106 = vst [vmem:[%s840 + $0x28] sm:$0xff] %v6098
        %6107 = vst [vmem:[%s840 + $0x30] sm:$0xff] %v6099
        %6108 = vst [vmem:[%s840 + $0x38] sm:$0xff] %v6100
        %s6109 = smul.u32 8, %s22
        %p6110 = scmp.lt.s32.totalorder %s6109, 15
        %s6111 = scalar_select %p6110, %s6109, 15
        %s6112 = smul.addr %s6111, 8
        %s6113 = scalar_lea.vmem %s7, %s6112
        // Predicated region
        $region91: #{pointnet2_dense_encoder.2} parent=81 // pred_check
          %p6114 = pneg %p202
        $region92: #{pointnet2_dense_encoder.2} parent=81 // pred_check_branch
          %6116 = sbr.rel (%p6114) target = $region94
        $region93: #{pointnet2_dense_encoder.2} parent=81 // pred_region
          %s6117 = smul.u32 8, %s22
        $region94: #{pointnet2_dense_encoder.2} parent=81 // pred_fallthru
          _
      $region82: #{pointnet2_dense_encoder.2} parent=5 // pred_fallthru
        _
      %p6118 = scmp.le.s32.totalorder 2, %s13
      // Predicated region
      $region95: #{pointnet2_dense_encoder.2} parent=5 // pred_check
        %p6119 = pneg %p6118
      $region96: #{pointnet2_dense_encoder.2} parent=5 // pred_check_branch
        %6121 = sbr.rel (%p6119) target = $region98
      $region97: #{pointnet2_dense_encoder.2} parent=5 // pred_region
        %s6122 = ssub.s32 %s13, 2
        // Predicated region
        $region99: #{pointnet2_dense_encoder.2} parent=97 // pred_check
          %p6123 = pneg %p208
        $region100: #{pointnet2_dense_encoder.2} parent=97 // pred_check_branch
          %6125 = sbr.rel (%p6123) target = $region102
        $region101: #{pointnet2_dense_encoder.2} parent=97 // pred_region
          %s6126 = smul.u32 8, %s24
          %p6127 = scmp.lt.s32.totalorder %s6126, 15
          %s6128 = scalar_select %p6127, %s6126, 15
          %s6129 = smul.addr %s6128, 8
          %s6130 = scalar_lea.vmem %s7, %s6129
        $region102: #{pointnet2_dense_encoder.2} parent=97 // pred_fallthru
          _
      $region98: #{pointnet2_dense_encoder.2} parent=5 // pred_fallthru
        _
    $region6: #{pointnet2_dense_encoder.2} parent=1 // loop_footer
      %s17 = sadd.s32 1, %s13
    $region7: #{pointnet2_dense_encoder.2} parent=1 // loop_footer_branch
      %12 = sbr.rel target = $region3
    $region8: #{pointnet2_dense_encoder.2} parent=1 // loop_exit
      _

// kernel: pointnet2_dense_encoder.3
$region0: #{pointnet2_dense_encoder.3}
  #allocation0 [shape = 'u32[]', space=smem, size = 0x4, offset = 0x4, fixed_abs, tag = 'smem constant byte address 0x4 - core index']
  #allocation1 [shape = 'u32[144,128]{1,0:T(1,128)}', space=vmem, size = 0x12000, scoped, tag = 'internal scratch']
  %s0 = inlined_call_operand.vmem [shape: f32[32,64,3], index: 0, kind: input, shape index: {}]
  %s1 = inlined_call_operand.vmem [shape: bf16[32,64,128], index: 1, kind: input, shape index: {}]
  %s2 = inlined_call_operand.vmem [shape: f32[3,128], index: 2, kind: input, shape index: {}]
  %s3 = inlined_call_operand.vmem [shape: bf16[128,128], index: 3, kind: input, shape index: {}]
  %s4 = inlined_call_operand.vmem [shape: f32[1,128], index: 4, kind: input, shape index: {}]
  %s5 = inlined_call_operand.vmem [shape: bf16[128,128], index: 5, kind: input, shape index: {}]
  %s6 = inlined_call_operand.vmem [shape: f32[1,128], index: 6, kind: input, shape index: {}]
  %s7 = inlined_call_operand.vmem [shape: bf16[128,384], index: 7, kind: input, shape index: {}]
  %s8 = inlined_call_operand.vmem [shape: f32[1,384], index: 8, kind: input, shape index: {}]
  %s9 = inlined_call_operand.hbm [shape: f32[32,384], index: 9, kind: output, shape index: {}]
  %s10 = sld [smem:[#allocation0]]
  $region152: #{pointnet2_dense_encoder.3} parent=0
    _
  %s12 = ssub.s32 1, %s10
  %s13 = scalar_select 0, %s12, %s10
  $region1: #{pointnet2_dense_encoder.3} parent=0
    #allocation2 [shape = 'u8[262144]{0}', space=vmem, size = 0x40000, scoped, tag = 'input window, operand 0']
    #allocation3 [shape = 'u8[131072]{0}', space=vmem, size = 0x20000, scoped, tag = 'input window, operand 1']
    #allocation4 [shape = 'u8[49152]{0}', space=vmem, size = 0xc000, scoped, tag = 'output window, operand 0']
    #allocation5 [shape = 's32[2]{0}', space=sflag, size = 0x8, scoped, tag = 'scoped memory for pointnet2_dense_encoder.3']
    %14 = vsyncpa [#allocation5], 0
    %s15 = scalar_lea.sflag [#allocation5], 1
    %16 = vsyncpa %s15, 0
    loop: start=0, step=1, limit=10
    $region2: #{pointnet2_dense_encoder.3} parent=1 // loop_pre_header
      _
    $region3: #{pointnet2_dense_encoder.3} parent=1 // loop_header
      %s18 = sphi 0, %s22
      %p19 = scmp.ge.s32.totalorder %s18, 10
      %s25 = sphi 0, %s37
      %s26 = sphi 0, %s33
      %s27 = sphi 0, %s25
      %s28 = sphi 0, %s26
      %s29 = sphi 0, %s27
      %s30 = sphi 0, %s28
      %s42 = sphi 0, %s44
      %s45 = sphi 0, %s42
      %s46 = sphi 0, %s45
      %s62 = sphi 0, %s46
      %s70 = sphi 0, %s72
      %s73 = sphi 0, %s70
      %s74 = sphi 0, %s73
      %s90 = sphi 0, %s74
      %s94 = sphi 0, %s94
      %s96 = sphi 0, %s94
      %s97 = sphi 0, %s96
      %s111 = sphi 0, %s97
      %s115 = sphi 0, %s115
      %s117 = sphi 0, %s115
      %s118 = sphi 0, %s117
      %s132 = sphi 0, %s118
      %s136 = sphi 0, %s136
      %s138 = sphi 0, %s136
      %s139 = sphi 0, %s138
      %s153 = sphi 0, %s139
      %s157 = sphi 0, %s157
      %s159 = sphi 0, %s157
      %s160 = sphi 0, %s159
      %s174 = sphi 0, %s160
      %s178 = sphi 0, %s178
      %s180 = sphi 0, %s178
      %s181 = sphi 0, %s180
      %s195 = sphi 0, %s181
      %s199 = sphi 0, %s199
      %s201 = sphi 0, %s199
      %s202 = sphi 0, %s201
      %s216 = sphi 0, %s202
      %s220 = sphi 0, %s220
      %s222 = sphi 0, %s220
      %s223 = sphi 0, %s222
      %s237 = sphi 0, %s223
      %s243 = sphi 0, %s245
      %s246 = sphi 0, %s243
      %s247 = sphi 0, %s246
      %s263 = sphi 0, %s247
    $region4: #{pointnet2_dense_encoder.3} parent=1 // loop_header_branch
      %21 = sbr.rel (%p19) target = $region8
    $region5: #{pointnet2_dense_encoder.3} parent=1 // loop_body
      %s23 = ssub.s32 %s18, 1
      %s24 = ssub.s32 %s18, 2
      %s31 = sadd.s32 1, %s26
      %p32 = scmp.ge.s32.totalorder %s31, 4
      %s33 = scalar_select %p32, 0, %s31
      %s34 = sadd.s32 1, %s25
      %s35 = scalar_select %p32, %s34, %s25
      %p36 = scmp.ge.s32.totalorder %s35, 2
      %s37 = scalar_select %p36, 0, %s35
      %s38 = ssub.s32 %s25, %s37
      %s39 = ssub.s32 %s26, %s33
      %s40 = sor.u32 %s38, %s39
      %p41 = scmp.eq.s32.totalorder %s40, 0
      %s43 = sadd.s32 %s42, 1
      %s44 = scalar_select %p41, %s42, %s43
      %p47 = pneg %p41
      %p48 = scmp.eq.s32.totalorder %s18, 7
      %p49 = por %p47, %p48
      %p50 = scmp.ne.s32.totalorder %s42, %s45
      %p51 = scmp.eq.s32.totalorder %s18, 0
      %p52 = por %p50, %p51
      %p53 = scmp.ne.s32.totalorder %s42, %s45
      %p54 = scmp.eq.s32.totalorder %s23, 7
      %p55 = por %p53, %p54
      %p56 = scmp.ne.s32.totalorder %s45, %s46
      %p57 = scmp.eq.s32.totalorder %s23, 0
      %p58 = por %p56, %p57
      %p59 = scmp.ne.s32.totalorder %s45, %s46
      %p60 = scmp.eq.s32.totalorder %s24, 7
      %p61 = por %p59, %p60
      %p63 = scmp.ne.s32.totalorder %s46, %s62
      %p64 = scmp.eq.s32.totalorder %s24, 0
      %p65 = por %p63, %p64
      %s66 = ssub.s32 %s25, %s37
      %s67 = ssub.s32 %s26, %s33
      %s68 = sor.u32 %s66, %s67
      %p69 = scmp.eq.s32.totalorder %s68, 0
      %s71 = sadd.s32 %s70, 1
      %s72 = scalar_select %p69, %s70, %s71
      %p75 = pneg %p69
      %p76 = scmp.eq.s32.totalorder %s18, 7
      %p77 = por %p75, %p76
      %p78 = scmp.ne.s32.totalorder %s70, %s73
      %p79 = scmp.eq.s32.totalorder %s18, 0
      %p80 = por %p78, %p79
      %p81 = scmp.ne.s32.totalorder %s70, %s73
      %p82 = scmp.eq.s32.totalorder %s23, 7
      %p83 = por %p81, %p82
      %p84 = scmp.ne.s32.totalorder %s73, %s74
      %p85 = scmp.eq.s32.totalorder %s23, 0
      %p86 = por %p84, %p85
      %p87 = scmp.ne.s32.totalorder %s73, %s74
      %p88 = scmp.eq.s32.totalorder %s24, 7
      %p89 = por %p87, %p88
      %p91 = scmp.ne.s32.totalorder %s74, %s90
      %p92 = scmp.eq.s32.totalorder %s24, 0
      %p93 = por %p91, %p92
      %s95 = sadd.s32 %s94, 1
      %p98 = scmp.eq.s32.totalorder %s18, 7
      %p99 = scmp.ne.s32.totalorder %s94, %s96
      %p100 = scmp.eq.s32.totalorder %s18, 0
      %p101 = por %p99, %p100
      %p102 = scmp.ne.s32.totalorder %s94, %s96
      %p103 = scmp.eq.s32.totalorder %s23, 7
      %p104 = por %p102, %p103
      %p105 = scmp.ne.s32.totalorder %s96, %s97
      %p106 = scmp.eq.s32.totalorder %s23, 0
      %p107 = por %p105, %p106
      %p108 = scmp.ne.s32.totalorder %s96, %s97
      %p109 = scmp.eq.s32.totalorder %s24, 7
      %p110 = por %p108, %p109
      %p112 = scmp.ne.s32.totalorder %s97, %s111
      %p113 = scmp.eq.s32.totalorder %s24, 0
      %p114 = por %p112, %p113
      %s116 = sadd.s32 %s115, 1
      %p119 = scmp.eq.s32.totalorder %s18, 7
      %p120 = scmp.ne.s32.totalorder %s115, %s117
      %p121 = scmp.eq.s32.totalorder %s18, 0
      %p122 = por %p120, %p121
      %p123 = scmp.ne.s32.totalorder %s115, %s117
      %p124 = scmp.eq.s32.totalorder %s23, 7
      %p125 = por %p123, %p124
      %p126 = scmp.ne.s32.totalorder %s117, %s118
      %p127 = scmp.eq.s32.totalorder %s23, 0
      %p128 = por %p126, %p127
      %p129 = scmp.ne.s32.totalorder %s117, %s118
      %p130 = scmp.eq.s32.totalorder %s24, 7
      %p131 = por %p129, %p130
      %p133 = scmp.ne.s32.totalorder %s118, %s132
      %p134 = scmp.eq.s32.totalorder %s24, 0
      %p135 = por %p133, %p134
      %s137 = sadd.s32 %s136, 1
      %p140 = scmp.eq.s32.totalorder %s18, 7
      %p141 = scmp.ne.s32.totalorder %s136, %s138
      %p142 = scmp.eq.s32.totalorder %s18, 0
      %p143 = por %p141, %p142
      %p144 = scmp.ne.s32.totalorder %s136, %s138
      %p145 = scmp.eq.s32.totalorder %s23, 7
      %p146 = por %p144, %p145
      %p147 = scmp.ne.s32.totalorder %s138, %s139
      %p148 = scmp.eq.s32.totalorder %s23, 0
      %p149 = por %p147, %p148
      %p150 = scmp.ne.s32.totalorder %s138, %s139
      %p151 = scmp.eq.s32.totalorder %s24, 7
      %p152 = por %p150, %p151
      %p154 = scmp.ne.s32.totalorder %s139, %s153
      %p155 = scmp.eq.s32.totalorder %s24, 0
      %p156 = por %p154, %p155
      %s158 = sadd.s32 %s157, 1
      %p161 = scmp.eq.s32.totalorder %s18, 7
      %p162 = scmp.ne.s32.totalorder %s157, %s159
      %p163 = scmp.eq.s32.totalorder %s18, 0
      %p164 = por %p162, %p163
      %p165 = scmp.ne.s32.totalorder %s157, %s159
      %p166 = scmp.eq.s32.totalorder %s23, 7
      %p167 = por %p165, %p166
      %p168 = scmp.ne.s32.totalorder %s159, %s160
      %p169 = scmp.eq.s32.totalorder %s23, 0
      %p170 = por %p168, %p169
      %p171 = scmp.ne.s32.totalorder %s159, %s160
      %p172 = scmp.eq.s32.totalorder %s24, 7
      %p173 = por %p171, %p172
      %p175 = scmp.ne.s32.totalorder %s160, %s174
      %p176 = scmp.eq.s32.totalorder %s24, 0
      %p177 = por %p175, %p176
      %s179 = sadd.s32 %s178, 1
      %p182 = scmp.eq.s32.totalorder %s18, 7
      %p183 = scmp.ne.s32.totalorder %s178, %s180
      %p184 = scmp.eq.s32.totalorder %s18, 0
      %p185 = por %p183, %p184
      %p186 = scmp.ne.s32.totalorder %s178, %s180
      %p187 = scmp.eq.s32.totalorder %s23, 7
      %p188 = por %p186, %p187
      %p189 = scmp.ne.s32.totalorder %s180, %s181
      %p190 = scmp.eq.s32.totalorder %s23, 0
      %p191 = por %p189, %p190
      %p192 = scmp.ne.s32.totalorder %s180, %s181
      %p193 = scmp.eq.s32.totalorder %s24, 7
      %p194 = por %p192, %p193
      %p196 = scmp.ne.s32.totalorder %s181, %s195
      %p197 = scmp.eq.s32.totalorder %s24, 0
      %p198 = por %p196, %p197
      %s200 = sadd.s32 %s199, 1
      %p203 = scmp.eq.s32.totalorder %s18, 7
      %p204 = scmp.ne.s32.totalorder %s199, %s201
      %p205 = scmp.eq.s32.totalorder %s18, 0
      %p206 = por %p204, %p205
      %p207 = scmp.ne.s32.totalorder %s199, %s201
      %p208 = scmp.eq.s32.totalorder %s23, 7
      %p209 = por %p207, %p208
      %p210 = scmp.ne.s32.totalorder %s201, %s202
      %p211 = scmp.eq.s32.totalorder %s23, 0
      %p212 = por %p210, %p211
      %p213 = scmp.ne.s32.totalorder %s201, %s202
      %p214 = scmp.eq.s32.totalorder %s24, 7
      %p215 = por %p213, %p214
      %p217 = scmp.ne.s32.totalorder %s202, %s216
      %p218 = scmp.eq.s32.totalorder %s24, 0
      %p219 = por %p217, %p218
      %s221 = sadd.s32 %s220, 1
      %p224 = scmp.eq.s32.totalorder %s18, 7
      %p225 = scmp.ne.s32.totalorder %s220, %s222
      %p226 = scmp.eq.s32.totalorder %s18, 0
      %p227 = por %p225, %p226
      %p228 = scmp.ne.s32.totalorder %s220, %s222
      %p229 = scmp.eq.s32.totalorder %s23, 7
      %p230 = por %p228, %p229
      %p231 = scmp.ne.s32.totalorder %s222, %s223
      %p232 = scmp.eq.s32.totalorder %s23, 0
      %p233 = por %p231, %p232
      %p234 = scmp.ne.s32.totalorder %s222, %s223
      %p235 = scmp.eq.s32.totalorder %s24, 7
      %p236 = por %p234, %p235
      %p238 = scmp.ne.s32.totalorder %s223, %s237
      %p239 = scmp.eq.s32.totalorder %s24, 0
      %p240 = por %p238, %p239
      %s241 = ssub.s32 %s25, %s37
      %p242 = scmp.eq.s32.totalorder %s241, 0
      %s244 = sadd.s32 %s243, 1
      %s245 = scalar_select %p242, %s243, %s244
      %p248 = pneg %p242
      %p249 = scmp.eq.s32.totalorder %s18, 7
      %p250 = por %p248, %p249
      %p251 = scmp.ne.s32.totalorder %s243, %s246
      %p252 = scmp.eq.s32.totalorder %s18, 0
      %p253 = por %p251, %p252
      %p254 = scmp.ne.s32.totalorder %s243, %s246
      %p255 = scmp.eq.s32.totalorder %s23, 7
      %p256 = por %p254, %p255
      %p257 = scmp.ne.s32.totalorder %s246, %s247
      %p258 = scmp.eq.s32.totalorder %s23, 0
      %p259 = por %p257, %p258
      %p260 = scmp.ne.s32.totalorder %s246, %s247
      %p261 = scmp.eq.s32.totalorder %s24, 7
      %p262 = por %p260, %p261
      %p264 = scmp.ne.s32.totalorder %s247, %s263
      %p265 = scmp.eq.s32.totalorder %s24, 0
      %p266 = por %p264, %p265
      %p267 = scmp.le.s32.totalorder 1, %s18
      %p268 = scmp.lt.s32.totalorder %s18, 9
      %p269 = pnand %p267, %p268
      %p270 = pneg %p269
      // Predicated region
      $region9: #{pointnet2_dense_encoder.3} parent=5 // pred_check
        _
      $region10: #{pointnet2_dense_encoder.3} parent=5 // pred_check_branch
        %272 = sbr.rel (%p269) target = $region12
      $region11: #{pointnet2_dense_encoder.3} parent=5 // pred_region
        %s273 = ssub.s32 %s18, 1
        // Predicated region
        $region13: #{pointnet2_dense_encoder.3} parent=11 // pred_check
          %p274 = pneg %p107
        $region14: #{pointnet2_dense_encoder.3} parent=11 // pred_check_branch
          %276 = sbr.rel (%p274) target = $region16
        $region15: #{pointnet2_dense_encoder.3} parent=11 // pred_region
          _
        $region16: #{pointnet2_dense_encoder.3} parent=11 // pred_fallthru
          _
        // Predicated region
        $region17: #{pointnet2_dense_encoder.3} parent=11 // pred_check
          %p277 = pneg %p128
        $region18: #{pointnet2_dense_encoder.3} parent=11 // pred_check_branch
          %279 = sbr.rel (%p277) target = $region20
        $region19: #{pointnet2_dense_encoder.3} parent=11 // pred_region
          _
        $region20: #{pointnet2_dense_encoder.3} parent=11 // pred_fallthru
          _
        // Predicated region
        $region21: #{pointnet2_dense_encoder.3} parent=11 // pred_check
          %p280 = pneg %p149
        $region22: #{pointnet2_dense_encoder.3} parent=11 // pred_check_branch
          %282 = sbr.rel (%p280) target = $region24
        $region23: #{pointnet2_dense_encoder.3} parent=11 // pred_region
          _
        $region24: #{pointnet2_dense_encoder.3} parent=11 // pred_fallthru
          _
        // Predicated region
        $region25: #{pointnet2_dense_encoder.3} parent=11 // pred_check
          %p283 = pneg %p170
        $region26: #{pointnet2_dense_encoder.3} parent=11 // pred_check_branch
          %285 = sbr.rel (%p283) target = $region28
        $region27: #{pointnet2_dense_encoder.3} parent=11 // pred_region
          _
        $region28: #{pointnet2_dense_encoder.3} parent=11 // pred_fallthru
          _
        // Predicated region
        $region29: #{pointnet2_dense_encoder.3} parent=11 // pred_check
          %p286 = pneg %p191
        $region30: #{pointnet2_dense_encoder.3} parent=11 // pred_check_branch
          %288 = sbr.rel (%p286) target = $region32
        $region31: #{pointnet2_dense_encoder.3} parent=11 // pred_region
          _
        $region32: #{pointnet2_dense_encoder.3} parent=11 // pred_fallthru
          _
        // Predicated region
        $region33: #{pointnet2_dense_encoder.3} parent=11 // pred_check
          %p289 = pneg %p212
        $region34: #{pointnet2_dense_encoder.3} parent=11 // pred_check_branch
          %291 = sbr.rel (%p289) target = $region36
        $region35: #{pointnet2_dense_encoder.3} parent=11 // pred_region
          _
        $region36: #{pointnet2_dense_encoder.3} parent=11 // pred_fallthru
          _
        // Predicated region
        $region37: #{pointnet2_dense_encoder.3} parent=11 // pred_check
          %p292 = pneg %p233
        $region38: #{pointnet2_dense_encoder.3} parent=11 // pred_check_branch
          %294 = sbr.rel (%p292) target = $region40
        $region39: #{pointnet2_dense_encoder.3} parent=11 // pred_region
          _
        $region40: #{pointnet2_dense_encoder.3} parent=11 // pred_fallthru
          _
      $region12: #{pointnet2_dense_encoder.3} parent=5 // pred_fallthru
        _
      %p295 = scmp.lt.s32.totalorder %s18, 8
      // Predicated region
      $region41: #{pointnet2_dense_encoder.3} parent=5 // pred_check
        %p296 = pneg %p295
      $region42: #{pointnet2_dense_encoder.3} parent=5 // pred_check_branch
        %298 = sbr.rel (%p296) target = $region44
      $region43: #{pointnet2_dense_encoder.3} parent=5 // pred_region
        // Predicated region
        $region45: #{pointnet2_dense_encoder.3} parent=43 // pred_check
          %p299 = pneg %p52
        $region46: #{pointnet2_dense_encoder.3} parent=43 // pred_check_branch
          %301 = sbr.rel (%p299) target = $region48
        $region47: #{pointnet2_dense_encoder.3} parent=43 // pred_region
          %s302 = sand.u32 %s42, 1
          %s303 = sand.u32 %s42, 1
          %s304 = smul.addr %s303, 256
          %s305 = scalar_lea.vmem [#allocation2], %s304
          %s306 = smul.u32 16, %s25
          %s307 = smul.u32 2, %s26
          %s308 = smul.addr %s306, 8
          %s309 = sadd.s32 %s307, %s308
          %s310 = smul.addr %s309, 8
          %s311 = scalar_lea.vmem %s0, %s310
          // Predicated region
          $region49: #{pointnet2_dense_encoder.3} parent=47 // pred_check
            _
          $region50: #{pointnet2_dense_encoder.3} parent=47 // pred_check_branch
            %313 = sbr.rel (0) target = $region52
          $region51: #{pointnet2_dense_encoder.3} parent=47 // pred_region
            // Predicated region
            $region53: #{pointnet2_dense_encoder.3} parent=51 // pred_check
              _
            $region54: #{pointnet2_dense_encoder.3} parent=51 // pred_check_branch
              %315 = sbr.rel (0) target = $region56
            $region55: #{pointnet2_dense_encoder.3} parent=51 // pred_region
              // Predicated region
              $region68: #{pointnet2_dense_encoder.3} parent=55 // pred_check
                _
              $region69: #{pointnet2_dense_encoder.3} parent=55 // pred_check_branch
                %392 = sbr.rel (0) target = $region71
              $region70: #{pointnet2_dense_encoder.3} parent=55 // pred_region
                loop: start=0, step=1, limit=1
                $region72: #{pointnet2_dense_encoder.3} parent=70 // loop_pre_header
                  _
                $region73: #{pointnet2_dense_encoder.3} parent=70 // loop_header
                  %s394 = sphi 0, %s398
                  %p395 = scmp.ge.s32.totalorder %s394, 1
                  %s399 = sphi %s311, %s311
                  %s400 = sphi %s305, %s305
                $region74: #{pointnet2_dense_encoder.3} parent=70 // loop_header_branch
                  %397 = sbr.rel (%p395) target = $region78
                $region75: #{pointnet2_dense_encoder.3} parent=70 // loop_body
                  %v401 = vld [vmem:[%s399] sm:$0xff]
                  %402 = vst [vmem:[%s400] sm:$0xff] %v401
                  %v403 = vld [vmem:[%s399 + $0x8] sm:$0xff]
                  %404 = vst [vmem:[%s400 + $0x8] sm:$0xff] %v403
                  %v405 = vld [vmem:[%s399 + $0x40] sm:$0xff]
                  %406 = vst [vmem:[%s400 + $0x10] sm:$0xff] %v405
                  %v407 = vld [vmem:[%s399 + $0x48] sm:$0xff]
                  %408 = vst [vmem:[%s400 + $0x18] sm:$0xff] %v407
                  %v409 = vld [vmem:[%s399 + $0x80] sm:$0xff]
                  %410 = vst [vmem:[%s400 + $0x20] sm:$0xff] %v409
                  %v411 = vld [vmem:[%s399 + $0x88] sm:$0xff]
                  %412 = vst [vmem:[%s400 + $0x28] sm:$0xff] %v411
                  %v413 = vld [vmem:[%s399 + $0xc0] sm:$0xff]
                  %414 = vst [vmem:[%s400 + $0x30] sm:$0xff] %v413
                  %v415 = vld [vmem:[%s399 + $0xc8] sm:$0xff]
                  %416 = vst [vmem:[%s400 + $0x38] sm:$0xff] %v415
                  %v417 = vld [vmem:[%s399 + $0x100] sm:$0xff]
                  %418 = vst [vmem:[%s400 + $0x40] sm:$0xff] %v417
                  %v419 = vld [vmem:[%s399 + $0x108] sm:$0xff]
                  %420 = vst [vmem:[%s400 + $0x48] sm:$0xff] %v419
                  %v421 = vld [vmem:[%s399 + $0x140] sm:$0xff]
                  %422 = vst [vmem:[%s400 + $0x50] sm:$0xff] %v421
                  %v423 = vld [vmem:[%s399 + $0x148] sm:$0xff]
                  %424 = vst [vmem:[%s400 + $0x58] sm:$0xff] %v423
                  %v425 = vld [vmem:[%s399 + $0x180] sm:$0xff]
                  %426 = vst [vmem:[%s400 + $0x60] sm:$0xff] %v425
                  %v427 = vld [vmem:[%s399 + $0x188] sm:$0xff]
                  %428 = vst [vmem:[%s400 + $0x68] sm:$0xff] %v427
                  %v429 = vld [vmem:[%s399 + $0x1c0] sm:$0xff]
                  %430 = vst [vmem:[%s400 + $0x70] sm:$0xff] %v429
                  %v431 = vld [vmem:[%s399 + $0x1c8] sm:$0xff]
                  %432 = vst [vmem:[%s400 + $0x78] sm:$0xff] %v431
                  %v433 = vld [vmem:[%s399 + $0x200] sm:$0xff]
                  %434 = vst [vmem:[%s400 + $0x80] sm:$0xff] %v433
                  %v435 = vld [vmem:[%s399 + $0x208] sm:$0xff]
                  %436 = vst [vmem:[%s400 + $0x88] sm:$0xff] %v435
                  %v437 = vld [vmem:[%s399 + $0x240] sm:$0xff]
                  %438 = vst [vmem:[%s400 + $0x90] sm:$0xff] %v437
                  %v439 = vld [vmem:[%s399 + $0x248] sm:$0xff]
                  %440 = vst [vmem:[%s400 + $0x98] sm:$0xff] %v439
                  %v441 = vld [vmem:[%s399 + $0x280] sm:$0xff]
                  %442 = vst [vmem:[%s400 + $0xa0] sm:$0xff] %v441
                  %v443 = vld [vmem:[%s399 + $0x288] sm:$0xff]
                  %444 = vst [vmem:[%s400 + $0xa8] sm:$0xff] %v443
                  %v445 = vld [vmem:[%s399 + $0x2c0] sm:$0xff]
                  %446 = vst [vmem:[%s400 + $0xb0] sm:$0xff] %v445
                  %v447 = vld [vmem:[%s399 + $0x2c8] sm:$0xff]
                  %448 = vst [vmem:[%s400 + $0xb8] sm:$0xff] %v447
                  %v449 = vld [vmem:[%s399 + $0x300] sm:$0xff]
                  %450 = vst [vmem:[%s400 + $0xc0] sm:$0xff] %v449
                  %v451 = vld [vmem:[%s399 + $0x308] sm:$0xff]
                  %452 = vst [vmem:[%s400 + $0xc8] sm:$0xff] %v451
                  %v453 = vld [vmem:[%s399 + $0x340] sm:$0xff]
                  %454 = vst [vmem:[%s400 + $0xd0] sm:$0xff] %v453
                  %v455 = vld [vmem:[%s399 + $0x348] sm:$0xff]
                  %456 = vst [vmem:[%s400 + $0xd8] sm:$0xff] %v455
                  %v457 = vld [vmem:[%s399 + $0x380] sm:$0xff]
                  %458 = vst [vmem:[%s400 + $0xe0] sm:$0xff] %v457
                  %v459 = vld [vmem:[%s399 + $0x388] sm:$0xff]
                  %460 = vst [vmem:[%s400 + $0xe8] sm:$0xff] %v459
                  %v461 = vld [vmem:[%s399 + $0x3c0] sm:$0xff]
                  %462 = vst [vmem:[%s400 + $0xf0] sm:$0xff] %v461
                  %v463 = vld [vmem:[%s399 + $0x3c8] sm:$0xff]
                  %464 = vst [vmem:[%s400 + $0xf8] sm:$0xff] %v463
                $region76: #{pointnet2_dense_encoder.3} parent=70 // loop_footer
                  %s398 = sadd.s32 1, %s394
                $region77: #{pointnet2_dense_encoder.3} parent=70 // loop_footer_branch
                  %393 = sbr.rel target = $region73
                $region78: #{pointnet2_dense_encoder.3} parent=70 // loop_exit
                  _
              $region71: #{pointnet2_dense_encoder.3} parent=55 // pred_fallthru
                _
              // Predicated region
              $region79: #{pointnet2_dense_encoder.3} parent=55 // pred_check
                _
              $region80: #{pointnet2_dense_encoder.3} parent=55 // pred_check_branch
                %466 = sbr.rel target = $region82
              $region81: #{pointnet2_dense_encoder.3} parent=55 // pred_region
                _
              $region82: #{pointnet2_dense_encoder.3} parent=55 // pred_fallthru
                _
            $region56: #{pointnet2_dense_encoder.3} parent=51 // pred_fallthru
              _
            // Predicated region
            $region57: #{pointnet2_dense_encoder.3} parent=51 // pred_check
              _
            $region58: #{pointnet2_dense_encoder.3} parent=51 // pred_check_branch
              %317 = sbr.rel target = $region60
            $region59: #{pointnet2_dense_encoder.3} parent=51 // pred_region
              loop: start=0, step=1, limit=1
              $region61: #{pointnet2_dense_encoder.3} parent=59 // loop_pre_header
                _
              $region62: #{pointnet2_dense_encoder.3} parent=59 // loop_header
                %s320 = sphi 0, %s324
                %p321 = scmp.ge.s32.totalorder %s320, 1
                %s325 = sphi %s311, %s311
                %s326 = sphi %s305, %s305
              $region63: #{pointnet2_dense_encoder.3} parent=59 // loop_header_branch
                %323 = sbr.rel (%p321) target = $region67
              $region64: #{pointnet2_dense_encoder.3} parent=59 // loop_body
                %v327 = vld [vmem:[%s325] sm:$0xff]
                %328 = vst [vmem:[%s326] sm:$0xff] %v327
                %v329 = vld [vmem:[%s325 + $0x8] sm:$0xff]
                %330 = vst [vmem:[%s326 + $0x8] sm:$0xff] %v329
                %v331 = vld [vmem:[%s325 + $0x40] sm:$0xff]
                %332 = vst [vmem:[%s326 + $0x10] sm:$0xff] %v331
                %v333 = vld [vmem:[%s325 + $0x48] sm:$0xff]
                %334 = vst [vmem:[%s326 + $0x18] sm:$0xff] %v333
                %v335 = vld [vmem:[%s325 + $0x80] sm:$0xff]
                %336 = vst [vmem:[%s326 + $0x20] sm:$0xff] %v335
                %v337 = vld [vmem:[%s325 + $0x88] sm:$0xff]
                %338 = vst [vmem:[%s326 + $0x28] sm:$0xff] %v337
                %v339 = vld [vmem:[%s325 + $0xc0] sm:$0xff]
                %340 = vst [vmem:[%s326 + $0x30] sm:$0xff] %v339
                %v341 = vld [vmem:[%s325 + $0xc8] sm:$0xff]
                %342 = vst [vmem:[%s326 + $0x38] sm:$0xff] %v341
                %v343 = vld [vmem:[%s325 + $0x100] sm:$0xff]
                %344 = vst [vmem:[%s326 + $0x40] sm:$0xff] %v343
                %v345 = vld [vmem:[%s325 + $0x108] sm:$0xff]
                %346 = vst [vmem:[%s326 + $0x48] sm:$0xff] %v345
                %v347 = vld [vmem:[%s325 + $0x140] sm:$0xff]
                %348 = vst [vmem:[%s326 + $0x50] sm:$0xff] %v347
                %v349 = vld [vmem:[%s325 + $0x148] sm:$0xff]
                %350 = vst [vmem:[%s326 + $0x58] sm:$0xff] %v349
                %v351 = vld [vmem:[%s325 + $0x180] sm:$0xff]
                %352 = vst [vmem:[%s326 + $0x60] sm:$0xff] %v351
                %v353 = vld [vmem:[%s325 + $0x188] sm:$0xff]
                %354 = vst [vmem:[%s326 + $0x68] sm:$0xff] %v353
                %v355 = vld [vmem:[%s325 + $0x1c0] sm:$0xff]
                %356 = vst [vmem:[%s326 + $0x70] sm:$0xff] %v355
                %v357 = vld [vmem:[%s325 + $0x1c8] sm:$0xff]
                %358 = vst [vmem:[%s326 + $0x78] sm:$0xff] %v357
                %v359 = vld [vmem:[%s325 + $0x200] sm:$0xff]
                %360 = vst [vmem:[%s326 + $0x80] sm:$0xff] %v359
                %v361 = vld [vmem:[%s325 + $0x208] sm:$0xff]
                %362 = vst [vmem:[%s326 + $0x88] sm:$0xff] %v361
                %v363 = vld [vmem:[%s325 + $0x240] sm:$0xff]
                %364 = vst [vmem:[%s326 + $0x90] sm:$0xff] %v363
                %v365 = vld [vmem:[%s325 + $0x248] sm:$0xff]
                %366 = vst [vmem:[%s326 + $0x98] sm:$0xff] %v365
                %v367 = vld [vmem:[%s325 + $0x280] sm:$0xff]
                %368 = vst [vmem:[%s326 + $0xa0] sm:$0xff] %v367
                %v369 = vld [vmem:[%s325 + $0x288] sm:$0xff]
                %370 = vst [vmem:[%s326 + $0xa8] sm:$0xff] %v369
                %v371 = vld [vmem:[%s325 + $0x2c0] sm:$0xff]
                %372 = vst [vmem:[%s326 + $0xb0] sm:$0xff] %v371
                %v373 = vld [vmem:[%s325 + $0x2c8] sm:$0xff]
                %374 = vst [vmem:[%s326 + $0xb8] sm:$0xff] %v373
                %v375 = vld [vmem:[%s325 + $0x300] sm:$0xff]
                %376 = vst [vmem:[%s326 + $0xc0] sm:$0xff] %v375
                %v377 = vld [vmem:[%s325 + $0x308] sm:$0xff]
                %378 = vst [vmem:[%s326 + $0xc8] sm:$0xff] %v377
                %v379 = vld [vmem:[%s325 + $0x340] sm:$0xff]
                %380 = vst [vmem:[%s326 + $0xd0] sm:$0xff] %v379
                %v381 = vld [vmem:[%s325 + $0x348] sm:$0xff]
                %382 = vst [vmem:[%s326 + $0xd8] sm:$0xff] %v381
                %v383 = vld [vmem:[%s325 + $0x380] sm:$0xff]
                %384 = vst [vmem:[%s326 + $0xe0] sm:$0xff] %v383
                %v385 = vld [vmem:[%s325 + $0x388] sm:$0xff]
                %386 = vst [vmem:[%s326 + $0xe8] sm:$0xff] %v385
                %v387 = vld [vmem:[%s325 + $0x3c0] sm:$0xff]
                %388 = vst [vmem:[%s326 + $0xf0] sm:$0xff] %v387
                %v389 = vld [vmem:[%s325 + $0x3c8] sm:$0xff]
                %390 = vst [vmem:[%s326 + $0xf8] sm:$0xff] %v389
              $region65: #{pointnet2_dense_encoder.3} parent=59 // loop_footer
                %s324 = sadd.s32 1, %s320
              $region66: #{pointnet2_dense_encoder.3} parent=59 // loop_footer_branch
                %319 = sbr.rel target = $region62
              $region67: #{pointnet2_dense_encoder.3} parent=59 // loop_exit
                _
            $region60: #{pointnet2_dense_encoder.3} parent=51 // pred_fallthru
              _
          $region52: #{pointnet2_dense_encoder.3} parent=47 // pred_fallthru
            _
          %467 = vnop
        $region48: #{pointnet2_dense_encoder.3} parent=43 // pred_fallthru
          _
        // Predicated region
        $region83: #{pointnet2_dense_encoder.3} parent=43 // pred_check
          %p468 = pneg %p80
        $region84: #{pointnet2_dense_encoder.3} parent=43 // pred_check_branch
          %470 = sbr.rel (%p468) target = $region86
        $region85: #{pointnet2_dense_encoder.3} parent=43 // pred_region
          %s471 = sand.u32 %s70, 1
          %s472 = sand.u32 %s70, 1
          %s473 = smul.addr %s472, 128
          %s474 = scalar_lea.vmem [#allocation3], %s473
          %s475 = smul.u32 16, %s25
          %s476 = smul.u32 2, %s26
          %s477 = smul.addr %s475, 8
          %s478 = sadd.s32 %s476, %s477
          %s479 = smul.addr %s478, 4
          %s480 = scalar_lea.vmem %s1, %s479
          // Predicated region
          $region87: #{pointnet2_dense_encoder.3} parent=85 // pred_check
            _
          $region88: #{pointnet2_dense_encoder.3} parent=85 // pred_check_branch
            %482 = sbr.rel (0) target = $region90
          $region89: #{pointnet2_dense_encoder.3} parent=85 // pred_region
            // Predicated region
            $region91: #{pointnet2_dense_encoder.3} parent=89 // pred_check
              _
            $region92: #{pointnet2_dense_encoder.3} parent=89 // pred_check_branch
              %484 = sbr.rel target = $region94
            $region93: #{pointnet2_dense_encoder.3} parent=89 // pred_region
              // Predicated region
              $region106: #{pointnet2_dense_encoder.3} parent=93 // pred_check
                _
              $region107: #{pointnet2_dense_encoder.3} parent=93 // pred_check_branch
                %561 = sbr.rel (0) target = $region109
              $region108: #{pointnet2_dense_encoder.3} parent=93 // pred_region
                loop: start=0, step=1, limit=1
                $region110: #{pointnet2_dense_encoder.3} parent=108 // loop_pre_header
                  _
                $region111: #{pointnet2_dense_encoder.3} parent=108 // loop_header
                  %s563 = sphi 0, %s567
                  %p564 = scmp.ge.s32.totalorder %s563, 1
                  %s568 = sphi %s480, %s480
                  %s569 = sphi %s474, %s474
                $region112: #{pointnet2_dense_encoder.3} parent=108 // loop_header_branch
                  %566 = sbr.rel (%p564) target = $region116
                $region113: #{pointnet2_dense_encoder.3} parent=108 // loop_body
                  _
                $region114: #{pointnet2_dense_encoder.3} parent=108 // loop_footer
                  %s567 = sadd.s32 1, %s563
                $region115: #{pointnet2_dense_encoder.3} parent=108 // loop_footer_branch
                  %562 = sbr.rel target = $region111
                $region116: #{pointnet2_dense_encoder.3} parent=108 // loop_exit
                  _
                loop: start=0, step=1, limit=1
                $region117: #{pointnet2_dense_encoder.3} parent=108 // loop_pre_header
                  _
                $region118: #{pointnet2_dense_encoder.3} parent=108 // loop_header
                  %s572 = sphi 0, %s576
                  %p573 = scmp.ge.s32.totalorder %s572, 1
                  %s577 = sphi %s480, %s480
                  %s578 = sphi %s474, %s474
                $region119: #{pointnet2_dense_encoder.3} parent=108 // loop_header_branch
                  %575 = sbr.rel (%p573) target = $region123
                $region120: #{pointnet2_dense_encoder.3} parent=108 // loop_body
                  %v579 = vld [vmem:[%s577] sm:$0xf]
                  %580 = vst [vmem:[%s578] sm:$0xf] %v579
                  %v581 = vld [vmem:[%s577 + $0x4] sm:$0xf]
                  %582 = vst [vmem:[%s578 + $0x4] sm:$0xf] %v581
                  %v583 = vld [vmem:[%s577 + $0x20] sm:$0xf]
                  %584 = vst [vmem:[%s578 + $0x8] sm:$0xf] %v583
                  %v585 = vld [vmem:[%s577 + $0x24] sm:$0xf]
                  %586 = vst [vmem:[%s578 + $0xc] sm:$0xf] %v585
                  %v587 = vld [vmem:[%s577 + $0x40] sm:$0xf]
                  %588 = vst [vmem:[%s578 + $0x10] sm:$0xf] %v587
                  %v589 = vld [vmem:[%s577 + $0x44] sm:$0xf]
                  %590 = vst [vmem:[%s578 + $0x14] sm:$0xf] %v589
                  %v591 = vld [vmem:[%s577 + $0x60] sm:$0xf]
                  %592 = vst [vmem:[%s578 + $0x18] sm:$0xf] %v591
                  %v593 = vld [vmem:[%s577 + $0x64] sm:$0xf]
                  %594 = vst [vmem:[%s578 + $0x1c] sm:$0xf] %v593
                  %v595 = vld [vmem:[%s577 + $0x80] sm:$0xf]
                  %596 = vst [vmem:[%s578 + $0x20] sm:$0xf] %v595
                  %v597 = vld [vmem:[%s577 + $0x84] sm:$0xf]
                  %598 = vst [vmem:[%s578 + $0x24] sm:$0xf] %v597
                  %v599 = vld [vmem:[%s577 + $0xa0] sm:$0xf]
                  %600 = vst [vmem:[%s578 + $0x28] sm:$0xf] %v599
                  %v601 = vld [vmem:[%s577 + $0xa4] sm:$0xf]
                  %602 = vst [vmem:[%s578 + $0x2c] sm:$0xf] %v601
                  %v603 = vld [vmem:[%s577 + $0xc0] sm:$0xf]
                  %604 = vst [vmem:[%s578 + $0x30] sm:$0xf] %v603
                  %v605 = vld [vmem:[%s577 + $0xc4] sm:$0xf]
                  %606 = vst [vmem:[%s578 + $0x34] sm:$0xf] %v605
                  %v607 = vld [vmem:[%s577 + $0xe0] sm:$0xf]
                  %608 = vst [vmem:[%s578 + $0x38] sm:$0xf] %v607
                  %v609 = vld [vmem:[%s577 + $0xe4] sm:$0xf]
                  %610 = vst [vmem:[%s578 + $0x3c] sm:$0xf] %v609
                  %v611 = vld [vmem:[%s577 + $0x100] sm:$0xf]
                  %612 = vst [vmem:[%s578 + $0x40] sm:$0xf] %v611
                  %v613 = vld [vmem:[%s577 + $0x104] sm:$0xf]
                  %614 = vst [vmem:[%s578 + $0x44] sm:$0xf] %v613
                  %v615 = vld [vmem:[%s577 + $0x120] sm:$0xf]
                  %616 = vst [vmem:[%s578 + $0x48] sm:$0xf] %v615
                  %v617 = vld [vmem:[%s577 + $0x124] sm:$0xf]
                  %618 = vst [vmem:[%s578 + $0x4c] sm:$0xf] %v617
                  %v619 = vld [vmem:[%s577 + $0x140] sm:$0xf]
                  %620 = vst [vmem:[%s578 + $0x50] sm:$0xf] %v619
                  %v621 = vld [vmem:[%s577 + $0x144] sm:$0xf]
                  %622 = vst [vmem:[%s578 + $0x54] sm:$0xf] %v621
                  %v623 = vld [vmem:[%s577 + $0x160] sm:$0xf]
                  %624 = vst [vmem:[%s578 + $0x58] sm:$0xf] %v623
                  %v625 = vld [vmem:[%s577 + $0x164] sm:$0xf]
                  %626 = vst [vmem:[%s578 + $0x5c] sm:$0xf] %v625
                  %v627 = vld [vmem:[%s577 + $0x180] sm:$0xf]
                  %628 = vst [vmem:[%s578 + $0x60] sm:$0xf] %v627
                  %v629 = vld [vmem:[%s577 + $0x184] sm:$0xf]
                  %630 = vst [vmem:[%s578 + $0x64] sm:$0xf] %v629
                  %v631 = vld [vmem:[%s577 + $0x1a0] sm:$0xf]
                  %632 = vst [vmem:[%s578 + $0x68] sm:$0xf] %v631
                  %v633 = vld [vmem:[%s577 + $0x1a4] sm:$0xf]
                  %634 = vst [vmem:[%s578 + $0x6c] sm:$0xf] %v633
                  %v635 = vld [vmem:[%s577 + $0x1c0] sm:$0xf]
                  %636 = vst [vmem:[%s578 + $0x70] sm:$0xf] %v635
                  %v637 = vld [vmem:[%s577 + $0x1c4] sm:$0xf]
                  %638 = vst [vmem:[%s578 + $0x74] sm:$0xf] %v637
                  %v639 = vld [vmem:[%s577 + $0x1e0] sm:$0xf]
                  %640 = vst [vmem:[%s578 + $0x78] sm:$0xf] %v639
                  %v641 = vld [vmem:[%s577 + $0x1e4] sm:$0xf]
                  %642 = vst [vmem:[%s578 + $0x7c] sm:$0xf] %v641
                $region121: #{pointnet2_dense_encoder.3} parent=108 // loop_footer
                  %s576 = sadd.s32 1, %s572
                $region122: #{pointnet2_dense_encoder.3} parent=108 // loop_footer_branch
                  %571 = sbr.rel target = $region118
                $region123: #{pointnet2_dense_encoder.3} parent=108 // loop_exit
                  _
              $region109: #{pointnet2_dense_encoder.3} parent=93 // pred_fallthru
                _
            $region94: #{pointnet2_dense_encoder.3} parent=89 // pred_fallthru
              _
            // Predicated region
            $region95: #{pointnet2_dense_encoder.3} parent=89 // pred_check
              _
            $region96: #{pointnet2_dense_encoder.3} parent=89 // pred_check_branch
              %486 = sbr.rel (0) target = $region98
            $region97: #{pointnet2_dense_encoder.3} parent=89 // pred_region
              loop: start=0, step=1, limit=1
              $region99: #{pointnet2_dense_encoder.3} parent=97 // loop_pre_header
                _
              $region100: #{pointnet2_dense_encoder.3} parent=97 // loop_header
                %s489 = sphi 0, %s493
                %p490 = scmp.ge.s32.totalorder %s489, 1
                %s494 = sphi %s480, %s480
                %s495 = sphi %s474, %s474
              $region101: #{pointnet2_dense_encoder.3} parent=97 // loop_header_branch
                %492 = sbr.rel (%p490) target = $region105
              $region102: #{pointnet2_dense_encoder.3} parent=97 // loop_body
                %v496 = vld [vmem:[%s494] sm:$0xf]
                %497 = vst [vmem:[%s495] sm:$0xf] %v496
                %v498 = vld [vmem:[%s494 + $0x4] sm:$0xf]
                %499 = vst [vmem:[%s495 + $0x4] sm:$0xf] %v498
                %v500 = vld [vmem:[%s494 + $0x20] sm:$0xf]
                %501 = vst [vmem:[%s495 + $0x8] sm:$0xf] %v500
                %v502 = vld [vmem:[%s494 + $0x24] sm:$0xf]
                %503 = vst [vmem:[%s495 + $0xc] sm:$0xf] %v502
                %v504 = vld [vmem:[%s494 + $0x40] sm:$0xf]
                %505 = vst [vmem:[%s495 + $0x10] sm:$0xf] %v504
                %v506 = vld [vmem:[%s494 + $0x44] sm:$0xf]
                %507 = vst [vmem:[%s495 + $0x14] sm:$0xf] %v506
                %v508 = vld [vmem:[%s494 + $0x60] sm:$0xf]
                %509 = vst [vmem:[%s495 + $0x18] sm:$0xf] %v508
                %v510 = vld [vmem:[%s494 + $0x64] sm:$0xf]
                %511 = vst [vmem:[%s495 + $0x1c] sm:$0xf] %v510
                %v512 = vld [vmem:[%s494 + $0x80] sm:$0xf]
                %513 = vst [vmem:[%s495 + $0x20] sm:$0xf] %v512
                %v514 = vld [vmem:[%s494 + $0x84] sm:$0xf]
                %515 = vst [vmem:[%s495 + $0x24] sm:$0xf] %v514
                %v516 = vld [vmem:[%s494 + $0xa0] sm:$0xf]
                %517 = vst [vmem:[%s495 + $0x28] sm:$0xf] %v516
                %v518 = vld [vmem:[%s494 + $0xa4] sm:$0xf]
                %519 = vst [vmem:[%s495 + $0x2c] sm:$0xf] %v518
                %v520 = vld [vmem:[%s494 + $0xc0] sm:$0xf]
                %521 = vst [vmem:[%s495 + $0x30] sm:$0xf] %v520
                %v522 = vld [vmem:[%s494 + $0xc4] sm:$0xf]
                %523 = vst [vmem:[%s495 + $0x34] sm:$0xf] %v522
                %v524 = vld [vmem:[%s494 + $0xe0] sm:$0xf]
                %525 = vst [vmem:[%s495 + $0x38] sm:$0xf] %v524
                %v526 = vld [vmem:[%s494 + $0xe4] sm:$0xf]
                %527 = vst [vmem:[%s495 + $0x3c] sm:$0xf] %v526
                %v528 = vld [vmem:[%s494 + $0x100] sm:$0xf]
                %529 = vst [vmem:[%s495 + $0x40] sm:$0xf] %v528
                %v530 = vld [vmem:[%s494 + $0x104] sm:$0xf]
                %531 = vst [vmem:[%s495 + $0x44] sm:$0xf] %v530
                %v532 = vld [vmem:[%s494 + $0x120] sm:$0xf]
                %533 = vst [vmem:[%s495 + $0x48] sm:$0xf] %v532
                %v534 = vld [vmem:[%s494 + $0x124] sm:$0xf]
                %535 = vst [vmem:[%s495 + $0x4c] sm:$0xf] %v534
                %v536 = vld [vmem:[%s494 + $0x140] sm:$0xf]
                %537 = vst [vmem:[%s495 + $0x50] sm:$0xf] %v536
                %v538 = vld [vmem:[%s494 + $0x144] sm:$0xf]
                %539 = vst [vmem:[%s495 + $0x54] sm:$0xf] %v538
                %v540 = vld [vmem:[%s494 + $0x160] sm:$0xf]
                %541 = vst [vmem:[%s495 + $0x58] sm:$0xf] %v540
                %v542 = vld [vmem:[%s494 + $0x164] sm:$0xf]
                %543 = vst [vmem:[%s495 + $0x5c] sm:$0xf] %v542
                %v544 = vld [vmem:[%s494 + $0x180] sm:$0xf]
                %545 = vst [vmem:[%s495 + $0x60] sm:$0xf] %v544
                %v546 = vld [vmem:[%s494 + $0x184] sm:$0xf]
                %547 = vst [vmem:[%s495 + $0x64] sm:$0xf] %v546
                %v548 = vld [vmem:[%s494 + $0x1a0] sm:$0xf]
                %549 = vst [vmem:[%s495 + $0x68] sm:$0xf] %v548
                %v550 = vld [vmem:[%s494 + $0x1a4] sm:$0xf]
                %551 = vst [vmem:[%s495 + $0x6c] sm:$0xf] %v550
                %v552 = vld [vmem:[%s494 + $0x1c0] sm:$0xf]
                %553 = vst [vmem:[%s495 + $0x70] sm:$0xf] %v552
                %v554 = vld [vmem:[%s494 + $0x1c4] sm:$0xf]
                %555 = vst [vmem:[%s495 + $0x74] sm:$0xf] %v554
                %v556 = vld [vmem:[%s494 + $0x1e0] sm:$0xf]
                %557 = vst [vmem:[%s495 + $0x78] sm:$0xf] %v556
                %v558 = vld [vmem:[%s494 + $0x1e4] sm:$0xf]
                %559 = vst [vmem:[%s495 + $0x7c] sm:$0xf] %v558
              $region103: #{pointnet2_dense_encoder.3} parent=97 // loop_footer
                %s493 = sadd.s32 1, %s489
              $region104: #{pointnet2_dense_encoder.3} parent=97 // loop_footer_branch
                %488 = sbr.rel target = $region100
              $region105: #{pointnet2_dense_encoder.3} parent=97 // loop_exit
                _
            $region98: #{pointnet2_dense_encoder.3} parent=89 // pred_fallthru
              _
          $region90: #{pointnet2_dense_encoder.3} parent=85 // pred_fallthru
            _
          %643 = vnop
        $region86: #{pointnet2_dense_encoder.3} parent=43 // pred_fallthru
          _
      $region44: #{pointnet2_dense_encoder.3} parent=5 // pred_fallthru
        _
      %p644 = scmp.le.s32.totalorder 1, %s18
      %p645 = scmp.lt.s32.totalorder %s18, 9
      %p646 = pnand %p644, %p645
      %p647 = pneg %p646
      // Predicated region
      $region124: #{pointnet2_dense_encoder.3} parent=5 // pred_check
        _
      $region125: #{pointnet2_dense_encoder.3} parent=5 // pred_check_branch
        %649 = sbr.rel (%p646) target = $region127
      $region126: #{pointnet2_dense_encoder.3} parent=5 // pred_region
        %s650 = ssub.s32 %s18, 1
        %s651 = sand.u32 %s45, 1
        %s652 = sand.u32 %s45, 1
        %s653 = smul.addr %s652, 256
        %s654 = scalar_lea.vmem [#allocation2], %s653
        // Predicated region
        $region128: #{pointnet2_dense_encoder.3} parent=126 // pred_check
          %p655 = pneg %p58
        $region129: #{pointnet2_dense_encoder.3} parent=126 // pred_check_branch
          %657 = sbr.rel (%p655) target = $region131
        $region130: #{pointnet2_dense_encoder.3} parent=126 // pred_region
          _
        $region131: #{pointnet2_dense_encoder.3} parent=126 // pred_fallthru
          _
        %s658 = sand.u32 %s73, 1
        %s659 = sand.u32 %s73, 1
        %s660 = smul.addr %s659, 128
        %s661 = scalar_lea.vmem [#allocation3], %s660
        // Predicated region
        $region132: #{pointnet2_dense_encoder.3} parent=126 // pred_check
          %p662 = pneg %p86
        $region133: #{pointnet2_dense_encoder.3} parent=126 // pred_check_branch
          %664 = sbr.rel (%p662) target = $region135
        $region134: #{pointnet2_dense_encoder.3} parent=126 // pred_region
          _
        $region135: #{pointnet2_dense_encoder.3} parent=126 // pred_fallthru
          _
        %s665 = sand.u32 %s45, 1
        %s666 = sand.u32 %s45, 1
        %s667 = smul.addr %s666, 256
        %s668 = scalar_lea.vmem [#allocation2], %s667
        %p669 = pneg %p58
        %p670 = pneg %p55
        %s671 = sand.u32 %s73, 1
        %s672 = sand.u32 %s73, 1
        %s673 = smul.addr %s672, 128
        %s674 = scalar_lea.vmem [#allocation3], %s673
        %p675 = pneg %p86
        %p676 = pneg %p83
        %p677 = pneg %p107
        %p678 = pneg %p104
        %p679 = pneg %p128
        %p680 = pneg %p125
        %p681 = pneg %p149
        %p682 = pneg %p146
        %p683 = pneg %p170
        %p684 = pneg %p167
        %p685 = pneg %p191
        %p686 = pneg %p188
        %p687 = pneg %p212
        %p688 = pneg %p209
        %p689 = pneg %p233
        %p690 = pneg %p230
        %p691 = pneg %p259
        %p692 = pneg %p256
        %s693 = sand.u32 %s246, 1
        %s694 = scalar_lea.sflag [#allocation5], %s693
        %s695 = sand.u32 %s246, 1
        %s696 = smul.addr %s695, 48
        %s697 = scalar_lea.vmem [#allocation4], %s696
        %s698 = smul.u32 16, %s27
        %s699 = smul.u32 2, %s28
        %s700 = smul.u32 16, %s27
        %s701 = smul.u32 2, %s28
        %s702 = smul.u32 2, %s27
        %v704 = vld [vmem:[%s654] sm:$0xff]
        %v705 = vld [vmem:[%s654 + $0x8] sm:$0xff]
        %v706 = vld [vmem:[%s654 + $0x10] sm:$0xff]
        %v707 = vld [vmem:[%s654 + $0x18] sm:$0xff]
        %v708 = vld [vmem:[%s654 + $0x20] sm:$0xff]
        %v709 = vld [vmem:[%s654 + $0x28] sm:$0xff]
        %v710 = vld [vmem:[%s654 + $0x30] sm:$0xff]
        %v711 = vld [vmem:[%s654 + $0x38] sm:$0xff]
        %v712 = vld [vmem:[%s654 + $0x40] sm:$0xff]
        %v713 = vld [vmem:[%s654 + $0x48] sm:$0xff]
        %v714 = vld [vmem:[%s654 + $0x50] sm:$0xff]
        %v715 = vld [vmem:[%s654 + $0x58] sm:$0xff]
        %v716 = vld [vmem:[%s654 + $0x60] sm:$0xff]
        %v717 = vld [vmem:[%s654 + $0x68] sm:$0xff]
        %v718 = vld [vmem:[%s654 + $0x70] sm:$0xff]
        %v719 = vld [vmem:[%s654 + $0x78] sm:$0xff]
        %v720 = vld [vmem:[%s654 + $0x80] sm:$0xff]
        %v721 = vld [vmem:[%s654 + $0x88] sm:$0xff]
        %v722 = vld [vmem:[%s654 + $0x90] sm:$0xff]
        %v723 = vld [vmem:[%s654 + $0x98] sm:$0xff]
        %v724 = vld [vmem:[%s654 + $0xa0] sm:$0xff]
        %v725 = vld [vmem:[%s654 + $0xa8] sm:$0xff]
        %v726 = vld [vmem:[%s654 + $0xb0] sm:$0xff]
        %v727 = vld [vmem:[%s654 + $0xb8] sm:$0xff]
        %v728 = vld [vmem:[%s654 + $0xc0] sm:$0xff]
        %v729 = vld [vmem:[%s654 + $0xc8] sm:$0xff]
        %v730 = vld [vmem:[%s654 + $0xd0] sm:$0xff]
        %v731 = vld [vmem:[%s654 + $0xd8] sm:$0xff]
        %v732 = vld [vmem:[%s654 + $0xe0] sm:$0xff]
        %v733 = vld [vmem:[%s654 + $0xe8] sm:$0xff]
        %v734 = vld [vmem:[%s654 + $0xf0] sm:$0xff]
        %v735 = vld [vmem:[%s654 + $0xf8] sm:$0xff]
        %v736 = vld [vmem:[%s2] sm:$0x1]
        %738 = vset.pattern.permute.xlu0 0
        %739 = vperm.xlu0 %738, %v704
        %v740 = vpop.permute.xlu0 %739
        %743 = vset.pattern.permute.xlu0 0
        %744 = vperm.xlu0 %743, %v705
        %v745 = vpop.permute.xlu0 %744
        %748 = vset.pattern.permute.xlu0 0
        %749 = vperm.xlu0 %748, %v706
        %v750 = vpop.permute.xlu0 %749
        %753 = vset.pattern.permute.xlu0 0
        %754 = vperm.xlu0 %753, %v707
        %v755 = vpop.permute.xlu0 %754
        %758 = vset.pattern.permute.xlu0 0
        %759 = vperm.xlu0 %758, %v708
        %v760 = vpop.permute.xlu0 %759
        %763 = vset.pattern.permute.xlu0 0
        %764 = vperm.xlu0 %763, %v709
        %v765 = vpop.permute.xlu0 %764
        %768 = vset.pattern.permute.xlu0 0
        %769 = vperm.xlu0 %768, %v710
        %v770 = vpop.permute.xlu0 %769
        %773 = vset.pattern.permute.xlu0 0
        %774 = vperm.xlu0 %773, %v711
        %v775 = vpop.permute.xlu0 %774
        %778 = vset.pattern.permute.xlu0 0
        %779 = vperm.xlu0 %778, %v712
        %v780 = vpop.permute.xlu0 %779
        %783 = vset.pattern.permute.xlu0 0
        %784 = vperm.xlu0 %783, %v713
        %v785 = vpop.permute.xlu0 %784
        %788 = vset.pattern.permute.xlu0 0
        %789 = vperm.xlu0 %788, %v714
        %v790 = vpop.permute.xlu0 %789
        %793 = vset.pattern.permute.xlu0 0
        %794 = vperm.xlu0 %793, %v715
        %v795 = vpop.permute.xlu0 %794
        %798 = vset.pattern.permute.xlu0 0
        %799 = vperm.xlu0 %798, %v716
        %v800 = vpop.permute.xlu0 %799
        %803 = vset.pattern.permute.xlu0 0
        %804 = vperm.xlu0 %803, %v717
        %v805 = vpop.permute.xlu0 %804
        %808 = vset.pattern.permute.xlu0 0
        %809 = vperm.xlu0 %808, %v718
        %v810 = vpop.permute.xlu0 %809
        %813 = vset.pattern.permute.xlu0 0
        %814 = vperm.xlu0 %813, %v719
        %v815 = vpop.permute.xlu0 %814
        %818 = vset.pattern.permute.xlu0 0
        %819 = vperm.xlu0 %818, %v720
        %v820 = vpop.permute.xlu0 %819
        %823 = vset.pattern.permute.xlu0 0
        %824 = vperm.xlu0 %823, %v721
        %v825 = vpop.permute.xlu0 %824
        %828 = vset.pattern.permute.xlu0 0
        %829 = vperm.xlu0 %828, %v722
        %v830 = vpop.permute.xlu0 %829
        %833 = vset.pattern.permute.xlu0 0
        %834 = vperm.xlu0 %833, %v723
        %v835 = vpop.permute.xlu0 %834
        %838 = vset.pattern.permute.xlu0 0
        %839 = vperm.xlu0 %838, %v724
        %v840 = vpop.permute.xlu0 %839
        %843 = vset.pattern.permute.xlu0 0
        %844 = vperm.xlu0 %843, %v725
        %v845 = vpop.permute.xlu0 %844
        %848 = vset.pattern.permute.xlu0 0
        %849 = vperm.xlu0 %848, %v726
        %v850 = vpop.permute.xlu0 %849
        %853 = vset.pattern.permute.xlu0 0
        %854 = vperm.xlu0 %853, %v727
        %v855 = vpop.permute.xlu0 %854
        %858 = vset.pattern.permute.xlu0 0
        %859 = vperm.xlu0 %858, %v728
        %v860 = vpop.permute.xlu0 %859
        %863 = vset.pattern.permute.xlu0 0
        %864 = vperm.xlu0 %863, %v729
        %v865 = vpop.permute.xlu0 %864
        %868 = vset.pattern.permute.xlu0 0
        %869 = vperm.xlu0 %868, %v730
        %v870 = vpop.permute.xlu0 %869
        %873 = vset.pattern.permute.xlu0 0
        %874 = vperm.xlu0 %873, %v731
        %v875 = vpop.permute.xlu0 %874
        %878 = vset.pattern.permute.xlu0 0
        %879 = vperm.xlu0 %878, %v732
        %v880 = vpop.permute.xlu0 %879
        %883 = vset.pattern.permute.xlu0 0
        %884 = vperm.xlu0 %883, %v733
        %v885 = vpop.permute.xlu0 %884
        %888 = vset.pattern.permute.xlu0 0
        %889 = vperm.xlu0 %888, %v734
        %v890 = vpop.permute.xlu0 %889
        %893 = vset.pattern.permute.xlu0 0
        %894 = vperm.xlu0 %893, %v735
        %v895 = vpop.permute.xlu0 %894
        %v897 = vlaneseq
        %v898 = vshrl.u32 %v897, 7
        %v899 = vsub.s32 0, %v898
        %v900 = vrot.slane %v736, %v899
        %v901 = vmul.f32 %v740, %v900
        %v902 = vmul.f32 %v745, %v900
        %v903 = vmul.f32 %v750, %v900
        %v904 = vmul.f32 %v755, %v900
        %v905 = vmul.f32 %v760, %v900
        %v906 = vmul.f32 %v765, %v900
        %v907 = vmul.f32 %v770, %v900
        %v908 = vmul.f32 %v775, %v900
        %v909 = vmul.f32 %v780, %v900
        %v910 = vmul.f32 %v785, %v900
        %v911 = vmul.f32 %v790, %v900
        %v912 = vmul.f32 %v795, %v900
        %v913 = vmul.f32 %v800, %v900
        %v914 = vmul.f32 %v805, %v900
        %v915 = vmul.f32 %v810, %v900
        %v916 = vmul.f32 %v815, %v900
        %v917 = vmul.f32 %v820, %v900
        %v918 = vmul.f32 %v825, %v900
        %v919 = vmul.f32 %v830, %v900
        %v920 = vmul.f32 %v835, %v900
        %v921 = vmul.f32 %v840, %v900
        %v922 = vmul.f32 %v845, %v900
        %v923 = vmul.f32 %v850, %v900
        %v924 = vmul.f32 %v855, %v900
        %v925 = vmul.f32 %v860, %v900
        %v926 = vmul.f32 %v865, %v900
        %v927 = vmul.f32 %v870, %v900
        %v928 = vmul.f32 %v875, %v900
        %v929 = vmul.f32 %v880, %v900
        %v930 = vmul.f32 %v885, %v900
        %v931 = vmul.f32 %v890, %v900
        %v932 = vmul.f32 %v895, %v900
        %v933 = vld [vmem:[%s2 + $0x1] sm:$0x1]
        %934 = vset.pattern.permute.xlu0 1
        %935 = vperm.xlu0 %934, %v704
        %v936 = vpop.permute.xlu0 %935
        %938 = vset.pattern.permute.xlu0 1
        %939 = vperm.xlu0 %938, %v705
        %v940 = vpop.permute.xlu0 %939
        %942 = vset.pattern.permute.xlu0 1
        %943 = vperm.xlu0 %942, %v706
        %v944 = vpop.permute.xlu0 %943
        %946 = vset.pattern.permute.xlu0 1
        %947 = vperm.xlu0 %946, %v707
        %v948 = vpop.permute.xlu0 %947
        %950 = vset.pattern.permute.xlu0 1
        %951 = vperm.xlu0 %950, %v708
        %v952 = vpop.permute.xlu0 %951
        %954 = vset.pattern.permute.xlu0 1
        %955 = vperm.xlu0 %954, %v709
        %v956 = vpop.permute.xlu0 %955
        %958 = vset.pattern.permute.xlu0 1
        %959 = vperm.xlu0 %958, %v710
        %v960 = vpop.permute.xlu0 %959
        %962 = vset.pattern.permute.xlu0 1
        %963 = vperm.xlu0 %962, %v711
        %v964 = vpop.permute.xlu0 %963
        %966 = vset.pattern.permute.xlu0 1
        %967 = vperm.xlu0 %966, %v712
        %v968 = vpop.permute.xlu0 %967
        %970 = vset.pattern.permute.xlu0 1
        %971 = vperm.xlu0 %970, %v713
        %v972 = vpop.permute.xlu0 %971
        %974 = vset.pattern.permute.xlu0 1
        %975 = vperm.xlu0 %974, %v714
        %v976 = vpop.permute.xlu0 %975
        %978 = vset.pattern.permute.xlu0 1
        %979 = vperm.xlu0 %978, %v715
        %v980 = vpop.permute.xlu0 %979
        %982 = vset.pattern.permute.xlu0 1
        %983 = vperm.xlu0 %982, %v716
        %v984 = vpop.permute.xlu0 %983
        %986 = vset.pattern.permute.xlu0 1
        %987 = vperm.xlu0 %986, %v717
        %v988 = vpop.permute.xlu0 %987
        %990 = vset.pattern.permute.xlu0 1
        %991 = vperm.xlu0 %990, %v718
        %v992 = vpop.permute.xlu0 %991
        %994 = vset.pattern.permute.xlu0 1
        %995 = vperm.xlu0 %994, %v719
        %v996 = vpop.permute.xlu0 %995
        %998 = vset.pattern.permute.xlu0 1
        %999 = vperm.xlu0 %998, %v720
        %v1000 = vpop.permute.xlu0 %999
        %1002 = vset.pattern.permute.xlu0 1
        %1003 = vperm.xlu0 %1002, %v721
        %v1004 = vpop.permute.xlu0 %1003
        %1006 = vset.pattern.permute.xlu0 1
        %1007 = vperm.xlu0 %1006, %v722
        %v1008 = vpop.permute.xlu0 %1007
        %1010 = vset.pattern.permute.xlu0 1
        %1011 = vperm.xlu0 %1010, %v723
        %v1012 = vpop.permute.xlu0 %1011
        %1014 = vset.pattern.permute.xlu0 1
        %1015 = vperm.xlu0 %1014, %v724
        %v1016 = vpop.permute.xlu0 %1015
        %1018 = vset.pattern.permute.xlu0 1
        %1019 = vperm.xlu0 %1018, %v725
        %v1020 = vpop.permute.xlu0 %1019
        %1022 = vset.pattern.permute.xlu0 1
        %1023 = vperm.xlu0 %1022, %v726
        %v1024 = vpop.permute.xlu0 %1023
        %1026 = vset.pattern.permute.xlu0 1
        %1027 = vperm.xlu0 %1026, %v727
        %v1028 = vpop.permute.xlu0 %1027
        %1030 = vset.pattern.permute.xlu0 1
        %1031 = vperm.xlu0 %1030, %v728
        %v1032 = vpop.permute.xlu0 %1031
        %1034 = vset.pattern.permute.xlu0 1
        %1035 = vperm.xlu0 %1034, %v729
        %v1036 = vpop.permute.xlu0 %1035
        %1038 = vset.pattern.permute.xlu0 1
        %1039 = vperm.xlu0 %1038, %v730
        %v1040 = vpop.permute.xlu0 %1039
        %1042 = vset.pattern.permute.xlu0 1
        %1043 = vperm.xlu0 %1042, %v731
        %v1044 = vpop.permute.xlu0 %1043
        %1046 = vset.pattern.permute.xlu0 1
        %1047 = vperm.xlu0 %1046, %v732
        %v1048 = vpop.permute.xlu0 %1047
        %1050 = vset.pattern.permute.xlu0 1
        %1051 = vperm.xlu0 %1050, %v733
        %v1052 = vpop.permute.xlu0 %1051
        %1054 = vset.pattern.permute.xlu0 1
        %1055 = vperm.xlu0 %1054, %v734
        %v1056 = vpop.permute.xlu0 %1055
        %1058 = vset.pattern.permute.xlu0 1
        %1059 = vperm.xlu0 %1058, %v735
        %v1060 = vpop.permute.xlu0 %1059
        %v1062 = vlaneseq
        %v1063 = vshrl.u32 %v1062, 7
        %v1064 = vsub.s32 0, %v1063
        %v1065 = vrot.slane %v933, %v1064
        %v1066 = vmul.f32 %v936, %v1065
        %v1067 = vmul.f32 %v940, %v1065
        %v1068 = vmul.f32 %v944, %v1065
        %v1069 = vmul.f32 %v948, %v1065
        %v1070 = vmul.f32 %v952, %v1065
        %v1071 = vmul.f32 %v956, %v1065
        %v1072 = vmul.f32 %v960, %v1065
        %v1073 = vmul.f32 %v964, %v1065
        %v1074 = vmul.f32 %v968, %v1065
        %v1075 = vmul.f32 %v972, %v1065
        %v1076 = vmul.f32 %v976, %v1065
        %v1077 = vmul.f32 %v980, %v1065
        %v1078 = vmul.f32 %v984, %v1065
        %v1079 = vmul.f32 %v988, %v1065
        %v1080 = vmul.f32 %v992, %v1065
        %v1081 = vmul.f32 %v996, %v1065
        %v1082 = vmul.f32 %v1000, %v1065
        %v1083 = vmul.f32 %v1004, %v1065
        %v1084 = vmul.f32 %v1008, %v1065
        %v1085 = vmul.f32 %v1012, %v1065
        %v1086 = vmul.f32 %v1016, %v1065
        %v1087 = vmul.f32 %v1020, %v1065
        %v1088 = vmul.f32 %v1024, %v1065
        %v1089 = vmul.f32 %v1028, %v1065
        %v1090 = vmul.f32 %v1032, %v1065
        %v1091 = vmul.f32 %v1036, %v1065
        %v1092 = vmul.f32 %v1040, %v1065
        %v1093 = vmul.f32 %v1044, %v1065
        %v1094 = vmul.f32 %v1048, %v1065
        %v1095 = vmul.f32 %v1052, %v1065
        %v1096 = vmul.f32 %v1056, %v1065
        %v1097 = vmul.f32 %v1060, %v1065
        %v1098 = vadd.f32 %v901, %v1066
        %v1099 = vadd.f32 %v902, %v1067
        %v1100 = vadd.f32 %v903, %v1068
        %v1101 = vadd.f32 %v904, %v1069
        %v1102 = vadd.f32 %v905, %v1070
        %v1103 = vadd.f32 %v906, %v1071
        %v1104 = vadd.f32 %v907, %v1072
        %v1105 = vadd.f32 %v908, %v1073
        %v1106 = vadd.f32 %v909, %v1074
        %v1107 = vadd.f32 %v910, %v1075
        %v1108 = vadd.f32 %v911, %v1076
        %v1109 = vadd.f32 %v912, %v1077
        %v1110 = vadd.f32 %v913, %v1078
        %v1111 = vadd.f32 %v914, %v1079
        %v1112 = vadd.f32 %v915, %v1080
        %v1113 = vadd.f32 %v916, %v1081
        %v1114 = vadd.f32 %v917, %v1082
        %v1115 = vadd.f32 %v918, %v1083
        %v1116 = vadd.f32 %v919, %v1084
        %v1117 = vadd.f32 %v920, %v1085
        %v1118 = vadd.f32 %v921, %v1086
        %v1119 = vadd.f32 %v922, %v1087
        %v1120 = vadd.f32 %v923, %v1088
        %v1121 = vadd.f32 %v924, %v1089
        %v1122 = vadd.f32 %v925, %v1090
        %v1123 = vadd.f32 %v926, %v1091
        %v1124 = vadd.f32 %v927, %v1092
        %v1125 = vadd.f32 %v928, %v1093
        %v1126 = vadd.f32 %v929, %v1094
        %v1127 = vadd.f32 %v930, %v1095
        %v1128 = vadd.f32 %v931, %v1096
        %v1129 = vadd.f32 %v932, %v1097
        %v1130 = vld [vmem:[%s2 + $0x2] sm:$0x1]
        %1131 = vset.pattern.permute.xlu0 2
        %1132 = vperm.xlu0 %1131, %v704
        %v1133 = vpop.permute.xlu0 %1132
        %1135 = vset.pattern.permute.xlu0 2
        %1136 = vperm.xlu0 %1135, %v705
        %v1137 = vpop.permute.xlu0 %1136
        %1139 = vset.pattern.permute.xlu0 2
        %1140 = vperm.xlu0 %1139, %v706
        %v1141 = vpop.permute.xlu0 %1140
        %1143 = vset.pattern.permute.xlu0 2
        %1144 = vperm.xlu0 %1143, %v707
        %v1145 = vpop.permute.xlu0 %1144
        %1147 = vset.pattern.permute.xlu0 2
        %1148 = vperm.xlu0 %1147, %v708
        %v1149 = vpop.permute.xlu0 %1148
        %1151 = vset.pattern.permute.xlu0 2
        %1152 = vperm.xlu0 %1151, %v709
        %v1153 = vpop.permute.xlu0 %1152
        %1155 = vset.pattern.permute.xlu0 2
        %1156 = vperm.xlu0 %1155, %v710
        %v1157 = vpop.permute.xlu0 %1156
        %1159 = vset.pattern.permute.xlu0 2
        %1160 = vperm.xlu0 %1159, %v711
        %v1161 = vpop.permute.xlu0 %1160
        %1163 = vset.pattern.permute.xlu0 2
        %1164 = vperm.xlu0 %1163, %v712
        %v1165 = vpop.permute.xlu0 %1164
        %1167 = vset.pattern.permute.xlu0 2
        %1168 = vperm.xlu0 %1167, %v713
        %v1169 = vpop.permute.xlu0 %1168
        %1171 = vset.pattern.permute.xlu0 2
        %1172 = vperm.xlu0 %1171, %v714
        %v1173 = vpop.permute.xlu0 %1172
        %1175 = vset.pattern.permute.xlu0 2
        %1176 = vperm.xlu0 %1175, %v715
        %v1177 = vpop.permute.xlu0 %1176
        %1179 = vset.pattern.permute.xlu0 2
        %1180 = vperm.xlu0 %1179, %v716
        %v1181 = vpop.permute.xlu0 %1180
        %1183 = vset.pattern.permute.xlu0 2
        %1184 = vperm.xlu0 %1183, %v717
        %v1185 = vpop.permute.xlu0 %1184
        %1187 = vset.pattern.permute.xlu0 2
        %1188 = vperm.xlu0 %1187, %v718
        %v1189 = vpop.permute.xlu0 %1188
        %1191 = vset.pattern.permute.xlu0 2
        %1192 = vperm.xlu0 %1191, %v719
        %v1193 = vpop.permute.xlu0 %1192
        %1195 = vset.pattern.permute.xlu0 2
        %1196 = vperm.xlu0 %1195, %v720
        %v1197 = vpop.permute.xlu0 %1196
        %1199 = vset.pattern.permute.xlu0 2
        %1200 = vperm.xlu0 %1199, %v721
        %v1201 = vpop.permute.xlu0 %1200
        %1203 = vset.pattern.permute.xlu0 2
        %1204 = vperm.xlu0 %1203, %v722
        %v1205 = vpop.permute.xlu0 %1204
        %1207 = vset.pattern.permute.xlu0 2
        %1208 = vperm.xlu0 %1207, %v723
        %v1209 = vpop.permute.xlu0 %1208
        %1211 = vset.pattern.permute.xlu0 2
        %1212 = vperm.xlu0 %1211, %v724
        %v1213 = vpop.permute.xlu0 %1212
        %1215 = vset.pattern.permute.xlu0 2
        %1216 = vperm.xlu0 %1215, %v725
        %v1217 = vpop.permute.xlu0 %1216
        %1219 = vset.pattern.permute.xlu0 2
        %1220 = vperm.xlu0 %1219, %v726
        %v1221 = vpop.permute.xlu0 %1220
        %1223 = vset.pattern.permute.xlu0 2
        %1224 = vperm.xlu0 %1223, %v727
        %v1225 = vpop.permute.xlu0 %1224
        %1227 = vset.pattern.permute.xlu0 2
        %1228 = vperm.xlu0 %1227, %v728
        %v1229 = vpop.permute.xlu0 %1228
        %1231 = vset.pattern.permute.xlu0 2
        %1232 = vperm.xlu0 %1231, %v729
        %v1233 = vpop.permute.xlu0 %1232
        %1235 = vset.pattern.permute.xlu0 2
        %1236 = vperm.xlu0 %1235, %v730
        %v1237 = vpop.permute.xlu0 %1236
        %1239 = vset.pattern.permute.xlu0 2
        %1240 = vperm.xlu0 %1239, %v731
        %v1241 = vpop.permute.xlu0 %1240
        %1243 = vset.pattern.permute.xlu0 2
        %1244 = vperm.xlu0 %1243, %v732
        %v1245 = vpop.permute.xlu0 %1244
        %1247 = vset.pattern.permute.xlu0 2
        %1248 = vperm.xlu0 %1247, %v733
        %v1249 = vpop.permute.xlu0 %1248
        %1251 = vset.pattern.permute.xlu0 2
        %1252 = vperm.xlu0 %1251, %v734
        %v1253 = vpop.permute.xlu0 %1252
        %1255 = vset.pattern.permute.xlu0 2
        %1256 = vperm.xlu0 %1255, %v735
        %v1257 = vpop.permute.xlu0 %1256
        %v1259 = vlaneseq
        %v1260 = vshrl.u32 %v1259, 7
        %v1261 = vsub.s32 0, %v1260
        %v1262 = vrot.slane %v1130, %v1261
        %v1263 = vmul.f32 %v1133, %v1262
        %v1264 = vmul.f32 %v1137, %v1262
        %v1265 = vmul.f32 %v1141, %v1262
        %v1266 = vmul.f32 %v1145, %v1262
        %v1267 = vmul.f32 %v1149, %v1262
        %v1268 = vmul.f32 %v1153, %v1262
        %v1269 = vmul.f32 %v1157, %v1262
        %v1270 = vmul.f32 %v1161, %v1262
        %v1271 = vmul.f32 %v1165, %v1262
        %v1272 = vmul.f32 %v1169, %v1262
        %v1273 = vmul.f32 %v1173, %v1262
        %v1274 = vmul.f32 %v1177, %v1262
        %v1275 = vmul.f32 %v1181, %v1262
        %v1276 = vmul.f32 %v1185, %v1262
        %v1277 = vmul.f32 %v1189, %v1262
        %v1278 = vmul.f32 %v1193, %v1262
        %v1279 = vmul.f32 %v1197, %v1262
        %v1280 = vmul.f32 %v1201, %v1262
        %v1281 = vmul.f32 %v1205, %v1262
        %v1282 = vmul.f32 %v1209, %v1262
        %v1283 = vmul.f32 %v1213, %v1262
        %v1284 = vmul.f32 %v1217, %v1262
        %v1285 = vmul.f32 %v1221, %v1262
        %v1286 = vmul.f32 %v1225, %v1262
        %v1287 = vmul.f32 %v1229, %v1262
        %v1288 = vmul.f32 %v1233, %v1262
        %v1289 = vmul.f32 %v1237, %v1262
        %v1290 = vmul.f32 %v1241, %v1262
        %v1291 = vmul.f32 %v1245, %v1262
        %v1292 = vmul.f32 %v1249, %v1262
        %v1293 = vmul.f32 %v1253, %v1262
        %v1294 = vmul.f32 %v1257, %v1262
        %v1295 = vadd.f32 %v1098, %v1263
        %v1296 = vadd.f32 %v1099, %v1264
        %v1297 = vadd.f32 %v1100, %v1265
        %v1298 = vadd.f32 %v1101, %v1266
        %v1299 = vadd.f32 %v1102, %v1267
        %v1300 = vadd.f32 %v1103, %v1268
        %v1301 = vadd.f32 %v1104, %v1269
        %v1302 = vadd.f32 %v1105, %v1270
        %v1303 = vadd.f32 %v1106, %v1271
        %v1304 = vadd.f32 %v1107, %v1272
        %v1305 = vadd.f32 %v1108, %v1273
        %v1306 = vadd.f32 %v1109, %v1274
        %v1307 = vadd.f32 %v1110, %v1275
        %v1308 = vadd.f32 %v1111, %v1276
        %v1309 = vadd.f32 %v1112, %v1277
        %v1310 = vadd.f32 %v1113, %v1278
        %v1311 = vadd.f32 %v1114, %v1279
        %v1312 = vadd.f32 %v1115, %v1280
        %v1313 = vadd.f32 %v1116, %v1281
        %v1314 = vadd.f32 %v1117, %v1282
        %v1315 = vadd.f32 %v1118, %v1283
        %v1316 = vadd.f32 %v1119, %v1284
        %v1317 = vadd.f32 %v1120, %v1285
        %v1318 = vadd.f32 %v1121, %v1286
        %v1319 = vadd.f32 %v1122, %v1287
        %v1320 = vadd.f32 %v1123, %v1288
        %v1321 = vadd.f32 %v1124, %v1289
        %v1322 = vadd.f32 %v1125, %v1290
        %v1323 = vadd.f32 %v1126, %v1291
        %v1324 = vadd.f32 %v1127, %v1292
        %v1325 = vadd.f32 %v1128, %v1293
        %v1326 = vadd.f32 %v1129, %v1294
        %v1327 = vld [vmem:[%s661] sm:$0xf]
        %v1328 = vld [vmem:[%s661 + $0x4] sm:$0xf]
        %v1329 = vld [vmem:[%s661 + $0x8] sm:$0xf]
        %v1330 = vld [vmem:[%s661 + $0xc] sm:$0xf]
        %v1331 = vld [vmem:[%s661 + $0x10] sm:$0xf]
        %v1332 = vld [vmem:[%s661 + $0x14] sm:$0xf]
        %v1333 = vld [vmem:[%s661 + $0x18] sm:$0xf]
        %v1334 = vld [vmem:[%s661 + $0x1c] sm:$0xf]
        %v1335 = vld [vmem:[%s661 + $0x20] sm:$0xf]
        %v1336 = vld [vmem:[%s661 + $0x24] sm:$0xf]
        %v1337 = vld [vmem:[%s661 + $0x28] sm:$0xf]
        %v1338 = vld [vmem:[%s661 + $0x2c] sm:$0xf]
        %v1339 = vld [vmem:[%s661 + $0x30] sm:$0xf]
        %v1340 = vld [vmem:[%s661 + $0x34] sm:$0xf]
        %v1341 = vld [vmem:[%s661 + $0x38] sm:$0xf]
        %v1342 = vld [vmem:[%s661 + $0x3c] sm:$0xf]
        %v1343 = vld [vmem:[%s661 + $0x40] sm:$0xf]
        %v1344 = vld [vmem:[%s661 + $0x44] sm:$0xf]
        %v1345 = vld [vmem:[%s661 + $0x48] sm:$0xf]
        %v1346 = vld [vmem:[%s661 + $0x4c] sm:$0xf]
        %v1347 = vld [vmem:[%s661 + $0x50] sm:$0xf]
        %v1348 = vld [vmem:[%s661 + $0x54] sm:$0xf]
        %v1349 = vld [vmem:[%s661 + $0x58] sm:$0xf]
        %v1350 = vld [vmem:[%s661 + $0x5c] sm:$0xf]
        %v1351 = vld [vmem:[%s661 + $0x60] sm:$0xf]
        %v1352 = vld [vmem:[%s661 + $0x64] sm:$0xf]
        %v1353 = vld [vmem:[%s661 + $0x68] sm:$0xf]
        %v1354 = vld [vmem:[%s661 + $0x6c] sm:$0xf]
        %v1355 = vld [vmem:[%s661 + $0x70] sm:$0xf]
        %v1356 = vld [vmem:[%s661 + $0x74] sm:$0xf]
        %v1357 = vld [vmem:[%s661 + $0x78] sm:$0xf]
        %v1358 = vld [vmem:[%s661 + $0x7c] sm:$0xf]
        %v1359 = vld [vmem:[%s3] sm:$0xf]
        %v1360 = vld [vmem:[%s3 + $0x4] sm:$0xf]
        %v1361 = vld [vmem:[%s3 + $0x8] sm:$0xf]
        %v1362 = vld [vmem:[%s3 + $0xc] sm:$0xf]
        %v1363 = vld [vmem:[%s3 + $0x10] sm:$0xf]
        %v1364 = vld [vmem:[%s3 + $0x14] sm:$0xf]
        %v1365 = vld [vmem:[%s3 + $0x18] sm:$0xf]
        %v1366 = vld [vmem:[%s3 + $0x1c] sm:$0xf]
        %v1367 = vld [vmem:[%s3 + $0x20] sm:$0xf]
        %v1368 = vld [vmem:[%s3 + $0x24] sm:$0xf]
        %v1369 = vld [vmem:[%s3 + $0x28] sm:$0xf]
        %v1370 = vld [vmem:[%s3 + $0x2c] sm:$0xf]
        %v1371 = vld [vmem:[%s3 + $0x30] sm:$0xf]
        %v1372 = vld [vmem:[%s3 + $0x34] sm:$0xf]
        %v1373 = vld [vmem:[%s3 + $0x38] sm:$0xf]
        %v1374 = vld [vmem:[%s3 + $0x3c] sm:$0xf]
        %v1407 = vunpack.c.l.b16 %v1327
        %v1408 = vunpack.c.l.b16 %v1328
        %v1409 = vunpack.c.l.b16 %v1329
        %v1410 = vunpack.c.l.b16 %v1330
        %v1411 = vunpack.c.l.b16 %v1331
        %v1412 = vunpack.c.l.b16 %v1332
        %v1413 = vunpack.c.l.b16 %v1333
        %v1414 = vunpack.c.l.b16 %v1334
        %v1415 = vunpack.c.l.b16 %v1335
        %v1416 = vunpack.c.l.b16 %v1336
        %v1417 = vunpack.c.l.b16 %v1337
        %v1418 = vunpack.c.l.b16 %v1338
        %v1419 = vunpack.c.l.b16 %v1339
        %v1420 = vunpack.c.l.b16 %v1340
        %v1421 = vunpack.c.l.b16 %v1341
        %v1422 = vunpack.c.l.b16 %v1342
        %v1423 = vunpack.c.l.b16 %v1343
        %v1424 = vunpack.c.l.b16 %v1344
        %v1425 = vunpack.c.l.b16 %v1345
        %v1426 = vunpack.c.l.b16 %v1346
        %v1427 = vunpack.c.l.b16 %v1347
        %v1428 = vunpack.c.l.b16 %v1348
        %v1429 = vunpack.c.l.b16 %v1349
        %v1430 = vunpack.c.l.b16 %v1350
        %v1431 = vunpack.c.l.b16 %v1351
        %v1432 = vunpack.c.l.b16 %v1352
        %v1433 = vunpack.c.l.b16 %v1353
        %v1434 = vunpack.c.l.b16 %v1354
        %v1435 = vunpack.c.l.b16 %v1355
        %v1436 = vunpack.c.l.b16 %v1356
        %v1437 = vunpack.c.l.b16 %v1357
        %v1438 = vunpack.c.l.b16 %v1358
        %v1439 = vpack.c.b16 %v1408, %v1407
        %v1440 = vpack.c.b16 %v1410, %v1409
        %v1441 = vpack.c.b16 %v1412, %v1411
        %v1442 = vpack.c.b16 %v1414, %v1413
        %v1443 = vpack.c.b16 %v1416, %v1415
        %v1444 = vpack.c.b16 %v1418, %v1417
        %v1445 = vpack.c.b16 %v1420, %v1419
        %v1446 = vpack.c.b16 %v1422, %v1421
        %v1447 = vpack.c.b16 %v1424, %v1423
        %v1448 = vpack.c.b16 %v1426, %v1425
        %v1449 = vpack.c.b16 %v1428, %v1427
        %v1450 = vpack.c.b16 %v1430, %v1429
        %v1451 = vpack.c.b16 %v1432, %v1431
        %v1452 = vpack.c.b16 %v1434, %v1433
        %v1453 = vpack.c.b16 %v1436, %v1435
        %v1454 = vpack.c.b16 %v1438, %v1437
        %v1487 = vunpack.c.l.b16 %v1359
        %v1488 = vunpack.c.l.b16 %v1360
        %v1489 = vunpack.c.l.b16 %v1361
        %v1490 = vunpack.c.l.b16 %v1362
        %v1491 = vunpack.c.l.b16 %v1363
        %v1492 = vunpack.c.l.b16 %v1364
        %v1493 = vunpack.c.l.b16 %v1365
        %v1494 = vunpack.c.l.b16 %v1366
        %v1495 = vunpack.c.l.b16 %v1367
        %v1496 = vunpack.c.l.b16 %v1368
        %v1497 = vunpack.c.l.b16 %v1369
        %v1498 = vunpack.c.l.b16 %v1370
        %v1499 = vunpack.c.l.b16 %v1371
        %v1500 = vunpack.c.l.b16 %v1372
        %v1501 = vunpack.c.l.b16 %v1373
        %v1502 = vunpack.c.l.b16 %v1374
        %v1503 = vpack.c.b16 %v1488, %v1487
        %v1504 = vpack.c.b16 %v1490, %v1489
        %v1505 = vpack.c.b16 %v1492, %v1491
        %v1506 = vpack.c.b16 %v1494, %v1493
        %v1507 = vpack.c.b16 %v1496, %v1495
        %v1508 = vpack.c.b16 %v1498, %v1497
        %v1509 = vpack.c.b16 %v1500, %v1499
        %v1510 = vpack.c.b16 %v1502, %v1501
        %1519 = vmatprep.subr.bf16.mxu0 0
        %1520 = vmatpush1.bf16.msra.mxu0 %v1503
        %1521 = vmatprep.subr.bf16.mxu0 0
        %1522 = vmatpush1.bf16.msra.mxu0 %v1504
        %1523 = vmatprep.subr.bf16.mxu0 0
        %1524 = vmatpush1.bf16.msra.mxu0 %v1505
        %1525 = vmatprep.subr.bf16.mxu0 0
        %1526 = vmatpush1.bf16.msra.mxu0 %v1506
        %1527 = vmatprep.subr.bf16.mxu0 0
        %1528 = vmatpush1.bf16.msra.mxu0 %v1507
        %1529 = vmatprep.subr.bf16.mxu0 0
        %1530 = vmatpush1.bf16.msra.mxu0 %v1508
        %1531 = vmatprep.subr.bf16.mxu0 0
        %1532 = vmatpush1.bf16.msra.mxu0 %v1509
        %1533 = vmatprep.subr.bf16.mxu0 0
        %1534 = vmatpush1.bf16.msra.mxu0 %v1510
        %1535 = vmatprep.subr.bf16.mxu0 0
        %1536 = vmatpush1.bf16.msra.mxu0 0
        %1537 = vmatprep.subr.bf16.mxu0 0
        %1538 = vmatpush1.bf16.msra.mxu0 0
        %1539 = vmatprep.subr.bf16.mxu0 0
        %1540 = vmatpush1.bf16.msra.mxu0 0
        %1541 = vmatprep.subr.bf16.mxu0 0
        %1542 = vmatpush1.bf16.msra.mxu0 0
        %1543 = vmatprep.subr.bf16.mxu0 0
        %1544 = vmatpush1.bf16.msra.mxu0 0
        %1545 = vmatprep.subr.bf16.mxu0 0
        %1546 = vmatpush1.bf16.msra.mxu0 0
        %1547 = vmatprep.subr.bf16.mxu0 0
        %1548 = vmatpush1.bf16.msra.mxu0 0
        %1549 = vmatprep.subr.bf16.mxu0 0
        %1550 = vmatpush1.bf16.msra.mxu0 0
        %1551 = vmatprep.mubr.bf16.mxu0 0
        %1552 = vmatmul.mubr.bf16.gmra.mrb[0].mxu0 %v1439
        %v1553 = vpop.f32.mrb[0].mxu0
        %v1554 = vadd.f32 0.0, %v1553
        %v1555 = vpop.f32.mrb[0].mxu0
        %v1556 = vpop.f32.mrb[0].mxu0
        %v1557 = vadd.f32 0.0, %v1556
        %v1558 = vpop.f32.mrb[0].mxu0
        %1559 = vmatprep.mubr.bf16.mxu0 0
        %1560 = vmatmul.mubr.bf16.gmra.mrb[0].mxu0 %v1440
        %v1561 = vpop.f32.mrb[0].mxu0
        %v1562 = vadd.f32 0.0, %v1561
        %v1563 = vpop.f32.mrb[0].mxu0
        %v1564 = vpop.f32.mrb[0].mxu0
        %v1565 = vadd.f32 0.0, %v1564
        %v1566 = vpop.f32.mrb[0].mxu0
        %1567 = vmatprep.mubr.bf16.mxu0 0
        %1568 = vmatmul.mubr.bf16.gmra.mrb[0].mxu0 %v1441
        %v1569 = vpop.f32.mrb[0].mxu0
        %v1570 = vadd.f32 0.0, %v1569
        %v1571 = vpop.f32.mrb[0].mxu0
        %v1572 = vpop.f32.mrb[0].mxu0
        %v1573 = vadd.f32 0.0, %v1572
        %v1574 = vpop.f32.mrb[0].mxu0
        %1575 = vmatprep.mubr.bf16.mxu0 0
        %1576 = vmatmul.mubr.bf16.gmra.mrb[0].mxu0 %v1442
        %v1577 = vpop.f32.mrb[0].mxu0
        %v1578 = vadd.f32 0.0, %v1577
        %v1579 = vpop.f32.mrb[0].mxu0
        %v1580 = vpop.f32.mrb[0].mxu0
        %v1581 = vadd.f32 0.0, %v1580
        %v1582 = vpop.f32.mrb[0].mxu0
        %1583 = vmatprep.mubr.bf16.mxu0 0
        %1584 = vmatmul.mubr.bf16.gmra.mrb[0].mxu0 %v1443
        %v1585 = vpop.f32.mrb[0].mxu0
        %v1586 = vadd.f32 0.0, %v1585
        %v1587 = vpop.f32.mrb[0].mxu0
        %v1588 = vpop.f32.mrb[0].mxu0
        %v1589 = vadd.f32 0.0, %v1588
        %v1590 = vpop.f32.mrb[0].mxu0
        %1591 = vmatprep.mubr.bf16.mxu0 0
        %1592 = vmatmul.mubr.bf16.gmra.mrb[0].mxu0 %v1444
        %v1593 = vpop.f32.mrb[0].mxu0
        %v1594 = vadd.f32 0.0, %v1593
        %v1595 = vpop.f32.mrb[0].mxu0
        %v1596 = vpop.f32.mrb[0].mxu0
        %v1597 = vadd.f32 0.0, %v1596
        %v1598 = vpop.f32.mrb[0].mxu0
        %1599 = vmatprep.mubr.bf16.mxu0 0
        %1600 = vmatmul.mubr.bf16.gmra.mrb[0].mxu0 %v1445
        %v1601 = vpop.f32.mrb[0].mxu0
        %v1602 = vadd.f32 0.0, %v1601
        %v1603 = vpop.f32.mrb[0].mxu0
        %v1604 = vpop.f32.mrb[0].mxu0
        %v1605 = vadd.f32 0.0, %v1604
        %v1606 = vpop.f32.mrb[0].mxu0
        %1607 = vmatprep.mubr.bf16.mxu0 0
        %1608 = vmatmul.mubr.bf16.gmra.mrb[0].mxu0 %v1446
        %v1609 = vpop.f32.mrb[0].mxu0
        %v1610 = vadd.f32 0.0, %v1609
        %v1611 = vpop.f32.mrb[0].mxu0
        %v1612 = vpop.f32.mrb[0].mxu0
        %v1613 = vadd.f32 0.0, %v1612
        %v1614 = vpop.f32.mrb[0].mxu0
        %1615 = vmatprep.mubr.bf16.mxu0 0
        %1616 = vmatmul.mubr.bf16.gmra.mrb[0].mxu0 %v1447
        %v1617 = vpop.f32.mrb[0].mxu0
        %v1618 = vadd.f32 0.0, %v1617
        %v1619 = vpop.f32.mrb[0].mxu0
        %v1620 = vpop.f32.mrb[0].mxu0
        %v1621 = vadd.f32 0.0, %v1620
        %v1622 = vpop.f32.mrb[0].mxu0
        %1623 = vmatprep.mubr.bf16.mxu0 0
        %1624 = vmatmul.mubr.bf16.gmra.mrb[0].mxu0 %v1448
        %v1625 = vpop.f32.mrb[0].mxu0
        %v1626 = vadd.f32 0.0, %v1625
        %v1627 = vpop.f32.mrb[0].mxu0
        %v1628 = vpop.f32.mrb[0].mxu0
        %v1629 = vadd.f32 0.0, %v1628
        %v1630 = vpop.f32.mrb[0].mxu0
        %1631 = vmatprep.mubr.bf16.mxu0 0
        %1632 = vmatmul.mubr.bf16.gmra.mrb[0].mxu0 %v1449
        %v1633 = vpop.f32.mrb[0].mxu0
        %v1634 = vadd.f32 0.0, %v1633
        %v1635 = vpop.f32.mrb[0].mxu0
        %v1636 = vpop.f32.mrb[0].mxu0
        %v1637 = vadd.f32 0.0, %v1636
        %v1638 = vpop.f32.mrb[0].mxu0
        %1639 = vmatprep.mubr.bf16.mxu0 0
        %1640 = vmatmul.mubr.bf16.gmra.mrb[0].mxu0 %v1450
        %v1641 = vpop.f32.mrb[0].mxu0
        %v1642 = vadd.f32 0.0, %v1641
        %v1643 = vpop.f32.mrb[0].mxu0
        %v1644 = vpop.f32.mrb[0].mxu0
        %v1645 = vadd.f32 0.0, %v1644
        %v1646 = vpop.f32.mrb[0].mxu0
        %1647 = vmatprep.mubr.bf16.mxu0 0
        %1648 = vmatmul.mubr.bf16.gmra.mrb[0].mxu0 %v1451
        %v1649 = vpop.f32.mrb[0].mxu0
        %v1650 = vadd.f32 0.0, %v1649
        %v1651 = vpop.f32.mrb[0].mxu0
        %v1652 = vpop.f32.mrb[0].mxu0
        %v1653 = vadd.f32 0.0, %v1652
        %v1654 = vpop.f32.mrb[0].mxu0
        %1655 = vmatprep.mubr.bf16.mxu0 0
        %1656 = vmatmul.mubr.bf16.gmra.mrb[0].mxu0 %v1452
        %v1657 = vpop.f32.mrb[0].mxu0
        %v1658 = vadd.f32 0.0, %v1657
        %v1659 = vpop.f32.mrb[0].mxu0
        %v1660 = vpop.f32.mrb[0].mxu0
        %v1661 = vadd.f32 0.0, %v1660
        %v1662 = vpop.f32.mrb[0].mxu0
        %1663 = vmatprep.mubr.bf16.mxu0 0
        %1664 = vmatmul.mubr.bf16.gmra.mrb[0].mxu0 %v1453
        %v1665 = vpop.f32.mrb[0].mxu0
        %v1666 = vadd.f32 0.0, %v1665
        %v1667 = vpop.f32.mrb[0].mxu0
        %v1668 = vpop.f32.mrb[0].mxu0
        %v1669 = vadd.f32 0.0, %v1668
        %v1670 = vpop.f32.mrb[0].mxu0
        %1671 = vmatprep.mubr.bf16.mxu0 0
        %1672 = vmatmul.mubr.bf16.gmra.mrb[0].mxu0 %v1454
        %v1673 = vpop.f32.mrb[0].mxu0
        %v1674 = vadd.f32 0.0, %v1673
        %v1675 = vpop.f32.mrb[0].mxu0
        %v1676 = vpop.f32.mrb[0].mxu0
        %v1677 = vadd.f32 0.0, %v1676
        %v1678 = vpop.f32.mrb[0].mxu0
        %1679 = vdwg.mxu0
        %v1680 = vadd.f32 %v1295, %v1554
        %v1681 = vadd.f32 %v1296, %v1557
        %v1682 = vadd.f32 %v1297, %v1562
        %v1683 = vadd.f32 %v1298, %v1565
        %v1684 = vadd.f32 %v1299, %v1570
        %v1685 = vadd.f32 %v1300, %v1573
        %v1686 = vadd.f32 %v1301, %v1578
        %v1687 = vadd.f32 %v1302, %v1581
        %v1688 = vadd.f32 %v1303, %v1586
        %v1689 = vadd.f32 %v1304, %v1589
        %v1690 = vadd.f32 %v1305, %v1594
        %v1691 = vadd.f32 %v1306, %v1597
        %v1692 = vadd.f32 %v1307, %v1602
        %v1693 = vadd.f32 %v1308, %v1605
        %v1694 = vadd.f32 %v1309, %v1610
        %v1695 = vadd.f32 %v1310, %v1613
        %v1696 = vadd.f32 %v1311, %v1618
        %v1697 = vadd.f32 %v1312, %v1621
        %v1698 = vadd.f32 %v1313, %v1626
        %v1699 = vadd.f32 %v1314, %v1629
        %v1700 = vadd.f32 %v1315, %v1634
        %v1701 = vadd.f32 %v1316, %v1637
        %v1702 = vadd.f32 %v1317, %v1642
        %v1703 = vadd.f32 %v1318, %v1645
        %v1704 = vadd.f32 %v1319, %v1650
        %v1705 = vadd.f32 %v1320, %v1653
        %v1706 = vadd.f32 %v1321, %v1658
        %v1707 = vadd.f32 %v1322, %v1661
        %v1708 = vadd.f32 %v1323, %v1666
        %v1709 = vadd.f32 %v1324, %v1669
        %v1710 = vadd.f32 %v1325, %v1674
        %v1711 = vadd.f32 %v1326, %v1677
        %v1712 = vld [vmem:[%s4] sm:$0x1]
        %v1714 = vlaneseq
        %v1715 = vshrl.u32 %v1714, 7
        %v1716 = vsub.s32 0, %v1715
        %v1717 = vrot.slane %v1712, %v1716
        %v1719 = vadd.f32 %v1680, %v1717
        %v1720 = vadd.f32 %v1681, %v1717
        %v1721 = vadd.f32 %v1682, %v1717
        %v1722 = vadd.f32 %v1683, %v1717
        %v1723 = vadd.f32 %v1684, %v1717
        %v1724 = vadd.f32 %v1685, %v1717
        %v1725 = vadd.f32 %v1686, %v1717
        %v1726 = vadd.f32 %v1687, %v1717
        %v1727 = vadd.f32 %v1688, %v1717
        %v1728 = vadd.f32 %v1689, %v1717
        %v1729 = vadd.f32 %v1690, %v1717
        %v1730 = vadd.f32 %v1691, %v1717
        %v1731 = vadd.f32 %v1692, %v1717
        %v1732 = vadd.f32 %v1693, %v1717
        %v1733 = vadd.f32 %v1694, %v1717
        %v1734 = vadd.f32 %v1695, %v1717
        %v1735 = vadd.f32 %v1696, %v1717
        %v1736 = vadd.f32 %v1697, %v1717
        %v1737 = vadd.f32 %v1698, %v1717
        %v1738 = vadd.f32 %v1699, %v1717
        %v1739 = vadd.f32 %v1700, %v1717
        %v1740 = vadd.f32 %v1701, %v1717
        %v1741 = vadd.f32 %v1702, %v1717
        %v1742 = vadd.f32 %v1703, %v1717
        %v1743 = vadd.f32 %v1704, %v1717
        %v1744 = vadd.f32 %v1705, %v1717
        %v1745 = vadd.f32 %v1706, %v1717
        %v1746 = vadd.f32 %v1707, %v1717
        %v1747 = vadd.f32 %v1708, %v1717
        %v1748 = vadd.f32 %v1709, %v1717
        %v1749 = vadd.f32 %v1710, %v1717
        %v1750 = vadd.f32 %v1711, %v1717
        %v1751 = vmax.f32 %v1719, 0.0
        %v1752 = vmax.f32 %v1720, 0.0
        %v1753 = vmax.f32 %v1721, 0.0
        %v1754 = vmax.f32 %v1722, 0.0
        %v1755 = vmax.f32 %v1723, 0.0
        %v1756 = vmax.f32 %v1724, 0.0
        %v1757 = vmax.f32 %v1725, 0.0
        %v1758 = vmax.f32 %v1726, 0.0
        %v1759 = vmax.f32 %v1727, 0.0
        %v1760 = vmax.f32 %v1728, 0.0
        %v1761 = vmax.f32 %v1729, 0.0
        %v1762 = vmax.f32 %v1730, 0.0
        %v1763 = vmax.f32 %v1731, 0.0
        %v1764 = vmax.f32 %v1732, 0.0
        %v1765 = vmax.f32 %v1733, 0.0
        %v1766 = vmax.f32 %v1734, 0.0
        %v1767 = vmax.f32 %v1735, 0.0
        %v1768 = vmax.f32 %v1736, 0.0
        %v1769 = vmax.f32 %v1737, 0.0
        %v1770 = vmax.f32 %v1738, 0.0
        %v1771 = vmax.f32 %v1739, 0.0
        %v1772 = vmax.f32 %v1740, 0.0
        %v1773 = vmax.f32 %v1741, 0.0
        %v1774 = vmax.f32 %v1742, 0.0
        %v1775 = vmax.f32 %v1743, 0.0
        %v1776 = vmax.f32 %v1744, 0.0
        %v1777 = vmax.f32 %v1745, 0.0
        %v1778 = vmax.f32 %v1746, 0.0
        %v1779 = vmax.f32 %v1747, 0.0
        %v1780 = vmax.f32 %v1748, 0.0
        %v1781 = vmax.f32 %v1749, 0.0
        %v1782 = vmax.f32 %v1750, 0.0
        %v1783 = vpack.c.bf16 %v1752, %v1751
        %v1784 = vpack.c.bf16 %v1754, %v1753
        %v1785 = vpack.c.bf16 %v1756, %v1755
        %v1786 = vpack.c.bf16 %v1758, %v1757
        %v1787 = vpack.c.bf16 %v1760, %v1759
        %v1788 = vpack.c.bf16 %v1762, %v1761
        %v1789 = vpack.c.bf16 %v1764, %v1763
        %v1790 = vpack.c.bf16 %v1766, %v1765
        %v1791 = vpack.c.bf16 %v1768, %v1767
        %v1792 = vpack.c.bf16 %v1770, %v1769
        %v1793 = vpack.c.bf16 %v1772, %v1771
        %v1794 = vpack.c.bf16 %v1774, %v1773
        %v1795 = vpack.c.bf16 %v1776, %v1775
        %v1796 = vpack.c.bf16 %v1778, %v1777
        %v1797 = vpack.c.bf16 %v1780, %v1779
        %v1798 = vpack.c.bf16 %v1782, %v1781
        %v1799 = vld [vmem:[%s5] sm:$0xf]
        %v1800 = vld [vmem:[%s5 + $0x4] sm:$0xf]
        %v1801 = vld [vmem:[%s5 + $0x8] sm:$0xf]
        %v1802 = vld [vmem:[%s5 + $0xc] sm:$0xf]
        %v1803 = vld [vmem:[%s5 + $0x10] sm:$0xf]
        %v1804 = vld [vmem:[%s5 + $0x14] sm:$0xf]
        %v1805 = vld [vmem:[%s5 + $0x18] sm:$0xf]
        %v1806 = vld [vmem:[%s5 + $0x1c] sm:$0xf]
        %v1807 = vld [vmem:[%s5 + $0x20] sm:$0xf]
        %v1808 = vld [vmem:[%s5 + $0x24] sm:$0xf]
        %v1809 = vld [vmem:[%s5 + $0x28] sm:$0xf]
        %v1810 = vld [vmem:[%s5 + $0x2c] sm:$0xf]
        %v1811 = vld [vmem:[%s5 + $0x30] sm:$0xf]
        %v1812 = vld [vmem:[%s5 + $0x34] sm:$0xf]
        %v1813 = vld [vmem:[%s5 + $0x38] sm:$0xf]
        %v1814 = vld [vmem:[%s5 + $0x3c] sm:$0xf]
        %v1815 = vld [vmem:[%s6] sm:$0x1]
        %v1817 = vlaneseq
        %v1818 = vshrl.u32 %v1817, 7
        %v1819 = vsub.s32 0, %v1818
        %v1820 = vrot.slane %v1815, %v1819
        %v1838 = vunpack.c.l.b16 %v1799
        %v1839 = vunpack.c.l.b16 %v1800
        %v1840 = vunpack.c.l.b16 %v1801
        %v1841 = vunpack.c.l.b16 %v1802
        %v1842 = vunpack.c.l.b16 %v1803
        %v1843 = vunpack.c.l.b16 %v1804
        %v1844 = vunpack.c.l.b16 %v1805
        %v1845 = vunpack.c.l.b16 %v1806
        %v1846 = vunpack.c.l.b16 %v1807
        %v1847 = vunpack.c.l.b16 %v1808
        %v1848 = vunpack.c.l.b16 %v1809
        %v1849 = vunpack.c.l.b16 %v1810
        %v1850 = vunpack.c.l.b16 %v1811
        %v1851 = vunpack.c.l.b16 %v1812
        %v1852 = vunpack.c.l.b16 %v1813
        %v1853 = vunpack.c.l.b16 %v1814
        %v1854 = vpack.c.b16 %v1839, %v1838
        %v1855 = vpack.c.b16 %v1841, %v1840
        %v1856 = vpack.c.b16 %v1843, %v1842
        %v1857 = vpack.c.b16 %v1845, %v1844
        %v1858 = vpack.c.b16 %v1847, %v1846
        %v1859 = vpack.c.b16 %v1849, %v1848
        %v1860 = vpack.c.b16 %v1851, %v1850
        %v1861 = vpack.c.b16 %v1853, %v1852
        %1870 = vmatprep.subr.bf16.mxu0 0
        %1871 = vmatpush1.bf16.msra.mxu0 %v1854
        %1872 = vmatprep.subr.bf16.mxu0 0
        %1873 = vmatpush1.bf16.msra.mxu0 %v1855
        %1874 = vmatprep.subr.bf16.mxu0 0
        %1875 = vmatpush1.bf16.msra.mxu0 %v1856
        %1876 = vmatprep.subr.bf16.mxu0 0
        %1877 = vmatpush1.bf16.msra.mxu0 %v1857
        %1878 = vmatprep.subr.bf16.mxu0 0
        %1879 = vmatpush1.bf16.msra.mxu0 %v1858
        %1880 = vmatprep.subr.bf16.mxu0 0
        %1881 = vmatpush1.bf16.msra.mxu0 %v1859
        %1882 = vmatprep.subr.bf16.mxu0 0
        %1883 = vmatpush1.bf16.msra.mxu0 %v1860
        %1884 = vmatprep.subr.bf16.mxu0 0
        %1885 = vmatpush1.bf16.msra.mxu0 %v1861
        %1886 = vmatprep.subr.bf16.mxu0 0
        %1887 = vmatpush1.bf16.msra.mxu0 0
        %1888 = vmatprep.subr.bf16.mxu0 0
        %1889 = vmatpush1.bf16.msra.mxu0 0
        %1890 = vmatprep.subr.bf16.mxu0 0
        %1891 = vmatpush1.bf16.msra.mxu0 0
        %1892 = vmatprep.subr.bf16.mxu0 0
        %1893 = vmatpush1.bf16.msra.mxu0 0
        %1894 = vmatprep.subr.bf16.mxu0 0
        %1895 = vmatpush1.bf16.msra.mxu0 0
        %1896 = vmatprep.subr.bf16.mxu0 0
        %1897 = vmatpush1.bf16.msra.mxu0 0
        %1898 = vmatprep.subr.bf16.mxu0 0
        %1899 = vmatpush1.bf16.msra.mxu0 0
        %1900 = vmatprep.subr.bf16.mxu0 0
        %1901 = vmatpush1.bf16.msra.mxu0 0
        %1902 = vmatprep.mubr.bf16.mxu0 0
        %1903 = vmatmul.mubr.bf16.gmra.mrb[0].mxu0 %v1783
        %v1904 = vpop.f32.mrb[0].mxu0
        %v1905 = vadd.f32 %v1820, %v1904
        %v1906 = vpop.f32.mrb[0].mxu0
        %v1907 = vpop.f32.mrb[0].mxu0
        %v1908 = vadd.f32 %v1820, %v1907
        %v1909 = vpop.f32.mrb[0].mxu0
        %1910 = vmatprep.mubr.bf16.mxu0 0
        %1911 = vmatmul.mubr.bf16.gmra.mrb[0].mxu0 %v1784
        %v1912 = vpop.f32.mrb[0].mxu0
        %v1913 = vadd.f32 %v1820, %v1912
        %v1914 = vpop.f32.mrb[0].mxu0
        %v1915 = vpop.f32.mrb[0].mxu0
        %v1916 = vadd.f32 %v1820, %v1915
        %v1917 = vpop.f32.mrb[0].mxu0
        %1918 = vmatprep.mubr.bf16.mxu0 0
        %1919 = vmatmul.mubr.bf16.gmra.mrb[0].mxu0 %v1785
        %v1920 = vpop.f32.mrb[0].mxu0
        %v1921 = vadd.f32 %v1820, %v1920
        %v1922 = vpop.f32.mrb[0].mxu0
        %v1923 = vpop.f32.mrb[0].mxu0
        %v1924 = vadd.f32 %v1820, %v1923
        %v1925 = vpop.f32.mrb[0].mxu0
        %1926 = vmatprep.mubr.bf16.mxu0 0
        %1927 = vmatmul.mubr.bf16.gmra.mrb[0].mxu0 %v1786
        %v1928 = vpop.f32.mrb[0].mxu0
        %v1929 = vadd.f32 %v1820, %v1928
        %v1930 = vpop.f32.mrb[0].mxu0
        %v1931 = vpop.f32.mrb[0].mxu0
        %v1932 = vadd.f32 %v1820, %v1931
        %v1933 = vpop.f32.mrb[0].mxu0
        %1934 = vmatprep.mubr.bf16.mxu0 0
        %1935 = vmatmul.mubr.bf16.gmra.mrb[0].mxu0 %v1787
        %v1936 = vpop.f32.mrb[0].mxu0
        %v1937 = vadd.f32 %v1820, %v1936
        %v1938 = vpop.f32.mrb[0].mxu0
        %v1939 = vpop.f32.mrb[0].mxu0
        %v1940 = vadd.f32 %v1820, %v1939
        %v1941 = vpop.f32.mrb[0].mxu0
        %1942 = vmatprep.mubr.bf16.mxu0 0
        %1943 = vmatmul.mubr.bf16.gmra.mrb[0].mxu0 %v1788
        %v1944 = vpop.f32.mrb[0].mxu0
        %v1945 = vadd.f32 %v1820, %v1944
        %v1946 = vpop.f32.mrb[0].mxu0
        %v1947 = vpop.f32.mrb[0].mxu0
        %v1948 = vadd.f32 %v1820, %v1947
        %v1949 = vpop.f32.mrb[0].mxu0
        %1950 = vmatprep.mubr.bf16.mxu0 0
        %1951 = vmatmul.mubr.bf16.gmra.mrb[0].mxu0 %v1789
        %v1952 = vpop.f32.mrb[0].mxu0
        %v1953 = vadd.f32 %v1820, %v1952
        %v1954 = vpop.f32.mrb[0].mxu0
        %v1955 = vpop.f32.mrb[0].mxu0
        %v1956 = vadd.f32 %v1820, %v1955
        %v1957 = vpop.f32.mrb[0].mxu0
        %1958 = vmatprep.mubr.bf16.mxu0 0
        %1959 = vmatmul.mubr.bf16.gmra.mrb[0].mxu0 %v1790
        %v1960 = vpop.f32.mrb[0].mxu0
        %v1961 = vadd.f32 %v1820, %v1960
        %v1962 = vpop.f32.mrb[0].mxu0
        %v1963 = vpop.f32.mrb[0].mxu0
        %v1964 = vadd.f32 %v1820, %v1963
        %v1965 = vpop.f32.mrb[0].mxu0
        %1966 = vmatprep.mubr.bf16.mxu0 0
        %1967 = vmatmul.mubr.bf16.gmra.mrb[0].mxu0 %v1791
        %v1968 = vpop.f32.mrb[0].mxu0
        %v1969 = vadd.f32 %v1820, %v1968
        %v1970 = vpop.f32.mrb[0].mxu0
        %v1971 = vpop.f32.mrb[0].mxu0
        %v1972 = vadd.f32 %v1820, %v1971
        %v1973 = vpop.f32.mrb[0].mxu0
        %1974 = vmatprep.mubr.bf16.mxu0 0
        %1975 = vmatmul.mubr.bf16.gmra.mrb[0].mxu0 %v1792
        %v1976 = vpop.f32.mrb[0].mxu0
        %v1977 = vadd.f32 %v1820, %v1976
        %v1978 = vpop.f32.mrb[0].mxu0
        %v1979 = vpop.f32.mrb[0].mxu0
        %v1980 = vadd.f32 %v1820, %v1979
        %v1981 = vpop.f32.mrb[0].mxu0
        %1982 = vmatprep.mubr.bf16.mxu0 0
        %1983 = vmatmul.mubr.bf16.gmra.mrb[0].mxu0 %v1793
        %v1984 = vpop.f32.mrb[0].mxu0
        %v1985 = vadd.f32 %v1820, %v1984
        %v1986 = vpop.f32.mrb[0].mxu0
        %v1987 = vpop.f32.mrb[0].mxu0
        %v1988 = vadd.f32 %v1820, %v1987
        %v1989 = vpop.f32.mrb[0].mxu0
        %1990 = vmatprep.mubr.bf16.mxu0 0
        %1991 = vmatmul.mubr.bf16.gmra.mrb[0].mxu0 %v1794
        %v1992 = vpop.f32.mrb[0].mxu0
        %v1993 = vadd.f32 %v1820, %v1992
        %v1994 = vpop.f32.mrb[0].mxu0
        %v1995 = vpop.f32.mrb[0].mxu0
        %v1996 = vadd.f32 %v1820, %v1995
        %v1997 = vpop.f32.mrb[0].mxu0
        %1998 = vmatprep.mubr.bf16.mxu0 0
        %1999 = vmatmul.mubr.bf16.gmra.mrb[0].mxu0 %v1795
        %v2000 = vpop.f32.mrb[0].mxu0
        %v2001 = vadd.f32 %v1820, %v2000
        %v2002 = vpop.f32.mrb[0].mxu0
        %v2003 = vpop.f32.mrb[0].mxu0
        %v2004 = vadd.f32 %v1820, %v2003
        %v2005 = vpop.f32.mrb[0].mxu0
        %2006 = vmatprep.mubr.bf16.mxu0 0
        %2007 = vmatmul.mubr.bf16.gmra.mrb[0].mxu0 %v1796
        %v2008 = vpop.f32.mrb[0].mxu0
        %v2009 = vadd.f32 %v1820, %v2008
        %v2010 = vpop.f32.mrb[0].mxu0
        %v2011 = vpop.f32.mrb[0].mxu0
        %v2012 = vadd.f32 %v1820, %v2011
        %v2013 = vpop.f32.mrb[0].mxu0
        %2014 = vmatprep.mubr.bf16.mxu0 0
        %2015 = vmatmul.mubr.bf16.gmra.mrb[0].mxu0 %v1797
        %v2016 = vpop.f32.mrb[0].mxu0
        %v2017 = vadd.f32 %v1820, %v2016
        %v2018 = vpop.f32.mrb[0].mxu0
        %v2019 = vpop.f32.mrb[0].mxu0
        %v2020 = vadd.f32 %v1820, %v2019
        %v2021 = vpop.f32.mrb[0].mxu0
        %2022 = vmatprep.mubr.bf16.mxu0 0
        %2023 = vmatmul.mubr.bf16.gmra.mrb[0].mxu0 %v1798
        %v2024 = vpop.f32.mrb[0].mxu0
        %v2025 = vadd.f32 %v1820, %v2024
        %v2026 = vpop.f32.mrb[0].mxu0
        %v2027 = vpop.f32.mrb[0].mxu0
        %v2028 = vadd.f32 %v1820, %v2027
        %v2029 = vpop.f32.mrb[0].mxu0
        %2030 = vdwg.mxu0
        %v2031 = vmax.f32 %v1905, 0.0
        %v2032 = vmax.f32 %v1908, 0.0
        %v2033 = vmax.f32 %v1913, 0.0
        %v2034 = vmax.f32 %v1916, 0.0
        %v2035 = vmax.f32 %v1921, 0.0
        %v2036 = vmax.f32 %v1924, 0.0
        %v2037 = vmax.f32 %v1929, 0.0
        %v2038 = vmax.f32 %v1932, 0.0
        %v2039 = vmax.f32 %v1937, 0.0
        %v2040 = vmax.f32 %v1940, 0.0
        %v2041 = vmax.f32 %v1945, 0.0
        %v2042 = vmax.f32 %v1948, 0.0
        %v2043 = vmax.f32 %v1953, 0.0
        %v2044 = vmax.f32 %v1956, 0.0
        %v2045 = vmax.f32 %v1961, 0.0
        %v2046 = vmax.f32 %v1964, 0.0
        %v2047 = vmax.f32 %v1969, 0.0
        %v2048 = vmax.f32 %v1972, 0.0
        %v2049 = vmax.f32 %v1977, 0.0
        %v2050 = vmax.f32 %v1980, 0.0
        %v2051 = vmax.f32 %v1985, 0.0
        %v2052 = vmax.f32 %v1988, 0.0
        %v2053 = vmax.f32 %v1993, 0.0
        %v2054 = vmax.f32 %v1996, 0.0
        %v2055 = vmax.f32 %v2001, 0.0
        %v2056 = vmax.f32 %v2004, 0.0
        %v2057 = vmax.f32 %v2009, 0.0
        %v2058 = vmax.f32 %v2012, 0.0
        %v2059 = vmax.f32 %v2017, 0.0
        %v2060 = vmax.f32 %v2020, 0.0
        %v2061 = vmax.f32 %v2025, 0.0
        %v2062 = vmax.f32 %v2028, 0.0
        %v2063 = vpack.c.bf16 %v2032, %v2031
        %v2064 = vpack.c.bf16 %v2034, %v2033
        %v2065 = vpack.c.bf16 %v2036, %v2035
        %v2066 = vpack.c.bf16 %v2038, %v2037
        %v2067 = vpack.c.bf16 %v2040, %v2039
        %v2068 = vpack.c.bf16 %v2042, %v2041
        %v2069 = vpack.c.bf16 %v2044, %v2043
        %v2070 = vpack.c.bf16 %v2046, %v2045
        %v2071 = vpack.c.bf16 %v2048, %v2047
        %v2072 = vpack.c.bf16 %v2050, %v2049
        %v2073 = vpack.c.bf16 %v2052, %v2051
        %v2074 = vpack.c.bf16 %v2054, %v2053
        %v2075 = vpack.c.bf16 %v2056, %v2055
        %v2076 = vpack.c.bf16 %v2058, %v2057
        %v2077 = vpack.c.bf16 %v2060, %v2059
        %v2078 = vpack.c.bf16 %v2062, %v2061
        %v2079 = vld [vmem:[%s7] sm:$0xff]
        %v2080 = vld [vmem:[%s7 + $0x8] sm:$0xf]
        %v2081 = vld [vmem:[%s7 + $0xc] sm:$0xff]
        %v2082 = vld [vmem:[%s7 + $0x14] sm:$0xf]
        %v2083 = vld [vmem:[%s7 + $0x18] sm:$0xff]
        %v2084 = vld [vmem:[%s7 + $0x20] sm:$0xf]
        %v2085 = vld [vmem:[%s7 + $0x24] sm:$0xff]
        %v2086 = vld [vmem:[%s7 + $0x2c] sm:$0xf]
        %v2087 = vld [vmem:[%s7 + $0x30] sm:$0xff]
        %v2088 = vld [vmem:[%s7 + $0x38] sm:$0xf]
        %v2089 = vld [vmem:[%s7 + $0x3c] sm:$0xff]
        %v2090 = vld [vmem:[%s7 + $0x44] sm:$0xf]
        %v2091 = vld [vmem:[%s7 + $0x48] sm:$0xff]
        %v2092 = vld [vmem:[%s7 + $0x50] sm:$0xf]
        %v2093 = vld [vmem:[%s7 + $0x54] sm:$0xff]
        %v2094 = vld [vmem:[%s7 + $0x5c] sm:$0xf]
        %v2095 = vld [vmem:[%s7 + $0x60] sm:$0xff]
        %v2096 = vld [vmem:[%s7 + $0x68] sm:$0xf]
        %v2097 = vld [vmem:[%s7 + $0x6c] sm:$0xff]
        %v2098 = vld [vmem:[%s7 + $0x74] sm:$0xf]
        %v2099 = vld [vmem:[%s7 + $0x78] sm:$0xff]
        %v2100 = vld [vmem:[%s7 + $0x80] sm:$0xf]
        %v2101 = vld [vmem:[%s7 + $0x84] sm:$0xff]
        %v2102 = vld [vmem:[%s7 + $0x8c] sm:$0xf]
        %v2103 = vld [vmem:[%s7 + $0x90] sm:$0xff]
        %v2104 = vld [vmem:[%s7 + $0x98] sm:$0xf]
        %v2105 = vld [vmem:[%s7 + $0x9c] sm:$0xff]
        %v2106 = vld [vmem:[%s7 + $0xa4] sm:$0xf]
        %v2107 = vld [vmem:[%s7 + $0xa8] sm:$0xff]
        %v2108 = vld [vmem:[%s7 + $0xb0] sm:$0xf]
        %v2109 = vld [vmem:[%s7 + $0xb4] sm:$0xff]
        %v2110 = vld [vmem:[%s7 + $0xbc] sm:$0xf]
        %v2111 = vld [vmem:[%s8] sm:$0x7]
        %v2113 = vlaneseq
        %v2114 = vshrl.u32 %v2113, 7
        %v2115 = vsub.s32 0, %v2114
        %v2116 = vrot.slane %v2111, %v2115
        %v2117 = vlaneseq
        %v2118 = vshrl.u32 %v2117, 7
        %v2119 = vsub.s32 1, %v2118
        %v2120 = vrot.slane %v2111, %v2119
        %v2121 = vlaneseq
        %v2122 = vshrl.u32 %v2121, 7
        %v2123 = vsub.s32 2, %v2122
        %v2124 = vrot.slane %v2111, %v2123
        %v2160 = vunpack.c.l.b16 %v2079
        %v2161 = vunpack.c.h.b16 %v2079
        %v2162 = vunpack.c.l.b16 %v2080
        %v2163 = vunpack.c.l.b16 %v2081
        %v2164 = vunpack.c.h.b16 %v2081
        %v2165 = vunpack.c.l.b16 %v2082
        %v2166 = vunpack.c.l.b16 %v2083
        %v2167 = vunpack.c.h.b16 %v2083
        %v2168 = vunpack.c.l.b16 %v2084
        %v2169 = vunpack.c.l.b16 %v2085
        %v2170 = vunpack.c.h.b16 %v2085
        %v2171 = vunpack.c.l.b16 %v2086
        %v2172 = vunpack.c.l.b16 %v2087
        %v2173 = vunpack.c.h.b16 %v2087
        %v2174 = vunpack.c.l.b16 %v2088
        %v2175 = vunpack.c.l.b16 %v2089
        %v2176 = vunpack.c.h.b16 %v2089
        %v2177 = vunpack.c.l.b16 %v2090
        %v2178 = vunpack.c.l.b16 %v2091
        %v2179 = vunpack.c.h.b16 %v2091
        %v2180 = vunpack.c.l.b16 %v2092
        %v2181 = vunpack.c.l.b16 %v2093
        %v2182 = vunpack.c.h.b16 %v2093
        %v2183 = vunpack.c.l.b16 %v2094
        %v2184 = vunpack.c.l.b16 %v2095
        %v2185 = vunpack.c.h.b16 %v2095
        %v2186 = vunpack.c.l.b16 %v2096
        %v2187 = vunpack.c.l.b16 %v2097
        %v2188 = vunpack.c.h.b16 %v2097
        %v2189 = vunpack.c.l.b16 %v2098
        %v2190 = vunpack.c.l.b16 %v2099
        %v2191 = vunpack.c.h.b16 %v2099
        %v2192 = vunpack.c.l.b16 %v2100
        %v2193 = vunpack.c.l.b16 %v2101
        %v2194 = vunpack.c.h.b16 %v2101
        %v2195 = vunpack.c.l.b16 %v2102
        %v2196 = vunpack.c.l.b16 %v2103
        %v2197 = vunpack.c.h.b16 %v2103
        %v2198 = vunpack.c.l.b16 %v2104
        %v2199 = vunpack.c.l.b16 %v2105
        %v2200 = vunpack.c.h.b16 %v2105
        %v2201 = vunpack.c.l.b16 %v2106
        %v2202 = vunpack.c.l.b16 %v2107
        %v2203 = vunpack.c.h.b16 %v2107
        %v2204 = vunpack.c.l.b16 %v2108
        %v2205 = vunpack.c.l.b16 %v2109
        %v2206 = vunpack.c.h.b16 %v2109
        %v2207 = vunpack.c.l.b16 %v2110
        %v2208 = vpack.c.b16 %v2163, %v2160
        %v2209 = vpack.c.b16 %v2164, %v2161
        %v2210 = vpack.c.b16 %v2165, %v2162
        %v2211 = vpack.c.b16 %v2169, %v2166
        %v2212 = vpack.c.b16 %v2170, %v2167
        %v2213 = vpack.c.b16 %v2171, %v2168
        %v2214 = vpack.c.b16 %v2175, %v2172
        %v2215 = vpack.c.b16 %v2176, %v2173
        %v2216 = vpack.c.b16 %v2177, %v2174
        %v2217 = vpack.c.b16 %v2181, %v2178
        %v2218 = vpack.c.b16 %v2182, %v2179
        %v2219 = vpack.c.b16 %v2183, %v2180
        %v2220 = vpack.c.b16 %v2187, %v2184
        %v2221 = vpack.c.b16 %v2188, %v2185
        %v2222 = vpack.c.b16 %v2189, %v2186
        %v2223 = vpack.c.b16 %v2193, %v2190
        %v2224 = vpack.c.b16 %v2194, %v2191
        %v2225 = vpack.c.b16 %v2195, %v2192
        %v2226 = vpack.c.b16 %v2199, %v2196
        %v2227 = vpack.c.b16 %v2200, %v2197
        %v2228 = vpack.c.b16 %v2201, %v2198
        %v2229 = vpack.c.b16 %v2205, %v2202
        %v2230 = vpack.c.b16 %v2206, %v2203
        %v2231 = vpack.c.b16 %v2207, %v2204
        %2256 = vmatprep.subr.bf16.mxu0 %v2209
        %2257 = vmatpush1.bf16.msra.mxu0 %v2208
        %2258 = vmatprep.subr.bf16.mxu0 %v2212
        %2259 = vmatpush1.bf16.msra.mxu0 %v2211
        %2260 = vmatprep.subr.bf16.mxu0 %v2215
        %2261 = vmatpush1.bf16.msra.mxu0 %v2214
        %2262 = vmatprep.subr.bf16.mxu0 %v2218
        %2263 = vmatpush1.bf16.msra.mxu0 %v2217
        %2264 = vmatprep.subr.bf16.mxu0 %v2221
        %2265 = vmatpush1.bf16.msra.mxu0 %v2220
        %2266 = vmatprep.subr.bf16.mxu0 %v2224
        %2267 = vmatpush1.bf16.msra.mxu0 %v2223
        %2268 = vmatprep.subr.bf16.mxu0 %v2227
        %2269 = vmatpush1.bf16.msra.mxu0 %v2226
        %2270 = vmatprep.subr.bf16.mxu0 %v2230
        %2271 = vmatpush1.bf16.msra.mxu0 %v2229
        %2272 = vmatprep.subr.bf16.mxu0 0
        %2273 = vmatpush1.bf16.msra.mxu0 0
        %2274 = vmatprep.subr.bf16.mxu0 0
        %2275 = vmatpush1.bf16.msra.mxu0 0
        %2276 = vmatprep.subr.bf16.mxu0 0
        %2277 = vmatpush1.bf16.msra.mxu0 0
        %2278 = vmatprep.subr.bf16.mxu0 0
        %2279 = vmatpush1.bf16.msra.mxu0 0
        %2280 = vmatprep.subr.bf16.mxu0 0
        %2281 = vmatpush1.bf16.msra.mxu0 0
        %2282 = vmatprep.subr.bf16.mxu0 0
        %2283 = vmatpush1.bf16.msra.mxu0 0
        %2284 = vmatprep.subr.bf16.mxu0 0
        %2285 = vmatpush1.bf16.msra.mxu0 0
        %2286 = vmatprep.subr.bf16.mxu0 0
        %2287 = vmatpush1.bf16.msra.mxu0 0
        %2288 = vmatprep.mubr.bf16.mxu0 0
        %2289 = vmatmul.mubr.bf16.gmra.mrb[0].mxu0 %v2063
        %v2290 = vpop.f32.mrb[0].mxu0
        %v2291 = vadd.f32 %v2116, %v2290
        %v2292 = vpop.f32.mrb[0].mxu0
        %v2293 = vadd.f32 %v2120, %v2292
        %v2294 = vpop.f32.mrb[0].mxu0
        %v2295 = vadd.f32 %v2116, %v2294
        %v2296 = vpop.f32.mrb[0].mxu0
        %v2297 = vadd.f32 %v2120, %v2296
        %2298 = vmatprep.mubr.bf16.mxu0 0
        %2299 = vmatmul.mubr.bf16.gmra.mrb[0].mxu0 %v2064
        %v2300 = vpop.f32.mrb[0].mxu0
        %v2301 = vadd.f32 %v2116, %v2300
        %v2302 = vpop.f32.mrb[0].mxu0
        %v2303 = vadd.f32 %v2120, %v2302
        %v2304 = vpop.f32.mrb[0].mxu0
        %v2305 = vadd.f32 %v2116, %v2304
        %v2306 = vpop.f32.mrb[0].mxu0
        %v2307 = vadd.f32 %v2120, %v2306
        %2308 = vmatprep.mubr.bf16.mxu0 0
        %2309 = vmatmul.mubr.bf16.gmra.mrb[0].mxu0 %v2065
        %v2310 = vpop.f32.mrb[0].mxu0
        %v2311 = vadd.f32 %v2116, %v2310
        %v2312 = vpop.f32.mrb[0].mxu0
        %v2313 = vadd.f32 %v2120, %v2312
        %v2314 = vpop.f32.mrb[0].mxu0
        %v2315 = vadd.f32 %v2116, %v2314
        %v2316 = vpop.f32.mrb[0].mxu0
        %v2317 = vadd.f32 %v2120, %v2316
        %2318 = vmatprep.mubr.bf16.mxu0 0
        %2319 = vmatmul.mubr.bf16.gmra.mrb[0].mxu0 %v2066
        %v2320 = vpop.f32.mrb[0].mxu0
        %v2321 = vadd.f32 %v2116, %v2320
        %v2322 = vpop.f32.mrb[0].mxu0
        %v2323 = vadd.f32 %v2120, %v2322
        %v2324 = vpop.f32.mrb[0].mxu0
        %v2325 = vadd.f32 %v2116, %v2324
        %v2326 = vpop.f32.mrb[0].mxu0
        %v2327 = vadd.f32 %v2120, %v2326
        %2328 = vmatprep.mubr.bf16.mxu0 0
        %2329 = vmatmul.mubr.bf16.gmra.mrb[0].mxu0 %v2067
        %v2330 = vpop.f32.mrb[0].mxu0
        %v2331 = vadd.f32 %v2116, %v2330
        %v2332 = vpop.f32.mrb[0].mxu0
        %v2333 = vadd.f32 %v2120, %v2332
        %v2334 = vpop.f32.mrb[0].mxu0
        %v2335 = vadd.f32 %v2116, %v2334
        %v2336 = vpop.f32.mrb[0].mxu0
        %v2337 = vadd.f32 %v2120, %v2336
        %2338 = vmatprep.mubr.bf16.mxu0 0
        %2339 = vmatmul.mubr.bf16.gmra.mrb[0].mxu0 %v2068
        %v2340 = vpop.f32.mrb[0].mxu0
        %v2341 = vadd.f32 %v2116, %v2340
        %v2342 = vpop.f32.mrb[0].mxu0
        %v2343 = vadd.f32 %v2120, %v2342
        %v2344 = vpop.f32.mrb[0].mxu0
        %v2345 = vadd.f32 %v2116, %v2344
        %v2346 = vpop.f32.mrb[0].mxu0
        %v2347 = vadd.f32 %v2120, %v2346
        %2348 = vmatprep.mubr.bf16.mxu0 0
        %2349 = vmatmul.mubr.bf16.gmra.mrb[0].mxu0 %v2069
        %v2350 = vpop.f32.mrb[0].mxu0
        %v2351 = vadd.f32 %v2116, %v2350
        %v2352 = vpop.f32.mrb[0].mxu0
        %v2353 = vadd.f32 %v2120, %v2352
        %v2354 = vpop.f32.mrb[0].mxu0
        %v2355 = vadd.f32 %v2116, %v2354
        %v2356 = vpop.f32.mrb[0].mxu0
        %v2357 = vadd.f32 %v2120, %v2356
        %2358 = vmatprep.mubr.bf16.mxu0 0
        %2359 = vmatmul.mubr.bf16.gmra.mrb[0].mxu0 %v2070
        %v2360 = vpop.f32.mrb[0].mxu0
        %v2361 = vadd.f32 %v2116, %v2360
        %v2362 = vpop.f32.mrb[0].mxu0
        %v2363 = vadd.f32 %v2120, %v2362
        %v2364 = vpop.f32.mrb[0].mxu0
        %v2365 = vadd.f32 %v2116, %v2364
        %v2366 = vpop.f32.mrb[0].mxu0
        %v2367 = vadd.f32 %v2120, %v2366
        %2368 = vmatprep.mubr.bf16.mxu0 0
        %2369 = vmatmul.mubr.bf16.gmra.mrb[0].mxu0 %v2071
        %v2370 = vpop.f32.mrb[0].mxu0
        %v2371 = vadd.f32 %v2116, %v2370
        %v2372 = vpop.f32.mrb[0].mxu0
        %v2373 = vadd.f32 %v2120, %v2372
        %v2374 = vpop.f32.mrb[0].mxu0
        %v2375 = vadd.f32 %v2116, %v2374
        %v2376 = vpop.f32.mrb[0].mxu0
        %v2377 = vadd.f32 %v2120, %v2376
        %2378 = vmatprep.mubr.bf16.mxu0 0
        %2379 = vmatmul.mubr.bf16.gmra.mrb[0].mxu0 %v2072
        %v2380 = vpop.f32.mrb[0].mxu0
        %v2381 = vadd.f32 %v2116, %v2380
        %v2382 = vpop.f32.mrb[0].mxu0
        %v2383 = vadd.f32 %v2120, %v2382
        %v2384 = vpop.f32.mrb[0].mxu0
        %v2385 = vadd.f32 %v2116, %v2384
        %v2386 = vpop.f32.mrb[0].mxu0
        %v2387 = vadd.f32 %v2120, %v2386
        %2388 = vmatprep.mubr.bf16.mxu0 0
        %2389 = vmatmul.mubr.bf16.gmra.mrb[0].mxu0 %v2073
        %v2390 = vpop.f32.mrb[0].mxu0
        %v2391 = vadd.f32 %v2116, %v2390
        %v2392 = vpop.f32.mrb[0].mxu0
        %v2393 = vadd.f32 %v2120, %v2392
        %v2394 = vpop.f32.mrb[0].mxu0
        %v2395 = vadd.f32 %v2116, %v2394
        %v2396 = vpop.f32.mrb[0].mxu0
        %v2397 = vadd.f32 %v2120, %v2396
        %2398 = vmatprep.mubr.bf16.mxu0 0
        %2399 = vmatmul.mubr.bf16.gmra.mrb[0].mxu0 %v2074
        %v2400 = vpop.f32.mrb[0].mxu0
        %v2401 = vadd.f32 %v2116, %v2400
        %v2402 = vpop.f32.mrb[0].mxu0
        %v2403 = vadd.f32 %v2120, %v2402
        %v2404 = vpop.f32.mrb[0].mxu0
        %v2405 = vadd.f32 %v2116, %v2404
        %v2406 = vpop.f32.mrb[0].mxu0
        %v2407 = vadd.f32 %v2120, %v2406
        %2408 = vmatprep.mubr.bf16.mxu0 0
        %2409 = vmatmul.mubr.bf16.gmra.mrb[0].mxu0 %v2075
        %v2410 = vpop.f32.mrb[0].mxu0
        %v2411 = vadd.f32 %v2116, %v2410
        %v2412 = vpop.f32.mrb[0].mxu0
        %v2413 = vadd.f32 %v2120, %v2412
        %v2414 = vpop.f32.mrb[0].mxu0
        %v2415 = vadd.f32 %v2116, %v2414
        %v2416 = vpop.f32.mrb[0].mxu0
        %v2417 = vadd.f32 %v2120, %v2416
        %2418 = vmatprep.mubr.bf16.mxu0 0
        %2419 = vmatmul.mubr.bf16.gmra.mrb[0].mxu0 %v2076
        %v2420 = vpop.f32.mrb[0].mxu0
        %v2421 = vadd.f32 %v2116, %v2420
        %v2422 = vpop.f32.mrb[0].mxu0
        %v2423 = vadd.f32 %v2120, %v2422
        %v2424 = vpop.f32.mrb[0].mxu0
        %v2425 = vadd.f32 %v2116, %v2424
        %v2426 = vpop.f32.mrb[0].mxu0
        %v2427 = vadd.f32 %v2120, %v2426
        %2428 = vmatprep.mubr.bf16.mxu0 0
        %2429 = vmatmul.mubr.bf16.gmra.mrb[0].mxu0 %v2077
        %v2430 = vpop.f32.mrb[0].mxu0
        %v2431 = vadd.f32 %v2116, %v2430
        %v2432 = vpop.f32.mrb[0].mxu0
        %v2433 = vadd.f32 %v2120, %v2432
        %v2434 = vpop.f32.mrb[0].mxu0
        %v2435 = vadd.f32 %v2116, %v2434
        %v2436 = vpop.f32.mrb[0].mxu0
        %v2437 = vadd.f32 %v2120, %v2436
        %2438 = vmatprep.mubr.bf16.mxu0 0
        %2439 = vmatmul.mubr.bf16.gmra.mrb[0].mxu0 %v2078
        %v2440 = vpop.f32.mrb[0].mxu0
        %v2441 = vadd.f32 %v2116, %v2440
        %v2442 = vpop.f32.mrb[0].mxu0
        %v2443 = vadd.f32 %v2120, %v2442
        %v2444 = vpop.f32.mrb[0].mxu0
        %v2445 = vadd.f32 %v2116, %v2444
        %v2446 = vpop.f32.mrb[0].mxu0
        %v2447 = vadd.f32 %v2120, %v2446
        %2448 = vdwg.mxu0
        %2449 = vmatprep.subr.bf16.mxu0 0
        %2450 = vmatpush1.bf16.msra.mxu0 %v2210
        %2451 = vmatprep.subr.bf16.mxu0 0
        %2452 = vmatpush1.bf16.msra.mxu0 %v2213
        %2453 = vmatprep.subr.bf16.mxu0 0
        %2454 = vmatpush1.bf16.msra.mxu0 %v2216
        %2455 = vmatprep.subr.bf16.mxu0 0
        %2456 = vmatpush1.bf16.msra.mxu0 %v2219
        %2457 = vmatprep.subr.bf16.mxu0 0
        %2458 = vmatpush1.bf16.msra.mxu0 %v2222
        %2459 = vmatprep.subr.bf16.mxu0 0
        %2460 = vmatpush1.bf16.msra.mxu0 %v2225
        %2461 = vmatprep.subr.bf16.mxu0 0
        %2462 = vmatpush1.bf16.msra.mxu0 %v2228
        %2463 = vmatprep.subr.bf16.mxu0 0
        %2464 = vmatpush1.bf16.msra.mxu0 %v2231
        %2465 = vmatprep.subr.bf16.mxu0 0
        %2466 = vmatpush1.bf16.msra.mxu0 0
        %2467 = vmatprep.subr.bf16.mxu0 0
        %2468 = vmatpush1.bf16.msra.mxu0 0
        %2469 = vmatprep.subr.bf16.mxu0 0
        %2470 = vmatpush1.bf16.msra.mxu0 0
        %2471 = vmatprep.subr.bf16.mxu0 0
        %2472 = vmatpush1.bf16.msra.mxu0 0
        %2473 = vmatprep.subr.bf16.mxu0 0
        %2474 = vmatpush1.bf16.msra.mxu0 0
        %2475 = vmatprep.subr.bf16.mxu0 0
        %2476 = vmatpush1.bf16.msra.mxu0 0
        %2477 = vmatprep.subr.bf16.mxu0 0
        %2478 = vmatpush1.bf16.msra.mxu0 0
        %2479 = vmatprep.subr.bf16.mxu0 0
        %2480 = vmatpush1.bf16.msra.mxu0 0
        %2481 = vmatprep.mubr.bf16.mxu0 0
        %2482 = vmatmul.mubr.bf16.gmra.mrb[0].mxu0 %v2063
        %v2483 = vpop.f32.mrb[0].mxu0
        %v2484 = vadd.f32 %v2124, %v2483
        %v2485 = vpop.f32.mrb[0].mxu0
        %v2486 = vpop.f32.mrb[0].mxu0
        %v2487 = vadd.f32 %v2124, %v2486
        %v2488 = vpop.f32.mrb[0].mxu0
        %2489 = vmatprep.mubr.bf16.mxu0 0
        %2490 = vmatmul.mubr.bf16.gmra.mrb[0].mxu0 %v2064
        %v2491 = vpop.f32.mrb[0].mxu0
        %v2492 = vadd.f32 %v2124, %v2491
        %v2493 = vpop.f32.mrb[0].mxu0
        %v2494 = vpop.f32.mrb[0].mxu0
        %v2495 = vadd.f32 %v2124, %v2494
        %v2496 = vpop.f32.mrb[0].mxu0
        %2497 = vmatprep.mubr.bf16.mxu0 0
        %2498 = vmatmul.mubr.bf16.gmra.mrb[0].mxu0 %v2065
        %v2499 = vpop.f32.mrb[0].mxu0
        %v2500 = vadd.f32 %v2124, %v2499
        %v2501 = vpop.f32.mrb[0].mxu0
        %v2502 = vpop.f32.mrb[0].mxu0
        %v2503 = vadd.f32 %v2124, %v2502
        %v2504 = vpop.f32.mrb[0].mxu0
        %2505 = vmatprep.mubr.bf16.mxu0 0
        %2506 = vmatmul.mubr.bf16.gmra.mrb[0].mxu0 %v2066
        %v2507 = vpop.f32.mrb[0].mxu0
        %v2508 = vadd.f32 %v2124, %v2507
        %v2509 = vpop.f32.mrb[0].mxu0
        %v2510 = vpop.f32.mrb[0].mxu0
        %v2511 = vadd.f32 %v2124, %v2510
        %v2512 = vpop.f32.mrb[0].mxu0
        %2513 = vmatprep.mubr.bf16.mxu0 0
        %2514 = vmatmul.mubr.bf16.gmra.mrb[0].mxu0 %v2067
        %v2515 = vpop.f32.mrb[0].mxu0
        %v2516 = vadd.f32 %v2124, %v2515
        %v2517 = vpop.f32.mrb[0].mxu0
        %v2518 = vpop.f32.mrb[0].mxu0
        %v2519 = vadd.f32 %v2124, %v2518
        %v2520 = vpop.f32.mrb[0].mxu0
        %2521 = vmatprep.mubr.bf16.mxu0 0
        %2522 = vmatmul.mubr.bf16.gmra.mrb[0].mxu0 %v2068
        %v2523 = vpop.f32.mrb[0].mxu0
        %v2524 = vadd.f32 %v2124, %v2523
        %v2525 = vpop.f32.mrb[0].mxu0
        %v2526 = vpop.f32.mrb[0].mxu0
        %v2527 = vadd.f32 %v2124, %v2526
        %v2528 = vpop.f32.mrb[0].mxu0
        %2529 = vmatprep.mubr.bf16.mxu0 0
        %2530 = vmatmul.mubr.bf16.gmra.mrb[0].mxu0 %v2069
        %v2531 = vpop.f32.mrb[0].mxu0
        %v2532 = vadd.f32 %v2124, %v2531
        %v2533 = vpop.f32.mrb[0].mxu0
        %v2534 = vpop.f32.mrb[0].mxu0
        %v2535 = vadd.f32 %v2124, %v2534
        %v2536 = vpop.f32.mrb[0].mxu0
        %2537 = vmatprep.mubr.bf16.mxu0 0
        %2538 = vmatmul.mubr.bf16.gmra.mrb[0].mxu0 %v2070
        %v2539 = vpop.f32.mrb[0].mxu0
        %v2540 = vadd.f32 %v2124, %v2539
        %v2541 = vpop.f32.mrb[0].mxu0
        %v2542 = vpop.f32.mrb[0].mxu0
        %v2543 = vadd.f32 %v2124, %v2542
        %v2544 = vpop.f32.mrb[0].mxu0
        %2545 = vmatprep.mubr.bf16.mxu0 0
        %2546 = vmatmul.mubr.bf16.gmra.mrb[0].mxu0 %v2071
        %v2547 = vpop.f32.mrb[0].mxu0
        %v2548 = vadd.f32 %v2124, %v2547
        %v2549 = vpop.f32.mrb[0].mxu0
        %v2550 = vpop.f32.mrb[0].mxu0
        %v2551 = vadd.f32 %v2124, %v2550
        %v2552 = vpop.f32.mrb[0].mxu0
        %2553 = vmatprep.mubr.bf16.mxu0 0
        %2554 = vmatmul.mubr.bf16.gmra.mrb[0].mxu0 %v2072
        %v2555 = vpop.f32.mrb[0].mxu0
        %v2556 = vadd.f32 %v2124, %v2555
        %v2557 = vpop.f32.mrb[0].mxu0
        %v2558 = vpop.f32.mrb[0].mxu0
        %v2559 = vadd.f32 %v2124, %v2558
        %v2560 = vpop.f32.mrb[0].mxu0
        %2561 = vmatprep.mubr.bf16.mxu0 0
        %2562 = vmatmul.mubr.bf16.gmra.mrb[0].mxu0 %v2073
        %v2563 = vpop.f32.mrb[0].mxu0
        %v2564 = vadd.f32 %v2124, %v2563
        %v2565 = vpop.f32.mrb[0].mxu0
        %v2566 = vpop.f32.mrb[0].mxu0
        %v2567 = vadd.f32 %v2124, %v2566
        %v2568 = vpop.f32.mrb[0].mxu0
        %2569 = vmatprep.mubr.bf16.mxu0 0
        %2570 = vmatmul.mubr.bf16.gmra.mrb[0].mxu0 %v2074
        %v2571 = vpop.f32.mrb[0].mxu0
        %v2572 = vadd.f32 %v2124, %v2571
        %v2573 = vpop.f32.mrb[0].mxu0
        %v2574 = vpop.f32.mrb[0].mxu0
        %v2575 = vadd.f32 %v2124, %v2574
        %v2576 = vpop.f32.mrb[0].mxu0
        %2577 = vmatprep.mubr.bf16.mxu0 0
        %2578 = vmatmul.mubr.bf16.gmra.mrb[0].mxu0 %v2075
        %v2579 = vpop.f32.mrb[0].mxu0
        %v2580 = vadd.f32 %v2124, %v2579
        %v2581 = vpop.f32.mrb[0].mxu0
        %v2582 = vpop.f32.mrb[0].mxu0
        %v2583 = vadd.f32 %v2124, %v2582
        %v2584 = vpop.f32.mrb[0].mxu0
        %2585 = vmatprep.mubr.bf16.mxu0 0
        %2586 = vmatmul.mubr.bf16.gmra.mrb[0].mxu0 %v2076
        %v2587 = vpop.f32.mrb[0].mxu0
        %v2588 = vadd.f32 %v2124, %v2587
        %v2589 = vpop.f32.mrb[0].mxu0
        %v2590 = vpop.f32.mrb[0].mxu0
        %v2591 = vadd.f32 %v2124, %v2590
        %v2592 = vpop.f32.mrb[0].mxu0
        %2593 = vmatprep.mubr.bf16.mxu0 0
        %2594 = vmatmul.mubr.bf16.gmra.mrb[0].mxu0 %v2077
        %v2595 = vpop.f32.mrb[0].mxu0
        %v2596 = vadd.f32 %v2124, %v2595
        %v2597 = vpop.f32.mrb[0].mxu0
        %v2598 = vpop.f32.mrb[0].mxu0
        %v2599 = vadd.f32 %v2124, %v2598
        %v2600 = vpop.f32.mrb[0].mxu0
        %2601 = vmatprep.mubr.bf16.mxu0 0
        %2602 = vmatmul.mubr.bf16.gmra.mrb[0].mxu0 %v2078
        %v2603 = vpop.f32.mrb[0].mxu0
        %v2604 = vadd.f32 %v2124, %v2603
        %v2605 = vpop.f32.mrb[0].mxu0
        %v2606 = vpop.f32.mrb[0].mxu0
        %v2607 = vadd.f32 %v2124, %v2606
        %v2608 = vpop.f32.mrb[0].mxu0
        %2609 = vdwg.mxu0
        %v2610 = vmax.f32 %v2291, 0.0
        %v2611 = vmax.f32 %v2293, 0.0
        %v2612 = vmax.f32 %v2484, 0.0
        %v2613 = vmax.f32 %v2295, 0.0
        %v2614 = vmax.f32 %v2297, 0.0
        %v2615 = vmax.f32 %v2487, 0.0
        %v2616 = vmax.f32 %v2301, 0.0
        %v2617 = vmax.f32 %v2303, 0.0
        %v2618 = vmax.f32 %v2492, 0.0
        %v2619 = vmax.f32 %v2305, 0.0
        %v2620 = vmax.f32 %v2307, 0.0
        %v2621 = vmax.f32 %v2495, 0.0
        %v2622 = vmax.f32 %v2311, 0.0
        %v2623 = vmax.f32 %v2313, 0.0
        %v2624 = vmax.f32 %v2500, 0.0
        %v2625 = vmax.f32 %v2315, 0.0
        %v2626 = vmax.f32 %v2317, 0.0
        %v2627 = vmax.f32 %v2503, 0.0
        %v2628 = vmax.f32 %v2321, 0.0
        %v2629 = vmax.f32 %v2323, 0.0
        %v2630 = vmax.f32 %v2508, 0.0
        %v2631 = vmax.f32 %v2325, 0.0
        %v2632 = vmax.f32 %v2327, 0.0
        %v2633 = vmax.f32 %v2511, 0.0
        %v2634 = vmax.f32 %v2331, 0.0
        %v2635 = vmax.f32 %v2333, 0.0
        %v2636 = vmax.f32 %v2516, 0.0
        %v2637 = vmax.f32 %v2335, 0.0
        %v2638 = vmax.f32 %v2337, 0.0
        %v2639 = vmax.f32 %v2519, 0.0
        %v2640 = vmax.f32 %v2341, 0.0
        %v2641 = vmax.f32 %v2343, 0.0
        %v2642 = vmax.f32 %v2524, 0.0
        %v2643 = vmax.f32 %v2345, 0.0
        %v2644 = vmax.f32 %v2347, 0.0
        %v2645 = vmax.f32 %v2527, 0.0
        %v2646 = vmax.f32 %v2351, 0.0
        %v2647 = vmax.f32 %v2353, 0.0
        %v2648 = vmax.f32 %v2532, 0.0
        %v2649 = vmax.f32 %v2355, 0.0
        %v2650 = vmax.f32 %v2357, 0.0
        %v2651 = vmax.f32 %v2535, 0.0
        %v2652 = vmax.f32 %v2361, 0.0
        %v2653 = vmax.f32 %v2363, 0.0
        %v2654 = vmax.f32 %v2540, 0.0
        %v2655 = vmax.f32 %v2365, 0.0
        %v2656 = vmax.f32 %v2367, 0.0
        %v2657 = vmax.f32 %v2543, 0.0
        %v2658 = vmax.f32 %v2371, 0.0
        %v2659 = vmax.f32 %v2373, 0.0
        %v2660 = vmax.f32 %v2548, 0.0
        %v2661 = vmax.f32 %v2375, 0.0
        %v2662 = vmax.f32 %v2377, 0.0
        %v2663 = vmax.f32 %v2551, 0.0
        %v2664 = vmax.f32 %v2381, 0.0
        %v2665 = vmax.f32 %v2383, 0.0
        %v2666 = vmax.f32 %v2556, 0.0
        %v2667 = vmax.f32 %v2385, 0.0
        %v2668 = vmax.f32 %v2387, 0.0
        %v2669 = vmax.f32 %v2559, 0.0
        %v2670 = vmax.f32 %v2391, 0.0
        %v2671 = vmax.f32 %v2393, 0.0
        %v2672 = vmax.f32 %v2564, 0.0
        %v2673 = vmax.f32 %v2395, 0.0
        %v2674 = vmax.f32 %v2397, 0.0
        %v2675 = vmax.f32 %v2567, 0.0
        %v2676 = vmax.f32 %v2401, 0.0
        %v2677 = vmax.f32 %v2403, 0.0
        %v2678 = vmax.f32 %v2572, 0.0
        %v2679 = vmax.f32 %v2405, 0.0
        %v2680 = vmax.f32 %v2407, 0.0
        %v2681 = vmax.f32 %v2575, 0.0
        %v2682 = vmax.f32 %v2411, 0.0
        %v2683 = vmax.f32 %v2413, 0.0
        %v2684 = vmax.f32 %v2580, 0.0
        %v2685 = vmax.f32 %v2415, 0.0
        %v2686 = vmax.f32 %v2417, 0.0
        %v2687 = vmax.f32 %v2583, 0.0
        %v2688 = vmax.f32 %v2421, 0.0
        %v2689 = vmax.f32 %v2423, 0.0
        %v2690 = vmax.f32 %v2588, 0.0
        %v2691 = vmax.f32 %v2425, 0.0
        %v2692 = vmax.f32 %v2427, 0.0
        %v2693 = vmax.f32 %v2591, 0.0
        %v2694 = vmax.f32 %v2431, 0.0
        %v2695 = vmax.f32 %v2433, 0.0
        %v2696 = vmax.f32 %v2596, 0.0
        %v2697 = vmax.f32 %v2435, 0.0
        %v2698 = vmax.f32 %v2437, 0.0
        %v2699 = vmax.f32 %v2599, 0.0
        %v2700 = vmax.f32 %v2441, 0.0
        %v2701 = vmax.f32 %v2443, 0.0
        %v2702 = vmax.f32 %v2604, 0.0
        %v2703 = vmax.f32 %v2445, 0.0
        %v2704 = vmax.f32 %v2447, 0.0
        %v2705 = vmax.f32 %v2607, 0.0
        %v2706 = vmax.f32 %v2610, %v2613
        %v2707 = vrot.slane %v2706, 4
        %v2708 = vmax.f32 %v2706, %v2707
        %v2709 = vrot.slane %v2708, 2
        %v2710 = vmax.f32 %v2708, %v2709
        %v2711 = vrot.slane %v2710, 1
        %v2712 = vmax.f32 %v2710, %v2711
        %v2713 = vmax.f32 %v2611, %v2614
        %v2714 = vrot.slane %v2713, 4
        %v2715 = vmax.f32 %v2713, %v2714
        %v2716 = vrot.slane %v2715, 2
        %v2717 = vmax.f32 %v2715, %v2716
        %v2718 = vrot.slane %v2717, 1
        %v2719 = vmax.f32 %v2717, %v2718
        %v2720 = vmax.f32 %v2612, %v2615
        %v2721 = vrot.slane %v2720, 4
        %v2722 = vmax.f32 %v2720, %v2721
        %v2723 = vrot.slane %v2722, 2
        %v2724 = vmax.f32 %v2722, %v2723
        %v2725 = vrot.slane %v2724, 1
        %v2726 = vmax.f32 %v2724, %v2725
        %v2727 = vmax.f32 %v2616, %v2619
        %v2728 = vrot.slane %v2727, 4
        %v2729 = vmax.f32 %v2727, %v2728
        %v2730 = vrot.slane %v2729, 2
        %v2731 = vmax.f32 %v2729, %v2730
        %v2732 = vrot.slane %v2731, 1
        %v2733 = vmax.f32 %v2731, %v2732
        %v2734 = vmax.f32 %v2617, %v2620
        %v2735 = vrot.slane %v2734, 4
        %v2736 = vmax.f32 %v2734, %v2735
        %v2737 = vrot.slane %v2736, 2
        %v2738 = vmax.f32 %v2736, %v2737
        %v2739 = vrot.slane %v2738, 1
        %v2740 = vmax.f32 %v2738, %v2739
        %v2741 = vmax.f32 %v2618, %v2621
        %v2742 = vrot.slane %v2741, 4
        %v2743 = vmax.f32 %v2741, %v2742
        %v2744 = vrot.slane %v2743, 2
        %v2745 = vmax.f32 %v2743, %v2744
        %v2746 = vrot.slane %v2745, 1
        %v2747 = vmax.f32 %v2745, %v2746
        %v2748 = vmax.f32 %v2622, %v2625
        %v2749 = vrot.slane %v2748, 4
        %v2750 = vmax.f32 %v2748, %v2749
        %v2751 = vrot.slane %v2750, 2
        %v2752 = vmax.f32 %v2750, %v2751
        %v2753 = vrot.slane %v2752, 1
        %v2754 = vmax.f32 %v2752, %v2753
        %v2755 = vmax.f32 %v2623, %v2626
        %v2756 = vrot.slane %v2755, 4
        %v2757 = vmax.f32 %v2755, %v2756
        %v2758 = vrot.slane %v2757, 2
        %v2759 = vmax.f32 %v2757, %v2758
        %v2760 = vrot.slane %v2759, 1
        %v2761 = vmax.f32 %v2759, %v2760
        %v2762 = vmax.f32 %v2624, %v2627
        %v2763 = vrot.slane %v2762, 4
        %v2764 = vmax.f32 %v2762, %v2763
        %v2765 = vrot.slane %v2764, 2
        %v2766 = vmax.f32 %v2764, %v2765
        %v2767 = vrot.slane %v2766, 1
        %v2768 = vmax.f32 %v2766, %v2767
        %v2769 = vmax.f32 %v2628, %v2631
        %v2770 = vrot.slane %v2769, 4
        %v2771 = vmax.f32 %v2769, %v2770
        %v2772 = vrot.slane %v2771, 2
        %v2773 = vmax.f32 %v2771, %v2772
        %v2774 = vrot.slane %v2773, 1
        %v2775 = vmax.f32 %v2773, %v2774
        %v2776 = vmax.f32 %v2629, %v2632
        %v2777 = vrot.slane %v2776, 4
        %v2778 = vmax.f32 %v2776, %v2777
        %v2779 = vrot.slane %v2778, 2
        %v2780 = vmax.f32 %v2778, %v2779
        %v2781 = vrot.slane %v2780, 1
        %v2782 = vmax.f32 %v2780, %v2781
        %v2783 = vmax.f32 %v2630, %v2633
        %v2784 = vrot.slane %v2783, 4
        %v2785 = vmax.f32 %v2783, %v2784
        %v2786 = vrot.slane %v2785, 2
        %v2787 = vmax.f32 %v2785, %v2786
        %v2788 = vrot.slane %v2787, 1
        %v2789 = vmax.f32 %v2787, %v2788
        %v2790 = vmax.f32 %v2634, %v2637
        %v2791 = vrot.slane %v2790, 4
        %v2792 = vmax.f32 %v2790, %v2791
        %v2793 = vrot.slane %v2792, 2
        %v2794 = vmax.f32 %v2792, %v2793
        %v2795 = vrot.slane %v2794, 1
        %v2796 = vmax.f32 %v2794, %v2795
        %v2797 = vmax.f32 %v2635, %v2638
        %v2798 = vrot.slane %v2797, 4
        %v2799 = vmax.f32 %v2797, %v2798
        %v2800 = vrot.slane %v2799, 2
        %v2801 = vmax.f32 %v2799, %v2800
        %v2802 = vrot.slane %v2801, 1
        %v2803 = vmax.f32 %v2801, %v2802
        %v2804 = vmax.f32 %v2636, %v2639
        %v2805 = vrot.slane %v2804, 4
        %v2806 = vmax.f32 %v2804, %v2805
        %v2807 = vrot.slane %v2806, 2
        %v2808 = vmax.f32 %v2806, %v2807
        %v2809 = vrot.slane %v2808, 1
        %v2810 = vmax.f32 %v2808, %v2809
        %v2811 = vmax.f32 %v2640, %v2643
        %v2812 = vrot.slane %v2811, 4
        %v2813 = vmax.f32 %v2811, %v2812
        %v2814 = vrot.slane %v2813, 2
        %v2815 = vmax.f32 %v2813, %v2814
        %v2816 = vrot.slane %v2815, 1
        %v2817 = vmax.f32 %v2815, %v2816
        %v2818 = vmax.f32 %v2641, %v2644
        %v2819 = vrot.slane %v2818, 4
        %v2820 = vmax.f32 %v2818, %v2819
        %v2821 = vrot.slane %v2820, 2
        %v2822 = vmax.f32 %v2820, %v2821
        %v2823 = vrot.slane %v2822, 1
        %v2824 = vmax.f32 %v2822, %v2823
        %v2825 = vmax.f32 %v2642, %v2645
        %v2826 = vrot.slane %v2825, 4
        %v2827 = vmax.f32 %v2825, %v2826
        %v2828 = vrot.slane %v2827, 2
        %v2829 = vmax.f32 %v2827, %v2828
        %v2830 = vrot.slane %v2829, 1
        %v2831 = vmax.f32 %v2829, %v2830
        %v2832 = vmax.f32 %v2646, %v2649
        %v2833 = vrot.slane %v2832, 4
        %v2834 = vmax.f32 %v2832, %v2833
        %v2835 = vrot.slane %v2834, 2
        %v2836 = vmax.f32 %v2834, %v2835
        %v2837 = vrot.slane %v2836, 1
        %v2838 = vmax.f32 %v2836, %v2837
        %v2839 = vmax.f32 %v2647, %v2650
        %v2840 = vrot.slane %v2839, 4
        %v2841 = vmax.f32 %v2839, %v2840
        %v2842 = vrot.slane %v2841, 2
        %v2843 = vmax.f32 %v2841, %v2842
        %v2844 = vrot.slane %v2843, 1
        %v2845 = vmax.f32 %v2843, %v2844
        %v2846 = vmax.f32 %v2648, %v2651
        %v2847 = vrot.slane %v2846, 4
        %v2848 = vmax.f32 %v2846, %v2847
        %v2849 = vrot.slane %v2848, 2
        %v2850 = vmax.f32 %v2848, %v2849
        %v2851 = vrot.slane %v2850, 1
        %v2852 = vmax.f32 %v2850, %v2851
        %v2853 = vmax.f32 %v2652, %v2655
        %v2854 = vrot.slane %v2853, 4
        %v2855 = vmax.f32 %v2853, %v2854
        %v2856 = vrot.slane %v2855, 2
        %v2857 = vmax.f32 %v2855, %v2856
        %v2858 = vrot.slane %v2857, 1
        %v2859 = vmax.f32 %v2857, %v2858
        %v2860 = vmax.f32 %v2653, %v2656
        %v2861 = vrot.slane %v2860, 4
        %v2862 = vmax.f32 %v2860, %v2861
        %v2863 = vrot.slane %v2862, 2
        %v2864 = vmax.f32 %v2862, %v2863
        %v2865 = vrot.slane %v2864, 1
        %v2866 = vmax.f32 %v2864, %v2865
        %v2867 = vmax.f32 %v2654, %v2657
        %v2868 = vrot.slane %v2867, 4
        %v2869 = vmax.f32 %v2867, %v2868
        %v2870 = vrot.slane %v2869, 2
        %v2871 = vmax.f32 %v2869, %v2870
        %v2872 = vrot.slane %v2871, 1
        %v2873 = vmax.f32 %v2871, %v2872
        %v2874 = vmax.f32 %v2658, %v2661
        %v2875 = vrot.slane %v2874, 4
        %v2876 = vmax.f32 %v2874, %v2875
        %v2877 = vrot.slane %v2876, 2
        %v2878 = vmax.f32 %v2876, %v2877
        %v2879 = vrot.slane %v2878, 1
        %v2880 = vmax.f32 %v2878, %v2879
        %v2881 = vmax.f32 %v2659, %v2662
        %v2882 = vrot.slane %v2881, 4
        %v2883 = vmax.f32 %v2881, %v2882
        %v2884 = vrot.slane %v2883, 2
        %v2885 = vmax.f32 %v2883, %v2884
        %v2886 = vrot.slane %v2885, 1
        %v2887 = vmax.f32 %v2885, %v2886
        %v2888 = vmax.f32 %v2660, %v2663
        %v2889 = vrot.slane %v2888, 4
        %v2890 = vmax.f32 %v2888, %v2889
        %v2891 = vrot.slane %v2890, 2
        %v2892 = vmax.f32 %v2890, %v2891
        %v2893 = vrot.slane %v2892, 1
        %v2894 = vmax.f32 %v2892, %v2893
        %v2895 = vmax.f32 %v2664, %v2667
        %v2896 = vrot.slane %v2895, 4
        %v2897 = vmax.f32 %v2895, %v2896
        %v2898 = vrot.slane %v2897, 2
        %v2899 = vmax.f32 %v2897, %v2898
        %v2900 = vrot.slane %v2899, 1
        %v2901 = vmax.f32 %v2899, %v2900
        %v2902 = vmax.f32 %v2665, %v2668
        %v2903 = vrot.slane %v2902, 4
        %v2904 = vmax.f32 %v2902, %v2903
        %v2905 = vrot.slane %v2904, 2
        %v2906 = vmax.f32 %v2904, %v2905
        %v2907 = vrot.slane %v2906, 1
        %v2908 = vmax.f32 %v2906, %v2907
        %v2909 = vmax.f32 %v2666, %v2669
        %v2910 = vrot.slane %v2909, 4
        %v2911 = vmax.f32 %v2909, %v2910
        %v2912 = vrot.slane %v2911, 2
        %v2913 = vmax.f32 %v2911, %v2912
        %v2914 = vrot.slane %v2913, 1
        %v2915 = vmax.f32 %v2913, %v2914
        %v2916 = vmax.f32 %v2670, %v2673
        %v2917 = vrot.slane %v2916, 4
        %v2918 = vmax.f32 %v2916, %v2917
        %v2919 = vrot.slane %v2918, 2
        %v2920 = vmax.f32 %v2918, %v2919
        %v2921 = vrot.slane %v2920, 1
        %v2922 = vmax.f32 %v2920, %v2921
        %v2923 = vmax.f32 %v2671, %v2674
        %v2924 = vrot.slane %v2923, 4
        %v2925 = vmax.f32 %v2923, %v2924
        %v2926 = vrot.slane %v2925, 2
        %v2927 = vmax.f32 %v2925, %v2926
        %v2928 = vrot.slane %v2927, 1
        %v2929 = vmax.f32 %v2927, %v2928
        %v2930 = vmax.f32 %v2672, %v2675
        %v2931 = vrot.slane %v2930, 4
        %v2932 = vmax.f32 %v2930, %v2931
        %v2933 = vrot.slane %v2932, 2
        %v2934 = vmax.f32 %v2932, %v2933
        %v2935 = vrot.slane %v2934, 1
        %v2936 = vmax.f32 %v2934, %v2935
        %v2937 = vmax.f32 %v2676, %v2679
        %v2938 = vrot.slane %v2937, 4
        %v2939 = vmax.f32 %v2937, %v2938
        %v2940 = vrot.slane %v2939, 2
        %v2941 = vmax.f32 %v2939, %v2940
        %v2942 = vrot.slane %v2941, 1
        %v2943 = vmax.f32 %v2941, %v2942
        %v2944 = vmax.f32 %v2677, %v2680
        %v2945 = vrot.slane %v2944, 4
        %v2946 = vmax.f32 %v2944, %v2945
        %v2947 = vrot.slane %v2946, 2
        %v2948 = vmax.f32 %v2946, %v2947
        %v2949 = vrot.slane %v2948, 1
        %v2950 = vmax.f32 %v2948, %v2949
        %v2951 = vmax.f32 %v2678, %v2681
        %v2952 = vrot.slane %v2951, 4
        %v2953 = vmax.f32 %v2951, %v2952
        %v2954 = vrot.slane %v2953, 2
        %v2955 = vmax.f32 %v2953, %v2954
        %v2956 = vrot.slane %v2955, 1
        %v2957 = vmax.f32 %v2955, %v2956
        %v2958 = vmax.f32 %v2682, %v2685
        %v2959 = vrot.slane %v2958, 4
        %v2960 = vmax.f32 %v2958, %v2959
        %v2961 = vrot.slane %v2960, 2
        %v2962 = vmax.f32 %v2960, %v2961
        %v2963 = vrot.slane %v2962, 1
        %v2964 = vmax.f32 %v2962, %v2963
        %v2965 = vmax.f32 %v2683, %v2686
        %v2966 = vrot.slane %v2965, 4
        %v2967 = vmax.f32 %v2965, %v2966
        %v2968 = vrot.slane %v2967, 2
        %v2969 = vmax.f32 %v2967, %v2968
        %v2970 = vrot.slane %v2969, 1
        %v2971 = vmax.f32 %v2969, %v2970
        %v2972 = vmax.f32 %v2684, %v2687
        %v2973 = vrot.slane %v2972, 4
        %v2974 = vmax.f32 %v2972, %v2973
        %v2975 = vrot.slane %v2974, 2
        %v2976 = vmax.f32 %v2974, %v2975
        %v2977 = vrot.slane %v2976, 1
        %v2978 = vmax.f32 %v2976, %v2977
        %v2979 = vmax.f32 %v2688, %v2691
        %v2980 = vrot.slane %v2979, 4
        %v2981 = vmax.f32 %v2979, %v2980
        %v2982 = vrot.slane %v2981, 2
        %v2983 = vmax.f32 %v2981, %v2982
        %v2984 = vrot.slane %v2983, 1
        %v2985 = vmax.f32 %v2983, %v2984
        %v2986 = vmax.f32 %v2689, %v2692
        %v2987 = vrot.slane %v2986, 4
        %v2988 = vmax.f32 %v2986, %v2987
        %v2989 = vrot.slane %v2988, 2
        %v2990 = vmax.f32 %v2988, %v2989
        %v2991 = vrot.slane %v2990, 1
        %v2992 = vmax.f32 %v2990, %v2991
        %v2993 = vmax.f32 %v2690, %v2693
        %v2994 = vrot.slane %v2993, 4
        %v2995 = vmax.f32 %v2993, %v2994
        %v2996 = vrot.slane %v2995, 2
        %v2997 = vmax.f32 %v2995, %v2996
        %v2998 = vrot.slane %v2997, 1
        %v2999 = vmax.f32 %v2997, %v2998
        %v3000 = vmax.f32 %v2694, %v2697
        %v3001 = vrot.slane %v3000, 4
        %v3002 = vmax.f32 %v3000, %v3001
        %v3003 = vrot.slane %v3002, 2
        %v3004 = vmax.f32 %v3002, %v3003
        %v3005 = vrot.slane %v3004, 1
        %v3006 = vmax.f32 %v3004, %v3005
        %v3007 = vmax.f32 %v2695, %v2698
        %v3008 = vrot.slane %v3007, 4
        %v3009 = vmax.f32 %v3007, %v3008
        %v3010 = vrot.slane %v3009, 2
        %v3011 = vmax.f32 %v3009, %v3010
        %v3012 = vrot.slane %v3011, 1
        %v3013 = vmax.f32 %v3011, %v3012
        %v3014 = vmax.f32 %v2696, %v2699
        %v3015 = vrot.slane %v3014, 4
        %v3016 = vmax.f32 %v3014, %v3015
        %v3017 = vrot.slane %v3016, 2
        %v3018 = vmax.f32 %v3016, %v3017
        %v3019 = vrot.slane %v3018, 1
        %v3020 = vmax.f32 %v3018, %v3019
        %v3021 = vmax.f32 %v2700, %v2703
        %v3022 = vrot.slane %v3021, 4
        %v3023 = vmax.f32 %v3021, %v3022
        %v3024 = vrot.slane %v3023, 2
        %v3025 = vmax.f32 %v3023, %v3024
        %v3026 = vrot.slane %v3025, 1
        %v3027 = vmax.f32 %v3025, %v3026
        %v3028 = vmax.f32 %v2701, %v2704
        %v3029 = vrot.slane %v3028, 4
        %v3030 = vmax.f32 %v3028, %v3029
        %v3031 = vrot.slane %v3030, 2
        %v3032 = vmax.f32 %v3030, %v3031
        %v3033 = vrot.slane %v3032, 1
        %v3034 = vmax.f32 %v3032, %v3033
        %v3035 = vmax.f32 %v2702, %v2705
        %v3036 = vrot.slane %v3035, 4
        %v3037 = vmax.f32 %v3035, %v3036
        %v3038 = vrot.slane %v3037, 2
        %v3039 = vmax.f32 %v3037, %v3038
        %v3040 = vrot.slane %v3039, 1
        %v3041 = vmax.f32 %v3039, %v3040
        %p3042 = scmp.eq.s32.totalorder %s28, 0
        // Predicated region
        $region136: #{pointnet2_dense_encoder.3} parent=126 // pred_check
          %p3043 = pneg %p3042
        $region137: #{pointnet2_dense_encoder.3} parent=126 // pred_check_branch
          %3045 = sbr.rel (%p3043) target = $region139
        $region138: #{pointnet2_dense_encoder.3} parent=126 // pred_region
          %3046 = vst [vmem:[%s697] sm:$0xff] -inf
          %3047 = vst [vmem:[%s697 + $0x8] sm:$0xff] -inf
          %3048 = vst [vmem:[%s697 + $0x10] sm:$0xff] -inf
          %3049 = vst [vmem:[%s697 + $0x18] sm:$0xff] -inf
          %3050 = vst [vmem:[%s697 + $0x20] sm:$0xff] -inf
          %3051 = vst [vmem:[%s697 + $0x28] sm:$0xff] -inf
        $region139: #{pointnet2_dense_encoder.3} parent=126 // pred_fallthru
          _
        %v3052 = vld [vmem:[%s697] sm:$0xff]
        %v3053 = vld [vmem:[%s697 + $0x8] sm:$0xff]
        %v3054 = vld [vmem:[%s697 + $0x10] sm:$0xff]
        %v3055 = vld [vmem:[%s697 + $0x18] sm:$0xff]
        %v3056 = vld [vmem:[%s697 + $0x20] sm:$0xff]
        %v3057 = vld [vmem:[%s697 + $0x28] sm:$0xff]
        %vm3106 = vcmask 1041409
        %v3107 = vsel %vm3106, %v2733, %v2712
        %vm3108 = vcmask 1042434
        %v3109 = vsel %vm3108, %v2754, %v3107
        %vm3110 = vcmask 1043459
        %v3111 = vsel %vm3110, %v2775, %v3109
        %vm3112 = vcmask 1044484
        %v3113 = vsel %vm3112, %v2796, %v3111
        %vm3114 = vcmask 1045509
        %v3115 = vsel %vm3114, %v2817, %v3113
        %vm3116 = vcmask 1046534
        %v3117 = vsel %vm3116, %v2838, %v3115
        %vm3118 = vcmask 1047559
        %v3119 = vsel %vm3118, %v2859, %v3117
        %v3120 = vsel %vm3106, %v2740, %v2719
        %v3121 = vsel %vm3108, %v2761, %v3120
        %v3122 = vsel %vm3110, %v2782, %v3121
        %v3123 = vsel %vm3112, %v2803, %v3122
        %v3124 = vsel %vm3114, %v2824, %v3123
        %v3125 = vsel %vm3116, %v2845, %v3124
        %v3126 = vsel %vm3118, %v2866, %v3125
        %v3127 = vsel %vm3106, %v2747, %v2726
        %v3128 = vsel %vm3108, %v2768, %v3127
        %v3129 = vsel %vm3110, %v2789, %v3128
        %v3130 = vsel %vm3112, %v2810, %v3129
        %v3131 = vsel %vm3114, %v2831, %v3130
        %v3132 = vsel %vm3116, %v2852, %v3131
        %v3133 = vsel %vm3118, %v2873, %v3132
        %v3134 = vsel %vm3106, %v2901, %v2880
        %v3135 = vsel %vm3108, %v2922, %v3134
        %v3136 = vsel %vm3110, %v2943, %v3135
        %v3137 = vsel %vm3112, %v2964, %v3136
        %v3138 = vsel %vm3114, %v2985, %v3137
        %v3139 = vsel %vm3116, %v3006, %v3138
        %v3140 = vsel %vm3118, %v3027, %v3139
        %v3141 = vsel %vm3106, %v2908, %v2887
        %v3142 = vsel %vm3108, %v2929, %v3141
        %v3143 = vsel %vm3110, %v2950, %v3142
        %v3144 = vsel %vm3112, %v2971, %v3143
        %v3145 = vsel %vm3114, %v2992, %v3144
        %v3146 = vsel %vm3116, %v3013, %v3145
        %v3147 = vsel %vm3118, %v3034, %v3146
        %v3148 = vsel %vm3106, %v2915, %v2894
        %v3149 = vsel %vm3108, %v2936, %v3148
        %v3150 = vsel %vm3110, %v2957, %v3149
        %v3151 = vsel %vm3112, %v2978, %v3150
        %v3152 = vsel %vm3114, %v2999, %v3151
        %v3153 = vsel %vm3116, %v3020, %v3152
        %v3154 = vsel %vm3118, %v3041, %v3153
        %v3161 = vmax.f32 %v3052, %v3119
        %v3162 = vmax.f32 %v3053, %v3126
        %v3163 = vmax.f32 %v3054, %v3133
        %v3164 = vmax.f32 %v3055, %v3140
        %v3165 = vmax.f32 %v3056, %v3147
        %v3166 = vmax.f32 %v3057, %v3154
        %3167 = vst [vmem:[%s697] sm:$0xff] %v3161
        %3168 = vst [vmem:[%s697 + $0x8] sm:$0xff] %v3162
        %3169 = vst [vmem:[%s697 + $0x10] sm:$0xff] %v3163
        %3170 = vst [vmem:[%s697 + $0x18] sm:$0xff] %v3164
        %3171 = vst [vmem:[%s697 + $0x20] sm:$0xff] %v3165
        %3172 = vst [vmem:[%s697 + $0x28] sm:$0xff] %v3166
        %s3173 = sand.u32 %s246, 1
        %s3174 = scalar_lea.sflag [#allocation5], %s3173
        %s3175 = sand.u32 %s246, 1
        %s3176 = smul.addr %s3175, 48
        %s3177 = scalar_lea.vmem [#allocation4], %s3176
        // Predicated region
        $region140: #{pointnet2_dense_encoder.3} parent=126 // pred_check
          %p3178 = pneg %p256
        $region141: #{pointnet2_dense_encoder.3} parent=126 // pred_check_branch
          %3180 = sbr.rel (%p3178) target = $region143
        $region142: #{pointnet2_dense_encoder.3} parent=126 // pred_region
          %s3181 = smul.u32 2, %s27
          %s3183 = ssub.s32 768, 768
          %3184 = vsyncadd %s3174, %s3183
          %s3185 = smul.addr %s3181, 3
          %s3186 = smul.addr %s3185, 128
          %s3187 = scalar_lea.hbm %s9, %s3186
          %s3188 = sshll.u32 %s3177, 4
          %s3189 = int_to_ptr.vmem [resolvable:$true] %s3188
          %3194 = dma.vmem_to_hbm [thread:$0]  %s3189, 768, %s3187, %s3174, 384, 384, 24
        $region143: #{pointnet2_dense_encoder.3} parent=126 // pred_fallthru
          _
      $region127: #{pointnet2_dense_encoder.3} parent=5 // pred_fallthru
        _
      %p3195 = scmp.le.s32.totalorder 2, %s18
      // Predicated region
      $region144: #{pointnet2_dense_encoder.3} parent=5 // pred_check
        %p3196 = pneg %p3195
      $region145: #{pointnet2_dense_encoder.3} parent=5 // pred_check_branch
        %3198 = sbr.rel (%p3196) target = $region147
      $region146: #{pointnet2_dense_encoder.3} parent=5 // pred_region
        %s3199 = ssub.s32 %s18, 2
        // Predicated region
        $region148: #{pointnet2_dense_encoder.3} parent=146 // pred_check
          %p3200 = pneg %p262
        $region149: #{pointnet2_dense_encoder.3} parent=146 // pred_check_branch
          %3202 = sbr.rel (%p3200) target = $region151
        $region150: #{pointnet2_dense_encoder.3} parent=146 // pred_region
          %s3203 = sand.u32 %s247, 1
          %s3204 = scalar_lea.sflag [#allocation5], %s3203
          %s3205 = sand.u32 %s247, 1
          %s3206 = smul.addr %s3205, 48
          %s3207 = scalar_lea.vmem [#allocation4], %s3206
          %3208 = dma.done %s3204, 768
        $region151: #{pointnet2_dense_encoder.3} parent=146 // pred_fallthru
          _
      $region147: #{pointnet2_dense_encoder.3} parent=5 // pred_fallthru
        _
    $region6: #{pointnet2_dense_encoder.3} parent=1 // loop_footer
      %s22 = sadd.s32 1, %s18
    $region7: #{pointnet2_dense_encoder.3} parent=1 // loop_footer_branch
      %17 = sbr.rel target = $region3
    $region8: #{pointnet2_dense_encoder.3} parent=1 // loop_exit
      _
    %3209 = vsyncpa [#allocation5], 1
    %s3210 = scalar_lea.sflag [#allocation5], 1
    %3211 = vsyncpa %s3210, 1

</llo_original>
